<compile_context>
chip_gen: v7x
topology: tpu7x:2x2x1
jax: 0.10.0
libtpu: 0.0.40
codegen_flags: <defaults>
</compile_context>

<pallas_src>
import functools

import jax
import jax.numpy as jnp
import numpy as np
from jax.experimental import pallas as pl
from jax.experimental.pallas import tpu as pltpu

LANES = 128


# ------------------------------ fused kernel --------------------------------

def _resblock_kernel(*refs, has_projection):
    if has_projection:
        x_ref, w1_ref, w2_ref, ws_ref, bn_ref, o_ref, mid_ref = refs
    else:
        x_ref, w1_ref, w2_ref, bn_ref, o_ref, mid_ref = refs
        ws_ref = None

    # x_ref:   (B, H+2, Wx, Cp)       bf16  channel- and spatially-padded input
    # w1_ref:  (3, 3*Cp,  Cop)        bf16  conv1 weights, [dy][dx-major, cin-minor]
    # w2_ref:  (3, 3*Cop, Cop)        bf16  conv2 weights
    # ws_ref:  (Cp, Cop)              bf16  1x1 projection weights (projection only)
    # bn_ref:  (6, Cop)               f32   rows: s1, b1, s2, b2, s_skip, b_skip
    # o_ref:   (B, H, W, Cop)         bf16  lane-dense output block
    # mid_ref: (B, H+2, out_w1, Cop)  bf16  VMEM scratch: conv1 act + zero halo
    B, Hp2, _, Cp = x_ref.shape
    H = Hp2 - 2
    _, _, W, Cop = o_ref.shape
    out_w1 = mid_ref.shape[2]                      # conv1 computed width (multiple of 8)

    bn = bn_ref[...]                               # (6, Cop) f32, loaded once

    def conv3x3_bn(slab, w_ref, scale, bias, out_w):
        # slab: (B, H+2, >=out_w+2, C) bf16 value.  Returns (B*H*out_w, Cop) f32
        # = 3x3 conv + folded BN, as 3 accumulating MXU dots (K = 3*C per dot).
        C = slab.shape[-1]
        M = B * H * out_w
        acc = None
        for dy in range(3):
            row = jnp.concatenate(
                [slab[:, dy:dy + H, dx:dx + out_w, :] for dx in range(3)],
                axis=-1).reshape(M, 3 * C)         # (M, 3*C) bf16 transient
            part = jnp.dot(row, w_ref[dy], preferred_element_type=jnp.float32)
            acc = part if acc is None else acc + part
        return acc * scale + bias

    x_slab = x_ref[...]                            # (B, H+2, Wx, Cp) bf16

    # ---- conv1 + bn1 + relu, computed over out_w1 aligned columns; columns outside
    #      the valid range [1, W] are masked to zero (they are conv2's side halo) ----
    y1 = conv3x3_bn(x_slab, w1_ref, bn[0:1], bn[1:2], out_w1)
    y1 = jnp.maximum(y1, 0.0).reshape(B, H, out_w1, Cop)
    col = jax.lax.broadcasted_iota(jnp.int32, (1, 1, out_w1, 1), 2)
    mask = jnp.logical_and(col >= 1, col <= W).astype(jnp.float32)
    y1 = (y1 * mask).astype(jnp.bfloat16)

    zrow = jnp.zeros((B, 1, out_w1, Cop), jnp.bfloat16)
    mid_ref[:, 0:1, :, :] = zrow                   # top halo row
    mid_ref[:, H + 1:H + 2, :, :] = zrow           # bottom halo row
    mid_ref[:, 1:H + 1, :, :] = y1                 # interior (side halos already zero)

    # ---- conv2 + bn2 + relu, reading the bf16 intermediate straight from VMEM ----
    y2 = conv3x3_bn(mid_ref[...], w2_ref, bn[2:3], bn[3:4], W)
    y2 = jnp.maximum(y2, 0.0)                      # (B*H*W, Cop) f32

    # ---- skip branch fused into the epilogue ----
    x_in = x_slab[:, 1:H + 1, 2:W + 2, :].reshape(B * H * W, Cp)   # original input, bf16
    if has_projection:
        skip = jnp.dot(x_in, ws_ref[...], preferred_element_type=jnp.float32)
        skip = skip * bn[4:5] + bn[5:6]
    else:
        skip = x_in.astype(jnp.float32)            # Cp == Cop here

    o_ref[...] = (y2 + skip).reshape(B, H, W, Cop).astype(o_ref.dtype)


# -------------------------------- wrapper ------------------------------------

def _fold_bn(conv_bias, gamma, beta, mean, var, eps=1e-5):
    scale = gamma / jnp.sqrt(var + eps)
    bias = beta + (conv_bias - mean) * scale
    return scale, bias


def _pad_axis(a, size, axis):
    pad = size - a.shape[axis]
    if pad <= 0:
        return a
    widths = [(0, 0)] * a.ndim
    widths[axis] = (0, pad)
    return jnp.pad(a, widths)


def _im2col_weights(w_oihw, cin_p, cout_p):
    # (Cout, Cin, 3, 3) -> (3, 3*cin_p, cout_p): first axis dy; within a dy block the
    # rows are dx-major / cin-minor, matching concat([tap_dx0, tap_dx1, tap_dx2], -1).
    w = jnp.transpose(w_oihw, (2, 3, 1, 0))                   # (dy, dx, Cin, Cout)
    w = _pad_axis(_pad_axis(w, cin_p, 2), cout_p, 3)
    return w.reshape(3, 3 * cin_p, cout_p).astype(jnp.bfloat16)


def _round_up(n, m):
    return ((n + m - 1) // m) * m


def resblock_forward(x_nchw, p, stride=1, images_per_step=None):
    assert stride == 1  # TODO(synk): strided conv1 / strided 1x1 skip not implemented
    N, cin, H, W = x_nchw.shape
    cout = p["w1"].shape[0]
    has_projection = "ws" in p

    Cp = _round_up(cin, LANES)    # lane-dense padded input channels
    Cop = _round_up(cout, LANES)  # lane-dense padded output channels
    if not has_projection:
        assert Cp == Cop

    out_w1 = _round_up(W + 2, 8)  # conv1 computed output width (8-aligned reshapes)
    Wx = out_w1 + 2               # padded input width needed by conv1 taps

    if images_per_step is None:
        # 2-4 images/step amortizes per-grid-step overhead and raises matmul M.
        images_per_step = next(b for b in (4, 2, 1) if N % b == 0)
    b_sub = images_per_step
    assert N % b_sub == 0

    # NCHW -> NHWC bf16, zero-pad channels to Cp, spatial pad for the conv1 halo
    # (1 row top/bottom, 2 columns left, enough on the right for out_w1 columns).
    x = jnp.transpose(x_nchw, (0, 2, 3, 1)).astype(jnp.bfloat16)
    x = jnp.pad(x, ((0, 0), (1, 1), (2, Wx - W - 2), (0, Cp - cin)))

    w1 = _im2col_weights(p["w1"], Cp, Cop)
    w2 = _im2col_weights(p["w2"], Cop, Cop)

    s1, b1 = _fold_bn(p["b1"], p["g1"], p["be1"], p["m1"], p["v1"])
    s2, b2 = _fold_bn(p["b2"], p["g2"], p["be2"], p["m2"], p["v2"])
    if has_projection:
        ws = jnp.transpose(p["ws"][:, :, 0, 0], (1, 0))       # (Cin, Cout)
        ws = _pad_axis(_pad_axis(ws, Cp, 0), Cop, 1).astype(jnp.bfloat16)
        ss, bs = _fold_bn(p["bs"], p["gs"], p["bes"], p["ms"], p["vs"])
    else:
        ss = jnp.ones((cout,), jnp.float32)
        bs = jnp.zeros((cout,), jnp.float32)

    # Folded BN table; padded channels get scale=0 / bias=0 so they stay exactly 0.
    bn = jnp.stack([_pad_axis(v.astype(jnp.float32), Cop, 0)
                    for v in (s1, b1, s2, b2, ss, bs)], axis=0)   # (6, Cop)

    inputs = [x, w1, w2]
    in_specs = [
        pl.BlockSpec((b_sub, H + 2, Wx, Cp), lambda n: (n, 0, 0, 0)),
        pl.BlockSpec((3, 3 * Cp, Cop), lambda n: (0, 0, 0)),
        pl.BlockSpec((3, 3 * Cop, Cop), lambda n: (0, 0, 0)),
    ]
    if has_projection:
        inputs.append(ws)
        in_specs.append(pl.BlockSpec((Cp, Cop), lambda n: (0, 0)))
    inputs.append(bn)
    in_specs.append(pl.BlockSpec((6, Cop), lambda n: (0, 0)))

    kernel = functools.partial(_resblock_kernel, has_projection=has_projection)
    out = pl.pallas_call(
        kernel,
        out_shape=jax.ShapeDtypeStruct((N, H, W, Cop), jnp.bfloat16),
        grid=(N // b_sub,),
        in_specs=in_specs,
        out_specs=pl.BlockSpec((b_sub, H, W, Cop), lambda n: (n, 0, 0, 0)),
        scratch_shapes=[pltpu.VMEM((b_sub, H + 2, out_w1, Cop), jnp.bfloat16)],
        compiler_params=pltpu.CompilerParams(
            dimension_semantics=("parallel",),
        ),
    )(*inputs)

    # TODO(synk): for stacked ResBlocks keep activations in padded-NHWC bf16 between
    # kernels instead of this per-call slice + transpose back to NCHW.
    out = out[:, :, :, :cout]                 # drop lane padding
    return jnp.transpose(out, (0, 3, 1, 2))   # NHWC -> NCHW, bf16


# ------------------------ pure-JAX reference (NCHW) ---------------------------

def resblock_reference(x, p):
    def conv2d(x, w, b, stride, pad):
        y = jax.lax.conv_general_dilated(
            x, w, window_strides=(stride, stride),
            padding=[(pad, pad), (pad, pad)],
            dimension_numbers=("NCHW", "OIHW", "NCHW"))
        return y + b[None, :, None, None]

    def bn(x, gamma, beta, mean, var, eps=1e-5):
        inv = gamma / jnp.sqrt(var + eps)
        return (x - mean[None, :, None, None]) * inv[None, :, None, None] \
            + beta[None, :, None, None]

    out = jax.nn.relu(bn(conv2d(x, p["w1"], p["b1"], 1, 1),
                         p["g1"], p["be1"], p["m1"], p["v1"]))
    out = jax.nn.relu(bn(conv2d(out, p["w2"], p["b2"], 1, 1),
                         p["g2"], p["be2"], p["m2"], p["v2"]))
    if "ws" in p:                            # PyTorch: projection only when cin != cout
        skip = bn(conv2d(x, p["ws"], p["bs"], 1, 0),
                  p["gs"], p["bes"], p["ms"], p["vs"])
    else:
        skip = x
    return skip + out


# ---------------------------------- main --------------------------------------

def _make_params(key, cin, cout):
    ks = jax.random.split(key, 20)
    f32 = jnp.float32
    p = {
        "w1": 0.2 * jax.random.normal(ks[0], (cout, cin, 3, 3), f32),
        "b1": 0.1 * jax.random.normal(ks[1], (cout,), f32),
        "g1": 1.0 + 0.1 * jax.random.normal(ks[2], (cout,), f32),
        "be1": 0.1 * jax.random.normal(ks[3], (cout,), f32),
        "m1": 0.1 * jax.random.normal(ks[4], (cout,), f32),
        "v1": 1.0 + 0.1 * jax.random.uniform(ks[5], (cout,), f32),
        "w2": 0.2 * jax.random.normal(ks[6], (cout, cout, 3, 3), f32),
        "b2": 0.1 * jax.random.normal(ks[7], (cout,), f32),
        "g2": 1.0 + 0.1 * jax.random.normal(ks[8], (cout,), f32),
        "be2": 0.1 * jax.random.normal(ks[9], (cout,), f32),
        "m2": 0.1 * jax.random.normal(ks[10], (cout,), f32),
        "v2": 1.0 + 0.1 * jax.random.uniform(ks[11], (cout,), f32),
    }
    if cin != cout:  # matches nn.Sequential() identity when channels are equal
        p.update({
            "ws": 0.2 * jax.random.normal(ks[12], (cout, cin, 1, 1), f32),
            "bs": 0.1 * jax.random.normal(ks[13], (cout,), f32),
            "gs": 1.0 + 0.1 * jax.random.normal(ks[14], (cout,), f32),
            "bes": 0.1 * jax.random.normal(ks[15], (cout,), f32),
            "ms": 0.1 * jax.random.normal(ks[16], (cout,), f32),
            "vs": 1.0 + 0.1 * jax.random.uniform(ks[17], (cout,), f32),
        })
    return p


if __name__ == "__main__":
    key = jax.random.PRNGKey(0)
    N, H, W = 2, 16, 16

    for cin, cout in ((4, 8), (8, 8)):        # projection-skip and identity-skip paths
        kp, kx, key = jax.random.split(key, 3)
        p = _make_params(kp, cin, cout)
        x = jax.random.normal(kx, (N, cin, H, W), jnp.float32)

        out = jax.block_until_ready(resblock_forward(x, p))
        ref = jax.block_until_ready(resblock_reference(x, p))

        assert out.shape == (N, cout, H, W), out.shape
        # bf16 activations / operands / output vs. f32 reference -> relaxed tolerance.
        np.testing.assert_allclose(np.asarray(out, dtype=np.float32),
                                   np.asarray(ref, dtype=np.float32),
                                   atol=5e-2, rtol=5e-2)
    print("KERNEL_OK")
</pallas_src>

<mosaic_0001>
module attributes {stable_mosaic.version = 11 : i64} {
  func.func @_resblock_kernel(%arg0: i32, %arg1: memref<2x18x26x128xbf16, #tpu.memory_space<vmem>>, %arg2: memref<3x384x128xbf16, #tpu.memory_space<vmem>>, %arg3: memref<3x384x128xbf16, #tpu.memory_space<vmem>>, %arg4: memref<128x128xbf16, #tpu.memory_space<vmem>>, %arg5: memref<6x128xf32, #tpu.memory_space<vmem>>, %arg6: memref<2x16x16x128xbf16, #tpu.memory_space<vmem>>, %arg7: memref<2x18x24x128xbf16, #tpu.memory_space<vmem>>) attributes {dimension_semantics = [#tpu.dimension_semantics<parallel>], iteration_bounds = array<i64: 1>, scalar_prefetch = 0 : i64, scratch_operands = 1 : i64, tpu.core_type = #tpu.core_type<tc>, window_params = [{transform_indices = @transform_0, window_bounds = array<i64: 2, 18, 26, 128>}, {pipeline_mode = #tpu.pipeline_mode<synchronous>, transform_indices = @transform_1, window_bounds = array<i64: 3, 384, 128>}, {pipeline_mode = #tpu.pipeline_mode<synchronous>, transform_indices = @transform_2, window_bounds = array<i64: 3, 384, 128>}, {pipeline_mode = #tpu.pipeline_mode<synchronous>, transform_indices = @transform_3, window_bounds = array<i64: 128, 128>}, {pipeline_mode = #tpu.pipeline_mode<synchronous>, transform_indices = @transform_4, window_bounds = array<i64: 6, 128>}, {transform_indices = @transform_5, window_bounds = array<i64: 2, 16, 16, 128>}]} {
    %c0 = arith.constant 0 : index
    %c0_0 = arith.constant 0 : index
    %0 = vector.load %arg5[%c0, %c0_0] : memref<6x128xf32, #tpu.memory_space<vmem>>, vector<6x128xf32>
    %c0_1 = arith.constant 0 : index
    %c0_2 = arith.constant 0 : index
    %c0_3 = arith.constant 0 : index
    %c0_4 = arith.constant 0 : index
    %1 = vector.load %arg1[%c0_1, %c0_2, %c0_3, %c0_4] : memref<2x18x26x128xbf16, #tpu.memory_space<vmem>>, vector<2x18x26x128xbf16>
    %2 = vector.extract_strided_slice %0 {offsets = [0, 0], sizes = [1, 128], strides = [1, 1]} : vector<6x128xf32> to vector<1x128xf32>
    %3 = vector.extract_strided_slice %0 {offsets = [1, 0], sizes = [1, 128], strides = [1, 1]} : vector<6x128xf32> to vector<1x128xf32>
    %4 = vector.extract_strided_slice %1 {offsets = [0, 0, 0, 0], sizes = [2, 16, 24, 128], strides = [1, 1, 1, 1]} : vector<2x18x26x128xbf16> to vector<2x16x24x128xbf16>
    %5 = vector.extract_strided_slice %1 {offsets = [0, 0, 1, 0], sizes = [2, 16, 24, 128], strides = [1, 1, 1, 1]} : vector<2x18x26x128xbf16> to vector<2x16x24x128xbf16>
    %6 = vector.extract_strided_slice %1 {offsets = [0, 0, 2, 0], sizes = [2, 16, 24, 128], strides = [1, 1, 1, 1]} : vector<2x18x26x128xbf16> to vector<2x16x24x128xbf16>
    %7 = tpu.concatenate %4, %5, %6 in 3 : vector<2x16x24x128xbf16>, vector<2x16x24x128xbf16>, vector<2x16x24x128xbf16> -> vector<2x16x24x384xbf16>
    %8 = vector.shape_cast %7 : vector<2x16x24x384xbf16> to vector<768x384xbf16>
    %c0_5 = arith.constant 0 : index
    %c0_6 = arith.constant 0 : index
    %c0_7 = arith.constant 0 : index
    %9 = vector.load %arg2[%c0_5, %c0_6, %c0_7] : memref<3x384x128xbf16, #tpu.memory_space<vmem>>, vector<1x384x128xbf16>
    %10 = vector.shape_cast %9 : vector<1x384x128xbf16> to vector<384x128xbf16>
    %cst = arith.constant dense<0.000000e+00> : vector<768x128xf32>
    %11 = tpu.matmul %8, %10, %cst {dimension_numbers = #tpu.dot_dimension_numbers<[1], [0], [0], [1], [0, 0, 1, 1], [], []>} : vector<768x384xbf16>, vector<384x128xbf16>, vector<768x128xf32> -> vector<768x128xf32>
    %12 = vector.extract_strided_slice %1 {offsets = [0, 1, 0, 0], sizes = [2, 16, 24, 128], strides = [1, 1, 1, 1]} : vector<2x18x26x128xbf16> to vector<2x16x24x128xbf16>
    %13 = vector.extract_strided_slice %1 {offsets = [0, 1, 1, 0], sizes = [2, 16, 24, 128], strides = [1, 1, 1, 1]} : vector<2x18x26x128xbf16> to vector<2x16x24x128xbf16>
    %14 = vector.extract_strided_slice %1 {offsets = [0, 1, 2, 0], sizes = [2, 16, 24, 128], strides = [1, 1, 1, 1]} : vector<2x18x26x128xbf16> to vector<2x16x24x128xbf16>
    %15 = tpu.concatenate %12, %13, %14 in 3 : vector<2x16x24x128xbf16>, vector<2x16x24x128xbf16>, vector<2x16x24x128xbf16> -> vector<2x16x24x384xbf16>
    %16 = vector.shape_cast %15 : vector<2x16x24x384xbf16> to vector<768x384xbf16>
    %c1 = arith.constant 1 : index
    %c0_8 = arith.constant 0 : index
    %c0_9 = arith.constant 0 : index
    %17 = vector.load %arg2[%c1, %c0_8, %c0_9] : memref<3x384x128xbf16, #tpu.memory_space<vmem>>, vector<1x384x128xbf16>
    %18 = vector.shape_cast %17 : vector<1x384x128xbf16> to vector<384x128xbf16>
    %cst_10 = arith.constant dense<0.000000e+00> : vector<768x128xf32>
    %19 = tpu.matmul %16, %18, %cst_10 {dimension_numbers = #tpu.dot_dimension_numbers<[1], [0], [0], [1], [0, 0, 1, 1], [], []>} : vector<768x384xbf16>, vector<384x128xbf16>, vector<768x128xf32> -> vector<768x128xf32>
    %20 = arith.addf %11, %19 : vector<768x128xf32>
    %21 = vector.extract_strided_slice %1 {offsets = [0, 2, 0, 0], sizes = [2, 16, 24, 128], strides = [1, 1, 1, 1]} : vector<2x18x26x128xbf16> to vector<2x16x24x128xbf16>
    %22 = vector.extract_strided_slice %1 {offsets = [0, 2, 1, 0], sizes = [2, 16, 24, 128], strides = [1, 1, 1, 1]} : vector<2x18x26x128xbf16> to vector<2x16x24x128xbf16>
    %23 = vector.extract_strided_slice %1 {offsets = [0, 2, 2, 0], sizes = [2, 16, 24, 128], strides = [1, 1, 1, 1]} : vector<2x18x26x128xbf16> to vector<2x16x24x128xbf16>
    %24 = tpu.concatenate %21, %22, %23 in 3 : vector<2x16x24x128xbf16>, vector<2x16x24x128xbf16>, vector<2x16x24x128xbf16> -> vector<2x16x24x384xbf16>
    %25 = vector.shape_cast %24 : vector<2x16x24x384xbf16> to vector<768x384xbf16>
    %c2 = arith.constant 2 : index
    %c0_11 = arith.constant 0 : index
    %c0_12 = arith.constant 0 : index
    %26 = vector.load %arg2[%c2, %c0_11, %c0_12] : memref<3x384x128xbf16, #tpu.memory_space<vmem>>, vector<1x384x128xbf16>
    %27 = vector.shape_cast %26 : vector<1x384x128xbf16> to vector<384x128xbf16>
    %cst_13 = arith.constant dense<0.000000e+00> : vector<768x128xf32>
    %28 = tpu.matmul %25, %27, %cst_13 {dimension_numbers = #tpu.dot_dimension_numbers<[1], [0], [0], [1], [0, 0, 1, 1], [], []>} : vector<768x384xbf16>, vector<384x128xbf16>, vector<768x128xf32> -> vector<768x128xf32>
    %29 = arith.addf %20, %28 : vector<768x128xf32>
    %30 = vector.broadcast %2 : vector<1x128xf32> to vector<768x128xf32>
    %31 = arith.mulf %29, %30 : vector<768x128xf32>
    %32 = vector.broadcast %3 : vector<1x128xf32> to vector<768x128xf32>
    %33 = arith.addf %31, %32 : vector<768x128xf32>
    %cst_14 = arith.constant 0.000000e+00 : f32
    %34 = vector.broadcast %cst_14 : f32 to vector<768x128xf32>
    %35 = arith.maximumf %33, %34 : vector<768x128xf32>
    %36 = vector.shape_cast %35 : vector<768x128xf32> to vector<2x16x24x128xf32>
    %37 = tpu.iota {dimensions = array<i32: 2>} : vector<1x1x24x1xi32>
    %c1_i32 = arith.constant 1 : i32
    %38 = vector.broadcast %c1_i32 : i32 to vector<1x1x24x1xi32>
    %39 = arith.cmpi sge, %37, %38 : vector<1x1x24x1xi32>
    %c16_i32 = arith.constant 16 : i32
    %40 = vector.broadcast %c16_i32 : i32 to vector<1x1x24x1xi32>
    %41 = arith.cmpi sle, %37, %40 : vector<1x1x24x1xi32>
    %42 = arith.andi %39, %41 : vector<1x1x24x1xi1>
    %43 = arith.extui %42 : vector<1x1x24x1xi1> to vector<1x1x24x1xi32>
    %44 = arith.sitofp %43 : vector<1x1x24x1xi32> to vector<1x1x24x1xf32>
    %45 = vector.broadcast %44 : vector<1x1x24x1xf32> to vector<2x16x24x128xf32>
    %46 = arith.mulf %36, %45 : vector<2x16x24x128xf32>
    %47 = arith.truncf %46 : vector<2x16x24x128xf32> to vector<2x16x24x128xbf16>
    %cst_15 = arith.constant 0.000000e+00 : bf16
    %48 = vector.broadcast %cst_15 : bf16 to vector<2x1x24x128xbf16>
    %c0_16 = arith.constant 0 : index
    %c0_17 = arith.constant 0 : index
    %c0_18 = arith.constant 0 : index
    %c0_19 = arith.constant 0 : index
    %49 = vector.load %arg7[%c0_16, %c0_17, %c0_18, %c0_19] : memref<2x18x24x128xbf16, #tpu.memory_space<vmem>>, vector<2x1x24x128xbf16>
    tpu.vector_store %arg7[%c0_16, %c0_17, %c0_18, %c0_19], %48 {strides = array<i32>} : memref<2x18x24x128xbf16, #tpu.memory_space<vmem>>, vector<2x1x24x128xbf16>,
    %c0_20 = arith.constant 0 : index
    %c17 = arith.constant 17 : index
    %c0_21 = arith.constant 0 : index
    %c0_22 = arith.constant 0 : index
    %50 = vector.load %arg7[%c0_20, %c17, %c0_21, %c0_22] : memref<2x18x24x128xbf16, #tpu.memory_space<vmem>>, vector<2x1x24x128xbf16>
    tpu.vector_store %arg7[%c0_20, %c17, %c0_21, %c0_22], %48 {strides = array<i32>} : memref<2x18x24x128xbf16, #tpu.memory_space<vmem>>, vector<2x1x24x128xbf16>,
    %c0_23 = arith.constant 0 : index
    %c1_24 = arith.constant 1 : index
    %c0_25 = arith.constant 0 : index
    %c0_26 = arith.constant 0 : index
    %51 = vector.load %arg7[%c0_23, %c1_24, %c0_25, %c0_26] : memref<2x18x24x128xbf16, #tpu.memory_space<vmem>>, vector<2x16x24x128xbf16>
    tpu.vector_store %arg7[%c0_23, %c1_24, %c0_25, %c0_26], %47 {strides = array<i32>} : memref<2x18x24x128xbf16, #tpu.memory_space<vmem>>, vector<2x16x24x128xbf16>,
    %c0_27 = arith.constant 0 : index
    %c0_28 = arith.constant 0 : index
    %c0_29 = arith.constant 0 : index
    %c0_30 = arith.constant 0 : index
    %52 = vector.load %arg7[%c0_27, %c0_28, %c0_29, %c0_30] : memref<2x18x24x128xbf16, #tpu.memory_space<vmem>>, vector<2x18x24x128xbf16>
    %53 = vector.extract_strided_slice %0 {offsets = [2, 0], sizes = [1, 128], strides = [1, 1]} : vector<6x128xf32> to vector<1x128xf32>
    %54 = vector.extract_strided_slice %0 {offsets = [3, 0], sizes = [1, 128], strides = [1, 1]} : vector<6x128xf32> to vector<1x128xf32>
    %55 = vector.extract_strided_slice %52 {offsets = [0, 0, 0, 0], sizes = [2, 16, 16, 128], strides = [1, 1, 1, 1]} : vector<2x18x24x128xbf16> to vector<2x16x16x128xbf16>
    %56 = vector.extract_strided_slice %52 {offsets = [0, 0, 1, 0], sizes = [2, 16, 16, 128], strides = [1, 1, 1, 1]} : vector<2x18x24x128xbf16> to vector<2x16x16x128xbf16>
    %57 = vector.extract_strided_slice %52 {offsets = [0, 0, 2, 0], sizes = [2, 16, 16, 128], strides = [1, 1, 1, 1]} : vector<2x18x24x128xbf16> to vector<2x16x16x128xbf16>
    %58 = tpu.concatenate %55, %56, %57 in 3 : vector<2x16x16x128xbf16>, vector<2x16x16x128xbf16>, vector<2x16x16x128xbf16> -> vector<2x16x16x384xbf16>
    %59 = vector.shape_cast %58 : vector<2x16x16x384xbf16> to vector<512x384xbf16>
    %c0_31 = arith.constant 0 : index
    %c0_32 = arith.constant 0 : index
    %c0_33 = arith.constant 0 : index
    %60 = vector.load %arg3[%c0_31, %c0_32, %c0_33] : memref<3x384x128xbf16, #tpu.memory_space<vmem>>, vector<1x384x128xbf16>
    %61 = vector.shape_cast %60 : vector<1x384x128xbf16> to vector<384x128xbf16>
    %cst_34 = arith.constant dense<0.000000e+00> : vector<512x128xf32>
    %62 = tpu.matmul %59, %61, %cst_34 {dimension_numbers = #tpu.dot_dimension_numbers<[1], [0], [0], [1], [0, 0, 1, 1], [], []>} : vector<512x384xbf16>, vector<384x128xbf16>, vector<512x128xf32> -> vector<512x128xf32>
    %63 = vector.extract_strided_slice %52 {offsets = [0, 1, 0, 0], sizes = [2, 16, 16, 128], strides = [1, 1, 1, 1]} : vector<2x18x24x128xbf16> to vector<2x16x16x128xbf16>
    %64 = vector.extract_strided_slice %52 {offsets = [0, 1, 1, 0], sizes = [2, 16, 16, 128], strides = [1, 1, 1, 1]} : vector<2x18x24x128xbf16> to vector<2x16x16x128xbf16>
    %65 = vector.extract_strided_slice %52 {offsets = [0, 1, 2, 0], sizes = [2, 16, 16, 128], strides = [1, 1, 1, 1]} : vector<2x18x24x128xbf16> to vector<2x16x16x128xbf16>
    %66 = tpu.concatenate %63, %64, %65 in 3 : vector<2x16x16x128xbf16>, vector<2x16x16x128xbf16>, vector<2x16x16x128xbf16> -> vector<2x16x16x384xbf16>
    %67 = vector.shape_cast %66 : vector<2x16x16x384xbf16> to vector<512x384xbf16>
    %c1_35 = arith.constant 1 : index
    %c0_36 = arith.constant 0 : index
    %c0_37 = arith.constant 0 : index
    %68 = vector.load %arg3[%c1_35, %c0_36, %c0_37] : memref<3x384x128xbf16, #tpu.memory_space<vmem>>, vector<1x384x128xbf16>
    %69 = vector.shape_cast %68 : vector<1x384x128xbf16> to vector<384x128xbf16>
    %cst_38 = arith.constant dense<0.000000e+00> : vector<512x128xf32>
    %70 = tpu.matmul %67, %69, %cst_38 {dimension_numbers = #tpu.dot_dimension_numbers<[1], [0], [0], [1], [0, 0, 1, 1], [], []>} : vector<512x384xbf16>, vector<384x128xbf16>, vector<512x128xf32> -> vector<512x128xf32>
    %71 = arith.addf %62, %70 : vector<512x128xf32>
    %72 = vector.extract_strided_slice %52 {offsets = [0, 2, 0, 0], sizes = [2, 16, 16, 128], strides = [1, 1, 1, 1]} : vector<2x18x24x128xbf16> to vector<2x16x16x128xbf16>
    %73 = vector.extract_strided_slice %52 {offsets = [0, 2, 1, 0], sizes = [2, 16, 16, 128], strides = [1, 1, 1, 1]} : vector<2x18x24x128xbf16> to vector<2x16x16x128xbf16>
    %74 = vector.extract_strided_slice %52 {offsets = [0, 2, 2, 0], sizes = [2, 16, 16, 128], strides = [1, 1, 1, 1]} : vector<2x18x24x128xbf16> to vector<2x16x16x128xbf16>
    %75 = tpu.concatenate %72, %73, %74 in 3 : vector<2x16x16x128xbf16>, vector<2x16x16x128xbf16>, vector<2x16x16x128xbf16> -> vector<2x16x16x384xbf16>
    %76 = vector.shape_cast %75 : vector<2x16x16x384xbf16> to vector<512x384xbf16>
    %c2_39 = arith.constant 2 : index
    %c0_40 = arith.constant 0 : index
    %c0_41 = arith.constant 0 : index
    %77 = vector.load %arg3[%c2_39, %c0_40, %c0_41] : memref<3x384x128xbf16, #tpu.memory_space<vmem>>, vector<1x384x128xbf16>
    %78 = vector.shape_cast %77 : vector<1x384x128xbf16> to vector<384x128xbf16>
    %cst_42 = arith.constant dense<0.000000e+00> : vector<512x128xf32>
    %79 = tpu.matmul %76, %78, %cst_42 {dimension_numbers = #tpu.dot_dimension_numbers<[1], [0], [0], [1], [0, 0, 1, 1], [], []>} : vector<512x384xbf16>, vector<384x128xbf16>, vector<512x128xf32> -> vector<512x128xf32>
    %80 = arith.addf %71, %79 : vector<512x128xf32>
    %81 = vector.broadcast %53 : vector<1x128xf32> to vector<512x128xf32>
    %82 = arith.mulf %80, %81 : vector<512x128xf32>
    %83 = vector.broadcast %54 : vector<1x128xf32> to vector<512x128xf32>
    %84 = arith.addf %82, %83 : vector<512x128xf32>
    %cst_43 = arith.constant 0.000000e+00 : f32
    %85 = vector.broadcast %cst_43 : f32 to vector<512x128xf32>
    %86 = arith.maximumf %84, %85 : vector<512x128xf32>
    %87 = vector.extract_strided_slice %1 {offsets = [0, 1, 2, 0], sizes = [2, 16, 16, 128], strides = [1, 1, 1, 1]} : vector<2x18x26x128xbf16> to vector<2x16x16x128xbf16>
    %88 = vector.shape_cast %87 : vector<2x16x16x128xbf16> to vector<512x128xbf16>
    %c0_44 = arith.constant 0 : index
    %c0_45 = arith.constant 0 : index
    %89 = vector.load %arg4[%c0_44, %c0_45] : memref<128x128xbf16, #tpu.memory_space<vmem>>, vector<128x128xbf16>
    %cst_46 = arith.constant dense<0.000000e+00> : vector<512x128xf32>
    %90 = tpu.matmul %88, %89, %cst_46 {dimension_numbers = #tpu.dot_dimension_numbers<[1], [0], [0], [1], [0, 0, 1, 1], [], []>} : vector<512x128xbf16>, vector<128x128xbf16>, vector<512x128xf32> -> vector<512x128xf32>
    %91 = vector.extract_strided_slice %0 {offsets = [4, 0], sizes = [1, 128], strides = [1, 1]} : vector<6x128xf32> to vector<1x128xf32>
    %92 = vector.broadcast %91 : vector<1x128xf32> to vector<512x128xf32>
    %93 = arith.mulf %90, %92 : vector<512x128xf32>
    %94 = vector.extract_strided_slice %0 {offsets = [5, 0], sizes = [1, 128], strides = [1, 1]} : vector<6x128xf32> to vector<1x128xf32>
    %95 = vector.broadcast %94 : vector<1x128xf32> to vector<512x128xf32>
    %96 = arith.addf %93, %95 : vector<512x128xf32>
    %97 = arith.addf %86, %96 : vector<512x128xf32>
    %98 = vector.shape_cast %97 : vector<512x128xf32> to vector<2x16x16x128xf32>
    %99 = arith.truncf %98 : vector<2x16x16x128xf32> to vector<2x16x16x128xbf16>
    %c0_47 = arith.constant 0 : index
    %c0_48 = arith.constant 0 : index
    %c0_49 = arith.constant 0 : index
    %c0_50 = arith.constant 0 : index
    %100 = vector.load %arg6[%c0_47, %c0_48, %c0_49, %c0_50] : memref<2x16x16x128xbf16, #tpu.memory_space<vmem>>, vector<2x16x16x128xbf16>
    tpu.vector_store %arg6[%c0_47, %c0_48, %c0_49, %c0_50], %99 {strides = array<i32>} : memref<2x16x16x128xbf16, #tpu.memory_space<vmem>>, vector<2x16x16x128xbf16>,
    return
  }
  func.func @transform_0(%arg0: i32) -> (i32, i32, i32, i32) {
    %c0_i32 = arith.constant 0 : i32
    %c0_i32_0 = arith.constant 0 : i32
    %c0_i32_1 = arith.constant 0 : i32
    %c0_i32_2 = arith.constant 0 : i32
    return %arg0, %c0_i32, %c0_i32_0, %c0_i32_1 : i32, i32, i32, i32
  }
  func.func @transform_1(%arg0: i32) -> (i32, i32, i32) {
    %c0_i32 = arith.constant 0 : i32
    %c0_i32_0 = arith.constant 0 : i32
    %c0_i32_1 = arith.constant 0 : i32
    %c0_i32_2 = arith.constant 0 : i32
    return %c0_i32, %c0_i32_0, %c0_i32_1 : i32, i32, i32
  }
  func.func @transform_2(%arg0: i32) -> (i32, i32, i32) {
    %c0_i32 = arith.constant 0 : i32
    %c0_i32_0 = arith.constant 0 : i32
    %c0_i32_1 = arith.constant 0 : i32
    %c0_i32_2 = arith.constant 0 : i32
    return %c0_i32, %c0_i32_0, %c0_i32_1 : i32, i32, i32
  }
  func.func @transform_3(%arg0: i32) -> (i32, i32) {
    %c0_i32 = arith.constant 0 : i32
    %c0_i32_0 = arith.constant 0 : i32
    %c0_i32_1 = arith.constant 0 : i32
    return %c0_i32, %c0_i32_0 : i32, i32
  }
  func.func @transform_4(%arg0: i32) -> (i32, i32) {
    %c0_i32 = arith.constant 0 : i32
    %c0_i32_0 = arith.constant 0 : i32
    %c0_i32_1 = arith.constant 0 : i32
    return %c0_i32, %c0_i32_0 : i32, i32
  }
  func.func @transform_5(%arg0: i32) -> (i32, i32, i32, i32) {
    %c0_i32 = arith.constant 0 : i32
    %c0_i32_0 = arith.constant 0 : i32
    %c0_i32_1 = arith.constant 0 : i32
    %c0_i32_2 = arith.constant 0 : i32
    return %arg0, %c0_i32, %c0_i32_0, %c0_i32_1 : i32, i32, i32, i32
  }
}

</mosaic_0001>

<llo_original>
// kernel: tpu_custom_call.1
$region0: #{tpu_custom_call.1}
  #allocation0 [shape = 'u32[]', space=smem, size = 0x4, offset = 0x4, fixed_abs, tag = 'smem constant byte address 0x4 - core index']
  #allocation1 [shape = 'u32[144,128]{1,0:T(1,128)}', space=vmem, size = 0x12000, scoped, tag = 'internal scratch']
  #allocation2 [shape = 'bf16[2,18,24,128]{3,2,1,0:T(8,128)(2,1)}', space=vmem, size = 0x36000, scoped, tag = 'scratch operand']
  %s0 = inlined_call_operand.vmem [shape: bf16[2,18,26,128], index: 0, kind: input, shape index: {}]
  %s1 = inlined_call_operand.vmem [shape: bf16[3,384,128], index: 1, kind: input, shape index: {}]
  %s2 = inlined_call_operand.hbm [shape: bf16[3,384,128], index: 2, kind: input, shape index: {}]
  %s3 = inlined_call_operand.vmem [shape: bf16[128,128], index: 3, kind: input, shape index: {}]
  %s4 = inlined_call_operand.vmem [shape: f32[6,128], index: 4, kind: input, shape index: {}]
  %s5 = inlined_call_operand.hbm [shape: bf16[2,16,16,128], index: 5, kind: output, shape index: {}]
  %s6 = sld [smem:[#allocation0]]
  $region34: #{tpu_custom_call.1} parent=0
    _
  %s8 = ssub.s32 1, %s6
  %s9 = scalar_select 0, %s8, %s6
  $region1: #{tpu_custom_call.1} parent=0
    #allocation3 [shape = 'u8[294912]{0}', space=vmem, size = 0x48000, scoped, tag = 'input window, operand 2, single buffered']
    #allocation4 [shape = 's32[1]{0}', space=sflag, size = 0x4, scoped, tag = 'scoped memory for tpu_custom_call.1']
    #allocation5 [shape = 's32[1]{0}', space=sflag, size = 0x4, scoped, tag = 'scoped memory for tpu_custom_call.1']
    #allocation6 [shape = 'u8[131072]{0}', space=vmem, size = 0x20000, scoped, tag = 'output window, operand 0, single buffered']
    %10 = vsyncpa [#allocation4], 0
    %11 = vsyncpa [#allocation5], 0
    // Predicated region
    $region2: #{tpu_custom_call.1} parent=1 // pred_check
      _
    $region3: #{tpu_custom_call.1} parent=1 // pred_check_branch
      %13 = sbr.rel (0) target = $region5
    $region4: #{tpu_custom_call.1} parent=1 // pred_region
      _
    $region5: #{tpu_custom_call.1} parent=1 // pred_fallthru
      _
    // Predicated region
    $region6: #{tpu_custom_call.1} parent=1 // pred_check
      _
    $region7: #{tpu_custom_call.1} parent=1 // pred_check_branch
      %15 = sbr.rel (0) target = $region9
    $region8: #{tpu_custom_call.1} parent=1 // pred_region
      _
    $region9: #{tpu_custom_call.1} parent=1 // pred_fallthru
      _
    // Predicated region
    $region10: #{tpu_custom_call.1} parent=1 // pred_check
      _
    $region11: #{tpu_custom_call.1} parent=1 // pred_check_branch
      %17 = sbr.rel (0) target = $region13
    $region12: #{tpu_custom_call.1} parent=1 // pred_region
      %s19 = ssub.s32 9216, 9216
      %20 = vsyncadd [#allocation4], %s19
      %s21 = sshll.u32 [#allocation3], 4
      %s22 = int_to_ptr.vmem [resolvable:$true] %s21
      %27 = dma.hbm_to_vmem [thread:$0]  %s2, 9216, %s22, [#allocation4], 64, 64, 4
    $region13: #{tpu_custom_call.1} parent=1 // pred_fallthru
      _
    // Predicated region
    $region14: #{tpu_custom_call.1} parent=1 // pred_check
      _
    $region15: #{tpu_custom_call.1} parent=1 // pred_check_branch
      %29 = sbr.rel (0) target = $region17
    $region16: #{tpu_custom_call.1} parent=1 // pred_region
      _
    $region17: #{tpu_custom_call.1} parent=1 // pred_fallthru
      _
    // Predicated region
    $region18: #{tpu_custom_call.1} parent=1 // pred_check
      _
    $region19: #{tpu_custom_call.1} parent=1 // pred_check_branch
      %31 = sbr.rel (0) target = $region21
    $region20: #{tpu_custom_call.1} parent=1 // pred_region
      _
    $region21: #{tpu_custom_call.1} parent=1 // pred_fallthru
      _
    // Predicated region
    $region22: #{tpu_custom_call.1} parent=1 // pred_check
      _
    $region23: #{tpu_custom_call.1} parent=1 // pred_check_branch
      %33 = sbr.rel (0) target = $region25
    $region24: #{tpu_custom_call.1} parent=1 // pred_region
      %34 = dma.done [#allocation4], 9216
    $region25: #{tpu_custom_call.1} parent=1 // pred_fallthru
      _
    %v36 = vld [vmem:[%s4] sm:$0x3f]
    %v37 = vld [vmem:[%s0] sm:$0xf]
    %v38 = vld [vmem:[%s0 + $0x4] sm:$0xf]
    %v39 = vld [vmem:[%s0 + $0x8] sm:$0xf]
    %v40 = vld [vmem:[%s0 + $0xc] sm:$0x1]
    %v41 = vld [vmem:[%s0 + $0x10] sm:$0xf]
    %v42 = vld [vmem:[%s0 + $0x14] sm:$0xf]
    %v43 = vld [vmem:[%s0 + $0x18] sm:$0xf]
    %v44 = vld [vmem:[%s0 + $0x1c] sm:$0x1]
    %v45 = vld [vmem:[%s0 + $0x20] sm:$0xf]
    %v46 = vld [vmem:[%s0 + $0x24] sm:$0xf]
    %v47 = vld [vmem:[%s0 + $0x28] sm:$0xf]
    %v48 = vld [vmem:[%s0 + $0x2c] sm:$0x1]
    %v49 = vld [vmem:[%s0 + $0x30] sm:$0xf]
    %v50 = vld [vmem:[%s0 + $0x34] sm:$0xf]
    %v51 = vld [vmem:[%s0 + $0x38] sm:$0xf]
    %v52 = vld [vmem:[%s0 + $0x3c] sm:$0x1]
    %v53 = vld [vmem:[%s0 + $0x40] sm:$0xf]
    %v54 = vld [vmem:[%s0 + $0x44] sm:$0xf]
    %v55 = vld [vmem:[%s0 + $0x48] sm:$0xf]
    %v56 = vld [vmem:[%s0 + $0x4c] sm:$0x1]
    %v57 = vld [vmem:[%s0 + $0x50] sm:$0xf]
    %v58 = vld [vmem:[%s0 + $0x54] sm:$0xf]
    %v59 = vld [vmem:[%s0 + $0x58] sm:$0xf]
    %v60 = vld [vmem:[%s0 + $0x5c] sm:$0x1]
    %v61 = vld [vmem:[%s0 + $0x60] sm:$0xf]
    %v62 = vld [vmem:[%s0 + $0x64] sm:$0xf]
    %v63 = vld [vmem:[%s0 + $0x68] sm:$0xf]
    %v64 = vld [vmem:[%s0 + $0x6c] sm:$0x1]
    %v65 = vld [vmem:[%s0 + $0x70] sm:$0xf]
    %v66 = vld [vmem:[%s0 + $0x74] sm:$0xf]
    %v67 = vld [vmem:[%s0 + $0x78] sm:$0xf]
    %v68 = vld [vmem:[%s0 + $0x7c] sm:$0x1]
    %v69 = vld [vmem:[%s0 + $0x80] sm:$0xf]
    %v70 = vld [vmem:[%s0 + $0x84] sm:$0xf]
    %v71 = vld [vmem:[%s0 + $0x88] sm:$0xf]
    %v72 = vld [vmem:[%s0 + $0x8c] sm:$0x1]
    %v73 = vld [vmem:[%s0 + $0x90] sm:$0xf]
    %v74 = vld [vmem:[%s0 + $0x94] sm:$0xf]
    %v75 = vld [vmem:[%s0 + $0x98] sm:$0xf]
    %v76 = vld [vmem:[%s0 + $0x9c] sm:$0x1]
    %v77 = vld [vmem:[%s0 + $0xa0] sm:$0xf]
    %v78 = vld [vmem:[%s0 + $0xa4] sm:$0xf]
    %v79 = vld [vmem:[%s0 + $0xa8] sm:$0xf]
    %v80 = vld [vmem:[%s0 + $0xac] sm:$0x1]
    %v81 = vld [vmem:[%s0 + $0xb0] sm:$0xf]
    %v82 = vld [vmem:[%s0 + $0xb4] sm:$0xf]
    %v83 = vld [vmem:[%s0 + $0xb8] sm:$0xf]
    %v84 = vld [vmem:[%s0 + $0xbc] sm:$0x1]
    %v85 = vld [vmem:[%s0 + $0xc0] sm:$0xf]
    %v86 = vld [vmem:[%s0 + $0xc4] sm:$0xf]
    %v87 = vld [vmem:[%s0 + $0xc8] sm:$0xf]
    %v88 = vld [vmem:[%s0 + $0xcc] sm:$0x1]
    %v89 = vld [vmem:[%s0 + $0xd0] sm:$0xf]
    %v90 = vld [vmem:[%s0 + $0xd4] sm:$0xf]
    %v91 = vld [vmem:[%s0 + $0xd8] sm:$0xf]
    %v92 = vld [vmem:[%s0 + $0xdc] sm:$0x1]
    %v93 = vld [vmem:[%s0 + $0xe0] sm:$0xf]
    %v94 = vld [vmem:[%s0 + $0xe4] sm:$0xf]
    %v95 = vld [vmem:[%s0 + $0xe8] sm:$0xf]
    %v96 = vld [vmem:[%s0 + $0xec] sm:$0x1]
    %v97 = vld [vmem:[%s0 + $0xf0] sm:$0xf]
    %v98 = vld [vmem:[%s0 + $0xf4] sm:$0xf]
    %v99 = vld [vmem:[%s0 + $0xf8] sm:$0xf]
    %v100 = vld [vmem:[%s0 + $0xfc] sm:$0x1]
    %v101 = vld [vmem:[%s0 + $0x100] sm:$0xf]
    %v102 = vld [vmem:[%s0 + $0x104] sm:$0xf]
    %v103 = vld [vmem:[%s0 + $0x108] sm:$0xf]
    %v104 = vld [vmem:[%s0 + $0x10c] sm:$0x1]
    %v105 = vld [vmem:[%s0 + $0x110] sm:$0xf]
    %v106 = vld [vmem:[%s0 + $0x114] sm:$0xf]
    %v107 = vld [vmem:[%s0 + $0x118] sm:$0xf]
    %v108 = vld [vmem:[%s0 + $0x11c] sm:$0x1]
    %v109 = vld [vmem:[%s0 + $0x120] sm:$0xf]
    %v110 = vld [vmem:[%s0 + $0x124] sm:$0xf]
    %v111 = vld [vmem:[%s0 + $0x128] sm:$0xf]
    %v112 = vld [vmem:[%s0 + $0x12c] sm:$0x1]
    %v113 = vld [vmem:[%s0 + $0x130] sm:$0xf]
    %v114 = vld [vmem:[%s0 + $0x134] sm:$0xf]
    %v115 = vld [vmem:[%s0 + $0x138] sm:$0xf]
    %v116 = vld [vmem:[%s0 + $0x13c] sm:$0x1]
    %v117 = vld [vmem:[%s0 + $0x140] sm:$0xf]
    %v118 = vld [vmem:[%s0 + $0x144] sm:$0xf]
    %v119 = vld [vmem:[%s0 + $0x148] sm:$0xf]
    %v120 = vld [vmem:[%s0 + $0x14c] sm:$0x1]
    %v121 = vld [vmem:[%s0 + $0x150] sm:$0xf]
    %v122 = vld [vmem:[%s0 + $0x154] sm:$0xf]
    %v123 = vld [vmem:[%s0 + $0x158] sm:$0xf]
    %v124 = vld [vmem:[%s0 + $0x15c] sm:$0x1]
    %v125 = vld [vmem:[%s0 + $0x160] sm:$0xf]
    %v126 = vld [vmem:[%s0 + $0x164] sm:$0xf]
    %v127 = vld [vmem:[%s0 + $0x168] sm:$0xf]
    %v128 = vld [vmem:[%s0 + $0x16c] sm:$0x1]
    %v129 = vld [vmem:[%s0 + $0x170] sm:$0xf]
    %v130 = vld [vmem:[%s0 + $0x174] sm:$0xf]
    %v131 = vld [vmem:[%s0 + $0x178] sm:$0xf]
    %v132 = vld [vmem:[%s0 + $0x17c] sm:$0x1]
    %v133 = vld [vmem:[%s0 + $0x180] sm:$0xf]
    %v134 = vld [vmem:[%s0 + $0x184] sm:$0xf]
    %v135 = vld [vmem:[%s0 + $0x188] sm:$0xf]
    %v136 = vld [vmem:[%s0 + $0x18c] sm:$0x1]
    %v137 = vld [vmem:[%s0 + $0x190] sm:$0xf]
    %v138 = vld [vmem:[%s0 + $0x194] sm:$0xf]
    %v139 = vld [vmem:[%s0 + $0x198] sm:$0xf]
    %v140 = vld [vmem:[%s0 + $0x19c] sm:$0x1]
    %v141 = vld [vmem:[%s0 + $0x1a0] sm:$0xf]
    %v142 = vld [vmem:[%s0 + $0x1a4] sm:$0xf]
    %v143 = vld [vmem:[%s0 + $0x1a8] sm:$0xf]
    %v144 = vld [vmem:[%s0 + $0x1ac] sm:$0x1]
    %v145 = vld [vmem:[%s0 + $0x1b0] sm:$0xf]
    %v146 = vld [vmem:[%s0 + $0x1b4] sm:$0xf]
    %v147 = vld [vmem:[%s0 + $0x1b8] sm:$0xf]
    %v148 = vld [vmem:[%s0 + $0x1bc] sm:$0x1]
    %v149 = vld [vmem:[%s0 + $0x1c0] sm:$0xf]
    %v150 = vld [vmem:[%s0 + $0x1c4] sm:$0xf]
    %v151 = vld [vmem:[%s0 + $0x1c8] sm:$0xf]
    %v152 = vld [vmem:[%s0 + $0x1cc] sm:$0x1]
    %v153 = vld [vmem:[%s0 + $0x1d0] sm:$0xf]
    %v154 = vld [vmem:[%s0 + $0x1d4] sm:$0xf]
    %v155 = vld [vmem:[%s0 + $0x1d8] sm:$0xf]
    %v156 = vld [vmem:[%s0 + $0x1dc] sm:$0x1]
    %v157 = vld [vmem:[%s0 + $0x1e0] sm:$0xf]
    %v158 = vld [vmem:[%s0 + $0x1e4] sm:$0xf]
    %v159 = vld [vmem:[%s0 + $0x1e8] sm:$0xf]
    %v160 = vld [vmem:[%s0 + $0x1ec] sm:$0x1]
    %v161 = vld [vmem:[%s0 + $0x1f0] sm:$0xf]
    %v162 = vld [vmem:[%s0 + $0x1f4] sm:$0xf]
    %v163 = vld [vmem:[%s0 + $0x1f8] sm:$0xf]
    %v164 = vld [vmem:[%s0 + $0x1fc] sm:$0x1]
    %v165 = vld [vmem:[%s0 + $0x200] sm:$0xf]
    %v166 = vld [vmem:[%s0 + $0x204] sm:$0xf]
    %v167 = vld [vmem:[%s0 + $0x208] sm:$0xf]
    %v168 = vld [vmem:[%s0 + $0x20c] sm:$0x1]
    %v169 = vld [vmem:[%s0 + $0x210] sm:$0xf]
    %v170 = vld [vmem:[%s0 + $0x214] sm:$0xf]
    %v171 = vld [vmem:[%s0 + $0x218] sm:$0xf]
    %v172 = vld [vmem:[%s0 + $0x21c] sm:$0x1]
    %v173 = vld [vmem:[%s0 + $0x220] sm:$0xf]
    %v174 = vld [vmem:[%s0 + $0x224] sm:$0xf]
    %v175 = vld [vmem:[%s0 + $0x228] sm:$0xf]
    %v176 = vld [vmem:[%s0 + $0x22c] sm:$0x1]
    %v177 = vld [vmem:[%s0 + $0x230] sm:$0xf]
    %v178 = vld [vmem:[%s0 + $0x234] sm:$0xf]
    %v179 = vld [vmem:[%s0 + $0x238] sm:$0xf]
    %v180 = vld [vmem:[%s0 + $0x23c] sm:$0x1]
    %v277 = vunpack.c.l.b16 %v37
    %v278 = vunpack.c.l.b16 %v38
    %v279 = vunpack.c.l.b16 %v39
    %v280 = vunpack.c.l.b16 %v41
    %v281 = vunpack.c.l.b16 %v42
    %v282 = vunpack.c.l.b16 %v43
    %v283 = vunpack.c.l.b16 %v45
    %v284 = vunpack.c.l.b16 %v46
    %v285 = vunpack.c.l.b16 %v47
    %v286 = vunpack.c.l.b16 %v49
    %v287 = vunpack.c.l.b16 %v50
    %v288 = vunpack.c.l.b16 %v51
    %v289 = vunpack.c.l.b16 %v53
    %v290 = vunpack.c.l.b16 %v54
    %v291 = vunpack.c.l.b16 %v55
    %v292 = vunpack.c.l.b16 %v57
    %v293 = vunpack.c.l.b16 %v58
    %v294 = vunpack.c.l.b16 %v59
    %v295 = vunpack.c.l.b16 %v61
    %v296 = vunpack.c.l.b16 %v62
    %v297 = vunpack.c.l.b16 %v63
    %v298 = vunpack.c.l.b16 %v65
    %v299 = vunpack.c.l.b16 %v66
    %v300 = vunpack.c.l.b16 %v67
    %v301 = vunpack.c.l.b16 %v69
    %v302 = vunpack.c.l.b16 %v70
    %v303 = vunpack.c.l.b16 %v71
    %v304 = vunpack.c.l.b16 %v73
    %v305 = vunpack.c.l.b16 %v74
    %v306 = vunpack.c.l.b16 %v75
    %v307 = vunpack.c.l.b16 %v77
    %v308 = vunpack.c.l.b16 %v78
    %v309 = vunpack.c.l.b16 %v79
    %v310 = vunpack.c.l.b16 %v81
    %v311 = vunpack.c.l.b16 %v82
    %v312 = vunpack.c.l.b16 %v83
    %v313 = vunpack.c.l.b16 %v85
    %v314 = vunpack.c.l.b16 %v86
    %v315 = vunpack.c.l.b16 %v87
    %v316 = vunpack.c.l.b16 %v89
    %v317 = vunpack.c.l.b16 %v90
    %v318 = vunpack.c.l.b16 %v91
    %v319 = vunpack.c.l.b16 %v93
    %v320 = vunpack.c.l.b16 %v94
    %v321 = vunpack.c.l.b16 %v95
    %v322 = vunpack.c.l.b16 %v97
    %v323 = vunpack.c.l.b16 %v98
    %v324 = vunpack.c.l.b16 %v99
    %v325 = vunpack.c.l.b16 %v109
    %v326 = vunpack.c.l.b16 %v110
    %v327 = vunpack.c.l.b16 %v111
    %v328 = vunpack.c.l.b16 %v113
    %v329 = vunpack.c.l.b16 %v114
    %v330 = vunpack.c.l.b16 %v115
    %v331 = vunpack.c.l.b16 %v117
    %v332 = vunpack.c.l.b16 %v118
    %v333 = vunpack.c.l.b16 %v119
    %v334 = vunpack.c.l.b16 %v121
    %v335 = vunpack.c.l.b16 %v122
    %v336 = vunpack.c.l.b16 %v123
    %v337 = vunpack.c.l.b16 %v125
    %v338 = vunpack.c.l.b16 %v126
    %v339 = vunpack.c.l.b16 %v127
    %v340 = vunpack.c.l.b16 %v129
    %v341 = vunpack.c.l.b16 %v130
    %v342 = vunpack.c.l.b16 %v131
    %v343 = vunpack.c.l.b16 %v133
    %v344 = vunpack.c.l.b16 %v134
    %v345 = vunpack.c.l.b16 %v135
    %v346 = vunpack.c.l.b16 %v137
    %v347 = vunpack.c.l.b16 %v138
    %v348 = vunpack.c.l.b16 %v139
    %v349 = vunpack.c.l.b16 %v141
    %v350 = vunpack.c.l.b16 %v142
    %v351 = vunpack.c.l.b16 %v143
    %v352 = vunpack.c.l.b16 %v145
    %v353 = vunpack.c.l.b16 %v146
    %v354 = vunpack.c.l.b16 %v147
    %v355 = vunpack.c.l.b16 %v149
    %v356 = vunpack.c.l.b16 %v150
    %v357 = vunpack.c.l.b16 %v151
    %v358 = vunpack.c.l.b16 %v153
    %v359 = vunpack.c.l.b16 %v154
    %v360 = vunpack.c.l.b16 %v155
    %v361 = vunpack.c.l.b16 %v157
    %v362 = vunpack.c.l.b16 %v158
    %v363 = vunpack.c.l.b16 %v159
    %v364 = vunpack.c.l.b16 %v161
    %v365 = vunpack.c.l.b16 %v162
    %v366 = vunpack.c.l.b16 %v163
    %v367 = vunpack.c.l.b16 %v165
    %v368 = vunpack.c.l.b16 %v166
    %v369 = vunpack.c.l.b16 %v167
    %v370 = vunpack.c.l.b16 %v169
    %v371 = vunpack.c.l.b16 %v170
    %v372 = vunpack.c.l.b16 %v171
    %v405 = vunpack.c.l.b16 %v40
    %v406 = vunpack.c.l.b16 %v44
    %v407 = vunpack.c.l.b16 %v48
    %v408 = vunpack.c.l.b16 %v52
    %v409 = vunpack.c.l.b16 %v56
    %v410 = vunpack.c.l.b16 %v60
    %v411 = vunpack.c.l.b16 %v64
    %v412 = vunpack.c.l.b16 %v68
    %v413 = vunpack.c.l.b16 %v72
    %v414 = vunpack.c.l.b16 %v76
    %v415 = vunpack.c.l.b16 %v80
    %v416 = vunpack.c.l.b16 %v84
    %v417 = vunpack.c.l.b16 %v88
    %v418 = vunpack.c.l.b16 %v92
    %v419 = vunpack.c.l.b16 %v96
    %v420 = vunpack.c.l.b16 %v100
    %v421 = vunpack.c.l.b16 %v112
    %v422 = vunpack.c.l.b16 %v116
    %v423 = vunpack.c.l.b16 %v120
    %v424 = vunpack.c.l.b16 %v124
    %v425 = vunpack.c.l.b16 %v128
    %v426 = vunpack.c.l.b16 %v132
    %v427 = vunpack.c.l.b16 %v136
    %v428 = vunpack.c.l.b16 %v140
    %v429 = vunpack.c.l.b16 %v144
    %v430 = vunpack.c.l.b16 %v148
    %v431 = vunpack.c.l.b16 %v152
    %v432 = vunpack.c.l.b16 %v156
    %v433 = vunpack.c.l.b16 %v160
    %v434 = vunpack.c.l.b16 %v164
    %v435 = vunpack.c.l.b16 %v168
    %v436 = vunpack.c.l.b16 %v172
    %v437 = vpack.c.b16 %v278, %v277
    %v438 = vpack.c.b16 %v405, %v279
    %v439 = vpack.c.b16 %v281, %v280
    %v440 = vpack.c.b16 %v406, %v282
    %v441 = vpack.c.b16 %v284, %v283
    %v442 = vpack.c.b16 %v407, %v285
    %v443 = vpack.c.b16 %v287, %v286
    %v444 = vpack.c.b16 %v408, %v288
    %v445 = vpack.c.b16 %v290, %v289
    %v446 = vpack.c.b16 %v409, %v291
    %v447 = vpack.c.b16 %v293, %v292
    %v448 = vpack.c.b16 %v410, %v294
    %v449 = vpack.c.b16 %v296, %v295
    %v450 = vpack.c.b16 %v411, %v297
    %v451 = vpack.c.b16 %v299, %v298
    %v452 = vpack.c.b16 %v412, %v300
    %v453 = vpack.c.b16 %v302, %v301
    %v454 = vpack.c.b16 %v413, %v303
    %v455 = vpack.c.b16 %v305, %v304
    %v456 = vpack.c.b16 %v414, %v306
    %v457 = vpack.c.b16 %v308, %v307
    %v458 = vpack.c.b16 %v415, %v309
    %v459 = vpack.c.b16 %v311, %v310
    %v460 = vpack.c.b16 %v416, %v312
    %v461 = vpack.c.b16 %v314, %v313
    %v462 = vpack.c.b16 %v417, %v315
    %v463 = vpack.c.b16 %v317, %v316
    %v464 = vpack.c.b16 %v418, %v318
    %v465 = vpack.c.b16 %v320, %v319
    %v466 = vpack.c.b16 %v419, %v321
    %v467 = vpack.c.b16 %v323, %v322
    %v468 = vpack.c.b16 %v420, %v324
    %v469 = vpack.c.b16 %v326, %v325
    %v470 = vpack.c.b16 %v421, %v327
    %v471 = vpack.c.b16 %v329, %v328
    %v472 = vpack.c.b16 %v422, %v330
    %v473 = vpack.c.b16 %v332, %v331
    %v474 = vpack.c.b16 %v423, %v333
    %v475 = vpack.c.b16 %v335, %v334
    %v476 = vpack.c.b16 %v424, %v336
    %v477 = vpack.c.b16 %v338, %v337
    %v478 = vpack.c.b16 %v425, %v339
    %v479 = vpack.c.b16 %v341, %v340
    %v480 = vpack.c.b16 %v426, %v342
    %v481 = vpack.c.b16 %v344, %v343
    %v482 = vpack.c.b16 %v427, %v345
    %v483 = vpack.c.b16 %v347, %v346
    %v484 = vpack.c.b16 %v428, %v348
    %v485 = vpack.c.b16 %v350, %v349
    %v486 = vpack.c.b16 %v429, %v351
    %v487 = vpack.c.b16 %v353, %v352
    %v488 = vpack.c.b16 %v430, %v354
    %v489 = vpack.c.b16 %v356, %v355
    %v490 = vpack.c.b16 %v431, %v357
    %v491 = vpack.c.b16 %v359, %v358
    %v492 = vpack.c.b16 %v432, %v360
    %v493 = vpack.c.b16 %v362, %v361
    %v494 = vpack.c.b16 %v433, %v363
    %v495 = vpack.c.b16 %v365, %v364
    %v496 = vpack.c.b16 %v434, %v366
    %v497 = vpack.c.b16 %v368, %v367
    %v498 = vpack.c.b16 %v435, %v369
    %v499 = vpack.c.b16 %v371, %v370
    %v500 = vpack.c.b16 %v436, %v372
    %vm501 = vsmask.f32 7424
    %v503 = vshrl.u32 %v437, 16
    %v505 = vshll.u32 %v437, 16
    %v507 = vrot.slane %v505, 1
    %v508 = vor.u32 %v503, %v507
    %v510 = vshll.u32 %v438, 16
    %v512 = vrot.slane %v510, 1
    %v513 = vsel %vm501, %v508, %v512
    %v514 = vshrl.u32 %v438, 16
    %v516 = vor.u32 %v514, %v512
    %v518 = vshrl.u32 %v439, 16
    %v520 = vshll.u32 %v439, 16
    %v522 = vrot.slane %v520, 1
    %v523 = vor.u32 %v518, %v522
    %v525 = vshll.u32 %v440, 16
    %v527 = vrot.slane %v525, 1
    %v528 = vsel %vm501, %v523, %v527
    %v529 = vshrl.u32 %v440, 16
    %v531 = vor.u32 %v529, %v527
    %v533 = vshrl.u32 %v441, 16
    %v535 = vshll.u32 %v441, 16
    %v537 = vrot.slane %v535, 1
    %v538 = vor.u32 %v533, %v537
    %v540 = vshll.u32 %v442, 16
    %v542 = vrot.slane %v540, 1
    %v543 = vsel %vm501, %v538, %v542
    %v544 = vshrl.u32 %v442, 16
    %v546 = vor.u32 %v544, %v542
    %v548 = vshrl.u32 %v443, 16
    %v550 = vshll.u32 %v443, 16
    %v552 = vrot.slane %v550, 1
    %v553 = vor.u32 %v548, %v552
    %v555 = vshll.u32 %v444, 16
    %v557 = vrot.slane %v555, 1
    %v558 = vsel %vm501, %v553, %v557
    %v559 = vshrl.u32 %v444, 16
    %v561 = vor.u32 %v559, %v557
    %v563 = vshrl.u32 %v445, 16
    %v565 = vshll.u32 %v445, 16
    %v567 = vrot.slane %v565, 1
    %v568 = vor.u32 %v563, %v567
    %v570 = vshll.u32 %v446, 16
    %v572 = vrot.slane %v570, 1
    %v573 = vsel %vm501, %v568, %v572
    %v574 = vshrl.u32 %v446, 16
    %v576 = vor.u32 %v574, %v572
    %v578 = vshrl.u32 %v447, 16
    %v580 = vshll.u32 %v447, 16
    %v582 = vrot.slane %v580, 1
    %v583 = vor.u32 %v578, %v582
    %v585 = vshll.u32 %v448, 16
    %v587 = vrot.slane %v585, 1
    %v588 = vsel %vm501, %v583, %v587
    %v589 = vshrl.u32 %v448, 16
    %v591 = vor.u32 %v589, %v587
    %v593 = vshrl.u32 %v449, 16
    %v595 = vshll.u32 %v449, 16
    %v597 = vrot.slane %v595, 1
    %v598 = vor.u32 %v593, %v597
    %v600 = vshll.u32 %v450, 16
    %v602 = vrot.slane %v600, 1
    %v603 = vsel %vm501, %v598, %v602
    %v604 = vshrl.u32 %v450, 16
    %v606 = vor.u32 %v604, %v602
    %v608 = vshrl.u32 %v451, 16
    %v610 = vshll.u32 %v451, 16
    %v612 = vrot.slane %v610, 1
    %v613 = vor.u32 %v608, %v612
    %v615 = vshll.u32 %v452, 16
    %v617 = vrot.slane %v615, 1
    %v618 = vsel %vm501, %v613, %v617
    %v619 = vshrl.u32 %v452, 16
    %v621 = vor.u32 %v619, %v617
    %v623 = vshrl.u32 %v453, 16
    %v625 = vshll.u32 %v453, 16
    %v627 = vrot.slane %v625, 1
    %v628 = vor.u32 %v623, %v627
    %v630 = vshll.u32 %v454, 16
    %v632 = vrot.slane %v630, 1
    %v633 = vsel %vm501, %v628, %v632
    %v634 = vshrl.u32 %v454, 16
    %v636 = vor.u32 %v634, %v632
    %v638 = vshrl.u32 %v455, 16
    %v640 = vshll.u32 %v455, 16
    %v642 = vrot.slane %v640, 1
    %v643 = vor.u32 %v638, %v642
    %v645 = vshll.u32 %v456, 16
    %v647 = vrot.slane %v645, 1
    %v648 = vsel %vm501, %v643, %v647
    %v649 = vshrl.u32 %v456, 16
    %v651 = vor.u32 %v649, %v647
    %v653 = vshrl.u32 %v457, 16
    %v655 = vshll.u32 %v457, 16
    %v657 = vrot.slane %v655, 1
    %v658 = vor.u32 %v653, %v657
    %v660 = vshll.u32 %v458, 16
    %v662 = vrot.slane %v660, 1
    %v663 = vsel %vm501, %v658, %v662
    %v664 = vshrl.u32 %v458, 16
    %v666 = vor.u32 %v664, %v662
    %v668 = vshrl.u32 %v459, 16
    %v670 = vshll.u32 %v459, 16
    %v672 = vrot.slane %v670, 1
    %v673 = vor.u32 %v668, %v672
    %v675 = vshll.u32 %v460, 16
    %v677 = vrot.slane %v675, 1
    %v678 = vsel %vm501, %v673, %v677
    %v679 = vshrl.u32 %v460, 16
    %v681 = vor.u32 %v679, %v677
    %v683 = vshrl.u32 %v461, 16
    %v685 = vshll.u32 %v461, 16
    %v687 = vrot.slane %v685, 1
    %v688 = vor.u32 %v683, %v687
    %v690 = vshll.u32 %v462, 16
    %v692 = vrot.slane %v690, 1
    %v693 = vsel %vm501, %v688, %v692
    %v694 = vshrl.u32 %v462, 16
    %v696 = vor.u32 %v694, %v692
    %v698 = vshrl.u32 %v463, 16
    %v700 = vshll.u32 %v463, 16
    %v702 = vrot.slane %v700, 1
    %v703 = vor.u32 %v698, %v702
    %v705 = vshll.u32 %v464, 16
    %v707 = vrot.slane %v705, 1
    %v708 = vsel %vm501, %v703, %v707
    %v709 = vshrl.u32 %v464, 16
    %v711 = vor.u32 %v709, %v707
    %v713 = vshrl.u32 %v465, 16
    %v715 = vshll.u32 %v465, 16
    %v717 = vrot.slane %v715, 1
    %v718 = vor.u32 %v713, %v717
    %v720 = vshll.u32 %v466, 16
    %v722 = vrot.slane %v720, 1
    %v723 = vsel %vm501, %v718, %v722
    %v724 = vshrl.u32 %v466, 16
    %v726 = vor.u32 %v724, %v722
    %v728 = vshrl.u32 %v467, 16
    %v730 = vshll.u32 %v467, 16
    %v732 = vrot.slane %v730, 1
    %v733 = vor.u32 %v728, %v732
    %v735 = vshll.u32 %v468, 16
    %v737 = vrot.slane %v735, 1
    %v738 = vsel %vm501, %v733, %v737
    %v739 = vshrl.u32 %v468, 16
    %v741 = vor.u32 %v739, %v737
    %v743 = vshrl.u32 %v469, 16
    %v745 = vshll.u32 %v469, 16
    %v747 = vrot.slane %v745, 1
    %v748 = vor.u32 %v743, %v747
    %v750 = vshll.u32 %v470, 16
    %v752 = vrot.slane %v750, 1
    %v753 = vsel %vm501, %v748, %v752
    %v754 = vshrl.u32 %v470, 16
    %v756 = vor.u32 %v754, %v752
    %v758 = vshrl.u32 %v471, 16
    %v760 = vshll.u32 %v471, 16
    %v762 = vrot.slane %v760, 1
    %v763 = vor.u32 %v758, %v762
    %v765 = vshll.u32 %v472, 16
    %v767 = vrot.slane %v765, 1
    %v768 = vsel %vm501, %v763, %v767
    %v769 = vshrl.u32 %v472, 16
    %v771 = vor.u32 %v769, %v767
    %v773 = vshrl.u32 %v473, 16
    %v775 = vshll.u32 %v473, 16
    %v777 = vrot.slane %v775, 1
    %v778 = vor.u32 %v773, %v777
    %v780 = vshll.u32 %v474, 16
    %v782 = vrot.slane %v780, 1
    %v783 = vsel %vm501, %v778, %v782
    %v784 = vshrl.u32 %v474, 16
    %v786 = vor.u32 %v784, %v782
    %v788 = vshrl.u32 %v475, 16
    %v790 = vshll.u32 %v475, 16
    %v792 = vrot.slane %v790, 1
    %v793 = vor.u32 %v788, %v792
    %v795 = vshll.u32 %v476, 16
    %v797 = vrot.slane %v795, 1
    %v798 = vsel %vm501, %v793, %v797
    %v799 = vshrl.u32 %v476, 16
    %v801 = vor.u32 %v799, %v797
    %v803 = vshrl.u32 %v477, 16
    %v805 = vshll.u32 %v477, 16
    %v807 = vrot.slane %v805, 1
    %v808 = vor.u32 %v803, %v807
    %v810 = vshll.u32 %v478, 16
    %v812 = vrot.slane %v810, 1
    %v813 = vsel %vm501, %v808, %v812
    %v814 = vshrl.u32 %v478, 16
    %v816 = vor.u32 %v814, %v812
    %v818 = vshrl.u32 %v479, 16
    %v820 = vshll.u32 %v479, 16
    %v822 = vrot.slane %v820, 1
    %v823 = vor.u32 %v818, %v822
    %v825 = vshll.u32 %v480, 16
    %v827 = vrot.slane %v825, 1
    %v828 = vsel %vm501, %v823, %v827
    %v829 = vshrl.u32 %v480, 16
    %v831 = vor.u32 %v829, %v827
    %v833 = vshrl.u32 %v481, 16
    %v835 = vshll.u32 %v481, 16
    %v837 = vrot.slane %v835, 1
    %v838 = vor.u32 %v833, %v837
    %v840 = vshll.u32 %v482, 16
    %v842 = vrot.slane %v840, 1
    %v843 = vsel %vm501, %v838, %v842
    %v844 = vshrl.u32 %v482, 16
    %v846 = vor.u32 %v844, %v842
    %v848 = vshrl.u32 %v483, 16
    %v850 = vshll.u32 %v483, 16
    %v852 = vrot.slane %v850, 1
    %v853 = vor.u32 %v848, %v852
    %v855 = vshll.u32 %v484, 16
    %v857 = vrot.slane %v855, 1
    %v858 = vsel %vm501, %v853, %v857
    %v859 = vshrl.u32 %v484, 16
    %v861 = vor.u32 %v859, %v857
    %v863 = vshrl.u32 %v485, 16
    %v865 = vshll.u32 %v485, 16
    %v867 = vrot.slane %v865, 1
    %v868 = vor.u32 %v863, %v867
    %v870 = vshll.u32 %v486, 16
    %v872 = vrot.slane %v870, 1
    %v873 = vsel %vm501, %v868, %v872
    %v874 = vshrl.u32 %v486, 16
    %v876 = vor.u32 %v874, %v872
    %v878 = vshrl.u32 %v487, 16
    %v880 = vshll.u32 %v487, 16
    %v882 = vrot.slane %v880, 1
    %v883 = vor.u32 %v878, %v882
    %v885 = vshll.u32 %v488, 16
    %v887 = vrot.slane %v885, 1
    %v888 = vsel %vm501, %v883, %v887
    %v889 = vshrl.u32 %v488, 16
    %v891 = vor.u32 %v889, %v887
    %v893 = vshrl.u32 %v489, 16
    %v895 = vshll.u32 %v489, 16
    %v897 = vrot.slane %v895, 1
    %v898 = vor.u32 %v893, %v897
    %v900 = vshll.u32 %v490, 16
    %v902 = vrot.slane %v900, 1
    %v903 = vsel %vm501, %v898, %v902
    %v904 = vshrl.u32 %v490, 16
    %v906 = vor.u32 %v904, %v902
    %v908 = vshrl.u32 %v491, 16
    %v910 = vshll.u32 %v491, 16
    %v912 = vrot.slane %v910, 1
    %v913 = vor.u32 %v908, %v912
    %v915 = vshll.u32 %v492, 16
    %v917 = vrot.slane %v915, 1
    %v918 = vsel %vm501, %v913, %v917
    %v919 = vshrl.u32 %v492, 16
    %v921 = vor.u32 %v919, %v917
    %v923 = vshrl.u32 %v493, 16
    %v925 = vshll.u32 %v493, 16
    %v927 = vrot.slane %v925, 1
    %v928 = vor.u32 %v923, %v927
    %v930 = vshll.u32 %v494, 16
    %v932 = vrot.slane %v930, 1
    %v933 = vsel %vm501, %v928, %v932
    %v934 = vshrl.u32 %v494, 16
    %v936 = vor.u32 %v934, %v932
    %v938 = vshrl.u32 %v495, 16
    %v940 = vshll.u32 %v495, 16
    %v942 = vrot.slane %v940, 1
    %v943 = vor.u32 %v938, %v942
    %v945 = vshll.u32 %v496, 16
    %v947 = vrot.slane %v945, 1
    %v948 = vsel %vm501, %v943, %v947
    %v949 = vshrl.u32 %v496, 16
    %v951 = vor.u32 %v949, %v947
    %v953 = vshrl.u32 %v497, 16
    %v955 = vshll.u32 %v497, 16
    %v957 = vrot.slane %v955, 1
    %v958 = vor.u32 %v953, %v957
    %v960 = vshll.u32 %v498, 16
    %v962 = vrot.slane %v960, 1
    %v963 = vsel %vm501, %v958, %v962
    %v964 = vshrl.u32 %v498, 16
    %v966 = vor.u32 %v964, %v962
    %v968 = vshrl.u32 %v499, 16
    %v970 = vshll.u32 %v499, 16
    %v972 = vrot.slane %v970, 1
    %v973 = vor.u32 %v968, %v972
    %v975 = vshll.u32 %v500, 16
    %v977 = vrot.slane %v975, 1
    %v978 = vsel %vm501, %v973, %v977
    %v979 = vshrl.u32 %v500, 16
    %v981 = vor.u32 %v979, %v977
    %vm982 = vcmask 1046528
    %v983 = vrot.slane %v437, 1
    %v984 = vrot.slane %v438, 1
    %v985 = vsel %vm982, %v983, %v984
    %v986 = vrot.slane %v439, 1
    %v987 = vrot.slane %v440, 1
    %v988 = vsel %vm982, %v986, %v987
    %v989 = vrot.slane %v441, 1
    %v990 = vrot.slane %v442, 1
    %v991 = vsel %vm982, %v989, %v990
    %v992 = vrot.slane %v443, 1
    %v993 = vrot.slane %v444, 1
    %v994 = vsel %vm982, %v992, %v993
    %v995 = vrot.slane %v445, 1
    %v996 = vrot.slane %v446, 1
    %v997 = vsel %vm982, %v995, %v996
    %v998 = vrot.slane %v447, 1
    %v999 = vrot.slane %v448, 1
    %v1000 = vsel %vm982, %v998, %v999
    %v1001 = vrot.slane %v449, 1
    %v1002 = vrot.slane %v450, 1
    %v1003 = vsel %vm982, %v1001, %v1002
    %v1004 = vrot.slane %v451, 1
    %v1005 = vrot.slane %v452, 1
    %v1006 = vsel %vm982, %v1004, %v1005
    %v1007 = vrot.slane %v453, 1
    %v1008 = vrot.slane %v454, 1
    %v1009 = vsel %vm982, %v1007, %v1008
    %v1010 = vrot.slane %v455, 1
    %v1011 = vrot.slane %v456, 1
    %v1012 = vsel %vm982, %v1010, %v1011
    %v1013 = vrot.slane %v457, 1
    %v1014 = vrot.slane %v458, 1
    %v1015 = vsel %vm982, %v1013, %v1014
    %v1016 = vrot.slane %v459, 1
    %v1017 = vrot.slane %v460, 1
    %v1018 = vsel %vm982, %v1016, %v1017
    %v1019 = vrot.slane %v461, 1
    %v1020 = vrot.slane %v462, 1
    %v1021 = vsel %vm982, %v1019, %v1020
    %v1022 = vrot.slane %v463, 1
    %v1023 = vrot.slane %v464, 1
    %v1024 = vsel %vm982, %v1022, %v1023
    %v1025 = vrot.slane %v465, 1
    %v1026 = vrot.slane %v466, 1
    %v1027 = vsel %vm982, %v1025, %v1026
    %v1028 = vrot.slane %v467, 1
    %v1029 = vrot.slane %v468, 1
    %v1030 = vsel %vm982, %v1028, %v1029
    %v1031 = vrot.slane %v469, 1
    %v1032 = vrot.slane %v470, 1
    %v1033 = vsel %vm982, %v1031, %v1032
    %v1034 = vrot.slane %v471, 1
    %v1035 = vrot.slane %v472, 1
    %v1036 = vsel %vm982, %v1034, %v1035
    %v1037 = vrot.slane %v473, 1
    %v1038 = vrot.slane %v474, 1
    %v1039 = vsel %vm982, %v1037, %v1038
    %v1040 = vrot.slane %v475, 1
    %v1041 = vrot.slane %v476, 1
    %v1042 = vsel %vm982, %v1040, %v1041
    %v1043 = vrot.slane %v477, 1
    %v1044 = vrot.slane %v478, 1
    %v1045 = vsel %vm982, %v1043, %v1044
    %v1046 = vrot.slane %v479, 1
    %v1047 = vrot.slane %v480, 1
    %v1048 = vsel %vm982, %v1046, %v1047
    %v1049 = vrot.slane %v481, 1
    %v1050 = vrot.slane %v482, 1
    %v1051 = vsel %vm982, %v1049, %v1050
    %v1052 = vrot.slane %v483, 1
    %v1053 = vrot.slane %v484, 1
    %v1054 = vsel %vm982, %v1052, %v1053
    %v1055 = vrot.slane %v485, 1
    %v1056 = vrot.slane %v486, 1
    %v1057 = vsel %vm982, %v1055, %v1056
    %v1058 = vrot.slane %v487, 1
    %v1059 = vrot.slane %v488, 1
    %v1060 = vsel %vm982, %v1058, %v1059
    %v1061 = vrot.slane %v489, 1
    %v1062 = vrot.slane %v490, 1
    %v1063 = vsel %vm982, %v1061, %v1062
    %v1064 = vrot.slane %v491, 1
    %v1065 = vrot.slane %v492, 1
    %v1066 = vsel %vm982, %v1064, %v1065
    %v1067 = vrot.slane %v493, 1
    %v1068 = vrot.slane %v494, 1
    %v1069 = vsel %vm982, %v1067, %v1068
    %v1070 = vrot.slane %v495, 1
    %v1071 = vrot.slane %v496, 1
    %v1072 = vsel %vm982, %v1070, %v1071
    %v1073 = vrot.slane %v497, 1
    %v1074 = vrot.slane %v498, 1
    %v1075 = vsel %vm982, %v1073, %v1074
    %v1076 = vrot.slane %v499, 1
    %v1077 = vrot.slane %v500, 1
    %v1078 = vsel %vm982, %v1076, %v1077
    %v1079 = vunpack.c.l.b16 %v513
    %v1080 = vunpack.c.l.b16 %v985
    %v1081 = vunpack.c.h.b16 %v513
    %v1082 = vunpack.c.h.b16 %v985
    %v1083 = vunpack.c.l.b16 %v516
    %v1084 = vunpack.c.l.b16 %v984
    %v1085 = vunpack.c.l.b16 %v528
    %v1086 = vunpack.c.l.b16 %v988
    %v1087 = vunpack.c.h.b16 %v528
    %v1088 = vunpack.c.h.b16 %v988
    %v1089 = vunpack.c.l.b16 %v531
    %v1090 = vunpack.c.l.b16 %v987
    %v1091 = vunpack.c.l.b16 %v543
    %v1092 = vunpack.c.l.b16 %v991
    %v1093 = vunpack.c.h.b16 %v543
    %v1094 = vunpack.c.h.b16 %v991
    %v1095 = vunpack.c.l.b16 %v546
    %v1096 = vunpack.c.l.b16 %v990
    %v1097 = vunpack.c.l.b16 %v558
    %v1098 = vunpack.c.l.b16 %v994
    %v1099 = vunpack.c.h.b16 %v558
    %v1100 = vunpack.c.h.b16 %v994
    %v1101 = vunpack.c.l.b16 %v561
    %v1102 = vunpack.c.l.b16 %v993
    %v1103 = vunpack.c.l.b16 %v573
    %v1104 = vunpack.c.l.b16 %v997
    %v1105 = vunpack.c.h.b16 %v573
    %v1106 = vunpack.c.h.b16 %v997
    %v1107 = vunpack.c.l.b16 %v576
    %v1108 = vunpack.c.l.b16 %v996
    %v1109 = vunpack.c.l.b16 %v588
    %v1110 = vunpack.c.l.b16 %v1000
    %v1111 = vunpack.c.h.b16 %v588
    %v1112 = vunpack.c.h.b16 %v1000
    %v1113 = vunpack.c.l.b16 %v591
    %v1114 = vunpack.c.l.b16 %v999
    %v1115 = vunpack.c.l.b16 %v603
    %v1116 = vunpack.c.l.b16 %v1003
    %v1117 = vunpack.c.h.b16 %v603
    %v1118 = vunpack.c.h.b16 %v1003
    %v1119 = vunpack.c.l.b16 %v606
    %v1120 = vunpack.c.l.b16 %v1002
    %v1121 = vunpack.c.l.b16 %v618
    %v1122 = vunpack.c.l.b16 %v1006
    %v1123 = vunpack.c.h.b16 %v618
    %v1124 = vunpack.c.h.b16 %v1006
    %v1125 = vunpack.c.l.b16 %v621
    %v1126 = vunpack.c.l.b16 %v1005
    %v1127 = vunpack.c.l.b16 %v633
    %v1128 = vunpack.c.l.b16 %v1009
    %v1129 = vunpack.c.h.b16 %v633
    %v1130 = vunpack.c.h.b16 %v1009
    %v1131 = vunpack.c.l.b16 %v636
    %v1132 = vunpack.c.l.b16 %v1008
    %v1133 = vunpack.c.l.b16 %v648
    %v1134 = vunpack.c.l.b16 %v1012
    %v1135 = vunpack.c.h.b16 %v648
    %v1136 = vunpack.c.h.b16 %v1012
    %v1137 = vunpack.c.l.b16 %v651
    %v1138 = vunpack.c.l.b16 %v1011
    %v1139 = vunpack.c.l.b16 %v663
    %v1140 = vunpack.c.l.b16 %v1015
    %v1141 = vunpack.c.h.b16 %v663
    %v1142 = vunpack.c.h.b16 %v1015
    %v1143 = vunpack.c.l.b16 %v666
    %v1144 = vunpack.c.l.b16 %v1014
    %v1145 = vunpack.c.l.b16 %v678
    %v1146 = vunpack.c.l.b16 %v1018
    %v1147 = vunpack.c.h.b16 %v678
    %v1148 = vunpack.c.h.b16 %v1018
    %v1149 = vunpack.c.l.b16 %v681
    %v1150 = vunpack.c.l.b16 %v1017
    %v1151 = vunpack.c.l.b16 %v693
    %v1152 = vunpack.c.l.b16 %v1021
    %v1153 = vunpack.c.h.b16 %v693
    %v1154 = vunpack.c.h.b16 %v1021
    %v1155 = vunpack.c.l.b16 %v696
    %v1156 = vunpack.c.l.b16 %v1020
    %v1157 = vunpack.c.l.b16 %v708
    %v1158 = vunpack.c.l.b16 %v1024
    %v1159 = vunpack.c.h.b16 %v708
    %v1160 = vunpack.c.h.b16 %v1024
    %v1161 = vunpack.c.l.b16 %v711
    %v1162 = vunpack.c.l.b16 %v1023
    %v1163 = vunpack.c.l.b16 %v723
    %v1164 = vunpack.c.l.b16 %v1027
    %v1165 = vunpack.c.h.b16 %v723
    %v1166 = vunpack.c.h.b16 %v1027
    %v1167 = vunpack.c.l.b16 %v726
    %v1168 = vunpack.c.l.b16 %v1026
    %v1169 = vunpack.c.l.b16 %v738
    %v1170 = vunpack.c.l.b16 %v1030
    %v1171 = vunpack.c.h.b16 %v738
    %v1172 = vunpack.c.h.b16 %v1030
    %v1173 = vunpack.c.l.b16 %v741
    %v1174 = vunpack.c.l.b16 %v1029
    %v1175 = vunpack.c.l.b16 %v753
    %v1176 = vunpack.c.l.b16 %v1033
    %v1177 = vunpack.c.h.b16 %v753
    %v1178 = vunpack.c.h.b16 %v1033
    %v1179 = vunpack.c.l.b16 %v756
    %v1180 = vunpack.c.l.b16 %v1032
    %v1181 = vunpack.c.l.b16 %v768
    %v1182 = vunpack.c.l.b16 %v1036
    %v1183 = vunpack.c.h.b16 %v768
    %v1184 = vunpack.c.h.b16 %v1036
    %v1185 = vunpack.c.l.b16 %v771
    %v1186 = vunpack.c.l.b16 %v1035
    %v1187 = vunpack.c.l.b16 %v783
    %v1188 = vunpack.c.l.b16 %v1039
    %v1189 = vunpack.c.h.b16 %v783
    %v1190 = vunpack.c.h.b16 %v1039
    %v1191 = vunpack.c.l.b16 %v786
    %v1192 = vunpack.c.l.b16 %v1038
    %v1193 = vunpack.c.l.b16 %v798
    %v1194 = vunpack.c.l.b16 %v1042
    %v1195 = vunpack.c.h.b16 %v798
    %v1196 = vunpack.c.h.b16 %v1042
    %v1197 = vunpack.c.l.b16 %v801
    %v1198 = vunpack.c.l.b16 %v1041
    %v1199 = vunpack.c.l.b16 %v813
    %v1200 = vunpack.c.l.b16 %v1045
    %v1201 = vunpack.c.h.b16 %v813
    %v1202 = vunpack.c.h.b16 %v1045
    %v1203 = vunpack.c.l.b16 %v816
    %v1204 = vunpack.c.l.b16 %v1044
    %v1205 = vunpack.c.l.b16 %v828
    %v1206 = vunpack.c.l.b16 %v1048
    %v1207 = vunpack.c.h.b16 %v828
    %v1208 = vunpack.c.h.b16 %v1048
    %v1209 = vunpack.c.l.b16 %v831
    %v1210 = vunpack.c.l.b16 %v1047
    %v1211 = vunpack.c.l.b16 %v843
    %v1212 = vunpack.c.l.b16 %v1051
    %v1213 = vunpack.c.h.b16 %v843
    %v1214 = vunpack.c.h.b16 %v1051
    %v1215 = vunpack.c.l.b16 %v846
    %v1216 = vunpack.c.l.b16 %v1050
    %v1217 = vunpack.c.l.b16 %v858
    %v1218 = vunpack.c.l.b16 %v1054
    %v1219 = vunpack.c.h.b16 %v858
    %v1220 = vunpack.c.h.b16 %v1054
    %v1221 = vunpack.c.l.b16 %v861
    %v1222 = vunpack.c.l.b16 %v1053
    %v1223 = vunpack.c.l.b16 %v873
    %v1224 = vunpack.c.l.b16 %v1057
    %v1225 = vunpack.c.h.b16 %v873
    %v1226 = vunpack.c.h.b16 %v1057
    %v1227 = vunpack.c.l.b16 %v876
    %v1228 = vunpack.c.l.b16 %v1056
    %v1229 = vunpack.c.l.b16 %v888
    %v1230 = vunpack.c.l.b16 %v1060
    %v1231 = vunpack.c.h.b16 %v888
    %v1232 = vunpack.c.h.b16 %v1060
    %v1233 = vunpack.c.l.b16 %v891
    %v1234 = vunpack.c.l.b16 %v1059
    %v1235 = vunpack.c.l.b16 %v903
    %v1236 = vunpack.c.l.b16 %v1063
    %v1237 = vunpack.c.h.b16 %v903
    %v1238 = vunpack.c.h.b16 %v1063
    %v1239 = vunpack.c.l.b16 %v906
    %v1240 = vunpack.c.l.b16 %v1062
    %v1241 = vunpack.c.l.b16 %v918
    %v1242 = vunpack.c.l.b16 %v1066
    %v1243 = vunpack.c.h.b16 %v918
    %v1244 = vunpack.c.h.b16 %v1066
    %v1245 = vunpack.c.l.b16 %v921
    %v1246 = vunpack.c.l.b16 %v1065
    %v1247 = vunpack.c.l.b16 %v933
    %v1248 = vunpack.c.l.b16 %v1069
    %v1249 = vunpack.c.h.b16 %v933
    %v1250 = vunpack.c.h.b16 %v1069
    %v1251 = vunpack.c.l.b16 %v936
    %v1252 = vunpack.c.l.b16 %v1068
    %v1253 = vunpack.c.l.b16 %v948
    %v1254 = vunpack.c.l.b16 %v1072
    %v1255 = vunpack.c.h.b16 %v948
    %v1256 = vunpack.c.h.b16 %v1072
    %v1257 = vunpack.c.l.b16 %v951
    %v1258 = vunpack.c.l.b16 %v1071
    %v1259 = vunpack.c.l.b16 %v963
    %v1260 = vunpack.c.l.b16 %v1075
    %v1261 = vunpack.c.h.b16 %v963
    %v1262 = vunpack.c.h.b16 %v1075
    %v1263 = vunpack.c.l.b16 %v966
    %v1264 = vunpack.c.l.b16 %v1074
    %v1265 = vunpack.c.l.b16 %v978
    %v1266 = vunpack.c.l.b16 %v1078
    %v1267 = vunpack.c.h.b16 %v978
    %v1268 = vunpack.c.h.b16 %v1078
    %v1269 = vunpack.c.l.b16 %v981
    %v1270 = vunpack.c.l.b16 %v1077
    %v1271 = vld [vmem:[%s1] sm:$0xf]
    %v1272 = vld [vmem:[%s1 + $0x4] sm:$0xf]
    %v1273 = vld [vmem:[%s1 + $0x8] sm:$0xf]
    %v1274 = vld [vmem:[%s1 + $0xc] sm:$0xf]
    %v1275 = vld [vmem:[%s1 + $0x10] sm:$0xf]
    %v1276 = vld [vmem:[%s1 + $0x14] sm:$0xf]
    %v1277 = vld [vmem:[%s1 + $0x18] sm:$0xf]
    %v1278 = vld [vmem:[%s1 + $0x1c] sm:$0xf]
    %v1279 = vld [vmem:[%s1 + $0x20] sm:$0xf]
    %v1280 = vld [vmem:[%s1 + $0x24] sm:$0xf]
    %v1281 = vld [vmem:[%s1 + $0x28] sm:$0xf]
    %v1282 = vld [vmem:[%s1 + $0x2c] sm:$0xf]
    %v1283 = vld [vmem:[%s1 + $0x30] sm:$0xf]
    %v1284 = vld [vmem:[%s1 + $0x34] sm:$0xf]
    %v1285 = vld [vmem:[%s1 + $0x38] sm:$0xf]
    %v1286 = vld [vmem:[%s1 + $0x3c] sm:$0xf]
    %v1287 = vld [vmem:[%s1 + $0x40] sm:$0xf]
    %v1288 = vld [vmem:[%s1 + $0x44] sm:$0xf]
    %v1289 = vld [vmem:[%s1 + $0x48] sm:$0xf]
    %v1290 = vld [vmem:[%s1 + $0x4c] sm:$0xf]
    %v1291 = vld [vmem:[%s1 + $0x50] sm:$0xf]
    %v1292 = vld [vmem:[%s1 + $0x54] sm:$0xf]
    %v1293 = vld [vmem:[%s1 + $0x58] sm:$0xf]
    %v1294 = vld [vmem:[%s1 + $0x5c] sm:$0xf]
    %v1295 = vld [vmem:[%s1 + $0x60] sm:$0xf]
    %v1296 = vld [vmem:[%s1 + $0x64] sm:$0xf]
    %v1297 = vld [vmem:[%s1 + $0x68] sm:$0xf]
    %v1298 = vld [vmem:[%s1 + $0x6c] sm:$0xf]
    %v1299 = vld [vmem:[%s1 + $0x70] sm:$0xf]
    %v1300 = vld [vmem:[%s1 + $0x74] sm:$0xf]
    %v1301 = vld [vmem:[%s1 + $0x78] sm:$0xf]
    %v1302 = vld [vmem:[%s1 + $0x7c] sm:$0xf]
    %v1303 = vld [vmem:[%s1 + $0x80] sm:$0xf]
    %v1304 = vld [vmem:[%s1 + $0x84] sm:$0xf]
    %v1305 = vld [vmem:[%s1 + $0x88] sm:$0xf]
    %v1306 = vld [vmem:[%s1 + $0x8c] sm:$0xf]
    %v1307 = vld [vmem:[%s1 + $0x90] sm:$0xf]
    %v1308 = vld [vmem:[%s1 + $0x94] sm:$0xf]
    %v1309 = vld [vmem:[%s1 + $0x98] sm:$0xf]
    %v1310 = vld [vmem:[%s1 + $0x9c] sm:$0xf]
    %v1311 = vld [vmem:[%s1 + $0xa0] sm:$0xf]
    %v1312 = vld [vmem:[%s1 + $0xa4] sm:$0xf]
    %v1313 = vld [vmem:[%s1 + $0xa8] sm:$0xf]
    %v1314 = vld [vmem:[%s1 + $0xac] sm:$0xf]
    %v1315 = vld [vmem:[%s1 + $0xb0] sm:$0xf]
    %v1316 = vld [vmem:[%s1 + $0xb4] sm:$0xf]
    %v1317 = vld [vmem:[%s1 + $0xb8] sm:$0xf]
    %v1318 = vld [vmem:[%s1 + $0xbc] sm:$0xf]
    %v1325 = vunpack.c.l.b16 %v101
    %v1326 = vunpack.c.l.b16 %v102
    %v1327 = vunpack.c.l.b16 %v103
    %v1328 = vunpack.c.l.b16 %v173
    %v1329 = vunpack.c.l.b16 %v174
    %v1330 = vunpack.c.l.b16 %v175
    %v1333 = vunpack.c.l.b16 %v104
    %v1334 = vunpack.c.l.b16 %v176
    %v1335 = vpack.c.b16 %v1326, %v1325
    %v1336 = vpack.c.b16 %v1333, %v1327
    %v1337 = vpack.c.b16 %v1329, %v1328
    %v1338 = vpack.c.b16 %v1334, %v1330
    %v1340 = vshrl.u32 %v1335, 16
    %v1342 = vshll.u32 %v1335, 16
    %v1344 = vrot.slane %v1342, 1
    %v1345 = vor.u32 %v1340, %v1344
    %v1347 = vshll.u32 %v1336, 16
    %v1349 = vrot.slane %v1347, 1
    %v1350 = vsel %vm501, %v1345, %v1349
    %v1351 = vshrl.u32 %v1336, 16
    %v1353 = vor.u32 %v1351, %v1349
    %v1355 = vshrl.u32 %v1337, 16
    %v1357 = vshll.u32 %v1337, 16
    %v1359 = vrot.slane %v1357, 1
    %v1360 = vor.u32 %v1355, %v1359
    %v1362 = vshll.u32 %v1338, 16
    %v1364 = vrot.slane %v1362, 1
    %v1365 = vsel %vm501, %v1360, %v1364
    %v1366 = vshrl.u32 %v1338, 16
    %v1368 = vor.u32 %v1366, %v1364
    %v1369 = vrot.slane %v1335, 1
    %v1370 = vrot.slane %v1336, 1
    %v1371 = vsel %vm982, %v1369, %v1370
    %v1372 = vrot.slane %v1337, 1
    %v1373 = vrot.slane %v1338, 1
    %v1374 = vsel %vm982, %v1372, %v1373
    %v1375 = vunpack.c.l.b16 %v1350
    %v1376 = vunpack.c.l.b16 %v1371
    %v1377 = vunpack.c.h.b16 %v1350
    %v1378 = vunpack.c.h.b16 %v1371
    %v1379 = vunpack.c.l.b16 %v1353
    %v1380 = vunpack.c.l.b16 %v1370
    %v1381 = vunpack.c.l.b16 %v1365
    %v1382 = vunpack.c.l.b16 %v1374
    %v1383 = vunpack.c.h.b16 %v1365
    %v1384 = vunpack.c.h.b16 %v1374
    %v1385 = vunpack.c.l.b16 %v1368
    %v1386 = vunpack.c.l.b16 %v1373
    %s1387 = scalar_lea.vmem %s1, 192
    %v1388 = vld [vmem:[%s1387] sm:$0xf]
    %v1389 = vld [vmem:[%s1387 + $0x4] sm:$0xf]
    %v1390 = vld [vmem:[%s1387 + $0x8] sm:$0xf]
    %v1391 = vld [vmem:[%s1387 + $0xc] sm:$0xf]
    %v1392 = vld [vmem:[%s1387 + $0x10] sm:$0xf]
    %v1393 = vld [vmem:[%s1387 + $0x14] sm:$0xf]
    %v1394 = vld [vmem:[%s1387 + $0x18] sm:$0xf]
    %v1395 = vld [vmem:[%s1387 + $0x1c] sm:$0xf]
    %v1396 = vld [vmem:[%s1387 + $0x20] sm:$0xf]
    %v1397 = vld [vmem:[%s1387 + $0x24] sm:$0xf]
    %v1398 = vld [vmem:[%s1387 + $0x28] sm:$0xf]
    %v1399 = vld [vmem:[%s1387 + $0x2c] sm:$0xf]
    %v1400 = vld [vmem:[%s1387 + $0x30] sm:$0xf]
    %v1401 = vld [vmem:[%s1387 + $0x34] sm:$0xf]
    %v1402 = vld [vmem:[%s1387 + $0x38] sm:$0xf]
    %v1403 = vld [vmem:[%s1387 + $0x3c] sm:$0xf]
    %v1404 = vld [vmem:[%s1387 + $0x40] sm:$0xf]
    %v1405 = vld [vmem:[%s1387 + $0x44] sm:$0xf]
    %v1406 = vld [vmem:[%s1387 + $0x48] sm:$0xf]
    %v1407 = vld [vmem:[%s1387 + $0x4c] sm:$0xf]
    %v1408 = vld [vmem:[%s1387 + $0x50] sm:$0xf]
    %v1409 = vld [vmem:[%s1387 + $0x54] sm:$0xf]
    %v1410 = vld [vmem:[%s1387 + $0x58] sm:$0xf]
    %v1411 = vld [vmem:[%s1387 + $0x5c] sm:$0xf]
    %v1412 = vld [vmem:[%s1387 + $0x60] sm:$0xf]
    %v1413 = vld [vmem:[%s1387 + $0x64] sm:$0xf]
    %v1414 = vld [vmem:[%s1387 + $0x68] sm:$0xf]
    %v1415 = vld [vmem:[%s1387 + $0x6c] sm:$0xf]
    %v1416 = vld [vmem:[%s1387 + $0x70] sm:$0xf]
    %v1417 = vld [vmem:[%s1387 + $0x74] sm:$0xf]
    %v1418 = vld [vmem:[%s1387 + $0x78] sm:$0xf]
    %v1419 = vld [vmem:[%s1387 + $0x7c] sm:$0xf]
    %v1420 = vld [vmem:[%s1387 + $0x80] sm:$0xf]
    %v1421 = vld [vmem:[%s1387 + $0x84] sm:$0xf]
    %v1422 = vld [vmem:[%s1387 + $0x88] sm:$0xf]
    %v1423 = vld [vmem:[%s1387 + $0x8c] sm:$0xf]
    %v1424 = vld [vmem:[%s1387 + $0x90] sm:$0xf]
    %v1425 = vld [vmem:[%s1387 + $0x94] sm:$0xf]
    %v1426 = vld [vmem:[%s1387 + $0x98] sm:$0xf]
    %v1427 = vld [vmem:[%s1387 + $0x9c] sm:$0xf]
    %v1428 = vld [vmem:[%s1387 + $0xa0] sm:$0xf]
    %v1429 = vld [vmem:[%s1387 + $0xa4] sm:$0xf]
    %v1430 = vld [vmem:[%s1387 + $0xa8] sm:$0xf]
    %v1431 = vld [vmem:[%s1387 + $0xac] sm:$0xf]
    %v1432 = vld [vmem:[%s1387 + $0xb0] sm:$0xf]
    %v1433 = vld [vmem:[%s1387 + $0xb4] sm:$0xf]
    %v1434 = vld [vmem:[%s1387 + $0xb8] sm:$0xf]
    %v1435 = vld [vmem:[%s1387 + $0xbc] sm:$0xf]
    %v1436 = vpack.c.b16 %v1087, %v1085
    %v1437 = vpack.c.b16 %v1088, %v1086
    %v1438 = vpack.c.b16 %v283, %v282
    %v1439 = vpack.c.b16 %v1091, %v1089
    %v1440 = vpack.c.b16 %v1092, %v1090
    %v1441 = vpack.c.b16 %v285, %v284
    %v1442 = vpack.c.b16 %v1095, %v1093
    %v1443 = vpack.c.b16 %v1096, %v1094
    %v1444 = vpack.c.b16 %v1099, %v1097
    %v1445 = vpack.c.b16 %v1100, %v1098
    %v1446 = vpack.c.b16 %v289, %v288
    %v1447 = vpack.c.b16 %v1103, %v1101
    %v1448 = vpack.c.b16 %v1104, %v1102
    %v1449 = vpack.c.b16 %v291, %v290
    %v1450 = vpack.c.b16 %v1107, %v1105
    %v1451 = vpack.c.b16 %v1108, %v1106
    %v1452 = vpack.c.b16 %v1111, %v1109
    %v1453 = vpack.c.b16 %v1112, %v1110
    %v1454 = vpack.c.b16 %v295, %v294
    %v1455 = vpack.c.b16 %v1115, %v1113
    %v1456 = vpack.c.b16 %v1116, %v1114
    %v1457 = vpack.c.b16 %v297, %v296
    %v1458 = vpack.c.b16 %v1119, %v1117
    %v1459 = vpack.c.b16 %v1120, %v1118
    %v1460 = vpack.c.b16 %v1123, %v1121
    %v1461 = vpack.c.b16 %v1124, %v1122
    %v1462 = vpack.c.b16 %v301, %v300
    %v1463 = vpack.c.b16 %v1127, %v1125
    %v1464 = vpack.c.b16 %v1128, %v1126
    %v1465 = vpack.c.b16 %v303, %v302
    %v1466 = vpack.c.b16 %v1131, %v1129
    %v1467 = vpack.c.b16 %v1132, %v1130
    %v1468 = vpack.c.b16 %v1135, %v1133
    %v1469 = vpack.c.b16 %v1136, %v1134
    %v1470 = vpack.c.b16 %v307, %v306
    %v1471 = vpack.c.b16 %v1139, %v1137
    %v1472 = vpack.c.b16 %v1140, %v1138
    %v1473 = vpack.c.b16 %v309, %v308
    %v1474 = vpack.c.b16 %v1143, %v1141
    %v1475 = vpack.c.b16 %v1144, %v1142
    %v1476 = vpack.c.b16 %v1147, %v1145
    %v1477 = vpack.c.b16 %v1148, %v1146
    %v1478 = vpack.c.b16 %v313, %v312
    %v1479 = vpack.c.b16 %v1151, %v1149
    %v1480 = vpack.c.b16 %v1152, %v1150
    %v1481 = vpack.c.b16 %v315, %v314
    %v1482 = vpack.c.b16 %v1155, %v1153
    %v1483 = vpack.c.b16 %v1156, %v1154
    %v1484 = vpack.c.b16 %v1159, %v1157
    %v1485 = vpack.c.b16 %v1160, %v1158
    %v1486 = vpack.c.b16 %v319, %v318
    %v1487 = vpack.c.b16 %v1163, %v1161
    %v1488 = vpack.c.b16 %v1164, %v1162
    %v1489 = vpack.c.b16 %v321, %v320
    %v1490 = vpack.c.b16 %v1167, %v1165
    %v1491 = vpack.c.b16 %v1168, %v1166
    %v1492 = vpack.c.b16 %v1171, %v1169
    %v1493 = vpack.c.b16 %v1172, %v1170
    %v1494 = vpack.c.b16 %v1325, %v324
    %v1495 = vpack.c.b16 %v1375, %v1173
    %v1496 = vpack.c.b16 %v1376, %v1174
    %v1497 = vpack.c.b16 %v1327, %v1326
    %v1498 = vpack.c.b16 %v1379, %v1377
    %v1499 = vpack.c.b16 %v1380, %v1378
    %v1500 = vpack.c.b16 %v1183, %v1181
    %v1501 = vpack.c.b16 %v1184, %v1182
    %v1502 = vpack.c.b16 %v331, %v330
    %v1503 = vpack.c.b16 %v1187, %v1185
    %v1504 = vpack.c.b16 %v1188, %v1186
    %v1505 = vpack.c.b16 %v333, %v332
    %v1506 = vpack.c.b16 %v1191, %v1189
    %v1507 = vpack.c.b16 %v1192, %v1190
    %v1508 = vpack.c.b16 %v1195, %v1193
    %v1509 = vpack.c.b16 %v1196, %v1194
    %v1510 = vpack.c.b16 %v337, %v336
    %v1511 = vpack.c.b16 %v1199, %v1197
    %v1512 = vpack.c.b16 %v1200, %v1198
    %v1513 = vpack.c.b16 %v339, %v338
    %v1514 = vpack.c.b16 %v1203, %v1201
    %v1515 = vpack.c.b16 %v1204, %v1202
    %v1516 = vpack.c.b16 %v1207, %v1205
    %v1517 = vpack.c.b16 %v1208, %v1206
    %v1518 = vpack.c.b16 %v343, %v342
    %v1519 = vpack.c.b16 %v1211, %v1209
    %v1520 = vpack.c.b16 %v1212, %v1210
    %v1521 = vpack.c.b16 %v345, %v344
    %v1522 = vpack.c.b16 %v1215, %v1213
    %v1523 = vpack.c.b16 %v1216, %v1214
    %v1524 = vpack.c.b16 %v1219, %v1217
    %v1525 = vpack.c.b16 %v1220, %v1218
    %v1526 = vpack.c.b16 %v349, %v348
    %v1527 = vpack.c.b16 %v1223, %v1221
    %v1528 = vpack.c.b16 %v1224, %v1222
    %v1529 = vpack.c.b16 %v351, %v350
    %v1530 = vpack.c.b16 %v1227, %v1225
    %v1531 = vpack.c.b16 %v1228, %v1226
    %v1532 = vpack.c.b16 %v1231, %v1229
    %v1533 = vpack.c.b16 %v1232, %v1230
    %v1534 = vpack.c.b16 %v355, %v354
    %v1535 = vpack.c.b16 %v1235, %v1233
    %v1536 = vpack.c.b16 %v1236, %v1234
    %v1537 = vpack.c.b16 %v357, %v356
    %v1538 = vpack.c.b16 %v1239, %v1237
    %v1539 = vpack.c.b16 %v1240, %v1238
    %v1540 = vpack.c.b16 %v1243, %v1241
    %v1541 = vpack.c.b16 %v1244, %v1242
    %v1542 = vpack.c.b16 %v361, %v360
    %v1543 = vpack.c.b16 %v1247, %v1245
    %v1544 = vpack.c.b16 %v1248, %v1246
    %v1545 = vpack.c.b16 %v363, %v362
    %v1546 = vpack.c.b16 %v1251, %v1249
    %v1547 = vpack.c.b16 %v1252, %v1250
    %v1548 = vpack.c.b16 %v1255, %v1253
    %v1549 = vpack.c.b16 %v1256, %v1254
    %v1550 = vpack.c.b16 %v367, %v366
    %v1551 = vpack.c.b16 %v1259, %v1257
    %v1552 = vpack.c.b16 %v1260, %v1258
    %v1553 = vpack.c.b16 %v369, %v368
    %v1554 = vpack.c.b16 %v1263, %v1261
    %v1555 = vpack.c.b16 %v1264, %v1262
    %v1556 = vpack.c.b16 %v1267, %v1265
    %v1557 = vpack.c.b16 %v1268, %v1266
    %v1558 = vpack.c.b16 %v1328, %v372
    %v1559 = vpack.c.b16 %v1381, %v1269
    %v1560 = vpack.c.b16 %v1382, %v1270
    %v1561 = vpack.c.b16 %v1330, %v1329
    %v1562 = vpack.c.b16 %v1385, %v1383
    %v1563 = vpack.c.b16 %v1386, %v1384
    %v1756 = vunpack.c.l.b16 %v1388
    %v1757 = vunpack.c.l.b16 %v1389
    %v1758 = vunpack.c.l.b16 %v1390
    %v1759 = vunpack.c.l.b16 %v1391
    %v1760 = vunpack.c.l.b16 %v1392
    %v1761 = vunpack.c.l.b16 %v1393
    %v1762 = vunpack.c.l.b16 %v1394
    %v1763 = vunpack.c.l.b16 %v1395
    %v1764 = vunpack.c.l.b16 %v1396
    %v1765 = vunpack.c.l.b16 %v1397
    %v1766 = vunpack.c.l.b16 %v1398
    %v1767 = vunpack.c.l.b16 %v1399
    %v1768 = vunpack.c.l.b16 %v1400
    %v1769 = vunpack.c.l.b16 %v1401
    %v1770 = vunpack.c.l.b16 %v1402
    %v1771 = vunpack.c.l.b16 %v1403
    %v1772 = vunpack.c.l.b16 %v1404
    %v1773 = vunpack.c.l.b16 %v1405
    %v1774 = vunpack.c.l.b16 %v1406
    %v1775 = vunpack.c.l.b16 %v1407
    %v1776 = vunpack.c.l.b16 %v1408
    %v1777 = vunpack.c.l.b16 %v1409
    %v1778 = vunpack.c.l.b16 %v1410
    %v1779 = vunpack.c.l.b16 %v1411
    %v1780 = vunpack.c.l.b16 %v1412
    %v1781 = vunpack.c.l.b16 %v1413
    %v1782 = vunpack.c.l.b16 %v1414
    %v1783 = vunpack.c.l.b16 %v1415
    %v1784 = vunpack.c.l.b16 %v1416
    %v1785 = vunpack.c.l.b16 %v1417
    %v1786 = vunpack.c.l.b16 %v1418
    %v1787 = vunpack.c.l.b16 %v1419
    %v1788 = vunpack.c.l.b16 %v1420
    %v1789 = vunpack.c.l.b16 %v1421
    %v1790 = vunpack.c.l.b16 %v1422
    %v1791 = vunpack.c.l.b16 %v1423
    %v1792 = vunpack.c.l.b16 %v1424
    %v1793 = vunpack.c.l.b16 %v1425
    %v1794 = vunpack.c.l.b16 %v1426
    %v1795 = vunpack.c.l.b16 %v1427
    %v1796 = vunpack.c.l.b16 %v1428
    %v1797 = vunpack.c.l.b16 %v1429
    %v1798 = vunpack.c.l.b16 %v1430
    %v1799 = vunpack.c.l.b16 %v1431
    %v1800 = vunpack.c.l.b16 %v1432
    %v1801 = vunpack.c.l.b16 %v1433
    %v1802 = vunpack.c.l.b16 %v1434
    %v1803 = vunpack.c.l.b16 %v1435
    %v1804 = vpack.c.b16 %v1757, %v1756
    %v1805 = vpack.c.b16 %v1759, %v1758
    %v1806 = vpack.c.b16 %v1761, %v1760
    %v1807 = vpack.c.b16 %v1763, %v1762
    %v1808 = vpack.c.b16 %v1765, %v1764
    %v1809 = vpack.c.b16 %v1767, %v1766
    %v1810 = vpack.c.b16 %v1769, %v1768
    %v1811 = vpack.c.b16 %v1771, %v1770
    %v1812 = vpack.c.b16 %v1773, %v1772
    %v1813 = vpack.c.b16 %v1775, %v1774
    %v1814 = vpack.c.b16 %v1777, %v1776
    %v1815 = vpack.c.b16 %v1779, %v1778
    %v1816 = vpack.c.b16 %v1781, %v1780
    %v1817 = vpack.c.b16 %v1783, %v1782
    %v1818 = vpack.c.b16 %v1785, %v1784
    %v1819 = vpack.c.b16 %v1787, %v1786
    %v1820 = vpack.c.b16 %v1789, %v1788
    %v1821 = vpack.c.b16 %v1791, %v1790
    %v1822 = vpack.c.b16 %v1793, %v1792
    %v1823 = vpack.c.b16 %v1795, %v1794
    %v1824 = vpack.c.b16 %v1797, %v1796
    %v1825 = vpack.c.b16 %v1799, %v1798
    %v1826 = vpack.c.b16 %v1801, %v1800
    %v1827 = vpack.c.b16 %v1803, %v1802
    %1852 = vmatprep.subr.bf16.mxu0 0
    %1853 = vmatpush1.bf16.msra.mxu0 %v1804
    %1854 = vmatprep.subr.bf16.mxu0 0
    %1855 = vmatpush1.bf16.msra.mxu0 %v1805
    %1856 = vmatprep.subr.bf16.mxu0 0
    %1857 = vmatpush1.bf16.msra.mxu0 %v1806
    %1858 = vmatprep.subr.bf16.mxu0 0
    %1859 = vmatpush1.bf16.msra.mxu0 %v1807
    %1860 = vmatprep.subr.bf16.mxu0 0
    %1861 = vmatpush1.bf16.msra.mxu0 %v1808
    %1862 = vmatprep.subr.bf16.mxu0 0
    %1863 = vmatpush1.bf16.msra.mxu0 %v1809
    %1864 = vmatprep.subr.bf16.mxu0 0
    %1865 = vmatpush1.bf16.msra.mxu0 %v1810
    %1866 = vmatprep.subr.bf16.mxu0 0
    %1867 = vmatpush1.bf16.msra.mxu0 %v1811
    %1868 = vmatprep.subr.bf16.mxu0 0
    %1869 = vmatpush1.bf16.msra.mxu0 %v1812
    %1870 = vmatprep.subr.bf16.mxu0 0
    %1871 = vmatpush1.bf16.msra.mxu0 %v1813
    %1872 = vmatprep.subr.bf16.mxu0 0
    %1873 = vmatpush1.bf16.msra.mxu0 %v1814
    %1874 = vmatprep.subr.bf16.mxu0 0
    %1875 = vmatpush1.bf16.msra.mxu0 %v1815
    %1876 = vmatprep.subr.bf16.mxu0 0
    %1877 = vmatpush1.bf16.msra.mxu0 %v1816
    %1878 = vmatprep.subr.bf16.mxu0 0
    %1879 = vmatpush1.bf16.msra.mxu0 %v1817
    %1880 = vmatprep.subr.bf16.mxu0 0
    %1881 = vmatpush1.bf16.msra.mxu0 %v1818
    %1882 = vmatprep.subr.bf16.mxu0 0
    %1883 = vmatpush1.bf16.msra.mxu0 %v1819
    %1884 = vmatprep.mubr.bf16.mxu0 %v1436
    %1885 = vmatmul.mubr.bf16.gmra.mrb[0].mxu0 %v439
    %v1886 = vpop.f32.mrb[0].mxu0
    %v1887 = vadd.f32 0.0, %v1886
    %v1888 = vpop.f32.mrb[0].mxu0
    %v1889 = vpop.f32.mrb[0].mxu0
    %v1890 = vadd.f32 0.0, %v1889
    %v1891 = vpop.f32.mrb[0].mxu0
    %1892 = vmatprep.mubr.bf16.mxu0 %v1439
    %1893 = vmatmul.mubr.bf16.gmra.mrb[0].mxu0 %v1438
    %v1894 = vpop.f32.mrb[0].mxu0
    %v1895 = vadd.f32 0.0, %v1894
    %v1896 = vpop.f32.mrb[0].mxu0
    %v1897 = vpop.f32.mrb[0].mxu0
    %v1898 = vadd.f32 0.0, %v1897
    %v1899 = vpop.f32.mrb[0].mxu0
    %1900 = vmatprep.mubr.bf16.mxu0 %v1442
    %1901 = vmatmul.mubr.bf16.gmra.mrb[0].mxu0 %v1441
    %v1902 = vpop.f32.mrb[0].mxu0
    %v1903 = vadd.f32 0.0, %v1902
    %v1904 = vpop.f32.mrb[0].mxu0
    %v1905 = vpop.f32.mrb[0].mxu0
    %v1906 = vadd.f32 0.0, %v1905
    %v1907 = vpop.f32.mrb[0].mxu0
    %1908 = vmatprep.mubr.bf16.mxu0 %v1444
    %1909 = vmatmul.mubr.bf16.gmra.mrb[0].mxu0 %v443
    %v1910 = vpop.f32.mrb[0].mxu0
    %v1911 = vadd.f32 0.0, %v1910
    %v1912 = vpop.f32.mrb[0].mxu0
    %v1913 = vpop.f32.mrb[0].mxu0
    %v1914 = vadd.f32 0.0, %v1913
    %v1915 = vpop.f32.mrb[0].mxu0
    %1916 = vmatprep.mubr.bf16.mxu0 %v1447
    %1917 = vmatmul.mubr.bf16.gmra.mrb[0].mxu0 %v1446
    %v1918 = vpop.f32.mrb[0].mxu0
    %v1919 = vadd.f32 0.0, %v1918
    %v1920 = vpop.f32.mrb[0].mxu0
    %v1921 = vpop.f32.mrb[0].mxu0
    %v1922 = vadd.f32 0.0, %v1921
    %v1923 = vpop.f32.mrb[0].mxu0
    %1924 = vmatprep.mubr.bf16.mxu0 %v1450
    %1925 = vmatmul.mubr.bf16.gmra.mrb[0].mxu0 %v1449
    %v1926 = vpop.f32.mrb[0].mxu0
    %v1927 = vadd.f32 0.0, %v1926
    %v1928 = vpop.f32.mrb[0].mxu0
    %v1929 = vpop.f32.mrb[0].mxu0
    %v1930 = vadd.f32 0.0, %v1929
    %v1931 = vpop.f32.mrb[0].mxu0
    %1932 = vmatprep.mubr.bf16.mxu0 %v1452
    %1933 = vmatmul.mubr.bf16.gmra.mrb[0].mxu0 %v447
    %v1934 = vpop.f32.mrb[0].mxu0
    %v1935 = vadd.f32 0.0, %v1934
    %v1936 = vpop.f32.mrb[0].mxu0
    %v1937 = vpop.f32.mrb[0].mxu0
    %v1938 = vadd.f32 0.0, %v1937
    %v1939 = vpop.f32.mrb[0].mxu0
    %1940 = vmatprep.mubr.bf16.mxu0 %v1455
    %1941 = vmatmul.mubr.bf16.gmra.mrb[0].mxu0 %v1454
    %v1942 = vpop.f32.mrb[0].mxu0
    %v1943 = vadd.f32 0.0, %v1942
    %v1944 = vpop.f32.mrb[0].mxu0
    %v1945 = vpop.f32.mrb[0].mxu0
    %v1946 = vadd.f32 0.0, %v1945
    %v1947 = vpop.f32.mrb[0].mxu0
    %1948 = vmatprep.mubr.bf16.mxu0 %v1458
    %1949 = vmatmul.mubr.bf16.gmra.mrb[0].mxu0 %v1457
    %v1950 = vpop.f32.mrb[0].mxu0
    %v1951 = vadd.f32 0.0, %v1950
    %v1952 = vpop.f32.mrb[0].mxu0
    %v1953 = vpop.f32.mrb[0].mxu0
    %v1954 = vadd.f32 0.0, %v1953
    %v1955 = vpop.f32.mrb[0].mxu0
    %1956 = vmatprep.mubr.bf16.mxu0 %v1460
    %1957 = vmatmul.mubr.bf16.gmra.mrb[0].mxu0 %v451
    %v1958 = vpop.f32.mrb[0].mxu0
    %v1959 = vadd.f32 0.0, %v1958
    %v1960 = vpop.f32.mrb[0].mxu0
    %v1961 = vpop.f32.mrb[0].mxu0
    %v1962 = vadd.f32 0.0, %v1961
    %v1963 = vpop.f32.mrb[0].mxu0
    %1964 = vmatprep.mubr.bf16.mxu0 %v1463
    %1965 = vmatmul.mubr.bf16.gmra.mrb[0].mxu0 %v1462
    %v1966 = vpop.f32.mrb[0].mxu0
    %v1967 = vadd.f32 0.0, %v1966
    %v1968 = vpop.f32.mrb[0].mxu0
    %v1969 = vpop.f32.mrb[0].mxu0
    %v1970 = vadd.f32 0.0, %v1969
    %v1971 = vpop.f32.mrb[0].mxu0
    %1972 = vmatprep.mubr.bf16.mxu0 %v1466
    %1973 = vmatmul.mubr.bf16.gmra.mrb[0].mxu0 %v1465
    %v1974 = vpop.f32.mrb[0].mxu0
    %v1975 = vadd.f32 0.0, %v1974
    %v1976 = vpop.f32.mrb[0].mxu0
    %v1977 = vpop.f32.mrb[0].mxu0
    %v1978 = vadd.f32 0.0, %v1977
    %v1979 = vpop.f32.mrb[0].mxu0
    %1980 = vmatprep.mubr.bf16.mxu0 %v1468
    %1981 = vmatmul.mubr.bf16.gmra.mrb[0].mxu0 %v455
    %v1982 = vpop.f32.mrb[0].mxu0
    %v1983 = vadd.f32 0.0, %v1982
    %v1984 = vpop.f32.mrb[0].mxu0
    %v1985 = vpop.f32.mrb[0].mxu0
    %v1986 = vadd.f32 0.0, %v1985
    %v1987 = vpop.f32.mrb[0].mxu0
    %1988 = vmatprep.mubr.bf16.mxu0 %v1471
    %1989 = vmatmul.mubr.bf16.gmra.mrb[0].mxu0 %v1470
    %v1990 = vpop.f32.mrb[0].mxu0
    %v1991 = vadd.f32 0.0, %v1990
    %v1992 = vpop.f32.mrb[0].mxu0
    %v1993 = vpop.f32.mrb[0].mxu0
    %v1994 = vadd.f32 0.0, %v1993
    %v1995 = vpop.f32.mrb[0].mxu0
    %1996 = vmatprep.mubr.bf16.mxu0 %v1474
    %1997 = vmatmul.mubr.bf16.gmra.mrb[0].mxu0 %v1473
    %v1998 = vpop.f32.mrb[0].mxu0
    %v1999 = vadd.f32 0.0, %v1998
    %v2000 = vpop.f32.mrb[0].mxu0
    %v2001 = vpop.f32.mrb[0].mxu0
    %v2002 = vadd.f32 0.0, %v2001
    %v2003 = vpop.f32.mrb[0].mxu0
    %2004 = vmatprep.mubr.bf16.mxu0 %v1476
    %2005 = vmatmul.mubr.bf16.gmra.mrb[0].mxu0 %v459
    %v2006 = vpop.f32.mrb[0].mxu0
    %v2007 = vadd.f32 0.0, %v2006
    %v2008 = vpop.f32.mrb[0].mxu0
    %v2009 = vpop.f32.mrb[0].mxu0
    %v2010 = vadd.f32 0.0, %v2009
    %v2011 = vpop.f32.mrb[0].mxu0
    %2012 = vmatprep.mubr.bf16.mxu0 %v1479
    %2013 = vmatmul.mubr.bf16.gmra.mrb[0].mxu0 %v1478
    %v2014 = vpop.f32.mrb[0].mxu0
    %v2015 = vadd.f32 0.0, %v2014
    %v2016 = vpop.f32.mrb[0].mxu0
    %v2017 = vpop.f32.mrb[0].mxu0
    %v2018 = vadd.f32 0.0, %v2017
    %v2019 = vpop.f32.mrb[0].mxu0
    %2020 = vmatprep.mubr.bf16.mxu0 %v1482
    %2021 = vmatmul.mubr.bf16.gmra.mrb[0].mxu0 %v1481
    %v2022 = vpop.f32.mrb[0].mxu0
    %v2023 = vadd.f32 0.0, %v2022
    %v2024 = vpop.f32.mrb[0].mxu0
    %v2025 = vpop.f32.mrb[0].mxu0
    %v2026 = vadd.f32 0.0, %v2025
    %v2027 = vpop.f32.mrb[0].mxu0
    %2028 = vmatprep.mubr.bf16.mxu0 %v1484
    %2029 = vmatmul.mubr.bf16.gmra.mrb[0].mxu0 %v463
    %v2030 = vpop.f32.mrb[0].mxu0
    %v2031 = vadd.f32 0.0, %v2030
    %v2032 = vpop.f32.mrb[0].mxu0
    %v2033 = vpop.f32.mrb[0].mxu0
    %v2034 = vadd.f32 0.0, %v2033
    %v2035 = vpop.f32.mrb[0].mxu0
    %2036 = vmatprep.mubr.bf16.mxu0 %v1487
    %2037 = vmatmul.mubr.bf16.gmra.mrb[0].mxu0 %v1486
    %v2038 = vpop.f32.mrb[0].mxu0
    %v2039 = vadd.f32 0.0, %v2038
    %v2040 = vpop.f32.mrb[0].mxu0
    %v2041 = vpop.f32.mrb[0].mxu0
    %v2042 = vadd.f32 0.0, %v2041
    %v2043 = vpop.f32.mrb[0].mxu0
    %2044 = vmatprep.mubr.bf16.mxu0 %v1490
    %2045 = vmatmul.mubr.bf16.gmra.mrb[0].mxu0 %v1489
    %v2046 = vpop.f32.mrb[0].mxu0
    %v2047 = vadd.f32 0.0, %v2046
    %v2048 = vpop.f32.mrb[0].mxu0
    %v2049 = vpop.f32.mrb[0].mxu0
    %v2050 = vadd.f32 0.0, %v2049
    %v2051 = vpop.f32.mrb[0].mxu0
    %2052 = vmatprep.mubr.bf16.mxu0 %v1492
    %2053 = vmatmul.mubr.bf16.gmra.mrb[0].mxu0 %v467
    %v2054 = vpop.f32.mrb[0].mxu0
    %v2055 = vadd.f32 0.0, %v2054
    %v2056 = vpop.f32.mrb[0].mxu0
    %v2057 = vpop.f32.mrb[0].mxu0
    %v2058 = vadd.f32 0.0, %v2057
    %v2059 = vpop.f32.mrb[0].mxu0
    %2060 = vmatprep.mubr.bf16.mxu0 %v1495
    %2061 = vmatmul.mubr.bf16.gmra.mrb[0].mxu0 %v1494
    %v2062 = vpop.f32.mrb[0].mxu0
    %v2063 = vadd.f32 0.0, %v2062
    %v2064 = vpop.f32.mrb[0].mxu0
    %v2065 = vpop.f32.mrb[0].mxu0
    %v2066 = vadd.f32 0.0, %v2065
    %v2067 = vpop.f32.mrb[0].mxu0
    %2068 = vmatprep.mubr.bf16.mxu0 %v1498
    %2069 = vmatmul.mubr.bf16.gmra.mrb[0].mxu0 %v1497
    %v2070 = vpop.f32.mrb[0].mxu0
    %v2071 = vadd.f32 0.0, %v2070
    %v2072 = vpop.f32.mrb[0].mxu0
    %v2073 = vpop.f32.mrb[0].mxu0
    %v2074 = vadd.f32 0.0, %v2073
    %v2075 = vpop.f32.mrb[0].mxu0
    %2076 = vmatprep.mubr.bf16.mxu0 %v1500
    %2077 = vmatmul.mubr.bf16.gmra.mrb[0].mxu0 %v471
    %v2078 = vpop.f32.mrb[0].mxu0
    %v2079 = vadd.f32 0.0, %v2078
    %v2080 = vpop.f32.mrb[0].mxu0
    %v2081 = vpop.f32.mrb[0].mxu0
    %v2082 = vadd.f32 0.0, %v2081
    %v2083 = vpop.f32.mrb[0].mxu0
    %2084 = vmatprep.mubr.bf16.mxu0 %v1503
    %2085 = vmatmul.mubr.bf16.gmra.mrb[0].mxu0 %v1502
    %v2086 = vpop.f32.mrb[0].mxu0
    %v2087 = vadd.f32 0.0, %v2086
    %v2088 = vpop.f32.mrb[0].mxu0
    %v2089 = vpop.f32.mrb[0].mxu0
    %v2090 = vadd.f32 0.0, %v2089
    %v2091 = vpop.f32.mrb[0].mxu0
    %2092 = vmatprep.mubr.bf16.mxu0 %v1506
    %2093 = vmatmul.mubr.bf16.gmra.mrb[0].mxu0 %v1505
    %v2094 = vpop.f32.mrb[0].mxu0
    %v2095 = vadd.f32 0.0, %v2094
    %v2096 = vpop.f32.mrb[0].mxu0
    %v2097 = vpop.f32.mrb[0].mxu0
    %v2098 = vadd.f32 0.0, %v2097
    %v2099 = vpop.f32.mrb[0].mxu0
    %2100 = vmatprep.mubr.bf16.mxu0 %v1508
    %2101 = vmatmul.mubr.bf16.gmra.mrb[0].mxu0 %v475
    %v2102 = vpop.f32.mrb[0].mxu0
    %v2103 = vadd.f32 0.0, %v2102
    %v2104 = vpop.f32.mrb[0].mxu0
    %v2105 = vpop.f32.mrb[0].mxu0
    %v2106 = vadd.f32 0.0, %v2105
    %v2107 = vpop.f32.mrb[0].mxu0
    %2108 = vmatprep.mubr.bf16.mxu0 %v1511
    %2109 = vmatmul.mubr.bf16.gmra.mrb[0].mxu0 %v1510
    %v2110 = vpop.f32.mrb[0].mxu0
    %v2111 = vadd.f32 0.0, %v2110
    %v2112 = vpop.f32.mrb[0].mxu0
    %v2113 = vpop.f32.mrb[0].mxu0
    %v2114 = vadd.f32 0.0, %v2113
    %v2115 = vpop.f32.mrb[0].mxu0
    %2116 = vmatprep.mubr.bf16.mxu0 %v1514
    %2117 = vmatmul.mubr.bf16.gmra.mrb[0].mxu0 %v1513
    %v2118 = vpop.f32.mrb[0].mxu0
    %v2119 = vadd.f32 0.0, %v2118
    %v2120 = vpop.f32.mrb[0].mxu0
    %v2121 = vpop.f32.mrb[0].mxu0
    %v2122 = vadd.f32 0.0, %v2121
    %v2123 = vpop.f32.mrb[0].mxu0
    %2124 = vmatprep.mubr.bf16.mxu0 %v1516
    %2125 = vmatmul.mubr.bf16.gmra.mrb[0].mxu0 %v479
    %v2126 = vpop.f32.mrb[0].mxu0
    %v2127 = vadd.f32 0.0, %v2126
    %v2128 = vpop.f32.mrb[0].mxu0
    %v2129 = vpop.f32.mrb[0].mxu0
    %v2130 = vadd.f32 0.0, %v2129
    %v2131 = vpop.f32.mrb[0].mxu0
    %2132 = vmatprep.mubr.bf16.mxu0 %v1519
    %2133 = vmatmul.mubr.bf16.gmra.mrb[0].mxu0 %v1518
    %v2134 = vpop.f32.mrb[0].mxu0
    %v2135 = vadd.f32 0.0, %v2134
    %v2136 = vpop.f32.mrb[0].mxu0
    %v2137 = vpop.f32.mrb[0].mxu0
    %v2138 = vadd.f32 0.0, %v2137
    %v2139 = vpop.f32.mrb[0].mxu0
    %2140 = vmatprep.mubr.bf16.mxu0 %v1522
    %2141 = vmatmul.mubr.bf16.gmra.mrb[0].mxu0 %v1521
    %v2142 = vpop.f32.mrb[0].mxu0
    %v2143 = vadd.f32 0.0, %v2142
    %v2144 = vpop.f32.mrb[0].mxu0
    %v2145 = vpop.f32.mrb[0].mxu0
    %v2146 = vadd.f32 0.0, %v2145
    %v2147 = vpop.f32.mrb[0].mxu0
    %2148 = vmatprep.mubr.bf16.mxu0 %v1524
    %2149 = vmatmul.mubr.bf16.gmra.mrb[0].mxu0 %v483
    %v2150 = vpop.f32.mrb[0].mxu0
    %v2151 = vadd.f32 0.0, %v2150
    %v2152 = vpop.f32.mrb[0].mxu0
    %v2153 = vpop.f32.mrb[0].mxu0
    %v2154 = vadd.f32 0.0, %v2153
    %v2155 = vpop.f32.mrb[0].mxu0
    %2156 = vmatprep.mubr.bf16.mxu0 %v1527
    %2157 = vmatmul.mubr.bf16.gmra.mrb[0].mxu0 %v1526
    %v2158 = vpop.f32.mrb[0].mxu0
    %v2159 = vadd.f32 0.0, %v2158
    %v2160 = vpop.f32.mrb[0].mxu0
    %v2161 = vpop.f32.mrb[0].mxu0
    %v2162 = vadd.f32 0.0, %v2161
    %v2163 = vpop.f32.mrb[0].mxu0
    %2164 = vmatprep.mubr.bf16.mxu0 %v1530
    %2165 = vmatmul.mubr.bf16.gmra.mrb[0].mxu0 %v1529
    %v2166 = vpop.f32.mrb[0].mxu0
    %v2167 = vadd.f32 0.0, %v2166
    %v2168 = vpop.f32.mrb[0].mxu0
    %v2169 = vpop.f32.mrb[0].mxu0
    %v2170 = vadd.f32 0.0, %v2169
    %v2171 = vpop.f32.mrb[0].mxu0
    %2172 = vmatprep.mubr.bf16.mxu0 %v1532
    %2173 = vmatmul.mubr.bf16.gmra.mrb[0].mxu0 %v487
    %v2174 = vpop.f32.mrb[0].mxu0
    %v2175 = vadd.f32 0.0, %v2174
    %v2176 = vpop.f32.mrb[0].mxu0
    %v2177 = vpop.f32.mrb[0].mxu0
    %v2178 = vadd.f32 0.0, %v2177
    %v2179 = vpop.f32.mrb[0].mxu0
    %2180 = vmatprep.mubr.bf16.mxu0 %v1535
    %2181 = vmatmul.mubr.bf16.gmra.mrb[0].mxu0 %v1534
    %v2182 = vpop.f32.mrb[0].mxu0
    %v2183 = vadd.f32 0.0, %v2182
    %v2184 = vpop.f32.mrb[0].mxu0
    %v2185 = vpop.f32.mrb[0].mxu0
    %v2186 = vadd.f32 0.0, %v2185
    %v2187 = vpop.f32.mrb[0].mxu0
    %2188 = vmatprep.mubr.bf16.mxu0 %v1538
    %2189 = vmatmul.mubr.bf16.gmra.mrb[0].mxu0 %v1537
    %v2190 = vpop.f32.mrb[0].mxu0
    %v2191 = vadd.f32 0.0, %v2190
    %v2192 = vpop.f32.mrb[0].mxu0
    %v2193 = vpop.f32.mrb[0].mxu0
    %v2194 = vadd.f32 0.0, %v2193
    %v2195 = vpop.f32.mrb[0].mxu0
    %2196 = vmatprep.mubr.bf16.mxu0 %v1540
    %2197 = vmatmul.mubr.bf16.gmra.mrb[0].mxu0 %v491
    %v2198 = vpop.f32.mrb[0].mxu0
    %v2199 = vadd.f32 0.0, %v2198
    %v2200 = vpop.f32.mrb[0].mxu0
    %v2201 = vpop.f32.mrb[0].mxu0
    %v2202 = vadd.f32 0.0, %v2201
    %v2203 = vpop.f32.mrb[0].mxu0
    %2204 = vmatprep.mubr.bf16.mxu0 %v1543
    %2205 = vmatmul.mubr.bf16.gmra.mrb[0].mxu0 %v1542
    %v2206 = vpop.f32.mrb[0].mxu0
    %v2207 = vadd.f32 0.0, %v2206
    %v2208 = vpop.f32.mrb[0].mxu0
    %v2209 = vpop.f32.mrb[0].mxu0
    %v2210 = vadd.f32 0.0, %v2209
    %v2211 = vpop.f32.mrb[0].mxu0
    %2212 = vmatprep.mubr.bf16.mxu0 %v1546
    %2213 = vmatmul.mubr.bf16.gmra.mrb[0].mxu0 %v1545
    %v2214 = vpop.f32.mrb[0].mxu0
    %v2215 = vadd.f32 0.0, %v2214
    %v2216 = vpop.f32.mrb[0].mxu0
    %v2217 = vpop.f32.mrb[0].mxu0
    %v2218 = vadd.f32 0.0, %v2217
    %v2219 = vpop.f32.mrb[0].mxu0
    %2220 = vmatprep.mubr.bf16.mxu0 %v1548
    %2221 = vmatmul.mubr.bf16.gmra.mrb[0].mxu0 %v495
    %v2222 = vpop.f32.mrb[0].mxu0
    %v2223 = vadd.f32 0.0, %v2222
    %v2224 = vpop.f32.mrb[0].mxu0
    %v2225 = vpop.f32.mrb[0].mxu0
    %v2226 = vadd.f32 0.0, %v2225
    %v2227 = vpop.f32.mrb[0].mxu0
    %2228 = vmatprep.mubr.bf16.mxu0 %v1551
    %2229 = vmatmul.mubr.bf16.gmra.mrb[0].mxu0 %v1550
    %v2230 = vpop.f32.mrb[0].mxu0
    %v2231 = vadd.f32 0.0, %v2230
    %v2232 = vpop.f32.mrb[0].mxu0
    %v2233 = vpop.f32.mrb[0].mxu0
    %v2234 = vadd.f32 0.0, %v2233
    %v2235 = vpop.f32.mrb[0].mxu0
    %2236 = vmatprep.mubr.bf16.mxu0 %v1554
    %2237 = vmatmul.mubr.bf16.gmra.mrb[0].mxu0 %v1553
    %v2238 = vpop.f32.mrb[0].mxu0
    %v2239 = vadd.f32 0.0, %v2238
    %v2240 = vpop.f32.mrb[0].mxu0
    %v2241 = vpop.f32.mrb[0].mxu0
    %v2242 = vadd.f32 0.0, %v2241
    %v2243 = vpop.f32.mrb[0].mxu0
    %2244 = vmatprep.mubr.bf16.mxu0 %v1556
    %2245 = vmatmul.mubr.bf16.gmra.mrb[0].mxu0 %v499
    %v2246 = vpop.f32.mrb[0].mxu0
    %v2247 = vadd.f32 0.0, %v2246
    %v2248 = vpop.f32.mrb[0].mxu0
    %v2249 = vpop.f32.mrb[0].mxu0
    %v2250 = vadd.f32 0.0, %v2249
    %v2251 = vpop.f32.mrb[0].mxu0
    %2252 = vmatprep.mubr.bf16.mxu0 %v1559
    %2253 = vmatmul.mubr.bf16.gmra.mrb[0].mxu0 %v1558
    %v2254 = vpop.f32.mrb[0].mxu0
    %v2255 = vadd.f32 0.0, %v2254
    %v2256 = vpop.f32.mrb[0].mxu0
    %v2257 = vpop.f32.mrb[0].mxu0
    %v2258 = vadd.f32 0.0, %v2257
    %v2259 = vpop.f32.mrb[0].mxu0
    %2260 = vmatprep.mubr.bf16.mxu0 %v1562
    %2261 = vmatmul.mubr.bf16.gmra.mrb[0].mxu0 %v1561
    %v2262 = vpop.f32.mrb[0].mxu0
    %v2263 = vadd.f32 0.0, %v2262
    %v2264 = vpop.f32.mrb[0].mxu0
    %v2265 = vpop.f32.mrb[0].mxu0
    %v2266 = vadd.f32 0.0, %v2265
    %v2267 = vpop.f32.mrb[0].mxu0
    %2268 = vdwg.mxu0
    %2269 = vmatprep.subr.bf16.mxu0 0
    %2270 = vmatpush1.bf16.msra.mxu0 %v1820
    %2271 = vmatprep.subr.bf16.mxu0 0
    %2272 = vmatpush1.bf16.msra.mxu0 %v1821
    %2273 = vmatprep.subr.bf16.mxu0 0
    %2274 = vmatpush1.bf16.msra.mxu0 %v1822
    %2275 = vmatprep.subr.bf16.mxu0 0
    %2276 = vmatpush1.bf16.msra.mxu0 %v1823
    %2277 = vmatprep.subr.bf16.mxu0 0
    %2278 = vmatpush1.bf16.msra.mxu0 %v1824
    %2279 = vmatprep.subr.bf16.mxu0 0
    %2280 = vmatpush1.bf16.msra.mxu0 %v1825
    %2281 = vmatprep.subr.bf16.mxu0 0
    %2282 = vmatpush1.bf16.msra.mxu0 %v1826
    %2283 = vmatprep.subr.bf16.mxu0 0
    %2284 = vmatpush1.bf16.msra.mxu0 %v1827
    %2285 = vmatprep.subr.bf16.mxu0 0
    %2286 = vmatpush1.bf16.msra.mxu0 0
    %2287 = vmatprep.subr.bf16.mxu0 0
    %2288 = vmatpush1.bf16.msra.mxu0 0
    %2289 = vmatprep.subr.bf16.mxu0 0
    %2290 = vmatpush1.bf16.msra.mxu0 0
    %2291 = vmatprep.subr.bf16.mxu0 0
    %2292 = vmatpush1.bf16.msra.mxu0 0
    %2293 = vmatprep.subr.bf16.mxu0 0
    %2294 = vmatpush1.bf16.msra.mxu0 0
    %2295 = vmatprep.subr.bf16.mxu0 0
    %2296 = vmatpush1.bf16.msra.mxu0 0
    %2297 = vmatprep.subr.bf16.mxu0 0
    %2298 = vmatpush1.bf16.msra.mxu0 0
    %2299 = vmatprep.subr.bf16.mxu0 0
    %2300 = vmatpush1.bf16.msra.mxu0 0
    %2301 = vmatprep.mubr.bf16.mxu0 0
    %2302 = vmatmul.mubr.bf16.gmra.mrb[0].mxu0 %v1437
    %v2303 = vpop.f32.mrb[0].mxu0
    %v2304 = vadd.f32 %v1887, %v2303
    %v2305 = vpop.f32.mrb[0].mxu0
    %v2306 = vpop.f32.mrb[0].mxu0
    %v2307 = vadd.f32 %v1890, %v2306
    %v2308 = vpop.f32.mrb[0].mxu0
    %2309 = vmatprep.mubr.bf16.mxu0 0
    %2310 = vmatmul.mubr.bf16.gmra.mrb[0].mxu0 %v1440
    %v2311 = vpop.f32.mrb[0].mxu0
    %v2312 = vadd.f32 %v1895, %v2311
    %v2313 = vpop.f32.mrb[0].mxu0
    %v2314 = vpop.f32.mrb[0].mxu0
    %v2315 = vadd.f32 %v1898, %v2314
    %v2316 = vpop.f32.mrb[0].mxu0
    %2317 = vmatprep.mubr.bf16.mxu0 0
    %2318 = vmatmul.mubr.bf16.gmra.mrb[0].mxu0 %v1443
    %v2319 = vpop.f32.mrb[0].mxu0
    %v2320 = vadd.f32 %v1903, %v2319
    %v2321 = vpop.f32.mrb[0].mxu0
    %v2322 = vpop.f32.mrb[0].mxu0
    %v2323 = vadd.f32 %v1906, %v2322
    %v2324 = vpop.f32.mrb[0].mxu0
    %2325 = vmatprep.mubr.bf16.mxu0 0
    %2326 = vmatmul.mubr.bf16.gmra.mrb[0].mxu0 %v1445
    %v2327 = vpop.f32.mrb[0].mxu0
    %v2328 = vadd.f32 %v1911, %v2327
    %v2329 = vpop.f32.mrb[0].mxu0
    %v2330 = vpop.f32.mrb[0].mxu0
    %v2331 = vadd.f32 %v1914, %v2330
    %v2332 = vpop.f32.mrb[0].mxu0
    %2333 = vmatprep.mubr.bf16.mxu0 0
    %2334 = vmatmul.mubr.bf16.gmra.mrb[0].mxu0 %v1448
    %v2335 = vpop.f32.mrb[0].mxu0
    %v2336 = vadd.f32 %v1919, %v2335
    %v2337 = vpop.f32.mrb[0].mxu0
    %v2338 = vpop.f32.mrb[0].mxu0
    %v2339 = vadd.f32 %v1922, %v2338
    %v2340 = vpop.f32.mrb[0].mxu0
    %2341 = vmatprep.mubr.bf16.mxu0 0
    %2342 = vmatmul.mubr.bf16.gmra.mrb[0].mxu0 %v1451
    %v2343 = vpop.f32.mrb[0].mxu0
    %v2344 = vadd.f32 %v1927, %v2343
    %v2345 = vpop.f32.mrb[0].mxu0
    %v2346 = vpop.f32.mrb[0].mxu0
    %v2347 = vadd.f32 %v1930, %v2346
    %v2348 = vpop.f32.mrb[0].mxu0
    %2349 = vmatprep.mubr.bf16.mxu0 0
    %2350 = vmatmul.mubr.bf16.gmra.mrb[0].mxu0 %v1453
    %v2351 = vpop.f32.mrb[0].mxu0
    %v2352 = vadd.f32 %v1935, %v2351
    %v2353 = vpop.f32.mrb[0].mxu0
    %v2354 = vpop.f32.mrb[0].mxu0
    %v2355 = vadd.f32 %v1938, %v2354
    %v2356 = vpop.f32.mrb[0].mxu0
    %2357 = vmatprep.mubr.bf16.mxu0 0
    %2358 = vmatmul.mubr.bf16.gmra.mrb[0].mxu0 %v1456
    %v2359 = vpop.f32.mrb[0].mxu0
    %v2360 = vadd.f32 %v1943, %v2359
    %v2361 = vpop.f32.mrb[0].mxu0
    %v2362 = vpop.f32.mrb[0].mxu0
    %v2363 = vadd.f32 %v1946, %v2362
    %v2364 = vpop.f32.mrb[0].mxu0
    %2365 = vmatprep.mubr.bf16.mxu0 0
    %2366 = vmatmul.mubr.bf16.gmra.mrb[0].mxu0 %v1459
    %v2367 = vpop.f32.mrb[0].mxu0
    %v2368 = vadd.f32 %v1951, %v2367
    %v2369 = vpop.f32.mrb[0].mxu0
    %v2370 = vpop.f32.mrb[0].mxu0
    %v2371 = vadd.f32 %v1954, %v2370
    %v2372 = vpop.f32.mrb[0].mxu0
    %2373 = vmatprep.mubr.bf16.mxu0 0
    %2374 = vmatmul.mubr.bf16.gmra.mrb[0].mxu0 %v1461
    %v2375 = vpop.f32.mrb[0].mxu0
    %v2376 = vadd.f32 %v1959, %v2375
    %v2377 = vpop.f32.mrb[0].mxu0
    %v2378 = vpop.f32.mrb[0].mxu0
    %v2379 = vadd.f32 %v1962, %v2378
    %v2380 = vpop.f32.mrb[0].mxu0
    %2381 = vmatprep.mubr.bf16.mxu0 0
    %2382 = vmatmul.mubr.bf16.gmra.mrb[0].mxu0 %v1464
    %v2383 = vpop.f32.mrb[0].mxu0
    %v2384 = vadd.f32 %v1967, %v2383
    %v2385 = vpop.f32.mrb[0].mxu0
    %v2386 = vpop.f32.mrb[0].mxu0
    %v2387 = vadd.f32 %v1970, %v2386
    %v2388 = vpop.f32.mrb[0].mxu0
    %2389 = vmatprep.mubr.bf16.mxu0 0
    %2390 = vmatmul.mubr.bf16.gmra.mrb[0].mxu0 %v1467
    %v2391 = vpop.f32.mrb[0].mxu0
    %v2392 = vadd.f32 %v1975, %v2391
    %v2393 = vpop.f32.mrb[0].mxu0
    %v2394 = vpop.f32.mrb[0].mxu0
    %v2395 = vadd.f32 %v1978, %v2394
    %v2396 = vpop.f32.mrb[0].mxu0
    %2397 = vmatprep.mubr.bf16.mxu0 0
    %2398 = vmatmul.mubr.bf16.gmra.mrb[0].mxu0 %v1469
    %v2399 = vpop.f32.mrb[0].mxu0
    %v2400 = vadd.f32 %v1983, %v2399
    %v2401 = vpop.f32.mrb[0].mxu0
    %v2402 = vpop.f32.mrb[0].mxu0
    %v2403 = vadd.f32 %v1986, %v2402
    %v2404 = vpop.f32.mrb[0].mxu0
    %2405 = vmatprep.mubr.bf16.mxu0 0
    %2406 = vmatmul.mubr.bf16.gmra.mrb[0].mxu0 %v1472
    %v2407 = vpop.f32.mrb[0].mxu0
    %v2408 = vadd.f32 %v1991, %v2407
    %v2409 = vpop.f32.mrb[0].mxu0
    %v2410 = vpop.f32.mrb[0].mxu0
    %v2411 = vadd.f32 %v1994, %v2410
    %v2412 = vpop.f32.mrb[0].mxu0
    %2413 = vmatprep.mubr.bf16.mxu0 0
    %2414 = vmatmul.mubr.bf16.gmra.mrb[0].mxu0 %v1475
    %v2415 = vpop.f32.mrb[0].mxu0
    %v2416 = vadd.f32 %v1999, %v2415
    %v2417 = vpop.f32.mrb[0].mxu0
    %v2418 = vpop.f32.mrb[0].mxu0
    %v2419 = vadd.f32 %v2002, %v2418
    %v2420 = vpop.f32.mrb[0].mxu0
    %2421 = vmatprep.mubr.bf16.mxu0 0
    %2422 = vmatmul.mubr.bf16.gmra.mrb[0].mxu0 %v1477
    %v2423 = vpop.f32.mrb[0].mxu0
    %v2424 = vadd.f32 %v2007, %v2423
    %v2425 = vpop.f32.mrb[0].mxu0
    %v2426 = vpop.f32.mrb[0].mxu0
    %v2427 = vadd.f32 %v2010, %v2426
    %v2428 = vpop.f32.mrb[0].mxu0
    %2429 = vmatprep.mubr.bf16.mxu0 0
    %2430 = vmatmul.mubr.bf16.gmra.mrb[0].mxu0 %v1480
    %v2431 = vpop.f32.mrb[0].mxu0
    %v2432 = vadd.f32 %v2015, %v2431
    %v2433 = vpop.f32.mrb[0].mxu0
    %v2434 = vpop.f32.mrb[0].mxu0
    %v2435 = vadd.f32 %v2018, %v2434
    %v2436 = vpop.f32.mrb[0].mxu0
    %2437 = vmatprep.mubr.bf16.mxu0 0
    %2438 = vmatmul.mubr.bf16.gmra.mrb[0].mxu0 %v1483
    %v2439 = vpop.f32.mrb[0].mxu0
    %v2440 = vadd.f32 %v2023, %v2439
    %v2441 = vpop.f32.mrb[0].mxu0
    %v2442 = vpop.f32.mrb[0].mxu0
    %v2443 = vadd.f32 %v2026, %v2442
    %v2444 = vpop.f32.mrb[0].mxu0
    %2445 = vmatprep.mubr.bf16.mxu0 0
    %2446 = vmatmul.mubr.bf16.gmra.mrb[0].mxu0 %v1485
    %v2447 = vpop.f32.mrb[0].mxu0
    %v2448 = vadd.f32 %v2031, %v2447
    %v2449 = vpop.f32.mrb[0].mxu0
    %v2450 = vpop.f32.mrb[0].mxu0
    %v2451 = vadd.f32 %v2034, %v2450
    %v2452 = vpop.f32.mrb[0].mxu0
    %2453 = vmatprep.mubr.bf16.mxu0 0
    %2454 = vmatmul.mubr.bf16.gmra.mrb[0].mxu0 %v1488
    %v2455 = vpop.f32.mrb[0].mxu0
    %v2456 = vadd.f32 %v2039, %v2455
    %v2457 = vpop.f32.mrb[0].mxu0
    %v2458 = vpop.f32.mrb[0].mxu0
    %v2459 = vadd.f32 %v2042, %v2458
    %v2460 = vpop.f32.mrb[0].mxu0
    %2461 = vmatprep.mubr.bf16.mxu0 0
    %2462 = vmatmul.mubr.bf16.gmra.mrb[0].mxu0 %v1491
    %v2463 = vpop.f32.mrb[0].mxu0
    %v2464 = vadd.f32 %v2047, %v2463
    %v2465 = vpop.f32.mrb[0].mxu0
    %v2466 = vpop.f32.mrb[0].mxu0
    %v2467 = vadd.f32 %v2050, %v2466
    %v2468 = vpop.f32.mrb[0].mxu0
    %2469 = vmatprep.mubr.bf16.mxu0 0
    %2470 = vmatmul.mubr.bf16.gmra.mrb[0].mxu0 %v1493
    %v2471 = vpop.f32.mrb[0].mxu0
    %v2472 = vadd.f32 %v2055, %v2471
    %v2473 = vpop.f32.mrb[0].mxu0
    %v2474 = vpop.f32.mrb[0].mxu0
    %v2475 = vadd.f32 %v2058, %v2474
    %v2476 = vpop.f32.mrb[0].mxu0
    %2477 = vmatprep.mubr.bf16.mxu0 0
    %2478 = vmatmul.mubr.bf16.gmra.mrb[0].mxu0 %v1496
    %v2479 = vpop.f32.mrb[0].mxu0
    %v2480 = vadd.f32 %v2063, %v2479
    %v2481 = vpop.f32.mrb[0].mxu0
    %v2482 = vpop.f32.mrb[0].mxu0
    %v2483 = vadd.f32 %v2066, %v2482
    %v2484 = vpop.f32.mrb[0].mxu0
    %2485 = vmatprep.mubr.bf16.mxu0 0
    %2486 = vmatmul.mubr.bf16.gmra.mrb[0].mxu0 %v1499
    %v2487 = vpop.f32.mrb[0].mxu0
    %v2488 = vadd.f32 %v2071, %v2487
    %v2489 = vpop.f32.mrb[0].mxu0
    %v2490 = vpop.f32.mrb[0].mxu0
    %v2491 = vadd.f32 %v2074, %v2490
    %v2492 = vpop.f32.mrb[0].mxu0
    %2493 = vmatprep.mubr.bf16.mxu0 0
    %2494 = vmatmul.mubr.bf16.gmra.mrb[0].mxu0 %v1501
    %v2495 = vpop.f32.mrb[0].mxu0
    %v2496 = vadd.f32 %v2079, %v2495
    %v2497 = vpop.f32.mrb[0].mxu0
    %v2498 = vpop.f32.mrb[0].mxu0
    %v2499 = vadd.f32 %v2082, %v2498
    %v2500 = vpop.f32.mrb[0].mxu0
    %2501 = vmatprep.mubr.bf16.mxu0 0
    %2502 = vmatmul.mubr.bf16.gmra.mrb[0].mxu0 %v1504
    %v2503 = vpop.f32.mrb[0].mxu0
    %v2504 = vadd.f32 %v2087, %v2503
    %v2505 = vpop.f32.mrb[0].mxu0
    %v2506 = vpop.f32.mrb[0].mxu0
    %v2507 = vadd.f32 %v2090, %v2506
    %v2508 = vpop.f32.mrb[0].mxu0
    %2509 = vmatprep.mubr.bf16.mxu0 0
    %2510 = vmatmul.mubr.bf16.gmra.mrb[0].mxu0 %v1507
    %v2511 = vpop.f32.mrb[0].mxu0
    %v2512 = vadd.f32 %v2095, %v2511
    %v2513 = vpop.f32.mrb[0].mxu0
    %v2514 = vpop.f32.mrb[0].mxu0
    %v2515 = vadd.f32 %v2098, %v2514
    %v2516 = vpop.f32.mrb[0].mxu0
    %2517 = vmatprep.mubr.bf16.mxu0 0
    %2518 = vmatmul.mubr.bf16.gmra.mrb[0].mxu0 %v1509
    %v2519 = vpop.f32.mrb[0].mxu0
    %v2520 = vadd.f32 %v2103, %v2519
    %v2521 = vpop.f32.mrb[0].mxu0
    %v2522 = vpop.f32.mrb[0].mxu0
    %v2523 = vadd.f32 %v2106, %v2522
    %v2524 = vpop.f32.mrb[0].mxu0
    %2525 = vmatprep.mubr.bf16.mxu0 0
    %2526 = vmatmul.mubr.bf16.gmra.mrb[0].mxu0 %v1512
    %v2527 = vpop.f32.mrb[0].mxu0
    %v2528 = vadd.f32 %v2111, %v2527
    %v2529 = vpop.f32.mrb[0].mxu0
    %v2530 = vpop.f32.mrb[0].mxu0
    %v2531 = vadd.f32 %v2114, %v2530
    %v2532 = vpop.f32.mrb[0].mxu0
    %2533 = vmatprep.mubr.bf16.mxu0 0
    %2534 = vmatmul.mubr.bf16.gmra.mrb[0].mxu0 %v1515
    %v2535 = vpop.f32.mrb[0].mxu0
    %v2536 = vadd.f32 %v2119, %v2535
    %v2537 = vpop.f32.mrb[0].mxu0
    %v2538 = vpop.f32.mrb[0].mxu0
    %v2539 = vadd.f32 %v2122, %v2538
    %v2540 = vpop.f32.mrb[0].mxu0
    %2541 = vmatprep.mubr.bf16.mxu0 0
    %2542 = vmatmul.mubr.bf16.gmra.mrb[0].mxu0 %v1517
    %v2543 = vpop.f32.mrb[0].mxu0
    %v2544 = vadd.f32 %v2127, %v2543
    %v2545 = vpop.f32.mrb[0].mxu0
    %v2546 = vpop.f32.mrb[0].mxu0
    %v2547 = vadd.f32 %v2130, %v2546
    %v2548 = vpop.f32.mrb[0].mxu0
    %2549 = vmatprep.mubr.bf16.mxu0 0
    %2550 = vmatmul.mubr.bf16.gmra.mrb[0].mxu0 %v1520
    %v2551 = vpop.f32.mrb[0].mxu0
    %v2552 = vadd.f32 %v2135, %v2551
    %v2553 = vpop.f32.mrb[0].mxu0
    %v2554 = vpop.f32.mrb[0].mxu0
    %v2555 = vadd.f32 %v2138, %v2554
    %v2556 = vpop.f32.mrb[0].mxu0
    %2557 = vmatprep.mubr.bf16.mxu0 0
    %2558 = vmatmul.mubr.bf16.gmra.mrb[0].mxu0 %v1523
    %v2559 = vpop.f32.mrb[0].mxu0
    %v2560 = vadd.f32 %v2143, %v2559
    %v2561 = vpop.f32.mrb[0].mxu0
    %v2562 = vpop.f32.mrb[0].mxu0
    %v2563 = vadd.f32 %v2146, %v2562
    %v2564 = vpop.f32.mrb[0].mxu0
    %2565 = vmatprep.mubr.bf16.mxu0 0
    %2566 = vmatmul.mubr.bf16.gmra.mrb[0].mxu0 %v1525
    %v2567 = vpop.f32.mrb[0].mxu0
    %v2568 = vadd.f32 %v2151, %v2567
    %v2569 = vpop.f32.mrb[0].mxu0
    %v2570 = vpop.f32.mrb[0].mxu0
    %v2571 = vadd.f32 %v2154, %v2570
    %v2572 = vpop.f32.mrb[0].mxu0
    %2573 = vmatprep.mubr.bf16.mxu0 0
    %2574 = vmatmul.mubr.bf16.gmra.mrb[0].mxu0 %v1528
    %v2575 = vpop.f32.mrb[0].mxu0
    %v2576 = vadd.f32 %v2159, %v2575
    %v2577 = vpop.f32.mrb[0].mxu0
    %v2578 = vpop.f32.mrb[0].mxu0
    %v2579 = vadd.f32 %v2162, %v2578
    %v2580 = vpop.f32.mrb[0].mxu0
    %2581 = vmatprep.mubr.bf16.mxu0 0
    %2582 = vmatmul.mubr.bf16.gmra.mrb[0].mxu0 %v1531
    %v2583 = vpop.f32.mrb[0].mxu0
    %v2584 = vadd.f32 %v2167, %v2583
    %v2585 = vpop.f32.mrb[0].mxu0
    %v2586 = vpop.f32.mrb[0].mxu0
    %v2587 = vadd.f32 %v2170, %v2586
    %v2588 = vpop.f32.mrb[0].mxu0
    %2589 = vmatprep.mubr.bf16.mxu0 0
    %2590 = vmatmul.mubr.bf16.gmra.mrb[0].mxu0 %v1533
    %v2591 = vpop.f32.mrb[0].mxu0
    %v2592 = vadd.f32 %v2175, %v2591
    %v2593 = vpop.f32.mrb[0].mxu0
    %v2594 = vpop.f32.mrb[0].mxu0
    %v2595 = vadd.f32 %v2178, %v2594
    %v2596 = vpop.f32.mrb[0].mxu0
    %2597 = vmatprep.mubr.bf16.mxu0 0
    %2598 = vmatmul.mubr.bf16.gmra.mrb[0].mxu0 %v1536
    %v2599 = vpop.f32.mrb[0].mxu0
    %v2600 = vadd.f32 %v2183, %v2599
    %v2601 = vpop.f32.mrb[0].mxu0
    %v2602 = vpop.f32.mrb[0].mxu0
    %v2603 = vadd.f32 %v2186, %v2602
    %v2604 = vpop.f32.mrb[0].mxu0
    %2605 = vmatprep.mubr.bf16.mxu0 0
    %2606 = vmatmul.mubr.bf16.gmra.mrb[0].mxu0 %v1539
    %v2607 = vpop.f32.mrb[0].mxu0
    %v2608 = vadd.f32 %v2191, %v2607
    %v2609 = vpop.f32.mrb[0].mxu0
    %v2610 = vpop.f32.mrb[0].mxu0
    %v2611 = vadd.f32 %v2194, %v2610
    %v2612 = vpop.f32.mrb[0].mxu0
    %2613 = vmatprep.mubr.bf16.mxu0 0
    %2614 = vmatmul.mubr.bf16.gmra.mrb[0].mxu0 %v1541
    %v2615 = vpop.f32.mrb[0].mxu0
    %v2616 = vadd.f32 %v2199, %v2615
    %v2617 = vpop.f32.mrb[0].mxu0
    %v2618 = vpop.f32.mrb[0].mxu0
    %v2619 = vadd.f32 %v2202, %v2618
    %v2620 = vpop.f32.mrb[0].mxu0
    %2621 = vmatprep.mubr.bf16.mxu0 0
    %2622 = vmatmul.mubr.bf16.gmra.mrb[0].mxu0 %v1544
    %v2623 = vpop.f32.mrb[0].mxu0
    %v2624 = vadd.f32 %v2207, %v2623
    %v2625 = vpop.f32.mrb[0].mxu0
    %v2626 = vpop.f32.mrb[0].mxu0
    %v2627 = vadd.f32 %v2210, %v2626
    %v2628 = vpop.f32.mrb[0].mxu0
    %2629 = vmatprep.mubr.bf16.mxu0 0
    %2630 = vmatmul.mubr.bf16.gmra.mrb[0].mxu0 %v1547
    %v2631 = vpop.f32.mrb[0].mxu0
    %v2632 = vadd.f32 %v2215, %v2631
    %v2633 = vpop.f32.mrb[0].mxu0
    %v2634 = vpop.f32.mrb[0].mxu0
    %v2635 = vadd.f32 %v2218, %v2634
    %v2636 = vpop.f32.mrb[0].mxu0
    %2637 = vmatprep.mubr.bf16.mxu0 0
    %2638 = vmatmul.mubr.bf16.gmra.mrb[0].mxu0 %v1549
    %v2639 = vpop.f32.mrb[0].mxu0
    %v2640 = vadd.f32 %v2223, %v2639
    %v2641 = vpop.f32.mrb[0].mxu0
    %v2642 = vpop.f32.mrb[0].mxu0
    %v2643 = vadd.f32 %v2226, %v2642
    %v2644 = vpop.f32.mrb[0].mxu0
    %2645 = vmatprep.mubr.bf16.mxu0 0
    %2646 = vmatmul.mubr.bf16.gmra.mrb[0].mxu0 %v1552
    %v2647 = vpop.f32.mrb[0].mxu0
    %v2648 = vadd.f32 %v2231, %v2647
    %v2649 = vpop.f32.mrb[0].mxu0
    %v2650 = vpop.f32.mrb[0].mxu0
    %v2651 = vadd.f32 %v2234, %v2650
    %v2652 = vpop.f32.mrb[0].mxu0
    %2653 = vmatprep.mubr.bf16.mxu0 0
    %2654 = vmatmul.mubr.bf16.gmra.mrb[0].mxu0 %v1555
    %v2655 = vpop.f32.mrb[0].mxu0
    %v2656 = vadd.f32 %v2239, %v2655
    %v2657 = vpop.f32.mrb[0].mxu0
    %v2658 = vpop.f32.mrb[0].mxu0
    %v2659 = vadd.f32 %v2242, %v2658
    %v2660 = vpop.f32.mrb[0].mxu0
    %2661 = vmatprep.mubr.bf16.mxu0 0
    %2662 = vmatmul.mubr.bf16.gmra.mrb[0].mxu0 %v1557
    %v2663 = vpop.f32.mrb[0].mxu0
    %v2664 = vadd.f32 %v2247, %v2663
    %v2665 = vpop.f32.mrb[0].mxu0
    %v2666 = vpop.f32.mrb[0].mxu0
    %v2667 = vadd.f32 %v2250, %v2666
    %v2668 = vpop.f32.mrb[0].mxu0
    %2669 = vmatprep.mubr.bf16.mxu0 0
    %2670 = vmatmul.mubr.bf16.gmra.mrb[0].mxu0 %v1560
    %v2671 = vpop.f32.mrb[0].mxu0
    %v2672 = vadd.f32 %v2255, %v2671
    %v2673 = vpop.f32.mrb[0].mxu0
    %v2674 = vpop.f32.mrb[0].mxu0
    %v2675 = vadd.f32 %v2258, %v2674
    %v2676 = vpop.f32.mrb[0].mxu0
    %2677 = vmatprep.mubr.bf16.mxu0 0
    %2678 = vmatmul.mubr.bf16.gmra.mrb[0].mxu0 %v1563
    %v2679 = vpop.f32.mrb[0].mxu0
    %v2680 = vadd.f32 %v2263, %v2679
    %v2681 = vpop.f32.mrb[0].mxu0
    %v2682 = vpop.f32.mrb[0].mxu0
    %v2683 = vadd.f32 %v2266, %v2682
    %v2684 = vpop.f32.mrb[0].mxu0
    %2685 = vdwg.mxu0
    %v2686 = vpack.c.b16 %v1081, %v1079
    %v2687 = vpack.c.b16 %v1082, %v1080
    %v2688 = vpack.c.b16 %v280, %v279
    %v2689 = vpack.c.b16 %v1085, %v1083
    %v2690 = vpack.c.b16 %v1086, %v1084
    %v2691 = vpack.c.b16 %v282, %v281
    %v2692 = vpack.c.b16 %v1089, %v1087
    %v2693 = vpack.c.b16 %v1090, %v1088
    %v2694 = vpack.c.b16 %v1093, %v1091
    %v2695 = vpack.c.b16 %v1094, %v1092
    %v2696 = vpack.c.b16 %v286, %v285
    %v2697 = vpack.c.b16 %v1097, %v1095
    %v2698 = vpack.c.b16 %v1098, %v1096
    %v2699 = vpack.c.b16 %v288, %v287
    %v2700 = vpack.c.b16 %v1101, %v1099
    %v2701 = vpack.c.b16 %v1102, %v1100
    %v2702 = vpack.c.b16 %v1105, %v1103
    %v2703 = vpack.c.b16 %v1106, %v1104
    %v2704 = vpack.c.b16 %v292, %v291
    %v2705 = vpack.c.b16 %v1109, %v1107
    %v2706 = vpack.c.b16 %v1110, %v1108
    %v2707 = vpack.c.b16 %v294, %v293
    %v2708 = vpack.c.b16 %v1113, %v1111
    %v2709 = vpack.c.b16 %v1114, %v1112
    %v2710 = vpack.c.b16 %v1117, %v1115
    %v2711 = vpack.c.b16 %v1118, %v1116
    %v2712 = vpack.c.b16 %v298, %v297
    %v2713 = vpack.c.b16 %v1121, %v1119
    %v2714 = vpack.c.b16 %v1122, %v1120
    %v2715 = vpack.c.b16 %v300, %v299
    %v2716 = vpack.c.b16 %v1125, %v1123
    %v2717 = vpack.c.b16 %v1126, %v1124
    %v2718 = vpack.c.b16 %v1129, %v1127
    %v2719 = vpack.c.b16 %v1130, %v1128
    %v2720 = vpack.c.b16 %v304, %v303
    %v2721 = vpack.c.b16 %v1133, %v1131
    %v2722 = vpack.c.b16 %v1134, %v1132
    %v2723 = vpack.c.b16 %v306, %v305
    %v2724 = vpack.c.b16 %v1137, %v1135
    %v2725 = vpack.c.b16 %v1138, %v1136
    %v2726 = vpack.c.b16 %v1141, %v1139
    %v2727 = vpack.c.b16 %v1142, %v1140
    %v2728 = vpack.c.b16 %v310, %v309
    %v2729 = vpack.c.b16 %v1145, %v1143
    %v2730 = vpack.c.b16 %v1146, %v1144
    %v2731 = vpack.c.b16 %v312, %v311
    %v2732 = vpack.c.b16 %v1149, %v1147
    %v2733 = vpack.c.b16 %v1150, %v1148
    %v2734 = vpack.c.b16 %v1153, %v1151
    %v2735 = vpack.c.b16 %v1154, %v1152
    %v2736 = vpack.c.b16 %v316, %v315
    %v2737 = vpack.c.b16 %v1157, %v1155
    %v2738 = vpack.c.b16 %v1158, %v1156
    %v2739 = vpack.c.b16 %v318, %v317
    %v2740 = vpack.c.b16 %v1161, %v1159
    %v2741 = vpack.c.b16 %v1162, %v1160
    %v2742 = vpack.c.b16 %v1165, %v1163
    %v2743 = vpack.c.b16 %v1166, %v1164
    %v2744 = vpack.c.b16 %v322, %v321
    %v2745 = vpack.c.b16 %v1169, %v1167
    %v2746 = vpack.c.b16 %v1170, %v1168
    %v2747 = vpack.c.b16 %v324, %v323
    %v2748 = vpack.c.b16 %v1173, %v1171
    %v2749 = vpack.c.b16 %v1174, %v1172
    %v2750 = vpack.c.b16 %v1177, %v1175
    %v2751 = vpack.c.b16 %v1178, %v1176
    %v2752 = vpack.c.b16 %v328, %v327
    %v2753 = vpack.c.b16 %v1181, %v1179
    %v2754 = vpack.c.b16 %v1182, %v1180
    %v2755 = vpack.c.b16 %v330, %v329
    %v2756 = vpack.c.b16 %v1185, %v1183
    %v2757 = vpack.c.b16 %v1186, %v1184
    %v2758 = vpack.c.b16 %v1189, %v1187
    %v2759 = vpack.c.b16 %v1190, %v1188
    %v2760 = vpack.c.b16 %v334, %v333
    %v2761 = vpack.c.b16 %v1193, %v1191
    %v2762 = vpack.c.b16 %v1194, %v1192
    %v2763 = vpack.c.b16 %v336, %v335
    %v2764 = vpack.c.b16 %v1197, %v1195
    %v2765 = vpack.c.b16 %v1198, %v1196
    %v2766 = vpack.c.b16 %v1201, %v1199
    %v2767 = vpack.c.b16 %v1202, %v1200
    %v2768 = vpack.c.b16 %v340, %v339
    %v2769 = vpack.c.b16 %v1205, %v1203
    %v2770 = vpack.c.b16 %v1206, %v1204
    %v2771 = vpack.c.b16 %v342, %v341
    %v2772 = vpack.c.b16 %v1209, %v1207
    %v2773 = vpack.c.b16 %v1210, %v1208
    %v2774 = vpack.c.b16 %v1213, %v1211
    %v2775 = vpack.c.b16 %v1214, %v1212
    %v2776 = vpack.c.b16 %v346, %v345
    %v2777 = vpack.c.b16 %v1217, %v1215
    %v2778 = vpack.c.b16 %v1218, %v1216
    %v2779 = vpack.c.b16 %v348, %v347
    %v2780 = vpack.c.b16 %v1221, %v1219
    %v2781 = vpack.c.b16 %v1222, %v1220
    %v2782 = vpack.c.b16 %v1225, %v1223
    %v2783 = vpack.c.b16 %v1226, %v1224
    %v2784 = vpack.c.b16 %v352, %v351
    %v2785 = vpack.c.b16 %v1229, %v1227
    %v2786 = vpack.c.b16 %v1230, %v1228
    %v2787 = vpack.c.b16 %v354, %v353
    %v2788 = vpack.c.b16 %v1233, %v1231
    %v2789 = vpack.c.b16 %v1234, %v1232
    %v2790 = vpack.c.b16 %v1237, %v1235
    %v2791 = vpack.c.b16 %v1238, %v1236
    %v2792 = vpack.c.b16 %v358, %v357
    %v2793 = vpack.c.b16 %v1241, %v1239
    %v2794 = vpack.c.b16 %v1242, %v1240
    %v2795 = vpack.c.b16 %v360, %v359
    %v2796 = vpack.c.b16 %v1245, %v1243
    %v2797 = vpack.c.b16 %v1246, %v1244
    %v2798 = vpack.c.b16 %v1249, %v1247
    %v2799 = vpack.c.b16 %v1250, %v1248
    %v2800 = vpack.c.b16 %v364, %v363
    %v2801 = vpack.c.b16 %v1253, %v1251
    %v2802 = vpack.c.b16 %v1254, %v1252
    %v2803 = vpack.c.b16 %v366, %v365
    %v2804 = vpack.c.b16 %v1257, %v1255
    %v2805 = vpack.c.b16 %v1258, %v1256
    %v2806 = vpack.c.b16 %v1261, %v1259
    %v2807 = vpack.c.b16 %v1262, %v1260
    %v2808 = vpack.c.b16 %v370, %v369
    %v2809 = vpack.c.b16 %v1265, %v1263
    %v2810 = vpack.c.b16 %v1266, %v1264
    %v2811 = vpack.c.b16 %v372, %v371
    %v2812 = vpack.c.b16 %v1269, %v1267
    %v2813 = vpack.c.b16 %v1270, %v1268
    %v3006 = vunpack.c.l.b16 %v1271
    %v3007 = vunpack.c.l.b16 %v1272
    %v3008 = vunpack.c.l.b16 %v1273
    %v3009 = vunpack.c.l.b16 %v1274
    %v3010 = vunpack.c.l.b16 %v1275
    %v3011 = vunpack.c.l.b16 %v1276
    %v3012 = vunpack.c.l.b16 %v1277
    %v3013 = vunpack.c.l.b16 %v1278
    %v3014 = vunpack.c.l.b16 %v1279
    %v3015 = vunpack.c.l.b16 %v1280
    %v3016 = vunpack.c.l.b16 %v1281
    %v3017 = vunpack.c.l.b16 %v1282
    %v3018 = vunpack.c.l.b16 %v1283
    %v3019 = vunpack.c.l.b16 %v1284
    %v3020 = vunpack.c.l.b16 %v1285
    %v3021 = vunpack.c.l.b16 %v1286
    %v3022 = vunpack.c.l.b16 %v1287
    %v3023 = vunpack.c.l.b16 %v1288
    %v3024 = vunpack.c.l.b16 %v1289
    %v3025 = vunpack.c.l.b16 %v1290
    %v3026 = vunpack.c.l.b16 %v1291
    %v3027 = vunpack.c.l.b16 %v1292
    %v3028 = vunpack.c.l.b16 %v1293
    %v3029 = vunpack.c.l.b16 %v1294
    %v3030 = vunpack.c.l.b16 %v1295
    %v3031 = vunpack.c.l.b16 %v1296
    %v3032 = vunpack.c.l.b16 %v1297
    %v3033 = vunpack.c.l.b16 %v1298
    %v3034 = vunpack.c.l.b16 %v1299
    %v3035 = vunpack.c.l.b16 %v1300
    %v3036 = vunpack.c.l.b16 %v1301
    %v3037 = vunpack.c.l.b16 %v1302
    %v3038 = vunpack.c.l.b16 %v1303
    %v3039 = vunpack.c.l.b16 %v1304
    %v3040 = vunpack.c.l.b16 %v1305
    %v3041 = vunpack.c.l.b16 %v1306
    %v3042 = vunpack.c.l.b16 %v1307
    %v3043 = vunpack.c.l.b16 %v1308
    %v3044 = vunpack.c.l.b16 %v1309
    %v3045 = vunpack.c.l.b16 %v1310
    %v3046 = vunpack.c.l.b16 %v1311
    %v3047 = vunpack.c.l.b16 %v1312
    %v3048 = vunpack.c.l.b16 %v1313
    %v3049 = vunpack.c.l.b16 %v1314
    %v3050 = vunpack.c.l.b16 %v1315
    %v3051 = vunpack.c.l.b16 %v1316
    %v3052 = vunpack.c.l.b16 %v1317
    %v3053 = vunpack.c.l.b16 %v1318
    %v3054 = vpack.c.b16 %v3007, %v3006
    %v3055 = vpack.c.b16 %v3009, %v3008
    %v3056 = vpack.c.b16 %v3011, %v3010
    %v3057 = vpack.c.b16 %v3013, %v3012
    %v3058 = vpack.c.b16 %v3015, %v3014
    %v3059 = vpack.c.b16 %v3017, %v3016
    %v3060 = vpack.c.b16 %v3019, %v3018
    %v3061 = vpack.c.b16 %v3021, %v3020
    %v3062 = vpack.c.b16 %v3023, %v3022
    %v3063 = vpack.c.b16 %v3025, %v3024
    %v3064 = vpack.c.b16 %v3027, %v3026
    %v3065 = vpack.c.b16 %v3029, %v3028
    %v3066 = vpack.c.b16 %v3031, %v3030
    %v3067 = vpack.c.b16 %v3033, %v3032
    %v3068 = vpack.c.b16 %v3035, %v3034
    %v3069 = vpack.c.b16 %v3037, %v3036
    %v3070 = vpack.c.b16 %v3039, %v3038
    %v3071 = vpack.c.b16 %v3041, %v3040
    %v3072 = vpack.c.b16 %v3043, %v3042
    %v3073 = vpack.c.b16 %v3045, %v3044
    %v3074 = vpack.c.b16 %v3047, %v3046
    %v3075 = vpack.c.b16 %v3049, %v3048
    %v3076 = vpack.c.b16 %v3051, %v3050
    %v3077 = vpack.c.b16 %v3053, %v3052
    %3102 = vmatprep.subr.bf16.mxu0 0
    %3103 = vmatpush1.bf16.msra.mxu0 %v3054
    %3104 = vmatprep.subr.bf16.mxu0 0
    %3105 = vmatpush1.bf16.msra.mxu0 %v3055
    %3106 = vmatprep.subr.bf16.mxu0 0
    %3107 = vmatpush1.bf16.msra.mxu0 %v3056
    %3108 = vmatprep.subr.bf16.mxu0 0
    %3109 = vmatpush1.bf16.msra.mxu0 %v3057
    %3110 = vmatprep.subr.bf16.mxu0 0
    %3111 = vmatpush1.bf16.msra.mxu0 %v3058
    %3112 = vmatprep.subr.bf16.mxu0 0
    %3113 = vmatpush1.bf16.msra.mxu0 %v3059
    %3114 = vmatprep.subr.bf16.mxu0 0
    %3115 = vmatpush1.bf16.msra.mxu0 %v3060
    %3116 = vmatprep.subr.bf16.mxu0 0
    %3117 = vmatpush1.bf16.msra.mxu0 %v3061
    %3118 = vmatprep.subr.bf16.mxu0 0
    %3119 = vmatpush1.bf16.msra.mxu0 %v3062
    %3120 = vmatprep.subr.bf16.mxu0 0
    %3121 = vmatpush1.bf16.msra.mxu0 %v3063
    %3122 = vmatprep.subr.bf16.mxu0 0
    %3123 = vmatpush1.bf16.msra.mxu0 %v3064
    %3124 = vmatprep.subr.bf16.mxu0 0
    %3125 = vmatpush1.bf16.msra.mxu0 %v3065
    %3126 = vmatprep.subr.bf16.mxu0 0
    %3127 = vmatpush1.bf16.msra.mxu0 %v3066
    %3128 = vmatprep.subr.bf16.mxu0 0
    %3129 = vmatpush1.bf16.msra.mxu0 %v3067
    %3130 = vmatprep.subr.bf16.mxu0 0
    %3131 = vmatpush1.bf16.msra.mxu0 %v3068
    %3132 = vmatprep.subr.bf16.mxu0 0
    %3133 = vmatpush1.bf16.msra.mxu0 %v3069
    %3134 = vmatprep.mubr.bf16.mxu0 %v2686
    %3135 = vmatmul.mubr.bf16.gmra.mrb[0].mxu0 %v437
    %v3136 = vpop.f32.mrb[0].mxu0
    %v3137 = vadd.f32 %v2304, %v3136
    %v3138 = vpop.f32.mrb[0].mxu0
    %v3139 = vpop.f32.mrb[0].mxu0
    %v3140 = vadd.f32 %v2307, %v3139
    %v3141 = vpop.f32.mrb[0].mxu0
    %3142 = vmatprep.mubr.bf16.mxu0 %v2689
    %3143 = vmatmul.mubr.bf16.gmra.mrb[0].mxu0 %v2688
    %v3144 = vpop.f32.mrb[0].mxu0
    %v3145 = vadd.f32 %v2312, %v3144
    %v3146 = vpop.f32.mrb[0].mxu0
    %v3147 = vpop.f32.mrb[0].mxu0
    %v3148 = vadd.f32 %v2315, %v3147
    %v3149 = vpop.f32.mrb[0].mxu0
    %3150 = vmatprep.mubr.bf16.mxu0 %v2692
    %3151 = vmatmul.mubr.bf16.gmra.mrb[0].mxu0 %v2691
    %v3152 = vpop.f32.mrb[0].mxu0
    %v3153 = vadd.f32 %v2320, %v3152
    %v3154 = vpop.f32.mrb[0].mxu0
    %v3155 = vpop.f32.mrb[0].mxu0
    %v3156 = vadd.f32 %v2323, %v3155
    %v3157 = vpop.f32.mrb[0].mxu0
    %3158 = vmatprep.mubr.bf16.mxu0 %v2694
    %3159 = vmatmul.mubr.bf16.gmra.mrb[0].mxu0 %v441
    %v3160 = vpop.f32.mrb[0].mxu0
    %v3161 = vadd.f32 %v2328, %v3160
    %v3162 = vpop.f32.mrb[0].mxu0
    %v3163 = vpop.f32.mrb[0].mxu0
    %v3164 = vadd.f32 %v2331, %v3163
    %v3165 = vpop.f32.mrb[0].mxu0
    %3166 = vmatprep.mubr.bf16.mxu0 %v2697
    %3167 = vmatmul.mubr.bf16.gmra.mrb[0].mxu0 %v2696
    %v3168 = vpop.f32.mrb[0].mxu0
    %v3169 = vadd.f32 %v2336, %v3168
    %v3170 = vpop.f32.mrb[0].mxu0
    %v3171 = vpop.f32.mrb[0].mxu0
    %v3172 = vadd.f32 %v2339, %v3171
    %v3173 = vpop.f32.mrb[0].mxu0
    %3174 = vmatprep.mubr.bf16.mxu0 %v2700
    %3175 = vmatmul.mubr.bf16.gmra.mrb[0].mxu0 %v2699
    %v3176 = vpop.f32.mrb[0].mxu0
    %v3177 = vadd.f32 %v2344, %v3176
    %v3178 = vpop.f32.mrb[0].mxu0
    %v3179 = vpop.f32.mrb[0].mxu0
    %v3180 = vadd.f32 %v2347, %v3179
    %v3181 = vpop.f32.mrb[0].mxu0
    %3182 = vmatprep.mubr.bf16.mxu0 %v2702
    %3183 = vmatmul.mubr.bf16.gmra.mrb[0].mxu0 %v445
    %v3184 = vpop.f32.mrb[0].mxu0
    %v3185 = vadd.f32 %v2352, %v3184
    %v3186 = vpop.f32.mrb[0].mxu0
    %v3187 = vpop.f32.mrb[0].mxu0
    %v3188 = vadd.f32 %v2355, %v3187
    %v3189 = vpop.f32.mrb[0].mxu0
    %3190 = vmatprep.mubr.bf16.mxu0 %v2705
    %3191 = vmatmul.mubr.bf16.gmra.mrb[0].mxu0 %v2704
    %v3192 = vpop.f32.mrb[0].mxu0
    %v3193 = vadd.f32 %v2360, %v3192
    %v3194 = vpop.f32.mrb[0].mxu0
    %v3195 = vpop.f32.mrb[0].mxu0
    %v3196 = vadd.f32 %v2363, %v3195
    %v3197 = vpop.f32.mrb[0].mxu0
    %3198 = vmatprep.mubr.bf16.mxu0 %v2708
    %3199 = vmatmul.mubr.bf16.gmra.mrb[0].mxu0 %v2707
    %v3200 = vpop.f32.mrb[0].mxu0
    %v3201 = vadd.f32 %v2368, %v3200
    %v3202 = vpop.f32.mrb[0].mxu0
    %v3203 = vpop.f32.mrb[0].mxu0
    %v3204 = vadd.f32 %v2371, %v3203
    %v3205 = vpop.f32.mrb[0].mxu0
    %3206 = vmatprep.mubr.bf16.mxu0 %v2710
    %3207 = vmatmul.mubr.bf16.gmra.mrb[0].mxu0 %v449
    %v3208 = vpop.f32.mrb[0].mxu0
    %v3209 = vadd.f32 %v2376, %v3208
    %v3210 = vpop.f32.mrb[0].mxu0
    %v3211 = vpop.f32.mrb[0].mxu0
    %v3212 = vadd.f32 %v2379, %v3211
    %v3213 = vpop.f32.mrb[0].mxu0
    %3214 = vmatprep.mubr.bf16.mxu0 %v2713
    %3215 = vmatmul.mubr.bf16.gmra.mrb[0].mxu0 %v2712
    %v3216 = vpop.f32.mrb[0].mxu0
    %v3217 = vadd.f32 %v2384, %v3216
    %v3218 = vpop.f32.mrb[0].mxu0
    %v3219 = vpop.f32.mrb[0].mxu0
    %v3220 = vadd.f32 %v2387, %v3219
    %v3221 = vpop.f32.mrb[0].mxu0
    %3222 = vmatprep.mubr.bf16.mxu0 %v2716
    %3223 = vmatmul.mubr.bf16.gmra.mrb[0].mxu0 %v2715
    %v3224 = vpop.f32.mrb[0].mxu0
    %v3225 = vadd.f32 %v2392, %v3224
    %v3226 = vpop.f32.mrb[0].mxu0
    %v3227 = vpop.f32.mrb[0].mxu0
    %v3228 = vadd.f32 %v2395, %v3227
    %v3229 = vpop.f32.mrb[0].mxu0
    %3230 = vmatprep.mubr.bf16.mxu0 %v2718
    %3231 = vmatmul.mubr.bf16.gmra.mrb[0].mxu0 %v453
    %v3232 = vpop.f32.mrb[0].mxu0
    %v3233 = vadd.f32 %v2400, %v3232
    %v3234 = vpop.f32.mrb[0].mxu0
    %v3235 = vpop.f32.mrb[0].mxu0
    %v3236 = vadd.f32 %v2403, %v3235
    %v3237 = vpop.f32.mrb[0].mxu0
    %3238 = vmatprep.mubr.bf16.mxu0 %v2721
    %3239 = vmatmul.mubr.bf16.gmra.mrb[0].mxu0 %v2720
    %v3240 = vpop.f32.mrb[0].mxu0
    %v3241 = vadd.f32 %v2408, %v3240
    %v3242 = vpop.f32.mrb[0].mxu0
    %v3243 = vpop.f32.mrb[0].mxu0
    %v3244 = vadd.f32 %v2411, %v3243
    %v3245 = vpop.f32.mrb[0].mxu0
    %3246 = vmatprep.mubr.bf16.mxu0 %v2724
    %3247 = vmatmul.mubr.bf16.gmra.mrb[0].mxu0 %v2723
    %v3248 = vpop.f32.mrb[0].mxu0
    %v3249 = vadd.f32 %v2416, %v3248
    %v3250 = vpop.f32.mrb[0].mxu0
    %v3251 = vpop.f32.mrb[0].mxu0
    %v3252 = vadd.f32 %v2419, %v3251
    %v3253 = vpop.f32.mrb[0].mxu0
    %3254 = vmatprep.mubr.bf16.mxu0 %v2726
    %3255 = vmatmul.mubr.bf16.gmra.mrb[0].mxu0 %v457
    %v3256 = vpop.f32.mrb[0].mxu0
    %v3257 = vadd.f32 %v2424, %v3256
    %v3258 = vpop.f32.mrb[0].mxu0
    %v3259 = vpop.f32.mrb[0].mxu0
    %v3260 = vadd.f32 %v2427, %v3259
    %v3261 = vpop.f32.mrb[0].mxu0
    %3262 = vmatprep.mubr.bf16.mxu0 %v2729
    %3263 = vmatmul.mubr.bf16.gmra.mrb[0].mxu0 %v2728
    %v3264 = vpop.f32.mrb[0].mxu0
    %v3265 = vadd.f32 %v2432, %v3264
    %v3266 = vpop.f32.mrb[0].mxu0
    %v3267 = vpop.f32.mrb[0].mxu0
    %v3268 = vadd.f32 %v2435, %v3267
    %v3269 = vpop.f32.mrb[0].mxu0
    %3270 = vmatprep.mubr.bf16.mxu0 %v2732
    %3271 = vmatmul.mubr.bf16.gmra.mrb[0].mxu0 %v2731
    %v3272 = vpop.f32.mrb[0].mxu0
    %v3273 = vadd.f32 %v2440, %v3272
    %v3274 = vpop.f32.mrb[0].mxu0
    %v3275 = vpop.f32.mrb[0].mxu0
    %v3276 = vadd.f32 %v2443, %v3275
    %v3277 = vpop.f32.mrb[0].mxu0
    %3278 = vmatprep.mubr.bf16.mxu0 %v2734
    %3279 = vmatmul.mubr.bf16.gmra.mrb[0].mxu0 %v461
    %v3280 = vpop.f32.mrb[0].mxu0
    %v3281 = vadd.f32 %v2448, %v3280
    %v3282 = vpop.f32.mrb[0].mxu0
    %v3283 = vpop.f32.mrb[0].mxu0
    %v3284 = vadd.f32 %v2451, %v3283
    %v3285 = vpop.f32.mrb[0].mxu0
    %3286 = vmatprep.mubr.bf16.mxu0 %v2737
    %3287 = vmatmul.mubr.bf16.gmra.mrb[0].mxu0 %v2736
    %v3288 = vpop.f32.mrb[0].mxu0
    %v3289 = vadd.f32 %v2456, %v3288
    %v3290 = vpop.f32.mrb[0].mxu0
    %v3291 = vpop.f32.mrb[0].mxu0
    %v3292 = vadd.f32 %v2459, %v3291
    %v3293 = vpop.f32.mrb[0].mxu0
    %3294 = vmatprep.mubr.bf16.mxu0 %v2740
    %3295 = vmatmul.mubr.bf16.gmra.mrb[0].mxu0 %v2739
    %v3296 = vpop.f32.mrb[0].mxu0
    %v3297 = vadd.f32 %v2464, %v3296
    %v3298 = vpop.f32.mrb[0].mxu0
    %v3299 = vpop.f32.mrb[0].mxu0
    %v3300 = vadd.f32 %v2467, %v3299
    %v3301 = vpop.f32.mrb[0].mxu0
    %3302 = vmatprep.mubr.bf16.mxu0 %v2742
    %3303 = vmatmul.mubr.bf16.gmra.mrb[0].mxu0 %v465
    %v3304 = vpop.f32.mrb[0].mxu0
    %v3305 = vadd.f32 %v2472, %v3304
    %v3306 = vpop.f32.mrb[0].mxu0
    %v3307 = vpop.f32.mrb[0].mxu0
    %v3308 = vadd.f32 %v2475, %v3307
    %v3309 = vpop.f32.mrb[0].mxu0
    %3310 = vmatprep.mubr.bf16.mxu0 %v2745
    %3311 = vmatmul.mubr.bf16.gmra.mrb[0].mxu0 %v2744
    %v3312 = vpop.f32.mrb[0].mxu0
    %v3313 = vadd.f32 %v2480, %v3312
    %v3314 = vpop.f32.mrb[0].mxu0
    %v3315 = vpop.f32.mrb[0].mxu0
    %v3316 = vadd.f32 %v2483, %v3315
    %v3317 = vpop.f32.mrb[0].mxu0
    %3318 = vmatprep.mubr.bf16.mxu0 %v2748
    %3319 = vmatmul.mubr.bf16.gmra.mrb[0].mxu0 %v2747
    %v3320 = vpop.f32.mrb[0].mxu0
    %v3321 = vadd.f32 %v2488, %v3320
    %v3322 = vpop.f32.mrb[0].mxu0
    %v3323 = vpop.f32.mrb[0].mxu0
    %v3324 = vadd.f32 %v2491, %v3323
    %v3325 = vpop.f32.mrb[0].mxu0
    %3326 = vmatprep.mubr.bf16.mxu0 %v2750
    %3327 = vmatmul.mubr.bf16.gmra.mrb[0].mxu0 %v469
    %v3328 = vpop.f32.mrb[0].mxu0
    %v3329 = vadd.f32 %v2496, %v3328
    %v3330 = vpop.f32.mrb[0].mxu0
    %v3331 = vpop.f32.mrb[0].mxu0
    %v3332 = vadd.f32 %v2499, %v3331
    %v3333 = vpop.f32.mrb[0].mxu0
    %3334 = vmatprep.mubr.bf16.mxu0 %v2753
    %3335 = vmatmul.mubr.bf16.gmra.mrb[0].mxu0 %v2752
    %v3336 = vpop.f32.mrb[0].mxu0
    %v3337 = vadd.f32 %v2504, %v3336
    %v3338 = vpop.f32.mrb[0].mxu0
    %v3339 = vpop.f32.mrb[0].mxu0
    %v3340 = vadd.f32 %v2507, %v3339
    %v3341 = vpop.f32.mrb[0].mxu0
    %3342 = vmatprep.mubr.bf16.mxu0 %v2756
    %3343 = vmatmul.mubr.bf16.gmra.mrb[0].mxu0 %v2755
    %v3344 = vpop.f32.mrb[0].mxu0
    %v3345 = vadd.f32 %v2512, %v3344
    %v3346 = vpop.f32.mrb[0].mxu0
    %v3347 = vpop.f32.mrb[0].mxu0
    %v3348 = vadd.f32 %v2515, %v3347
    %v3349 = vpop.f32.mrb[0].mxu0
    %3350 = vmatprep.mubr.bf16.mxu0 %v2758
    %3351 = vmatmul.mubr.bf16.gmra.mrb[0].mxu0 %v473
    %v3352 = vpop.f32.mrb[0].mxu0
    %v3353 = vadd.f32 %v2520, %v3352
    %v3354 = vpop.f32.mrb[0].mxu0
    %v3355 = vpop.f32.mrb[0].mxu0
    %v3356 = vadd.f32 %v2523, %v3355
    %v3357 = vpop.f32.mrb[0].mxu0
    %3358 = vmatprep.mubr.bf16.mxu0 %v2761
    %3359 = vmatmul.mubr.bf16.gmra.mrb[0].mxu0 %v2760
    %v3360 = vpop.f32.mrb[0].mxu0
    %v3361 = vadd.f32 %v2528, %v3360
    %v3362 = vpop.f32.mrb[0].mxu0
    %v3363 = vpop.f32.mrb[0].mxu0
    %v3364 = vadd.f32 %v2531, %v3363
    %v3365 = vpop.f32.mrb[0].mxu0
    %3366 = vmatprep.mubr.bf16.mxu0 %v2764
    %3367 = vmatmul.mubr.bf16.gmra.mrb[0].mxu0 %v2763
    %v3368 = vpop.f32.mrb[0].mxu0
    %v3369 = vadd.f32 %v2536, %v3368
    %v3370 = vpop.f32.mrb[0].mxu0
    %v3371 = vpop.f32.mrb[0].mxu0
    %v3372 = vadd.f32 %v2539, %v3371
    %v3373 = vpop.f32.mrb[0].mxu0
    %3374 = vmatprep.mubr.bf16.mxu0 %v2766
    %3375 = vmatmul.mubr.bf16.gmra.mrb[0].mxu0 %v477
    %v3376 = vpop.f32.mrb[0].mxu0
    %v3377 = vadd.f32 %v2544, %v3376
    %v3378 = vpop.f32.mrb[0].mxu0
    %v3379 = vpop.f32.mrb[0].mxu0
    %v3380 = vadd.f32 %v2547, %v3379
    %v3381 = vpop.f32.mrb[0].mxu0
    %3382 = vmatprep.mubr.bf16.mxu0 %v2769
    %3383 = vmatmul.mubr.bf16.gmra.mrb[0].mxu0 %v2768
    %v3384 = vpop.f32.mrb[0].mxu0
    %v3385 = vadd.f32 %v2552, %v3384
    %v3386 = vpop.f32.mrb[0].mxu0
    %v3387 = vpop.f32.mrb[0].mxu0
    %v3388 = vadd.f32 %v2555, %v3387
    %v3389 = vpop.f32.mrb[0].mxu0
    %3390 = vmatprep.mubr.bf16.mxu0 %v2772
    %3391 = vmatmul.mubr.bf16.gmra.mrb[0].mxu0 %v2771
    %v3392 = vpop.f32.mrb[0].mxu0
    %v3393 = vadd.f32 %v2560, %v3392
    %v3394 = vpop.f32.mrb[0].mxu0
    %v3395 = vpop.f32.mrb[0].mxu0
    %v3396 = vadd.f32 %v2563, %v3395
    %v3397 = vpop.f32.mrb[0].mxu0
    %3398 = vmatprep.mubr.bf16.mxu0 %v2774
    %3399 = vmatmul.mubr.bf16.gmra.mrb[0].mxu0 %v481
    %v3400 = vpop.f32.mrb[0].mxu0
    %v3401 = vadd.f32 %v2568, %v3400
    %v3402 = vpop.f32.mrb[0].mxu0
    %v3403 = vpop.f32.mrb[0].mxu0
    %v3404 = vadd.f32 %v2571, %v3403
    %v3405 = vpop.f32.mrb[0].mxu0
    %3406 = vmatprep.mubr.bf16.mxu0 %v2777
    %3407 = vmatmul.mubr.bf16.gmra.mrb[0].mxu0 %v2776
    %v3408 = vpop.f32.mrb[0].mxu0
    %v3409 = vadd.f32 %v2576, %v3408
    %v3410 = vpop.f32.mrb[0].mxu0
    %v3411 = vpop.f32.mrb[0].mxu0
    %v3412 = vadd.f32 %v2579, %v3411
    %v3413 = vpop.f32.mrb[0].mxu0
    %3414 = vmatprep.mubr.bf16.mxu0 %v2780
    %3415 = vmatmul.mubr.bf16.gmra.mrb[0].mxu0 %v2779
    %v3416 = vpop.f32.mrb[0].mxu0
    %v3417 = vadd.f32 %v2584, %v3416
    %v3418 = vpop.f32.mrb[0].mxu0
    %v3419 = vpop.f32.mrb[0].mxu0
    %v3420 = vadd.f32 %v2587, %v3419
    %v3421 = vpop.f32.mrb[0].mxu0
    %3422 = vmatprep.mubr.bf16.mxu0 %v2782
    %3423 = vmatmul.mubr.bf16.gmra.mrb[0].mxu0 %v485
    %v3424 = vpop.f32.mrb[0].mxu0
    %v3425 = vadd.f32 %v2592, %v3424
    %v3426 = vpop.f32.mrb[0].mxu0
    %v3427 = vpop.f32.mrb[0].mxu0
    %v3428 = vadd.f32 %v2595, %v3427
    %v3429 = vpop.f32.mrb[0].mxu0
    %3430 = vmatprep.mubr.bf16.mxu0 %v2785
    %3431 = vmatmul.mubr.bf16.gmra.mrb[0].mxu0 %v2784
    %v3432 = vpop.f32.mrb[0].mxu0
    %v3433 = vadd.f32 %v2600, %v3432
    %v3434 = vpop.f32.mrb[0].mxu0
    %v3435 = vpop.f32.mrb[0].mxu0
    %v3436 = vadd.f32 %v2603, %v3435
    %v3437 = vpop.f32.mrb[0].mxu0
    %3438 = vmatprep.mubr.bf16.mxu0 %v2788
    %3439 = vmatmul.mubr.bf16.gmra.mrb[0].mxu0 %v2787
    %v3440 = vpop.f32.mrb[0].mxu0
    %v3441 = vadd.f32 %v2608, %v3440
    %v3442 = vpop.f32.mrb[0].mxu0
    %v3443 = vpop.f32.mrb[0].mxu0
    %v3444 = vadd.f32 %v2611, %v3443
    %v3445 = vpop.f32.mrb[0].mxu0
    %3446 = vmatprep.mubr.bf16.mxu0 %v2790
    %3447 = vmatmul.mubr.bf16.gmra.mrb[0].mxu0 %v489
    %v3448 = vpop.f32.mrb[0].mxu0
    %v3449 = vadd.f32 %v2616, %v3448
    %v3450 = vpop.f32.mrb[0].mxu0
    %v3451 = vpop.f32.mrb[0].mxu0
    %v3452 = vadd.f32 %v2619, %v3451
    %v3453 = vpop.f32.mrb[0].mxu0
    %3454 = vmatprep.mubr.bf16.mxu0 %v2793
    %3455 = vmatmul.mubr.bf16.gmra.mrb[0].mxu0 %v2792
    %v3456 = vpop.f32.mrb[0].mxu0
    %v3457 = vadd.f32 %v2624, %v3456
    %v3458 = vpop.f32.mrb[0].mxu0
    %v3459 = vpop.f32.mrb[0].mxu0
    %v3460 = vadd.f32 %v2627, %v3459
    %v3461 = vpop.f32.mrb[0].mxu0
    %3462 = vmatprep.mubr.bf16.mxu0 %v2796
    %3463 = vmatmul.mubr.bf16.gmra.mrb[0].mxu0 %v2795
    %v3464 = vpop.f32.mrb[0].mxu0
    %v3465 = vadd.f32 %v2632, %v3464
    %v3466 = vpop.f32.mrb[0].mxu0
    %v3467 = vpop.f32.mrb[0].mxu0
    %v3468 = vadd.f32 %v2635, %v3467
    %v3469 = vpop.f32.mrb[0].mxu0
    %3470 = vmatprep.mubr.bf16.mxu0 %v2798
    %3471 = vmatmul.mubr.bf16.gmra.mrb[0].mxu0 %v493
    %v3472 = vpop.f32.mrb[0].mxu0
    %v3473 = vadd.f32 %v2640, %v3472
    %v3474 = vpop.f32.mrb[0].mxu0
    %v3475 = vpop.f32.mrb[0].mxu0
    %v3476 = vadd.f32 %v2643, %v3475
    %v3477 = vpop.f32.mrb[0].mxu0
    %3478 = vmatprep.mubr.bf16.mxu0 %v2801
    %3479 = vmatmul.mubr.bf16.gmra.mrb[0].mxu0 %v2800
    %v3480 = vpop.f32.mrb[0].mxu0
    %v3481 = vadd.f32 %v2648, %v3480
    %v3482 = vpop.f32.mrb[0].mxu0
    %v3483 = vpop.f32.mrb[0].mxu0
    %v3484 = vadd.f32 %v2651, %v3483
    %v3485 = vpop.f32.mrb[0].mxu0
    %3486 = vmatprep.mubr.bf16.mxu0 %v2804
    %3487 = vmatmul.mubr.bf16.gmra.mrb[0].mxu0 %v2803
    %v3488 = vpop.f32.mrb[0].mxu0
    %v3489 = vadd.f32 %v2656, %v3488
    %v3490 = vpop.f32.mrb[0].mxu0
    %v3491 = vpop.f32.mrb[0].mxu0
    %v3492 = vadd.f32 %v2659, %v3491
    %v3493 = vpop.f32.mrb[0].mxu0
    %3494 = vmatprep.mubr.bf16.mxu0 %v2806
    %3495 = vmatmul.mubr.bf16.gmra.mrb[0].mxu0 %v497
    %v3496 = vpop.f32.mrb[0].mxu0
    %v3497 = vadd.f32 %v2664, %v3496
    %v3498 = vpop.f32.mrb[0].mxu0
    %v3499 = vpop.f32.mrb[0].mxu0
    %v3500 = vadd.f32 %v2667, %v3499
    %v3501 = vpop.f32.mrb[0].mxu0
    %3502 = vmatprep.mubr.bf16.mxu0 %v2809
    %3503 = vmatmul.mubr.bf16.gmra.mrb[0].mxu0 %v2808
    %v3504 = vpop.f32.mrb[0].mxu0
    %v3505 = vadd.f32 %v2672, %v3504
    %v3506 = vpop.f32.mrb[0].mxu0
    %v3507 = vpop.f32.mrb[0].mxu0
    %v3508 = vadd.f32 %v2675, %v3507
    %v3509 = vpop.f32.mrb[0].mxu0
    %3510 = vmatprep.mubr.bf16.mxu0 %v2812
    %3511 = vmatmul.mubr.bf16.gmra.mrb[0].mxu0 %v2811
    %v3512 = vpop.f32.mrb[0].mxu0
    %v3513 = vadd.f32 %v2680, %v3512
    %v3514 = vpop.f32.mrb[0].mxu0
    %v3515 = vpop.f32.mrb[0].mxu0
    %v3516 = vadd.f32 %v2683, %v3515
    %v3517 = vpop.f32.mrb[0].mxu0
    %3518 = vdwg.mxu0
    %3519 = vmatprep.subr.bf16.mxu0 0
    %3520 = vmatpush1.bf16.msra.mxu0 %v3070
    %3521 = vmatprep.subr.bf16.mxu0 0
    %3522 = vmatpush1.bf16.msra.mxu0 %v3071
    %3523 = vmatprep.subr.bf16.mxu0 0
    %3524 = vmatpush1.bf16.msra.mxu0 %v3072
    %3525 = vmatprep.subr.bf16.mxu0 0
    %3526 = vmatpush1.bf16.msra.mxu0 %v3073
    %3527 = vmatprep.subr.bf16.mxu0 0
    %3528 = vmatpush1.bf16.msra.mxu0 %v3074
    %3529 = vmatprep.subr.bf16.mxu0 0
    %3530 = vmatpush1.bf16.msra.mxu0 %v3075
    %3531 = vmatprep.subr.bf16.mxu0 0
    %3532 = vmatpush1.bf16.msra.mxu0 %v3076
    %3533 = vmatprep.subr.bf16.mxu0 0
    %3534 = vmatpush1.bf16.msra.mxu0 %v3077
    %3535 = vmatprep.subr.bf16.mxu0 0
    %3536 = vmatpush1.bf16.msra.mxu0 0
    %3537 = vmatprep.subr.bf16.mxu0 0
    %3538 = vmatpush1.bf16.msra.mxu0 0
    %3539 = vmatprep.subr.bf16.mxu0 0
    %3540 = vmatpush1.bf16.msra.mxu0 0
    %3541 = vmatprep.subr.bf16.mxu0 0
    %3542 = vmatpush1.bf16.msra.mxu0 0
    %3543 = vmatprep.subr.bf16.mxu0 0
    %3544 = vmatpush1.bf16.msra.mxu0 0
    %3545 = vmatprep.subr.bf16.mxu0 0
    %3546 = vmatpush1.bf16.msra.mxu0 0
    %3547 = vmatprep.subr.bf16.mxu0 0
    %3548 = vmatpush1.bf16.msra.mxu0 0
    %3549 = vmatprep.subr.bf16.mxu0 0
    %3550 = vmatpush1.bf16.msra.mxu0 0
    %3551 = vmatprep.mubr.bf16.mxu0 0
    %3552 = vmatmul.mubr.bf16.gmra.mrb[0].mxu0 %v2687
    %v3553 = vpop.f32.mrb[0].mxu0
    %v3554 = vadd.f32 %v3137, %v3553
    %v3555 = vpop.f32.mrb[0].mxu0
    %v3556 = vpop.f32.mrb[0].mxu0
    %v3557 = vadd.f32 %v3140, %v3556
    %v3558 = vpop.f32.mrb[0].mxu0
    %3559 = vmatprep.mubr.bf16.mxu0 0
    %3560 = vmatmul.mubr.bf16.gmra.mrb[0].mxu0 %v2690
    %v3561 = vpop.f32.mrb[0].mxu0
    %v3562 = vadd.f32 %v3145, %v3561
    %v3563 = vpop.f32.mrb[0].mxu0
    %v3564 = vpop.f32.mrb[0].mxu0
    %v3565 = vadd.f32 %v3148, %v3564
    %v3566 = vpop.f32.mrb[0].mxu0
    %3567 = vmatprep.mubr.bf16.mxu0 0
    %3568 = vmatmul.mubr.bf16.gmra.mrb[0].mxu0 %v2693
    %v3569 = vpop.f32.mrb[0].mxu0
    %v3570 = vadd.f32 %v3153, %v3569
    %v3571 = vpop.f32.mrb[0].mxu0
    %v3572 = vpop.f32.mrb[0].mxu0
    %v3573 = vadd.f32 %v3156, %v3572
    %v3574 = vpop.f32.mrb[0].mxu0
    %3575 = vmatprep.mubr.bf16.mxu0 0
    %3576 = vmatmul.mubr.bf16.gmra.mrb[0].mxu0 %v2695
    %v3577 = vpop.f32.mrb[0].mxu0
    %v3578 = vadd.f32 %v3161, %v3577
    %v3579 = vpop.f32.mrb[0].mxu0
    %v3580 = vpop.f32.mrb[0].mxu0
    %v3581 = vadd.f32 %v3164, %v3580
    %v3582 = vpop.f32.mrb[0].mxu0
    %3583 = vmatprep.mubr.bf16.mxu0 0
    %3584 = vmatmul.mubr.bf16.gmra.mrb[0].mxu0 %v2698
    %v3585 = vpop.f32.mrb[0].mxu0
    %v3586 = vadd.f32 %v3169, %v3585
    %v3587 = vpop.f32.mrb[0].mxu0
    %v3588 = vpop.f32.mrb[0].mxu0
    %v3589 = vadd.f32 %v3172, %v3588
    %v3590 = vpop.f32.mrb[0].mxu0
    %3591 = vmatprep.mubr.bf16.mxu0 0
    %3592 = vmatmul.mubr.bf16.gmra.mrb[0].mxu0 %v2701
    %v3593 = vpop.f32.mrb[0].mxu0
    %v3594 = vadd.f32 %v3177, %v3593
    %v3595 = vpop.f32.mrb[0].mxu0
    %v3596 = vpop.f32.mrb[0].mxu0
    %v3597 = vadd.f32 %v3180, %v3596
    %v3598 = vpop.f32.mrb[0].mxu0
    %3599 = vmatprep.mubr.bf16.mxu0 0
    %3600 = vmatmul.mubr.bf16.gmra.mrb[0].mxu0 %v2703
    %v3601 = vpop.f32.mrb[0].mxu0
    %v3602 = vadd.f32 %v3185, %v3601
    %v3603 = vpop.f32.mrb[0].mxu0
    %v3604 = vpop.f32.mrb[0].mxu0
    %v3605 = vadd.f32 %v3188, %v3604
    %v3606 = vpop.f32.mrb[0].mxu0
    %3607 = vmatprep.mubr.bf16.mxu0 0
    %3608 = vmatmul.mubr.bf16.gmra.mrb[0].mxu0 %v2706
    %v3609 = vpop.f32.mrb[0].mxu0
    %v3610 = vadd.f32 %v3193, %v3609
    %v3611 = vpop.f32.mrb[0].mxu0
    %v3612 = vpop.f32.mrb[0].mxu0
    %v3613 = vadd.f32 %v3196, %v3612
    %v3614 = vpop.f32.mrb[0].mxu0
    %3615 = vmatprep.mubr.bf16.mxu0 0
    %3616 = vmatmul.mubr.bf16.gmra.mrb[0].mxu0 %v2709
    %v3617 = vpop.f32.mrb[0].mxu0
    %v3618 = vadd.f32 %v3201, %v3617
    %v3619 = vpop.f32.mrb[0].mxu0
    %v3620 = vpop.f32.mrb[0].mxu0
    %v3621 = vadd.f32 %v3204, %v3620
    %v3622 = vpop.f32.mrb[0].mxu0
    %3623 = vmatprep.mubr.bf16.mxu0 0
    %3624 = vmatmul.mubr.bf16.gmra.mrb[0].mxu0 %v2711
    %v3625 = vpop.f32.mrb[0].mxu0
    %v3626 = vadd.f32 %v3209, %v3625
    %v3627 = vpop.f32.mrb[0].mxu0
    %v3628 = vpop.f32.mrb[0].mxu0
    %v3629 = vadd.f32 %v3212, %v3628
    %v3630 = vpop.f32.mrb[0].mxu0
    %3631 = vmatprep.mubr.bf16.mxu0 0
    %3632 = vmatmul.mubr.bf16.gmra.mrb[0].mxu0 %v2714
    %v3633 = vpop.f32.mrb[0].mxu0
    %v3634 = vadd.f32 %v3217, %v3633
    %v3635 = vpop.f32.mrb[0].mxu0
    %v3636 = vpop.f32.mrb[0].mxu0
    %v3637 = vadd.f32 %v3220, %v3636
    %v3638 = vpop.f32.mrb[0].mxu0
    %3639 = vmatprep.mubr.bf16.mxu0 0
    %3640 = vmatmul.mubr.bf16.gmra.mrb[0].mxu0 %v2717
    %v3641 = vpop.f32.mrb[0].mxu0
    %v3642 = vadd.f32 %v3225, %v3641
    %v3643 = vpop.f32.mrb[0].mxu0
    %v3644 = vpop.f32.mrb[0].mxu0
    %v3645 = vadd.f32 %v3228, %v3644
    %v3646 = vpop.f32.mrb[0].mxu0
    %3647 = vmatprep.mubr.bf16.mxu0 0
    %3648 = vmatmul.mubr.bf16.gmra.mrb[0].mxu0 %v2719
    %v3649 = vpop.f32.mrb[0].mxu0
    %v3650 = vadd.f32 %v3233, %v3649
    %v3651 = vpop.f32.mrb[0].mxu0
    %v3652 = vpop.f32.mrb[0].mxu0
    %v3653 = vadd.f32 %v3236, %v3652
    %v3654 = vpop.f32.mrb[0].mxu0
    %3655 = vmatprep.mubr.bf16.mxu0 0
    %3656 = vmatmul.mubr.bf16.gmra.mrb[0].mxu0 %v2722
    %v3657 = vpop.f32.mrb[0].mxu0
    %v3658 = vadd.f32 %v3241, %v3657
    %v3659 = vpop.f32.mrb[0].mxu0
    %v3660 = vpop.f32.mrb[0].mxu0
    %v3661 = vadd.f32 %v3244, %v3660
    %v3662 = vpop.f32.mrb[0].mxu0
    %3663 = vmatprep.mubr.bf16.mxu0 0
    %3664 = vmatmul.mubr.bf16.gmra.mrb[0].mxu0 %v2725
    %v3665 = vpop.f32.mrb[0].mxu0
    %v3666 = vadd.f32 %v3249, %v3665
    %v3667 = vpop.f32.mrb[0].mxu0
    %v3668 = vpop.f32.mrb[0].mxu0
    %v3669 = vadd.f32 %v3252, %v3668
    %v3670 = vpop.f32.mrb[0].mxu0
    %3671 = vmatprep.mubr.bf16.mxu0 0
    %3672 = vmatmul.mubr.bf16.gmra.mrb[0].mxu0 %v2727
    %v3673 = vpop.f32.mrb[0].mxu0
    %v3674 = vadd.f32 %v3257, %v3673
    %v3675 = vpop.f32.mrb[0].mxu0
    %v3676 = vpop.f32.mrb[0].mxu0
    %v3677 = vadd.f32 %v3260, %v3676
    %v3678 = vpop.f32.mrb[0].mxu0
    %3679 = vmatprep.mubr.bf16.mxu0 0
    %3680 = vmatmul.mubr.bf16.gmra.mrb[0].mxu0 %v2730
    %v3681 = vpop.f32.mrb[0].mxu0
    %v3682 = vadd.f32 %v3265, %v3681
    %v3683 = vpop.f32.mrb[0].mxu0
    %v3684 = vpop.f32.mrb[0].mxu0
    %v3685 = vadd.f32 %v3268, %v3684
    %v3686 = vpop.f32.mrb[0].mxu0
    %3687 = vmatprep.mubr.bf16.mxu0 0
    %3688 = vmatmul.mubr.bf16.gmra.mrb[0].mxu0 %v2733
    %v3689 = vpop.f32.mrb[0].mxu0
    %v3690 = vadd.f32 %v3273, %v3689
    %v3691 = vpop.f32.mrb[0].mxu0
    %v3692 = vpop.f32.mrb[0].mxu0
    %v3693 = vadd.f32 %v3276, %v3692
    %v3694 = vpop.f32.mrb[0].mxu0
    %3695 = vmatprep.mubr.bf16.mxu0 0
    %3696 = vmatmul.mubr.bf16.gmra.mrb[0].mxu0 %v2735
    %v3697 = vpop.f32.mrb[0].mxu0
    %v3698 = vadd.f32 %v3281, %v3697
    %v3699 = vpop.f32.mrb[0].mxu0
    %v3700 = vpop.f32.mrb[0].mxu0
    %v3701 = vadd.f32 %v3284, %v3700
    %v3702 = vpop.f32.mrb[0].mxu0
    %3703 = vmatprep.mubr.bf16.mxu0 0
    %3704 = vmatmul.mubr.bf16.gmra.mrb[0].mxu0 %v2738
    %v3705 = vpop.f32.mrb[0].mxu0
    %v3706 = vadd.f32 %v3289, %v3705
    %v3707 = vpop.f32.mrb[0].mxu0
    %v3708 = vpop.f32.mrb[0].mxu0
    %v3709 = vadd.f32 %v3292, %v3708
    %v3710 = vpop.f32.mrb[0].mxu0
    %3711 = vmatprep.mubr.bf16.mxu0 0
    %3712 = vmatmul.mubr.bf16.gmra.mrb[0].mxu0 %v2741
    %v3713 = vpop.f32.mrb[0].mxu0
    %v3714 = vadd.f32 %v3297, %v3713
    %v3715 = vpop.f32.mrb[0].mxu0
    %v3716 = vpop.f32.mrb[0].mxu0
    %v3717 = vadd.f32 %v3300, %v3716
    %v3718 = vpop.f32.mrb[0].mxu0
    %3719 = vmatprep.mubr.bf16.mxu0 0
    %3720 = vmatmul.mubr.bf16.gmra.mrb[0].mxu0 %v2743
    %v3721 = vpop.f32.mrb[0].mxu0
    %v3722 = vadd.f32 %v3305, %v3721
    %v3723 = vpop.f32.mrb[0].mxu0
    %v3724 = vpop.f32.mrb[0].mxu0
    %v3725 = vadd.f32 %v3308, %v3724
    %v3726 = vpop.f32.mrb[0].mxu0
    %3727 = vmatprep.mubr.bf16.mxu0 0
    %3728 = vmatmul.mubr.bf16.gmra.mrb[0].mxu0 %v2746
    %v3729 = vpop.f32.mrb[0].mxu0
    %v3730 = vadd.f32 %v3313, %v3729
    %v3731 = vpop.f32.mrb[0].mxu0
    %v3732 = vpop.f32.mrb[0].mxu0
    %v3733 = vadd.f32 %v3316, %v3732
    %v3734 = vpop.f32.mrb[0].mxu0
    %3735 = vmatprep.mubr.bf16.mxu0 0
    %3736 = vmatmul.mubr.bf16.gmra.mrb[0].mxu0 %v2749
    %v3737 = vpop.f32.mrb[0].mxu0
    %v3738 = vadd.f32 %v3321, %v3737
    %v3739 = vpop.f32.mrb[0].mxu0
    %v3740 = vpop.f32.mrb[0].mxu0
    %v3741 = vadd.f32 %v3324, %v3740
    %v3742 = vpop.f32.mrb[0].mxu0
    %3743 = vmatprep.mubr.bf16.mxu0 0
    %3744 = vmatmul.mubr.bf16.gmra.mrb[0].mxu0 %v2751
    %v3745 = vpop.f32.mrb[0].mxu0
    %v3746 = vadd.f32 %v3329, %v3745
    %v3747 = vpop.f32.mrb[0].mxu0
    %v3748 = vpop.f32.mrb[0].mxu0
    %v3749 = vadd.f32 %v3332, %v3748
    %v3750 = vpop.f32.mrb[0].mxu0
    %3751 = vmatprep.mubr.bf16.mxu0 0
    %3752 = vmatmul.mubr.bf16.gmra.mrb[0].mxu0 %v2754
    %v3753 = vpop.f32.mrb[0].mxu0
    %v3754 = vadd.f32 %v3337, %v3753
    %v3755 = vpop.f32.mrb[0].mxu0
    %v3756 = vpop.f32.mrb[0].mxu0
    %v3757 = vadd.f32 %v3340, %v3756
    %v3758 = vpop.f32.mrb[0].mxu0
    %3759 = vmatprep.mubr.bf16.mxu0 0
    %3760 = vmatmul.mubr.bf16.gmra.mrb[0].mxu0 %v2757
    %v3761 = vpop.f32.mrb[0].mxu0
    %v3762 = vadd.f32 %v3345, %v3761
    %v3763 = vpop.f32.mrb[0].mxu0
    %v3764 = vpop.f32.mrb[0].mxu0
    %v3765 = vadd.f32 %v3348, %v3764
    %v3766 = vpop.f32.mrb[0].mxu0
    %3767 = vmatprep.mubr.bf16.mxu0 0
    %3768 = vmatmul.mubr.bf16.gmra.mrb[0].mxu0 %v2759
    %v3769 = vpop.f32.mrb[0].mxu0
    %v3770 = vadd.f32 %v3353, %v3769
    %v3771 = vpop.f32.mrb[0].mxu0
    %v3772 = vpop.f32.mrb[0].mxu0
    %v3773 = vadd.f32 %v3356, %v3772
    %v3774 = vpop.f32.mrb[0].mxu0
    %3775 = vmatprep.mubr.bf16.mxu0 0
    %3776 = vmatmul.mubr.bf16.gmra.mrb[0].mxu0 %v2762
    %v3777 = vpop.f32.mrb[0].mxu0
    %v3778 = vadd.f32 %v3361, %v3777
    %v3779 = vpop.f32.mrb[0].mxu0
    %v3780 = vpop.f32.mrb[0].mxu0
    %v3781 = vadd.f32 %v3364, %v3780
    %v3782 = vpop.f32.mrb[0].mxu0
    %3783 = vmatprep.mubr.bf16.mxu0 0
    %3784 = vmatmul.mubr.bf16.gmra.mrb[0].mxu0 %v2765
    %v3785 = vpop.f32.mrb[0].mxu0
    %v3786 = vadd.f32 %v3369, %v3785
    %v3787 = vpop.f32.mrb[0].mxu0
    %v3788 = vpop.f32.mrb[0].mxu0
    %v3789 = vadd.f32 %v3372, %v3788
    %v3790 = vpop.f32.mrb[0].mxu0
    %3791 = vmatprep.mubr.bf16.mxu0 0
    %3792 = vmatmul.mubr.bf16.gmra.mrb[0].mxu0 %v2767
    %v3793 = vpop.f32.mrb[0].mxu0
    %v3794 = vadd.f32 %v3377, %v3793
    %v3795 = vpop.f32.mrb[0].mxu0
    %v3796 = vpop.f32.mrb[0].mxu0
    %v3797 = vadd.f32 %v3380, %v3796
    %v3798 = vpop.f32.mrb[0].mxu0
    %3799 = vmatprep.mubr.bf16.mxu0 0
    %3800 = vmatmul.mubr.bf16.gmra.mrb[0].mxu0 %v2770
    %v3801 = vpop.f32.mrb[0].mxu0
    %v3802 = vadd.f32 %v3385, %v3801
    %v3803 = vpop.f32.mrb[0].mxu0
    %v3804 = vpop.f32.mrb[0].mxu0
    %v3805 = vadd.f32 %v3388, %v3804
    %v3806 = vpop.f32.mrb[0].mxu0
    %3807 = vmatprep.mubr.bf16.mxu0 0
    %3808 = vmatmul.mubr.bf16.gmra.mrb[0].mxu0 %v2773
    %v3809 = vpop.f32.mrb[0].mxu0
    %v3810 = vadd.f32 %v3393, %v3809
    %v3811 = vpop.f32.mrb[0].mxu0
    %v3812 = vpop.f32.mrb[0].mxu0
    %v3813 = vadd.f32 %v3396, %v3812
    %v3814 = vpop.f32.mrb[0].mxu0
    %3815 = vmatprep.mubr.bf16.mxu0 0
    %3816 = vmatmul.mubr.bf16.gmra.mrb[0].mxu0 %v2775
    %v3817 = vpop.f32.mrb[0].mxu0
    %v3818 = vadd.f32 %v3401, %v3817
    %v3819 = vpop.f32.mrb[0].mxu0
    %v3820 = vpop.f32.mrb[0].mxu0
    %v3821 = vadd.f32 %v3404, %v3820
    %v3822 = vpop.f32.mrb[0].mxu0
    %3823 = vmatprep.mubr.bf16.mxu0 0
    %3824 = vmatmul.mubr.bf16.gmra.mrb[0].mxu0 %v2778
    %v3825 = vpop.f32.mrb[0].mxu0
    %v3826 = vadd.f32 %v3409, %v3825
    %v3827 = vpop.f32.mrb[0].mxu0
    %v3828 = vpop.f32.mrb[0].mxu0
    %v3829 = vadd.f32 %v3412, %v3828
    %v3830 = vpop.f32.mrb[0].mxu0
    %3831 = vmatprep.mubr.bf16.mxu0 0
    %3832 = vmatmul.mubr.bf16.gmra.mrb[0].mxu0 %v2781
    %v3833 = vpop.f32.mrb[0].mxu0
    %v3834 = vadd.f32 %v3417, %v3833
    %v3835 = vpop.f32.mrb[0].mxu0
    %v3836 = vpop.f32.mrb[0].mxu0
    %v3837 = vadd.f32 %v3420, %v3836
    %v3838 = vpop.f32.mrb[0].mxu0
    %3839 = vmatprep.mubr.bf16.mxu0 0
    %3840 = vmatmul.mubr.bf16.gmra.mrb[0].mxu0 %v2783
    %v3841 = vpop.f32.mrb[0].mxu0
    %v3842 = vadd.f32 %v3425, %v3841
    %v3843 = vpop.f32.mrb[0].mxu0
    %v3844 = vpop.f32.mrb[0].mxu0
    %v3845 = vadd.f32 %v3428, %v3844
    %v3846 = vpop.f32.mrb[0].mxu0
    %3847 = vmatprep.mubr.bf16.mxu0 0
    %3848 = vmatmul.mubr.bf16.gmra.mrb[0].mxu0 %v2786
    %v3849 = vpop.f32.mrb[0].mxu0
    %v3850 = vadd.f32 %v3433, %v3849
    %v3851 = vpop.f32.mrb[0].mxu0
    %v3852 = vpop.f32.mrb[0].mxu0
    %v3853 = vadd.f32 %v3436, %v3852
    %v3854 = vpop.f32.mrb[0].mxu0
    %3855 = vmatprep.mubr.bf16.mxu0 0
    %3856 = vmatmul.mubr.bf16.gmra.mrb[0].mxu0 %v2789
    %v3857 = vpop.f32.mrb[0].mxu0
    %v3858 = vadd.f32 %v3441, %v3857
    %v3859 = vpop.f32.mrb[0].mxu0
    %v3860 = vpop.f32.mrb[0].mxu0
    %v3861 = vadd.f32 %v3444, %v3860
    %v3862 = vpop.f32.mrb[0].mxu0
    %3863 = vmatprep.mubr.bf16.mxu0 0
    %3864 = vmatmul.mubr.bf16.gmra.mrb[0].mxu0 %v2791
    %v3865 = vpop.f32.mrb[0].mxu0
    %v3866 = vadd.f32 %v3449, %v3865
    %v3867 = vpop.f32.mrb[0].mxu0
    %v3868 = vpop.f32.mrb[0].mxu0
    %v3869 = vadd.f32 %v3452, %v3868
    %v3870 = vpop.f32.mrb[0].mxu0
    %3871 = vmatprep.mubr.bf16.mxu0 0
    %3872 = vmatmul.mubr.bf16.gmra.mrb[0].mxu0 %v2794
    %v3873 = vpop.f32.mrb[0].mxu0
    %v3874 = vadd.f32 %v3457, %v3873
    %v3875 = vpop.f32.mrb[0].mxu0
    %v3876 = vpop.f32.mrb[0].mxu0
    %v3877 = vadd.f32 %v3460, %v3876
    %v3878 = vpop.f32.mrb[0].mxu0
    %3879 = vmatprep.mubr.bf16.mxu0 0
    %3880 = vmatmul.mubr.bf16.gmra.mrb[0].mxu0 %v2797
    %v3881 = vpop.f32.mrb[0].mxu0
    %v3882 = vadd.f32 %v3465, %v3881
    %v3883 = vpop.f32.mrb[0].mxu0
    %v3884 = vpop.f32.mrb[0].mxu0
    %v3885 = vadd.f32 %v3468, %v3884
    %v3886 = vpop.f32.mrb[0].mxu0
    %3887 = vmatprep.mubr.bf16.mxu0 0
    %3888 = vmatmul.mubr.bf16.gmra.mrb[0].mxu0 %v2799
    %v3889 = vpop.f32.mrb[0].mxu0
    %v3890 = vadd.f32 %v3473, %v3889
    %v3891 = vpop.f32.mrb[0].mxu0
    %v3892 = vpop.f32.mrb[0].mxu0
    %v3893 = vadd.f32 %v3476, %v3892
    %v3894 = vpop.f32.mrb[0].mxu0
    %3895 = vmatprep.mubr.bf16.mxu0 0
    %3896 = vmatmul.mubr.bf16.gmra.mrb[0].mxu0 %v2802
    %v3897 = vpop.f32.mrb[0].mxu0
    %v3898 = vadd.f32 %v3481, %v3897
    %v3899 = vpop.f32.mrb[0].mxu0
    %v3900 = vpop.f32.mrb[0].mxu0
    %v3901 = vadd.f32 %v3484, %v3900
    %v3902 = vpop.f32.mrb[0].mxu0
    %3903 = vmatprep.mubr.bf16.mxu0 0
    %3904 = vmatmul.mubr.bf16.gmra.mrb[0].mxu0 %v2805
    %v3905 = vpop.f32.mrb[0].mxu0
    %v3906 = vadd.f32 %v3489, %v3905
    %v3907 = vpop.f32.mrb[0].mxu0
    %v3908 = vpop.f32.mrb[0].mxu0
    %v3909 = vadd.f32 %v3492, %v3908
    %v3910 = vpop.f32.mrb[0].mxu0
    %3911 = vmatprep.mubr.bf16.mxu0 0
    %3912 = vmatmul.mubr.bf16.gmra.mrb[0].mxu0 %v2807
    %v3913 = vpop.f32.mrb[0].mxu0
    %v3914 = vadd.f32 %v3497, %v3913
    %v3915 = vpop.f32.mrb[0].mxu0
    %v3916 = vpop.f32.mrb[0].mxu0
    %v3917 = vadd.f32 %v3500, %v3916
    %v3918 = vpop.f32.mrb[0].mxu0
    %3919 = vmatprep.mubr.bf16.mxu0 0
    %3920 = vmatmul.mubr.bf16.gmra.mrb[0].mxu0 %v2810
    %v3921 = vpop.f32.mrb[0].mxu0
    %v3922 = vadd.f32 %v3505, %v3921
    %v3923 = vpop.f32.mrb[0].mxu0
    %v3924 = vpop.f32.mrb[0].mxu0
    %v3925 = vadd.f32 %v3508, %v3924
    %v3926 = vpop.f32.mrb[0].mxu0
    %3927 = vmatprep.mubr.bf16.mxu0 0
    %3928 = vmatmul.mubr.bf16.gmra.mrb[0].mxu0 %v2813
    %v3929 = vpop.f32.mrb[0].mxu0
    %v3930 = vadd.f32 %v3513, %v3929
    %v3931 = vpop.f32.mrb[0].mxu0
    %v3932 = vpop.f32.mrb[0].mxu0
    %v3933 = vadd.f32 %v3516, %v3932
    %v3934 = vpop.f32.mrb[0].mxu0
    %3935 = vdwg.mxu0
    %v3942 = vunpack.c.l.b16 %v105
    %v3943 = vunpack.c.l.b16 %v106
    %v3944 = vunpack.c.l.b16 %v107
    %v3945 = vunpack.c.l.b16 %v177
    %v3946 = vunpack.c.l.b16 %v178
    %v3947 = vunpack.c.l.b16 %v179
    %v3950 = vunpack.c.l.b16 %v108
    %v3951 = vunpack.c.l.b16 %v180
    %v3952 = vpack.c.b16 %v3943, %v3942
    %v3953 = vpack.c.b16 %v3950, %v3944
    %v3954 = vpack.c.b16 %v3946, %v3945
    %v3955 = vpack.c.b16 %v3951, %v3947
    %v3957 = vshrl.u32 %v3952, 16
    %v3959 = vshll.u32 %v3952, 16
    %v3961 = vrot.slane %v3959, 1
    %v3962 = vor.u32 %v3957, %v3961
    %v3964 = vshll.u32 %v3953, 16
    %v3966 = vrot.slane %v3964, 1
    %v3967 = vsel %vm501, %v3962, %v3966
    %v3968 = vshrl.u32 %v3953, 16
    %v3970 = vor.u32 %v3968, %v3966
    %v3972 = vshrl.u32 %v3954, 16
    %v3974 = vshll.u32 %v3954, 16
    %v3976 = vrot.slane %v3974, 1
    %v3977 = vor.u32 %v3972, %v3976
    %v3979 = vshll.u32 %v3955, 16
    %v3981 = vrot.slane %v3979, 1
    %v3982 = vsel %vm501, %v3977, %v3981
    %v3983 = vshrl.u32 %v3955, 16
    %v3985 = vor.u32 %v3983, %v3981
    %v3986 = vrot.slane %v3952, 1
    %v3987 = vrot.slane %v3953, 1
    %v3988 = vsel %vm982, %v3986, %v3987
    %v3989 = vrot.slane %v3954, 1
    %v3990 = vrot.slane %v3955, 1
    %v3991 = vsel %vm982, %v3989, %v3990
    %v3992 = vunpack.c.l.b16 %v3967
    %v3993 = vunpack.c.l.b16 %v3988
    %v3994 = vunpack.c.h.b16 %v3967
    %v3995 = vunpack.c.h.b16 %v3988
    %v3996 = vunpack.c.l.b16 %v3970
    %v3997 = vunpack.c.l.b16 %v3987
    %v3998 = vunpack.c.l.b16 %v3982
    %v3999 = vunpack.c.l.b16 %v3991
    %v4000 = vunpack.c.h.b16 %v3982
    %v4001 = vunpack.c.h.b16 %v3991
    %v4002 = vunpack.c.l.b16 %v3985
    %v4003 = vunpack.c.l.b16 %v3990
    %s4004 = scalar_lea.vmem %s1, 384
    %v4005 = vld [vmem:[%s4004] sm:$0xf]
    %v4006 = vld [vmem:[%s4004 + $0x4] sm:$0xf]
    %v4007 = vld [vmem:[%s4004 + $0x8] sm:$0xf]
    %v4008 = vld [vmem:[%s4004 + $0xc] sm:$0xf]
    %v4009 = vld [vmem:[%s4004 + $0x10] sm:$0xf]
    %v4010 = vld [vmem:[%s4004 + $0x14] sm:$0xf]
    %v4011 = vld [vmem:[%s4004 + $0x18] sm:$0xf]
    %v4012 = vld [vmem:[%s4004 + $0x1c] sm:$0xf]
    %v4013 = vld [vmem:[%s4004 + $0x20] sm:$0xf]
    %v4014 = vld [vmem:[%s4004 + $0x24] sm:$0xf]
    %v4015 = vld [vmem:[%s4004 + $0x28] sm:$0xf]
    %v4016 = vld [vmem:[%s4004 + $0x2c] sm:$0xf]
    %v4017 = vld [vmem:[%s4004 + $0x30] sm:$0xf]
    %v4018 = vld [vmem:[%s4004 + $0x34] sm:$0xf]
    %v4019 = vld [vmem:[%s4004 + $0x38] sm:$0xf]
    %v4020 = vld [vmem:[%s4004 + $0x3c] sm:$0xf]
    %v4021 = vld [vmem:[%s4004 + $0x40] sm:$0xf]
    %v4022 = vld [vmem:[%s4004 + $0x44] sm:$0xf]
    %v4023 = vld [vmem:[%s4004 + $0x48] sm:$0xf]
    %v4024 = vld [vmem:[%s4004 + $0x4c] sm:$0xf]
    %v4025 = vld [vmem:[%s4004 + $0x50] sm:$0xf]
    %v4026 = vld [vmem:[%s4004 + $0x54] sm:$0xf]
    %v4027 = vld [vmem:[%s4004 + $0x58] sm:$0xf]
    %v4028 = vld [vmem:[%s4004 + $0x5c] sm:$0xf]
    %v4029 = vld [vmem:[%s4004 + $0x60] sm:$0xf]
    %v4030 = vld [vmem:[%s4004 + $0x64] sm:$0xf]
    %v4031 = vld [vmem:[%s4004 + $0x68] sm:$0xf]
    %v4032 = vld [vmem:[%s4004 + $0x6c] sm:$0xf]
    %v4033 = vld [vmem:[%s4004 + $0x70] sm:$0xf]
    %v4034 = vld [vmem:[%s4004 + $0x74] sm:$0xf]
    %v4035 = vld [vmem:[%s4004 + $0x78] sm:$0xf]
    %v4036 = vld [vmem:[%s4004 + $0x7c] sm:$0xf]
    %v4037 = vld [vmem:[%s4004 + $0x80] sm:$0xf]
    %v4038 = vld [vmem:[%s4004 + $0x84] sm:$0xf]
    %v4039 = vld [vmem:[%s4004 + $0x88] sm:$0xf]
    %v4040 = vld [vmem:[%s4004 + $0x8c] sm:$0xf]
    %v4041 = vld [vmem:[%s4004 + $0x90] sm:$0xf]
    %v4042 = vld [vmem:[%s4004 + $0x94] sm:$0xf]
    %v4043 = vld [vmem:[%s4004 + $0x98] sm:$0xf]
    %v4044 = vld [vmem:[%s4004 + $0x9c] sm:$0xf]
    %v4045 = vld [vmem:[%s4004 + $0xa0] sm:$0xf]
    %v4046 = vld [vmem:[%s4004 + $0xa4] sm:$0xf]
    %v4047 = vld [vmem:[%s4004 + $0xa8] sm:$0xf]
    %v4048 = vld [vmem:[%s4004 + $0xac] sm:$0xf]
    %v4049 = vld [vmem:[%s4004 + $0xb0] sm:$0xf]
    %v4050 = vld [vmem:[%s4004 + $0xb4] sm:$0xf]
    %v4051 = vld [vmem:[%s4004 + $0xb8] sm:$0xf]
    %v4052 = vld [vmem:[%s4004 + $0xbc] sm:$0xf]
    %v4053 = vpack.c.b16 %v1377, %v1375
    %v4054 = vpack.c.b16 %v1378, %v1376
    %v4055 = vpack.c.b16 %v3942, %v1327
    %v4056 = vpack.c.b16 %v3992, %v1379
    %v4057 = vpack.c.b16 %v3993, %v1380
    %v4058 = vpack.c.b16 %v3944, %v3943
    %v4059 = vpack.c.b16 %v3996, %v3994
    %v4060 = vpack.c.b16 %v3997, %v3995
    %v4061 = vpack.c.b16 %v1383, %v1381
    %v4062 = vpack.c.b16 %v1384, %v1382
    %v4063 = vpack.c.b16 %v3945, %v1330
    %v4064 = vpack.c.b16 %v3998, %v1385
    %v4065 = vpack.c.b16 %v3999, %v1386
    %v4066 = vpack.c.b16 %v3947, %v3946
    %v4067 = vpack.c.b16 %v4002, %v4000
    %v4068 = vpack.c.b16 %v4003, %v4001
    %v4135 = vunpack.c.l.b16 %v4005
    %v4136 = vunpack.c.l.b16 %v4006
    %v4137 = vunpack.c.l.b16 %v4007
    %v4138 = vunpack.c.l.b16 %v4008
    %v4139 = vunpack.c.l.b16 %v4009
    %v4140 = vunpack.c.l.b16 %v4010
    %v4141 = vunpack.c.l.b16 %v4011
    %v4142 = vunpack.c.l.b16 %v4012
    %v4143 = vunpack.c.l.b16 %v4013
    %v4144 = vunpack.c.l.b16 %v4014
    %v4145 = vunpack.c.l.b16 %v4015
    %v4146 = vunpack.c.l.b16 %v4016
    %v4147 = vunpack.c.l.b16 %v4017
    %v4148 = vunpack.c.l.b16 %v4018
    %v4149 = vunpack.c.l.b16 %v4019
    %v4150 = vunpack.c.l.b16 %v4020
    %v4151 = vunpack.c.l.b16 %v4021
    %v4152 = vunpack.c.l.b16 %v4022
    %v4153 = vunpack.c.l.b16 %v4023
    %v4154 = vunpack.c.l.b16 %v4024
    %v4155 = vunpack.c.l.b16 %v4025
    %v4156 = vunpack.c.l.b16 %v4026
    %v4157 = vunpack.c.l.b16 %v4027
    %v4158 = vunpack.c.l.b16 %v4028
    %v4159 = vunpack.c.l.b16 %v4029
    %v4160 = vunpack.c.l.b16 %v4030
    %v4161 = vunpack.c.l.b16 %v4031
    %v4162 = vunpack.c.l.b16 %v4032
    %v4163 = vunpack.c.l.b16 %v4033
    %v4164 = vunpack.c.l.b16 %v4034
    %v4165 = vunpack.c.l.b16 %v4035
    %v4166 = vunpack.c.l.b16 %v4036
    %v4167 = vunpack.c.l.b16 %v4037
    %v4168 = vunpack.c.l.b16 %v4038
    %v4169 = vunpack.c.l.b16 %v4039
    %v4170 = vunpack.c.l.b16 %v4040
    %v4171 = vunpack.c.l.b16 %v4041
    %v4172 = vunpack.c.l.b16 %v4042
    %v4173 = vunpack.c.l.b16 %v4043
    %v4174 = vunpack.c.l.b16 %v4044
    %v4175 = vunpack.c.l.b16 %v4045
    %v4176 = vunpack.c.l.b16 %v4046
    %v4177 = vunpack.c.l.b16 %v4047
    %v4178 = vunpack.c.l.b16 %v4048
    %v4179 = vunpack.c.l.b16 %v4049
    %v4180 = vunpack.c.l.b16 %v4050
    %v4181 = vunpack.c.l.b16 %v4051
    %v4182 = vunpack.c.l.b16 %v4052
    %v4183 = vpack.c.b16 %v4136, %v4135
    %v4184 = vpack.c.b16 %v4138, %v4137
    %v4185 = vpack.c.b16 %v4140, %v4139
    %v4186 = vpack.c.b16 %v4142, %v4141
    %v4187 = vpack.c.b16 %v4144, %v4143
    %v4188 = vpack.c.b16 %v4146, %v4145
    %v4189 = vpack.c.b16 %v4148, %v4147
    %v4190 = vpack.c.b16 %v4150, %v4149
    %v4191 = vpack.c.b16 %v4152, %v4151
    %v4192 = vpack.c.b16 %v4154, %v4153
    %v4193 = vpack.c.b16 %v4156, %v4155
    %v4194 = vpack.c.b16 %v4158, %v4157
    %v4195 = vpack.c.b16 %v4160, %v4159
    %v4196 = vpack.c.b16 %v4162, %v4161
    %v4197 = vpack.c.b16 %v4164, %v4163
    %v4198 = vpack.c.b16 %v4166, %v4165
    %v4199 = vpack.c.b16 %v4168, %v4167
    %v4200 = vpack.c.b16 %v4170, %v4169
    %v4201 = vpack.c.b16 %v4172, %v4171
    %v4202 = vpack.c.b16 %v4174, %v4173
    %v4203 = vpack.c.b16 %v4176, %v4175
    %v4204 = vpack.c.b16 %v4178, %v4177
    %v4205 = vpack.c.b16 %v4180, %v4179
    %v4206 = vpack.c.b16 %v4182, %v4181
    %4231 = vmatprep.subr.bf16.mxu0 0
    %4232 = vmatpush1.bf16.msra.mxu0 %v4183
    %4233 = vmatprep.subr.bf16.mxu0 0
    %4234 = vmatpush1.bf16.msra.mxu0 %v4184
    %4235 = vmatprep.subr.bf16.mxu0 0
    %4236 = vmatpush1.bf16.msra.mxu0 %v4185
    %4237 = vmatprep.subr.bf16.mxu0 0
    %4238 = vmatpush1.bf16.msra.mxu0 %v4186
    %4239 = vmatprep.subr.bf16.mxu0 0
    %4240 = vmatpush1.bf16.msra.mxu0 %v4187
    %4241 = vmatprep.subr.bf16.mxu0 0
    %4242 = vmatpush1.bf16.msra.mxu0 %v4188
    %4243 = vmatprep.subr.bf16.mxu0 0
    %4244 = vmatpush1.bf16.msra.mxu0 %v4189
    %4245 = vmatprep.subr.bf16.mxu0 0
    %4246 = vmatpush1.bf16.msra.mxu0 %v4190
    %4247 = vmatprep.subr.bf16.mxu0 0
    %4248 = vmatpush1.bf16.msra.mxu0 %v4191
    %4249 = vmatprep.subr.bf16.mxu0 0
    %4250 = vmatpush1.bf16.msra.mxu0 %v4192
    %4251 = vmatprep.subr.bf16.mxu0 0
    %4252 = vmatpush1.bf16.msra.mxu0 %v4193
    %4253 = vmatprep.subr.bf16.mxu0 0
    %4254 = vmatpush1.bf16.msra.mxu0 %v4194
    %4255 = vmatprep.subr.bf16.mxu0 0
    %4256 = vmatpush1.bf16.msra.mxu0 %v4195
    %4257 = vmatprep.subr.bf16.mxu0 0
    %4258 = vmatpush1.bf16.msra.mxu0 %v4196
    %4259 = vmatprep.subr.bf16.mxu0 0
    %4260 = vmatpush1.bf16.msra.mxu0 %v4197
    %4261 = vmatprep.subr.bf16.mxu0 0
    %4262 = vmatpush1.bf16.msra.mxu0 %v4198
    %4263 = vmatprep.mubr.bf16.mxu0 %v2694
    %4264 = vmatmul.mubr.bf16.gmra.mrb[0].mxu0 %v441
    %v4265 = vpop.f32.mrb[0].mxu0
    %v4266 = vadd.f32 0.0, %v4265
    %v4267 = vpop.f32.mrb[0].mxu0
    %v4268 = vpop.f32.mrb[0].mxu0
    %v4269 = vadd.f32 0.0, %v4268
    %v4270 = vpop.f32.mrb[0].mxu0
    %4271 = vmatprep.mubr.bf16.mxu0 %v2697
    %4272 = vmatmul.mubr.bf16.gmra.mrb[0].mxu0 %v2696
    %v4273 = vpop.f32.mrb[0].mxu0
    %v4274 = vadd.f32 0.0, %v4273
    %v4275 = vpop.f32.mrb[0].mxu0
    %v4276 = vpop.f32.mrb[0].mxu0
    %v4277 = vadd.f32 0.0, %v4276
    %v4278 = vpop.f32.mrb[0].mxu0
    %4279 = vmatprep.mubr.bf16.mxu0 %v2700
    %4280 = vmatmul.mubr.bf16.gmra.mrb[0].mxu0 %v2699
    %v4281 = vpop.f32.mrb[0].mxu0
    %v4282 = vadd.f32 0.0, %v4281
    %v4283 = vpop.f32.mrb[0].mxu0
    %v4284 = vpop.f32.mrb[0].mxu0
    %v4285 = vadd.f32 0.0, %v4284
    %v4286 = vpop.f32.mrb[0].mxu0
    %4287 = vmatprep.mubr.bf16.mxu0 %v2702
    %4288 = vmatmul.mubr.bf16.gmra.mrb[0].mxu0 %v445
    %v4289 = vpop.f32.mrb[0].mxu0
    %v4290 = vadd.f32 0.0, %v4289
    %v4291 = vpop.f32.mrb[0].mxu0
    %v4292 = vpop.f32.mrb[0].mxu0
    %v4293 = vadd.f32 0.0, %v4292
    %v4294 = vpop.f32.mrb[0].mxu0
    %4295 = vmatprep.mubr.bf16.mxu0 %v2705
    %4296 = vmatmul.mubr.bf16.gmra.mrb[0].mxu0 %v2704
    %v4297 = vpop.f32.mrb[0].mxu0
    %v4298 = vadd.f32 0.0, %v4297
    %v4299 = vpop.f32.mrb[0].mxu0
    %v4300 = vpop.f32.mrb[0].mxu0
    %v4301 = vadd.f32 0.0, %v4300
    %v4302 = vpop.f32.mrb[0].mxu0
    %4303 = vmatprep.mubr.bf16.mxu0 %v2708
    %4304 = vmatmul.mubr.bf16.gmra.mrb[0].mxu0 %v2707
    %v4305 = vpop.f32.mrb[0].mxu0
    %v4306 = vadd.f32 0.0, %v4305
    %v4307 = vpop.f32.mrb[0].mxu0
    %v4308 = vpop.f32.mrb[0].mxu0
    %v4309 = vadd.f32 0.0, %v4308
    %v4310 = vpop.f32.mrb[0].mxu0
    %4311 = vmatprep.mubr.bf16.mxu0 %v2710
    %4312 = vmatmul.mubr.bf16.gmra.mrb[0].mxu0 %v449
    %v4313 = vpop.f32.mrb[0].mxu0
    %v4314 = vadd.f32 0.0, %v4313
    %v4315 = vpop.f32.mrb[0].mxu0
    %v4316 = vpop.f32.mrb[0].mxu0
    %v4317 = vadd.f32 0.0, %v4316
    %v4318 = vpop.f32.mrb[0].mxu0
    %4319 = vmatprep.mubr.bf16.mxu0 %v2713
    %4320 = vmatmul.mubr.bf16.gmra.mrb[0].mxu0 %v2712
    %v4321 = vpop.f32.mrb[0].mxu0
    %v4322 = vadd.f32 0.0, %v4321
    %v4323 = vpop.f32.mrb[0].mxu0
    %v4324 = vpop.f32.mrb[0].mxu0
    %v4325 = vadd.f32 0.0, %v4324
    %v4326 = vpop.f32.mrb[0].mxu0
    %4327 = vmatprep.mubr.bf16.mxu0 %v2716
    %4328 = vmatmul.mubr.bf16.gmra.mrb[0].mxu0 %v2715
    %v4329 = vpop.f32.mrb[0].mxu0
    %v4330 = vadd.f32 0.0, %v4329
    %v4331 = vpop.f32.mrb[0].mxu0
    %v4332 = vpop.f32.mrb[0].mxu0
    %v4333 = vadd.f32 0.0, %v4332
    %v4334 = vpop.f32.mrb[0].mxu0
    %4335 = vmatprep.mubr.bf16.mxu0 %v2718
    %4336 = vmatmul.mubr.bf16.gmra.mrb[0].mxu0 %v453
    %v4337 = vpop.f32.mrb[0].mxu0
    %v4338 = vadd.f32 0.0, %v4337
    %v4339 = vpop.f32.mrb[0].mxu0
    %v4340 = vpop.f32.mrb[0].mxu0
    %v4341 = vadd.f32 0.0, %v4340
    %v4342 = vpop.f32.mrb[0].mxu0
    %4343 = vmatprep.mubr.bf16.mxu0 %v2721
    %4344 = vmatmul.mubr.bf16.gmra.mrb[0].mxu0 %v2720
    %v4345 = vpop.f32.mrb[0].mxu0
    %v4346 = vadd.f32 0.0, %v4345
    %v4347 = vpop.f32.mrb[0].mxu0
    %v4348 = vpop.f32.mrb[0].mxu0
    %v4349 = vadd.f32 0.0, %v4348
    %v4350 = vpop.f32.mrb[0].mxu0
    %4351 = vmatprep.mubr.bf16.mxu0 %v2724
    %4352 = vmatmul.mubr.bf16.gmra.mrb[0].mxu0 %v2723
    %v4353 = vpop.f32.mrb[0].mxu0
    %v4354 = vadd.f32 0.0, %v4353
    %v4355 = vpop.f32.mrb[0].mxu0
    %v4356 = vpop.f32.mrb[0].mxu0
    %v4357 = vadd.f32 0.0, %v4356
    %v4358 = vpop.f32.mrb[0].mxu0
    %4359 = vmatprep.mubr.bf16.mxu0 %v2726
    %4360 = vmatmul.mubr.bf16.gmra.mrb[0].mxu0 %v457
    %v4361 = vpop.f32.mrb[0].mxu0
    %v4362 = vadd.f32 0.0, %v4361
    %v4363 = vpop.f32.mrb[0].mxu0
    %v4364 = vpop.f32.mrb[0].mxu0
    %v4365 = vadd.f32 0.0, %v4364
    %v4366 = vpop.f32.mrb[0].mxu0
    %4367 = vmatprep.mubr.bf16.mxu0 %v2729
    %4368 = vmatmul.mubr.bf16.gmra.mrb[0].mxu0 %v2728
    %v4369 = vpop.f32.mrb[0].mxu0
    %v4370 = vadd.f32 0.0, %v4369
    %v4371 = vpop.f32.mrb[0].mxu0
    %v4372 = vpop.f32.mrb[0].mxu0
    %v4373 = vadd.f32 0.0, %v4372
    %v4374 = vpop.f32.mrb[0].mxu0
    %4375 = vmatprep.mubr.bf16.mxu0 %v2732
    %4376 = vmatmul.mubr.bf16.gmra.mrb[0].mxu0 %v2731
    %v4377 = vpop.f32.mrb[0].mxu0
    %v4378 = vadd.f32 0.0, %v4377
    %v4379 = vpop.f32.mrb[0].mxu0
    %v4380 = vpop.f32.mrb[0].mxu0
    %v4381 = vadd.f32 0.0, %v4380
    %v4382 = vpop.f32.mrb[0].mxu0
    %4383 = vmatprep.mubr.bf16.mxu0 %v2734
    %4384 = vmatmul.mubr.bf16.gmra.mrb[0].mxu0 %v461
    %v4385 = vpop.f32.mrb[0].mxu0
    %v4386 = vadd.f32 0.0, %v4385
    %v4387 = vpop.f32.mrb[0].mxu0
    %v4388 = vpop.f32.mrb[0].mxu0
    %v4389 = vadd.f32 0.0, %v4388
    %v4390 = vpop.f32.mrb[0].mxu0
    %4391 = vmatprep.mubr.bf16.mxu0 %v2737
    %4392 = vmatmul.mubr.bf16.gmra.mrb[0].mxu0 %v2736
    %v4393 = vpop.f32.mrb[0].mxu0
    %v4394 = vadd.f32 0.0, %v4393
    %v4395 = vpop.f32.mrb[0].mxu0
    %v4396 = vpop.f32.mrb[0].mxu0
    %v4397 = vadd.f32 0.0, %v4396
    %v4398 = vpop.f32.mrb[0].mxu0
    %4399 = vmatprep.mubr.bf16.mxu0 %v2740
    %4400 = vmatmul.mubr.bf16.gmra.mrb[0].mxu0 %v2739
    %v4401 = vpop.f32.mrb[0].mxu0
    %v4402 = vadd.f32 0.0, %v4401
    %v4403 = vpop.f32.mrb[0].mxu0
    %v4404 = vpop.f32.mrb[0].mxu0
    %v4405 = vadd.f32 0.0, %v4404
    %v4406 = vpop.f32.mrb[0].mxu0
    %4407 = vmatprep.mubr.bf16.mxu0 %v2742
    %4408 = vmatmul.mubr.bf16.gmra.mrb[0].mxu0 %v465
    %v4409 = vpop.f32.mrb[0].mxu0
    %v4410 = vadd.f32 0.0, %v4409
    %v4411 = vpop.f32.mrb[0].mxu0
    %v4412 = vpop.f32.mrb[0].mxu0
    %v4413 = vadd.f32 0.0, %v4412
    %v4414 = vpop.f32.mrb[0].mxu0
    %4415 = vmatprep.mubr.bf16.mxu0 %v2745
    %4416 = vmatmul.mubr.bf16.gmra.mrb[0].mxu0 %v2744
    %v4417 = vpop.f32.mrb[0].mxu0
    %v4418 = vadd.f32 0.0, %v4417
    %v4419 = vpop.f32.mrb[0].mxu0
    %v4420 = vpop.f32.mrb[0].mxu0
    %v4421 = vadd.f32 0.0, %v4420
    %v4422 = vpop.f32.mrb[0].mxu0
    %4423 = vmatprep.mubr.bf16.mxu0 %v2748
    %4424 = vmatmul.mubr.bf16.gmra.mrb[0].mxu0 %v2747
    %v4425 = vpop.f32.mrb[0].mxu0
    %v4426 = vadd.f32 0.0, %v4425
    %v4427 = vpop.f32.mrb[0].mxu0
    %v4428 = vpop.f32.mrb[0].mxu0
    %v4429 = vadd.f32 0.0, %v4428
    %v4430 = vpop.f32.mrb[0].mxu0
    %4431 = vmatprep.mubr.bf16.mxu0 %v4053
    %4432 = vmatmul.mubr.bf16.gmra.mrb[0].mxu0 %v1335
    %v4433 = vpop.f32.mrb[0].mxu0
    %v4434 = vadd.f32 0.0, %v4433
    %v4435 = vpop.f32.mrb[0].mxu0
    %v4436 = vpop.f32.mrb[0].mxu0
    %v4437 = vadd.f32 0.0, %v4436
    %v4438 = vpop.f32.mrb[0].mxu0
    %4439 = vmatprep.mubr.bf16.mxu0 %v4056
    %4440 = vmatmul.mubr.bf16.gmra.mrb[0].mxu0 %v4055
    %v4441 = vpop.f32.mrb[0].mxu0
    %v4442 = vadd.f32 0.0, %v4441
    %v4443 = vpop.f32.mrb[0].mxu0
    %v4444 = vpop.f32.mrb[0].mxu0
    %v4445 = vadd.f32 0.0, %v4444
    %v4446 = vpop.f32.mrb[0].mxu0
    %4447 = vmatprep.mubr.bf16.mxu0 %v4059
    %4448 = vmatmul.mubr.bf16.gmra.mrb[0].mxu0 %v4058
    %v4449 = vpop.f32.mrb[0].mxu0
    %v4450 = vadd.f32 0.0, %v4449
    %v4451 = vpop.f32.mrb[0].mxu0
    %v4452 = vpop.f32.mrb[0].mxu0
    %v4453 = vadd.f32 0.0, %v4452
    %v4454 = vpop.f32.mrb[0].mxu0
    %4455 = vmatprep.mubr.bf16.mxu0 %v2758
    %4456 = vmatmul.mubr.bf16.gmra.mrb[0].mxu0 %v473
    %v4457 = vpop.f32.mrb[0].mxu0
    %v4458 = vadd.f32 0.0, %v4457
    %v4459 = vpop.f32.mrb[0].mxu0
    %v4460 = vpop.f32.mrb[0].mxu0
    %v4461 = vadd.f32 0.0, %v4460
    %v4462 = vpop.f32.mrb[0].mxu0
    %4463 = vmatprep.mubr.bf16.mxu0 %v2761
    %4464 = vmatmul.mubr.bf16.gmra.mrb[0].mxu0 %v2760
    %v4465 = vpop.f32.mrb[0].mxu0
    %v4466 = vadd.f32 0.0, %v4465
    %v4467 = vpop.f32.mrb[0].mxu0
    %v4468 = vpop.f32.mrb[0].mxu0
    %v4469 = vadd.f32 0.0, %v4468
    %v4470 = vpop.f32.mrb[0].mxu0
    %4471 = vmatprep.mubr.bf16.mxu0 %v2764
    %4472 = vmatmul.mubr.bf16.gmra.mrb[0].mxu0 %v2763
    %v4473 = vpop.f32.mrb[0].mxu0
    %v4474 = vadd.f32 0.0, %v4473
    %v4475 = vpop.f32.mrb[0].mxu0
    %v4476 = vpop.f32.mrb[0].mxu0
    %v4477 = vadd.f32 0.0, %v4476
    %v4478 = vpop.f32.mrb[0].mxu0
    %4479 = vmatprep.mubr.bf16.mxu0 %v2766
    %4480 = vmatmul.mubr.bf16.gmra.mrb[0].mxu0 %v477
    %v4481 = vpop.f32.mrb[0].mxu0
    %v4482 = vadd.f32 0.0, %v4481
    %v4483 = vpop.f32.mrb[0].mxu0
    %v4484 = vpop.f32.mrb[0].mxu0
    %v4485 = vadd.f32 0.0, %v4484
    %v4486 = vpop.f32.mrb[0].mxu0
    %4487 = vmatprep.mubr.bf16.mxu0 %v2769
    %4488 = vmatmul.mubr.bf16.gmra.mrb[0].mxu0 %v2768
    %v4489 = vpop.f32.mrb[0].mxu0
    %v4490 = vadd.f32 0.0, %v4489
    %v4491 = vpop.f32.mrb[0].mxu0
    %v4492 = vpop.f32.mrb[0].mxu0
    %v4493 = vadd.f32 0.0, %v4492
    %v4494 = vpop.f32.mrb[0].mxu0
    %4495 = vmatprep.mubr.bf16.mxu0 %v2772
    %4496 = vmatmul.mubr.bf16.gmra.mrb[0].mxu0 %v2771
    %v4497 = vpop.f32.mrb[0].mxu0
    %v4498 = vadd.f32 0.0, %v4497
    %v4499 = vpop.f32.mrb[0].mxu0
    %v4500 = vpop.f32.mrb[0].mxu0
    %v4501 = vadd.f32 0.0, %v4500
    %v4502 = vpop.f32.mrb[0].mxu0
    %4503 = vmatprep.mubr.bf16.mxu0 %v2774
    %4504 = vmatmul.mubr.bf16.gmra.mrb[0].mxu0 %v481
    %v4505 = vpop.f32.mrb[0].mxu0
    %v4506 = vadd.f32 0.0, %v4505
    %v4507 = vpop.f32.mrb[0].mxu0
    %v4508 = vpop.f32.mrb[0].mxu0
    %v4509 = vadd.f32 0.0, %v4508
    %v4510 = vpop.f32.mrb[0].mxu0
    %4511 = vmatprep.mubr.bf16.mxu0 %v2777
    %4512 = vmatmul.mubr.bf16.gmra.mrb[0].mxu0 %v2776
    %v4513 = vpop.f32.mrb[0].mxu0
    %v4514 = vadd.f32 0.0, %v4513
    %v4515 = vpop.f32.mrb[0].mxu0
    %v4516 = vpop.f32.mrb[0].mxu0
    %v4517 = vadd.f32 0.0, %v4516
    %v4518 = vpop.f32.mrb[0].mxu0
    %4519 = vmatprep.mubr.bf16.mxu0 %v2780
    %4520 = vmatmul.mubr.bf16.gmra.mrb[0].mxu0 %v2779
    %v4521 = vpop.f32.mrb[0].mxu0
    %v4522 = vadd.f32 0.0, %v4521
    %v4523 = vpop.f32.mrb[0].mxu0
    %v4524 = vpop.f32.mrb[0].mxu0
    %v4525 = vadd.f32 0.0, %v4524
    %v4526 = vpop.f32.mrb[0].mxu0
    %4527 = vmatprep.mubr.bf16.mxu0 %v2782
    %4528 = vmatmul.mubr.bf16.gmra.mrb[0].mxu0 %v485
    %v4529 = vpop.f32.mrb[0].mxu0
    %v4530 = vadd.f32 0.0, %v4529
    %v4531 = vpop.f32.mrb[0].mxu0
    %v4532 = vpop.f32.mrb[0].mxu0
    %v4533 = vadd.f32 0.0, %v4532
    %v4534 = vpop.f32.mrb[0].mxu0
    %4535 = vmatprep.mubr.bf16.mxu0 %v2785
    %4536 = vmatmul.mubr.bf16.gmra.mrb[0].mxu0 %v2784
    %v4537 = vpop.f32.mrb[0].mxu0
    %v4538 = vadd.f32 0.0, %v4537
    %v4539 = vpop.f32.mrb[0].mxu0
    %v4540 = vpop.f32.mrb[0].mxu0
    %v4541 = vadd.f32 0.0, %v4540
    %v4542 = vpop.f32.mrb[0].mxu0
    %4543 = vmatprep.mubr.bf16.mxu0 %v2788
    %4544 = vmatmul.mubr.bf16.gmra.mrb[0].mxu0 %v2787
    %v4545 = vpop.f32.mrb[0].mxu0
    %v4546 = vadd.f32 0.0, %v4545
    %v4547 = vpop.f32.mrb[0].mxu0
    %v4548 = vpop.f32.mrb[0].mxu0
    %v4549 = vadd.f32 0.0, %v4548
    %v4550 = vpop.f32.mrb[0].mxu0
    %4551 = vmatprep.mubr.bf16.mxu0 %v2790
    %4552 = vmatmul.mubr.bf16.gmra.mrb[0].mxu0 %v489
    %v4553 = vpop.f32.mrb[0].mxu0
    %v4554 = vadd.f32 0.0, %v4553
    %v4555 = vpop.f32.mrb[0].mxu0
    %v4556 = vpop.f32.mrb[0].mxu0
    %v4557 = vadd.f32 0.0, %v4556
    %v4558 = vpop.f32.mrb[0].mxu0
    %4559 = vmatprep.mubr.bf16.mxu0 %v2793
    %4560 = vmatmul.mubr.bf16.gmra.mrb[0].mxu0 %v2792
    %v4561 = vpop.f32.mrb[0].mxu0
    %v4562 = vadd.f32 0.0, %v4561
    %v4563 = vpop.f32.mrb[0].mxu0
    %v4564 = vpop.f32.mrb[0].mxu0
    %v4565 = vadd.f32 0.0, %v4564
    %v4566 = vpop.f32.mrb[0].mxu0
    %4567 = vmatprep.mubr.bf16.mxu0 %v2796
    %4568 = vmatmul.mubr.bf16.gmra.mrb[0].mxu0 %v2795
    %v4569 = vpop.f32.mrb[0].mxu0
    %v4570 = vadd.f32 0.0, %v4569
    %v4571 = vpop.f32.mrb[0].mxu0
    %v4572 = vpop.f32.mrb[0].mxu0
    %v4573 = vadd.f32 0.0, %v4572
    %v4574 = vpop.f32.mrb[0].mxu0
    %4575 = vmatprep.mubr.bf16.mxu0 %v2798
    %4576 = vmatmul.mubr.bf16.gmra.mrb[0].mxu0 %v493
    %v4577 = vpop.f32.mrb[0].mxu0
    %v4578 = vadd.f32 0.0, %v4577
    %v4579 = vpop.f32.mrb[0].mxu0
    %v4580 = vpop.f32.mrb[0].mxu0
    %v4581 = vadd.f32 0.0, %v4580
    %v4582 = vpop.f32.mrb[0].mxu0
    %4583 = vmatprep.mubr.bf16.mxu0 %v2801
    %4584 = vmatmul.mubr.bf16.gmra.mrb[0].mxu0 %v2800
    %v4585 = vpop.f32.mrb[0].mxu0
    %v4586 = vadd.f32 0.0, %v4585
    %v4587 = vpop.f32.mrb[0].mxu0
    %v4588 = vpop.f32.mrb[0].mxu0
    %v4589 = vadd.f32 0.0, %v4588
    %v4590 = vpop.f32.mrb[0].mxu0
    %4591 = vmatprep.mubr.bf16.mxu0 %v2804
    %4592 = vmatmul.mubr.bf16.gmra.mrb[0].mxu0 %v2803
    %v4593 = vpop.f32.mrb[0].mxu0
    %v4594 = vadd.f32 0.0, %v4593
    %v4595 = vpop.f32.mrb[0].mxu0
    %v4596 = vpop.f32.mrb[0].mxu0
    %v4597 = vadd.f32 0.0, %v4596
    %v4598 = vpop.f32.mrb[0].mxu0
    %4599 = vmatprep.mubr.bf16.mxu0 %v2806
    %4600 = vmatmul.mubr.bf16.gmra.mrb[0].mxu0 %v497
    %v4601 = vpop.f32.mrb[0].mxu0
    %v4602 = vadd.f32 0.0, %v4601
    %v4603 = vpop.f32.mrb[0].mxu0
    %v4604 = vpop.f32.mrb[0].mxu0
    %v4605 = vadd.f32 0.0, %v4604
    %v4606 = vpop.f32.mrb[0].mxu0
    %4607 = vmatprep.mubr.bf16.mxu0 %v2809
    %4608 = vmatmul.mubr.bf16.gmra.mrb[0].mxu0 %v2808
    %v4609 = vpop.f32.mrb[0].mxu0
    %v4610 = vadd.f32 0.0, %v4609
    %v4611 = vpop.f32.mrb[0].mxu0
    %v4612 = vpop.f32.mrb[0].mxu0
    %v4613 = vadd.f32 0.0, %v4612
    %v4614 = vpop.f32.mrb[0].mxu0
    %4615 = vmatprep.mubr.bf16.mxu0 %v2812
    %4616 = vmatmul.mubr.bf16.gmra.mrb[0].mxu0 %v2811
    %v4617 = vpop.f32.mrb[0].mxu0
    %v4618 = vadd.f32 0.0, %v4617
    %v4619 = vpop.f32.mrb[0].mxu0
    %v4620 = vpop.f32.mrb[0].mxu0
    %v4621 = vadd.f32 0.0, %v4620
    %v4622 = vpop.f32.mrb[0].mxu0
    %4623 = vmatprep.mubr.bf16.mxu0 %v4061
    %4624 = vmatmul.mubr.bf16.gmra.mrb[0].mxu0 %v1337
    %v4625 = vpop.f32.mrb[0].mxu0
    %v4626 = vadd.f32 0.0, %v4625
    %v4627 = vpop.f32.mrb[0].mxu0
    %v4628 = vpop.f32.mrb[0].mxu0
    %v4629 = vadd.f32 0.0, %v4628
    %v4630 = vpop.f32.mrb[0].mxu0
    %4631 = vmatprep.mubr.bf16.mxu0 %v4064
    %4632 = vmatmul.mubr.bf16.gmra.mrb[0].mxu0 %v4063
    %v4633 = vpop.f32.mrb[0].mxu0
    %v4634 = vadd.f32 0.0, %v4633
    %v4635 = vpop.f32.mrb[0].mxu0
    %v4636 = vpop.f32.mrb[0].mxu0
    %v4637 = vadd.f32 0.0, %v4636
    %v4638 = vpop.f32.mrb[0].mxu0
    %4639 = vmatprep.mubr.bf16.mxu0 %v4067
    %4640 = vmatmul.mubr.bf16.gmra.mrb[0].mxu0 %v4066
    %v4641 = vpop.f32.mrb[0].mxu0
    %v4642 = vadd.f32 0.0, %v4641
    %v4643 = vpop.f32.mrb[0].mxu0
    %v4644 = vpop.f32.mrb[0].mxu0
    %v4645 = vadd.f32 0.0, %v4644
    %v4646 = vpop.f32.mrb[0].mxu0
    %4647 = vdwg.mxu0
    %4648 = vmatprep.subr.bf16.mxu0 0
    %4649 = vmatpush1.bf16.msra.mxu0 %v4199
    %4650 = vmatprep.subr.bf16.mxu0 0
    %4651 = vmatpush1.bf16.msra.mxu0 %v4200
    %4652 = vmatprep.subr.bf16.mxu0 0
    %4653 = vmatpush1.bf16.msra.mxu0 %v4201
    %4654 = vmatprep.subr.bf16.mxu0 0
    %4655 = vmatpush1.bf16.msra.mxu0 %v4202
    %4656 = vmatprep.subr.bf16.mxu0 0
    %4657 = vmatpush1.bf16.msra.mxu0 %v4203
    %4658 = vmatprep.subr.bf16.mxu0 0
    %4659 = vmatpush1.bf16.msra.mxu0 %v4204
    %4660 = vmatprep.subr.bf16.mxu0 0
    %4661 = vmatpush1.bf16.msra.mxu0 %v4205
    %4662 = vmatprep.subr.bf16.mxu0 0
    %4663 = vmatpush1.bf16.msra.mxu0 %v4206
    %4664 = vmatprep.subr.bf16.mxu0 0
    %4665 = vmatpush1.bf16.msra.mxu0 0
    %4666 = vmatprep.subr.bf16.mxu0 0
    %4667 = vmatpush1.bf16.msra.mxu0 0
    %4668 = vmatprep.subr.bf16.mxu0 0
    %4669 = vmatpush1.bf16.msra.mxu0 0
    %4670 = vmatprep.subr.bf16.mxu0 0
    %4671 = vmatpush1.bf16.msra.mxu0 0
    %4672 = vmatprep.subr.bf16.mxu0 0
    %4673 = vmatpush1.bf16.msra.mxu0 0
    %4674 = vmatprep.subr.bf16.mxu0 0
    %4675 = vmatpush1.bf16.msra.mxu0 0
    %4676 = vmatprep.subr.bf16.mxu0 0
    %4677 = vmatpush1.bf16.msra.mxu0 0
    %4678 = vmatprep.subr.bf16.mxu0 0
    %4679 = vmatpush1.bf16.msra.mxu0 0
    %4680 = vmatprep.mubr.bf16.mxu0 0
    %4681 = vmatmul.mubr.bf16.gmra.mrb[0].mxu0 %v2695
    %v4682 = vpop.f32.mrb[0].mxu0
    %v4683 = vadd.f32 %v4266, %v4682
    %v4684 = vpop.f32.mrb[0].mxu0
    %v4685 = vpop.f32.mrb[0].mxu0
    %v4686 = vadd.f32 %v4269, %v4685
    %v4687 = vpop.f32.mrb[0].mxu0
    %4688 = vmatprep.mubr.bf16.mxu0 0
    %4689 = vmatmul.mubr.bf16.gmra.mrb[0].mxu0 %v2698
    %v4690 = vpop.f32.mrb[0].mxu0
    %v4691 = vadd.f32 %v4274, %v4690
    %v4692 = vpop.f32.mrb[0].mxu0
    %v4693 = vpop.f32.mrb[0].mxu0
    %v4694 = vadd.f32 %v4277, %v4693
    %v4695 = vpop.f32.mrb[0].mxu0
    %4696 = vmatprep.mubr.bf16.mxu0 0
    %4697 = vmatmul.mubr.bf16.gmra.mrb[0].mxu0 %v2701
    %v4698 = vpop.f32.mrb[0].mxu0
    %v4699 = vadd.f32 %v4282, %v4698
    %v4700 = vpop.f32.mrb[0].mxu0
    %v4701 = vpop.f32.mrb[0].mxu0
    %v4702 = vadd.f32 %v4285, %v4701
    %v4703 = vpop.f32.mrb[0].mxu0
    %4704 = vmatprep.mubr.bf16.mxu0 0
    %4705 = vmatmul.mubr.bf16.gmra.mrb[0].mxu0 %v2703
    %v4706 = vpop.f32.mrb[0].mxu0
    %v4707 = vadd.f32 %v4290, %v4706
    %v4708 = vpop.f32.mrb[0].mxu0
    %v4709 = vpop.f32.mrb[0].mxu0
    %v4710 = vadd.f32 %v4293, %v4709
    %v4711 = vpop.f32.mrb[0].mxu0
    %4712 = vmatprep.mubr.bf16.mxu0 0
    %4713 = vmatmul.mubr.bf16.gmra.mrb[0].mxu0 %v2706
    %v4714 = vpop.f32.mrb[0].mxu0
    %v4715 = vadd.f32 %v4298, %v4714
    %v4716 = vpop.f32.mrb[0].mxu0
    %v4717 = vpop.f32.mrb[0].mxu0
    %v4718 = vadd.f32 %v4301, %v4717
    %v4719 = vpop.f32.mrb[0].mxu0
    %4720 = vmatprep.mubr.bf16.mxu0 0
    %4721 = vmatmul.mubr.bf16.gmra.mrb[0].mxu0 %v2709
    %v4722 = vpop.f32.mrb[0].mxu0
    %v4723 = vadd.f32 %v4306, %v4722
    %v4724 = vpop.f32.mrb[0].mxu0
    %v4725 = vpop.f32.mrb[0].mxu0
    %v4726 = vadd.f32 %v4309, %v4725
    %v4727 = vpop.f32.mrb[0].mxu0
    %4728 = vmatprep.mubr.bf16.mxu0 0
    %4729 = vmatmul.mubr.bf16.gmra.mrb[0].mxu0 %v2711
    %v4730 = vpop.f32.mrb[0].mxu0
    %v4731 = vadd.f32 %v4314, %v4730
    %v4732 = vpop.f32.mrb[0].mxu0
    %v4733 = vpop.f32.mrb[0].mxu0
    %v4734 = vadd.f32 %v4317, %v4733
    %v4735 = vpop.f32.mrb[0].mxu0
    %4736 = vmatprep.mubr.bf16.mxu0 0
    %4737 = vmatmul.mubr.bf16.gmra.mrb[0].mxu0 %v2714
    %v4738 = vpop.f32.mrb[0].mxu0
    %v4739 = vadd.f32 %v4322, %v4738
    %v4740 = vpop.f32.mrb[0].mxu0
    %v4741 = vpop.f32.mrb[0].mxu0
    %v4742 = vadd.f32 %v4325, %v4741
    %v4743 = vpop.f32.mrb[0].mxu0
    %4744 = vmatprep.mubr.bf16.mxu0 0
    %4745 = vmatmul.mubr.bf16.gmra.mrb[0].mxu0 %v2717
    %v4746 = vpop.f32.mrb[0].mxu0
    %v4747 = vadd.f32 %v4330, %v4746
    %v4748 = vpop.f32.mrb[0].mxu0
    %v4749 = vpop.f32.mrb[0].mxu0
    %v4750 = vadd.f32 %v4333, %v4749
    %v4751 = vpop.f32.mrb[0].mxu0
    %4752 = vmatprep.mubr.bf16.mxu0 0
    %4753 = vmatmul.mubr.bf16.gmra.mrb[0].mxu0 %v2719
    %v4754 = vpop.f32.mrb[0].mxu0
    %v4755 = vadd.f32 %v4338, %v4754
    %v4756 = vpop.f32.mrb[0].mxu0
    %v4757 = vpop.f32.mrb[0].mxu0
    %v4758 = vadd.f32 %v4341, %v4757
    %v4759 = vpop.f32.mrb[0].mxu0
    %4760 = vmatprep.mubr.bf16.mxu0 0
    %4761 = vmatmul.mubr.bf16.gmra.mrb[0].mxu0 %v2722
    %v4762 = vpop.f32.mrb[0].mxu0
    %v4763 = vadd.f32 %v4346, %v4762
    %v4764 = vpop.f32.mrb[0].mxu0
    %v4765 = vpop.f32.mrb[0].mxu0
    %v4766 = vadd.f32 %v4349, %v4765
    %v4767 = vpop.f32.mrb[0].mxu0
    %4768 = vmatprep.mubr.bf16.mxu0 0
    %4769 = vmatmul.mubr.bf16.gmra.mrb[0].mxu0 %v2725
    %v4770 = vpop.f32.mrb[0].mxu0
    %v4771 = vadd.f32 %v4354, %v4770
    %v4772 = vpop.f32.mrb[0].mxu0
    %v4773 = vpop.f32.mrb[0].mxu0
    %v4774 = vadd.f32 %v4357, %v4773
    %v4775 = vpop.f32.mrb[0].mxu0
    %4776 = vmatprep.mubr.bf16.mxu0 0
    %4777 = vmatmul.mubr.bf16.gmra.mrb[0].mxu0 %v2727
    %v4778 = vpop.f32.mrb[0].mxu0
    %v4779 = vadd.f32 %v4362, %v4778
    %v4780 = vpop.f32.mrb[0].mxu0
    %v4781 = vpop.f32.mrb[0].mxu0
    %v4782 = vadd.f32 %v4365, %v4781
    %v4783 = vpop.f32.mrb[0].mxu0
    %4784 = vmatprep.mubr.bf16.mxu0 0
    %4785 = vmatmul.mubr.bf16.gmra.mrb[0].mxu0 %v2730
    %v4786 = vpop.f32.mrb[0].mxu0
    %v4787 = vadd.f32 %v4370, %v4786
    %v4788 = vpop.f32.mrb[0].mxu0
    %v4789 = vpop.f32.mrb[0].mxu0
    %v4790 = vadd.f32 %v4373, %v4789
    %v4791 = vpop.f32.mrb[0].mxu0
    %4792 = vmatprep.mubr.bf16.mxu0 0
    %4793 = vmatmul.mubr.bf16.gmra.mrb[0].mxu0 %v2733
    %v4794 = vpop.f32.mrb[0].mxu0
    %v4795 = vadd.f32 %v4378, %v4794
    %v4796 = vpop.f32.mrb[0].mxu0
    %v4797 = vpop.f32.mrb[0].mxu0
    %v4798 = vadd.f32 %v4381, %v4797
    %v4799 = vpop.f32.mrb[0].mxu0
    %4800 = vmatprep.mubr.bf16.mxu0 0
    %4801 = vmatmul.mubr.bf16.gmra.mrb[0].mxu0 %v2735
    %v4802 = vpop.f32.mrb[0].mxu0
    %v4803 = vadd.f32 %v4386, %v4802
    %v4804 = vpop.f32.mrb[0].mxu0
    %v4805 = vpop.f32.mrb[0].mxu0
    %v4806 = vadd.f32 %v4389, %v4805
    %v4807 = vpop.f32.mrb[0].mxu0
    %4808 = vmatprep.mubr.bf16.mxu0 0
    %4809 = vmatmul.mubr.bf16.gmra.mrb[0].mxu0 %v2738
    %v4810 = vpop.f32.mrb[0].mxu0
    %v4811 = vadd.f32 %v4394, %v4810
    %v4812 = vpop.f32.mrb[0].mxu0
    %v4813 = vpop.f32.mrb[0].mxu0
    %v4814 = vadd.f32 %v4397, %v4813
    %v4815 = vpop.f32.mrb[0].mxu0
    %4816 = vmatprep.mubr.bf16.mxu0 0
    %4817 = vmatmul.mubr.bf16.gmra.mrb[0].mxu0 %v2741
    %v4818 = vpop.f32.mrb[0].mxu0
    %v4819 = vadd.f32 %v4402, %v4818
    %v4820 = vpop.f32.mrb[0].mxu0
    %v4821 = vpop.f32.mrb[0].mxu0
    %v4822 = vadd.f32 %v4405, %v4821
    %v4823 = vpop.f32.mrb[0].mxu0
    %4824 = vmatprep.mubr.bf16.mxu0 0
    %4825 = vmatmul.mubr.bf16.gmra.mrb[0].mxu0 %v2743
    %v4826 = vpop.f32.mrb[0].mxu0
    %v4827 = vadd.f32 %v4410, %v4826
    %v4828 = vpop.f32.mrb[0].mxu0
    %v4829 = vpop.f32.mrb[0].mxu0
    %v4830 = vadd.f32 %v4413, %v4829
    %v4831 = vpop.f32.mrb[0].mxu0
    %4832 = vmatprep.mubr.bf16.mxu0 0
    %4833 = vmatmul.mubr.bf16.gmra.mrb[0].mxu0 %v2746
    %v4834 = vpop.f32.mrb[0].mxu0
    %v4835 = vadd.f32 %v4418, %v4834
    %v4836 = vpop.f32.mrb[0].mxu0
    %v4837 = vpop.f32.mrb[0].mxu0
    %v4838 = vadd.f32 %v4421, %v4837
    %v4839 = vpop.f32.mrb[0].mxu0
    %4840 = vmatprep.mubr.bf16.mxu0 0
    %4841 = vmatmul.mubr.bf16.gmra.mrb[0].mxu0 %v2749
    %v4842 = vpop.f32.mrb[0].mxu0
    %v4843 = vadd.f32 %v4426, %v4842
    %v4844 = vpop.f32.mrb[0].mxu0
    %v4845 = vpop.f32.mrb[0].mxu0
    %v4846 = vadd.f32 %v4429, %v4845
    %v4847 = vpop.f32.mrb[0].mxu0
    %4848 = vmatprep.mubr.bf16.mxu0 0
    %4849 = vmatmul.mubr.bf16.gmra.mrb[0].mxu0 %v4054
    %v4850 = vpop.f32.mrb[0].mxu0
    %v4851 = vadd.f32 %v4434, %v4850
    %v4852 = vpop.f32.mrb[0].mxu0
    %v4853 = vpop.f32.mrb[0].mxu0
    %v4854 = vadd.f32 %v4437, %v4853
    %v4855 = vpop.f32.mrb[0].mxu0
    %4856 = vmatprep.mubr.bf16.mxu0 0
    %4857 = vmatmul.mubr.bf16.gmra.mrb[0].mxu0 %v4057
    %v4858 = vpop.f32.mrb[0].mxu0
    %v4859 = vadd.f32 %v4442, %v4858
    %v4860 = vpop.f32.mrb[0].mxu0
    %v4861 = vpop.f32.mrb[0].mxu0
    %v4862 = vadd.f32 %v4445, %v4861
    %v4863 = vpop.f32.mrb[0].mxu0
    %4864 = vmatprep.mubr.bf16.mxu0 0
    %4865 = vmatmul.mubr.bf16.gmra.mrb[0].mxu0 %v4060
    %v4866 = vpop.f32.mrb[0].mxu0
    %v4867 = vadd.f32 %v4450, %v4866
    %v4868 = vpop.f32.mrb[0].mxu0
    %v4869 = vpop.f32.mrb[0].mxu0
    %v4870 = vadd.f32 %v4453, %v4869
    %v4871 = vpop.f32.mrb[0].mxu0
    %4872 = vmatprep.mubr.bf16.mxu0 0
    %4873 = vmatmul.mubr.bf16.gmra.mrb[0].mxu0 %v2759
    %v4874 = vpop.f32.mrb[0].mxu0
    %v4875 = vadd.f32 %v4458, %v4874
    %v4876 = vpop.f32.mrb[0].mxu0
    %v4877 = vpop.f32.mrb[0].mxu0
    %v4878 = vadd.f32 %v4461, %v4877
    %v4879 = vpop.f32.mrb[0].mxu0
    %4880 = vmatprep.mubr.bf16.mxu0 0
    %4881 = vmatmul.mubr.bf16.gmra.mrb[0].mxu0 %v2762
    %v4882 = vpop.f32.mrb[0].mxu0
    %v4883 = vadd.f32 %v4466, %v4882
    %v4884 = vpop.f32.mrb[0].mxu0
    %v4885 = vpop.f32.mrb[0].mxu0
    %v4886 = vadd.f32 %v4469, %v4885
    %v4887 = vpop.f32.mrb[0].mxu0
    %4888 = vmatprep.mubr.bf16.mxu0 0
    %4889 = vmatmul.mubr.bf16.gmra.mrb[0].mxu0 %v2765
    %v4890 = vpop.f32.mrb[0].mxu0
    %v4891 = vadd.f32 %v4474, %v4890
    %v4892 = vpop.f32.mrb[0].mxu0
    %v4893 = vpop.f32.mrb[0].mxu0
    %v4894 = vadd.f32 %v4477, %v4893
    %v4895 = vpop.f32.mrb[0].mxu0
    %4896 = vmatprep.mubr.bf16.mxu0 0
    %4897 = vmatmul.mubr.bf16.gmra.mrb[0].mxu0 %v2767
    %v4898 = vpop.f32.mrb[0].mxu0
    %v4899 = vadd.f32 %v4482, %v4898
    %v4900 = vpop.f32.mrb[0].mxu0
    %v4901 = vpop.f32.mrb[0].mxu0
    %v4902 = vadd.f32 %v4485, %v4901
    %v4903 = vpop.f32.mrb[0].mxu0
    %4904 = vmatprep.mubr.bf16.mxu0 0
    %4905 = vmatmul.mubr.bf16.gmra.mrb[0].mxu0 %v2770
    %v4906 = vpop.f32.mrb[0].mxu0
    %v4907 = vadd.f32 %v4490, %v4906
    %v4908 = vpop.f32.mrb[0].mxu0
    %v4909 = vpop.f32.mrb[0].mxu0
    %v4910 = vadd.f32 %v4493, %v4909
    %v4911 = vpop.f32.mrb[0].mxu0
    %4912 = vmatprep.mubr.bf16.mxu0 0
    %4913 = vmatmul.mubr.bf16.gmra.mrb[0].mxu0 %v2773
    %v4914 = vpop.f32.mrb[0].mxu0
    %v4915 = vadd.f32 %v4498, %v4914
    %v4916 = vpop.f32.mrb[0].mxu0
    %v4917 = vpop.f32.mrb[0].mxu0
    %v4918 = vadd.f32 %v4501, %v4917
    %v4919 = vpop.f32.mrb[0].mxu0
    %4920 = vmatprep.mubr.bf16.mxu0 0
    %4921 = vmatmul.mubr.bf16.gmra.mrb[0].mxu0 %v2775
    %v4922 = vpop.f32.mrb[0].mxu0
    %v4923 = vadd.f32 %v4506, %v4922
    %v4924 = vpop.f32.mrb[0].mxu0
    %v4925 = vpop.f32.mrb[0].mxu0
    %v4926 = vadd.f32 %v4509, %v4925
    %v4927 = vpop.f32.mrb[0].mxu0
    %4928 = vmatprep.mubr.bf16.mxu0 0
    %4929 = vmatmul.mubr.bf16.gmra.mrb[0].mxu0 %v2778
    %v4930 = vpop.f32.mrb[0].mxu0
    %v4931 = vadd.f32 %v4514, %v4930
    %v4932 = vpop.f32.mrb[0].mxu0
    %v4933 = vpop.f32.mrb[0].mxu0
    %v4934 = vadd.f32 %v4517, %v4933
    %v4935 = vpop.f32.mrb[0].mxu0
    %4936 = vmatprep.mubr.bf16.mxu0 0
    %4937 = vmatmul.mubr.bf16.gmra.mrb[0].mxu0 %v2781
    %v4938 = vpop.f32.mrb[0].mxu0
    %v4939 = vadd.f32 %v4522, %v4938
    %v4940 = vpop.f32.mrb[0].mxu0
    %v4941 = vpop.f32.mrb[0].mxu0
    %v4942 = vadd.f32 %v4525, %v4941
    %v4943 = vpop.f32.mrb[0].mxu0
    %4944 = vmatprep.mubr.bf16.mxu0 0
    %4945 = vmatmul.mubr.bf16.gmra.mrb[0].mxu0 %v2783
    %v4946 = vpop.f32.mrb[0].mxu0
    %v4947 = vadd.f32 %v4530, %v4946
    %v4948 = vpop.f32.mrb[0].mxu0
    %v4949 = vpop.f32.mrb[0].mxu0
    %v4950 = vadd.f32 %v4533, %v4949
    %v4951 = vpop.f32.mrb[0].mxu0
    %4952 = vmatprep.mubr.bf16.mxu0 0
    %4953 = vmatmul.mubr.bf16.gmra.mrb[0].mxu0 %v2786
    %v4954 = vpop.f32.mrb[0].mxu0
    %v4955 = vadd.f32 %v4538, %v4954
    %v4956 = vpop.f32.mrb[0].mxu0
    %v4957 = vpop.f32.mrb[0].mxu0
    %v4958 = vadd.f32 %v4541, %v4957
    %v4959 = vpop.f32.mrb[0].mxu0
    %4960 = vmatprep.mubr.bf16.mxu0 0
    %4961 = vmatmul.mubr.bf16.gmra.mrb[0].mxu0 %v2789
    %v4962 = vpop.f32.mrb[0].mxu0
    %v4963 = vadd.f32 %v4546, %v4962
    %v4964 = vpop.f32.mrb[0].mxu0
    %v4965 = vpop.f32.mrb[0].mxu0
    %v4966 = vadd.f32 %v4549, %v4965
    %v4967 = vpop.f32.mrb[0].mxu0
    %4968 = vmatprep.mubr.bf16.mxu0 0
    %4969 = vmatmul.mubr.bf16.gmra.mrb[0].mxu0 %v2791
    %v4970 = vpop.f32.mrb[0].mxu0
    %v4971 = vadd.f32 %v4554, %v4970
    %v4972 = vpop.f32.mrb[0].mxu0
    %v4973 = vpop.f32.mrb[0].mxu0
    %v4974 = vadd.f32 %v4557, %v4973
    %v4975 = vpop.f32.mrb[0].mxu0
    %4976 = vmatprep.mubr.bf16.mxu0 0
    %4977 = vmatmul.mubr.bf16.gmra.mrb[0].mxu0 %v2794
    %v4978 = vpop.f32.mrb[0].mxu0
    %v4979 = vadd.f32 %v4562, %v4978
    %v4980 = vpop.f32.mrb[0].mxu0
    %v4981 = vpop.f32.mrb[0].mxu0
    %v4982 = vadd.f32 %v4565, %v4981
    %v4983 = vpop.f32.mrb[0].mxu0
    %4984 = vmatprep.mubr.bf16.mxu0 0
    %4985 = vmatmul.mubr.bf16.gmra.mrb[0].mxu0 %v2797
    %v4986 = vpop.f32.mrb[0].mxu0
    %v4987 = vadd.f32 %v4570, %v4986
    %v4988 = vpop.f32.mrb[0].mxu0
    %v4989 = vpop.f32.mrb[0].mxu0
    %v4990 = vadd.f32 %v4573, %v4989
    %v4991 = vpop.f32.mrb[0].mxu0
    %4992 = vmatprep.mubr.bf16.mxu0 0
    %4993 = vmatmul.mubr.bf16.gmra.mrb[0].mxu0 %v2799
    %v4994 = vpop.f32.mrb[0].mxu0
    %v4995 = vadd.f32 %v4578, %v4994
    %v4996 = vpop.f32.mrb[0].mxu0
    %v4997 = vpop.f32.mrb[0].mxu0
    %v4998 = vadd.f32 %v4581, %v4997
    %v4999 = vpop.f32.mrb[0].mxu0
    %5000 = vmatprep.mubr.bf16.mxu0 0
    %5001 = vmatmul.mubr.bf16.gmra.mrb[0].mxu0 %v2802
    %v5002 = vpop.f32.mrb[0].mxu0
    %v5003 = vadd.f32 %v4586, %v5002
    %v5004 = vpop.f32.mrb[0].mxu0
    %v5005 = vpop.f32.mrb[0].mxu0
    %v5006 = vadd.f32 %v4589, %v5005
    %v5007 = vpop.f32.mrb[0].mxu0
    %5008 = vmatprep.mubr.bf16.mxu0 0
    %5009 = vmatmul.mubr.bf16.gmra.mrb[0].mxu0 %v2805
    %v5010 = vpop.f32.mrb[0].mxu0
    %v5011 = vadd.f32 %v4594, %v5010
    %v5012 = vpop.f32.mrb[0].mxu0
    %v5013 = vpop.f32.mrb[0].mxu0
    %v5014 = vadd.f32 %v4597, %v5013
    %v5015 = vpop.f32.mrb[0].mxu0
    %5016 = vmatprep.mubr.bf16.mxu0 0
    %5017 = vmatmul.mubr.bf16.gmra.mrb[0].mxu0 %v2807
    %v5018 = vpop.f32.mrb[0].mxu0
    %v5019 = vadd.f32 %v4602, %v5018
    %v5020 = vpop.f32.mrb[0].mxu0
    %v5021 = vpop.f32.mrb[0].mxu0
    %v5022 = vadd.f32 %v4605, %v5021
    %v5023 = vpop.f32.mrb[0].mxu0
    %5024 = vmatprep.mubr.bf16.mxu0 0
    %5025 = vmatmul.mubr.bf16.gmra.mrb[0].mxu0 %v2810
    %v5026 = vpop.f32.mrb[0].mxu0
    %v5027 = vadd.f32 %v4610, %v5026
    %v5028 = vpop.f32.mrb[0].mxu0
    %v5029 = vpop.f32.mrb[0].mxu0
    %v5030 = vadd.f32 %v4613, %v5029
    %v5031 = vpop.f32.mrb[0].mxu0
    %5032 = vmatprep.mubr.bf16.mxu0 0
    %5033 = vmatmul.mubr.bf16.gmra.mrb[0].mxu0 %v2813
    %v5034 = vpop.f32.mrb[0].mxu0
    %v5035 = vadd.f32 %v4618, %v5034
    %v5036 = vpop.f32.mrb[0].mxu0
    %v5037 = vpop.f32.mrb[0].mxu0
    %v5038 = vadd.f32 %v4621, %v5037
    %v5039 = vpop.f32.mrb[0].mxu0
    %5040 = vmatprep.mubr.bf16.mxu0 0
    %5041 = vmatmul.mubr.bf16.gmra.mrb[0].mxu0 %v4062
    %v5042 = vpop.f32.mrb[0].mxu0
    %v5043 = vadd.f32 %v4626, %v5042
    %v5044 = vpop.f32.mrb[0].mxu0
    %v5045 = vpop.f32.mrb[0].mxu0
    %v5046 = vadd.f32 %v4629, %v5045
    %v5047 = vpop.f32.mrb[0].mxu0
    %5048 = vmatprep.mubr.bf16.mxu0 0
    %5049 = vmatmul.mubr.bf16.gmra.mrb[0].mxu0 %v4065
    %v5050 = vpop.f32.mrb[0].mxu0
    %v5051 = vadd.f32 %v4634, %v5050
    %v5052 = vpop.f32.mrb[0].mxu0
    %v5053 = vpop.f32.mrb[0].mxu0
    %v5054 = vadd.f32 %v4637, %v5053
    %v5055 = vpop.f32.mrb[0].mxu0
    %5056 = vmatprep.mubr.bf16.mxu0 0
    %5057 = vmatmul.mubr.bf16.gmra.mrb[0].mxu0 %v4068
    %v5058 = vpop.f32.mrb[0].mxu0
    %v5059 = vadd.f32 %v4642, %v5058
    %v5060 = vpop.f32.mrb[0].mxu0
    %v5061 = vpop.f32.mrb[0].mxu0
    %v5062 = vadd.f32 %v4645, %v5061
    %v5063 = vpop.f32.mrb[0].mxu0
    %5064 = vdwg.mxu0
    %v5065 = vadd.f32 %v3554, %v4683
    %v5066 = vadd.f32 %v3557, %v4686
    %v5067 = vadd.f32 %v3562, %v4691
    %v5068 = vadd.f32 %v3565, %v4694
    %v5069 = vadd.f32 %v3570, %v4699
    %v5070 = vadd.f32 %v3573, %v4702
    %v5071 = vadd.f32 %v3578, %v4707
    %v5072 = vadd.f32 %v3581, %v4710
    %v5073 = vadd.f32 %v3586, %v4715
    %v5074 = vadd.f32 %v3589, %v4718
    %v5075 = vadd.f32 %v3594, %v4723
    %v5076 = vadd.f32 %v3597, %v4726
    %v5077 = vadd.f32 %v3602, %v4731
    %v5078 = vadd.f32 %v3605, %v4734
    %v5079 = vadd.f32 %v3610, %v4739
    %v5080 = vadd.f32 %v3613, %v4742
    %v5081 = vadd.f32 %v3618, %v4747
    %v5082 = vadd.f32 %v3621, %v4750
    %v5083 = vadd.f32 %v3626, %v4755
    %v5084 = vadd.f32 %v3629, %v4758
    %v5085 = vadd.f32 %v3634, %v4763
    %v5086 = vadd.f32 %v3637, %v4766
    %v5087 = vadd.f32 %v3642, %v4771
    %v5088 = vadd.f32 %v3645, %v4774
    %v5089 = vadd.f32 %v3650, %v4779
    %v5090 = vadd.f32 %v3653, %v4782
    %v5091 = vadd.f32 %v3658, %v4787
    %v5092 = vadd.f32 %v3661, %v4790
    %v5093 = vadd.f32 %v3666, %v4795
    %v5094 = vadd.f32 %v3669, %v4798
    %v5095 = vadd.f32 %v3674, %v4803
    %v5096 = vadd.f32 %v3677, %v4806
    %v5097 = vadd.f32 %v3682, %v4811
    %v5098 = vadd.f32 %v3685, %v4814
    %v5099 = vadd.f32 %v3690, %v4819
    %v5100 = vadd.f32 %v3693, %v4822
    %v5101 = vadd.f32 %v3698, %v4827
    %v5102 = vadd.f32 %v3701, %v4830
    %v5103 = vadd.f32 %v3706, %v4835
    %v5104 = vadd.f32 %v3709, %v4838
    %v5105 = vadd.f32 %v3714, %v4843
    %v5106 = vadd.f32 %v3717, %v4846
    %v5107 = vadd.f32 %v3722, %v4851
    %v5108 = vadd.f32 %v3725, %v4854
    %v5109 = vadd.f32 %v3730, %v4859
    %v5110 = vadd.f32 %v3733, %v4862
    %v5111 = vadd.f32 %v3738, %v4867
    %v5112 = vadd.f32 %v3741, %v4870
    %v5113 = vadd.f32 %v3746, %v4875
    %v5114 = vadd.f32 %v3749, %v4878
    %v5115 = vadd.f32 %v3754, %v4883
    %v5116 = vadd.f32 %v3757, %v4886
    %v5117 = vadd.f32 %v3762, %v4891
    %v5118 = vadd.f32 %v3765, %v4894
    %v5119 = vadd.f32 %v3770, %v4899
    %v5120 = vadd.f32 %v3773, %v4902
    %v5121 = vadd.f32 %v3778, %v4907
    %v5122 = vadd.f32 %v3781, %v4910
    %v5123 = vadd.f32 %v3786, %v4915
    %v5124 = vadd.f32 %v3789, %v4918
    %v5125 = vadd.f32 %v3794, %v4923
    %v5126 = vadd.f32 %v3797, %v4926
    %v5127 = vadd.f32 %v3802, %v4931
    %v5128 = vadd.f32 %v3805, %v4934
    %v5129 = vadd.f32 %v3810, %v4939
    %v5130 = vadd.f32 %v3813, %v4942
    %v5131 = vadd.f32 %v3818, %v4947
    %v5132 = vadd.f32 %v3821, %v4950
    %v5133 = vadd.f32 %v3826, %v4955
    %v5134 = vadd.f32 %v3829, %v4958
    %v5135 = vadd.f32 %v3834, %v4963
    %v5136 = vadd.f32 %v3837, %v4966
    %v5137 = vadd.f32 %v3842, %v4971
    %v5138 = vadd.f32 %v3845, %v4974
    %v5139 = vadd.f32 %v3850, %v4979
    %v5140 = vadd.f32 %v3853, %v4982
    %v5141 = vadd.f32 %v3858, %v4987
    %v5142 = vadd.f32 %v3861, %v4990
    %v5143 = vadd.f32 %v3866, %v4995
    %v5144 = vadd.f32 %v3869, %v4998
    %v5145 = vadd.f32 %v3874, %v5003
    %v5146 = vadd.f32 %v3877, %v5006
    %v5147 = vadd.f32 %v3882, %v5011
    %v5148 = vadd.f32 %v3885, %v5014
    %v5149 = vadd.f32 %v3890, %v5019
    %v5150 = vadd.f32 %v3893, %v5022
    %v5151 = vadd.f32 %v3898, %v5027
    %v5152 = vadd.f32 %v3901, %v5030
    %v5153 = vadd.f32 %v3906, %v5035
    %v5154 = vadd.f32 %v3909, %v5038
    %v5155 = vadd.f32 %v3914, %v5043
    %v5156 = vadd.f32 %v3917, %v5046
    %v5157 = vadd.f32 %v3922, %v5051
    %v5158 = vadd.f32 %v3925, %v5054
    %v5159 = vadd.f32 %v3930, %v5059
    %v5160 = vadd.f32 %v3933, %v5062
    %v5161 = vlaneseq
    %v5162 = vshrl.u32 %v5161, 7
    %v5163 = vsub.s32 0, %v5162
    %v5164 = vrot.slane %v36, %v5163
    %v5165 = vmul.f32 %v5065, %v5164
    %v5166 = vmul.f32 %v5066, %v5164
    %v5167 = vmul.f32 %v5067, %v5164
    %v5168 = vmul.f32 %v5068, %v5164
    %v5169 = vmul.f32 %v5069, %v5164
    %v5170 = vmul.f32 %v5070, %v5164
    %v5171 = vmul.f32 %v5071, %v5164
    %v5172 = vmul.f32 %v5072, %v5164
    %v5173 = vmul.f32 %v5073, %v5164
    %v5174 = vmul.f32 %v5074, %v5164
    %v5175 = vmul.f32 %v5075, %v5164
    %v5176 = vmul.f32 %v5076, %v5164
    %v5177 = vmul.f32 %v5077, %v5164
    %v5178 = vmul.f32 %v5078, %v5164
    %v5179 = vmul.f32 %v5079, %v5164
    %v5180 = vmul.f32 %v5080, %v5164
    %v5181 = vmul.f32 %v5081, %v5164
    %v5182 = vmul.f32 %v5082, %v5164
    %v5183 = vmul.f32 %v5083, %v5164
    %v5184 = vmul.f32 %v5084, %v5164
    %v5185 = vmul.f32 %v5085, %v5164
    %v5186 = vmul.f32 %v5086, %v5164
    %v5187 = vmul.f32 %v5087, %v5164
    %v5188 = vmul.f32 %v5088, %v5164
    %v5189 = vmul.f32 %v5089, %v5164
    %v5190 = vmul.f32 %v5090, %v5164
    %v5191 = vmul.f32 %v5091, %v5164
    %v5192 = vmul.f32 %v5092, %v5164
    %v5193 = vmul.f32 %v5093, %v5164
    %v5194 = vmul.f32 %v5094, %v5164
    %v5195 = vmul.f32 %v5095, %v5164
    %v5196 = vmul.f32 %v5096, %v5164
    %v5197 = vmul.f32 %v5097, %v5164
    %v5198 = vmul.f32 %v5098, %v5164
    %v5199 = vmul.f32 %v5099, %v5164
    %v5200 = vmul.f32 %v5100, %v5164
    %v5201 = vmul.f32 %v5101, %v5164
    %v5202 = vmul.f32 %v5102, %v5164
    %v5203 = vmul.f32 %v5103, %v5164
    %v5204 = vmul.f32 %v5104, %v5164
    %v5205 = vmul.f32 %v5105, %v5164
    %v5206 = vmul.f32 %v5106, %v5164
    %v5207 = vmul.f32 %v5107, %v5164
    %v5208 = vmul.f32 %v5108, %v5164
    %v5209 = vmul.f32 %v5109, %v5164
    %v5210 = vmul.f32 %v5110, %v5164
    %v5211 = vmul.f32 %v5111, %v5164
    %v5212 = vmul.f32 %v5112, %v5164
    %v5213 = vmul.f32 %v5113, %v5164
    %v5214 = vmul.f32 %v5114, %v5164
    %v5215 = vmul.f32 %v5115, %v5164
    %v5216 = vmul.f32 %v5116, %v5164
    %v5217 = vmul.f32 %v5117, %v5164
    %v5218 = vmul.f32 %v5118, %v5164
    %v5219 = vmul.f32 %v5119, %v5164
    %v5220 = vmul.f32 %v5120, %v5164
    %v5221 = vmul.f32 %v5121, %v5164
    %v5222 = vmul.f32 %v5122, %v5164
    %v5223 = vmul.f32 %v5123, %v5164
    %v5224 = vmul.f32 %v5124, %v5164
    %v5225 = vmul.f32 %v5125, %v5164
    %v5226 = vmul.f32 %v5126, %v5164
    %v5227 = vmul.f32 %v5127, %v5164
    %v5228 = vmul.f32 %v5128, %v5164
    %v5229 = vmul.f32 %v5129, %v5164
    %v5230 = vmul.f32 %v5130, %v5164
    %v5231 = vmul.f32 %v5131, %v5164
    %v5232 = vmul.f32 %v5132, %v5164
    %v5233 = vmul.f32 %v5133, %v5164
    %v5234 = vmul.f32 %v5134, %v5164
    %v5235 = vmul.f32 %v5135, %v5164
    %v5236 = vmul.f32 %v5136, %v5164
    %v5237 = vmul.f32 %v5137, %v5164
    %v5238 = vmul.f32 %v5138, %v5164
    %v5239 = vmul.f32 %v5139, %v5164
    %v5240 = vmul.f32 %v5140, %v5164
    %v5241 = vmul.f32 %v5141, %v5164
    %v5242 = vmul.f32 %v5142, %v5164
    %v5243 = vmul.f32 %v5143, %v5164
    %v5244 = vmul.f32 %v5144, %v5164
    %v5245 = vmul.f32 %v5145, %v5164
    %v5246 = vmul.f32 %v5146, %v5164
    %v5247 = vmul.f32 %v5147, %v5164
    %v5248 = vmul.f32 %v5148, %v5164
    %v5249 = vmul.f32 %v5149, %v5164
    %v5250 = vmul.f32 %v5150, %v5164
    %v5251 = vmul.f32 %v5151, %v5164
    %v5252 = vmul.f32 %v5152, %v5164
    %v5253 = vmul.f32 %v5153, %v5164
    %v5254 = vmul.f32 %v5154, %v5164
    %v5255 = vmul.f32 %v5155, %v5164
    %v5256 = vmul.f32 %v5156, %v5164
    %v5257 = vmul.f32 %v5157, %v5164
    %v5258 = vmul.f32 %v5158, %v5164
    %v5259 = vmul.f32 %v5159, %v5164
    %v5260 = vmul.f32 %v5160, %v5164
    %v5261 = vlaneseq
    %v5262 = vshrl.u32 %v5261, 7
    %v5263 = vsub.s32 1, %v5262
    %v5264 = vrot.slane %v36, %v5263
    %v5265 = vadd.f32 %v5165, %v5264
    %v5266 = vadd.f32 %v5166, %v5264
    %v5267 = vadd.f32 %v5167, %v5264
    %v5268 = vadd.f32 %v5168, %v5264
    %v5269 = vadd.f32 %v5169, %v5264
    %v5270 = vadd.f32 %v5170, %v5264
    %v5271 = vadd.f32 %v5171, %v5264
    %v5272 = vadd.f32 %v5172, %v5264
    %v5273 = vadd.f32 %v5173, %v5264
    %v5274 = vadd.f32 %v5174, %v5264
    %v5275 = vadd.f32 %v5175, %v5264
    %v5276 = vadd.f32 %v5176, %v5264
    %v5277 = vadd.f32 %v5177, %v5264
    %v5278 = vadd.f32 %v5178, %v5264
    %v5279 = vadd.f32 %v5179, %v5264
    %v5280 = vadd.f32 %v5180, %v5264
    %v5281 = vadd.f32 %v5181, %v5264
    %v5282 = vadd.f32 %v5182, %v5264
    %v5283 = vadd.f32 %v5183, %v5264
    %v5284 = vadd.f32 %v5184, %v5264
    %v5285 = vadd.f32 %v5185, %v5264
    %v5286 = vadd.f32 %v5186, %v5264
    %v5287 = vadd.f32 %v5187, %v5264
    %v5288 = vadd.f32 %v5188, %v5264
    %v5289 = vadd.f32 %v5189, %v5264
    %v5290 = vadd.f32 %v5190, %v5264
    %v5291 = vadd.f32 %v5191, %v5264
    %v5292 = vadd.f32 %v5192, %v5264
    %v5293 = vadd.f32 %v5193, %v5264
    %v5294 = vadd.f32 %v5194, %v5264
    %v5295 = vadd.f32 %v5195, %v5264
    %v5296 = vadd.f32 %v5196, %v5264
    %v5297 = vadd.f32 %v5197, %v5264
    %v5298 = vadd.f32 %v5198, %v5264
    %v5299 = vadd.f32 %v5199, %v5264
    %v5300 = vadd.f32 %v5200, %v5264
    %v5301 = vadd.f32 %v5201, %v5264
    %v5302 = vadd.f32 %v5202, %v5264
    %v5303 = vadd.f32 %v5203, %v5264
    %v5304 = vadd.f32 %v5204, %v5264
    %v5305 = vadd.f32 %v5205, %v5264
    %v5306 = vadd.f32 %v5206, %v5264
    %v5307 = vadd.f32 %v5207, %v5264
    %v5308 = vadd.f32 %v5208, %v5264
    %v5309 = vadd.f32 %v5209, %v5264
    %v5310 = vadd.f32 %v5210, %v5264
    %v5311 = vadd.f32 %v5211, %v5264
    %v5312 = vadd.f32 %v5212, %v5264
    %v5313 = vadd.f32 %v5213, %v5264
    %v5314 = vadd.f32 %v5214, %v5264
    %v5315 = vadd.f32 %v5215, %v5264
    %v5316 = vadd.f32 %v5216, %v5264
    %v5317 = vadd.f32 %v5217, %v5264
    %v5318 = vadd.f32 %v5218, %v5264
    %v5319 = vadd.f32 %v5219, %v5264
    %v5320 = vadd.f32 %v5220, %v5264
    %v5321 = vadd.f32 %v5221, %v5264
    %v5322 = vadd.f32 %v5222, %v5264
    %v5323 = vadd.f32 %v5223, %v5264
    %v5324 = vadd.f32 %v5224, %v5264
    %v5325 = vadd.f32 %v5225, %v5264
    %v5326 = vadd.f32 %v5226, %v5264
    %v5327 = vadd.f32 %v5227, %v5264
    %v5328 = vadd.f32 %v5228, %v5264
    %v5329 = vadd.f32 %v5229, %v5264
    %v5330 = vadd.f32 %v5230, %v5264
    %v5331 = vadd.f32 %v5231, %v5264
    %v5332 = vadd.f32 %v5232, %v5264
    %v5333 = vadd.f32 %v5233, %v5264
    %v5334 = vadd.f32 %v5234, %v5264
    %v5335 = vadd.f32 %v5235, %v5264
    %v5336 = vadd.f32 %v5236, %v5264
    %v5337 = vadd.f32 %v5237, %v5264
    %v5338 = vadd.f32 %v5238, %v5264
    %v5339 = vadd.f32 %v5239, %v5264
    %v5340 = vadd.f32 %v5240, %v5264
    %v5341 = vadd.f32 %v5241, %v5264
    %v5342 = vadd.f32 %v5242, %v5264
    %v5343 = vadd.f32 %v5243, %v5264
    %v5344 = vadd.f32 %v5244, %v5264
    %v5345 = vadd.f32 %v5245, %v5264
    %v5346 = vadd.f32 %v5246, %v5264
    %v5347 = vadd.f32 %v5247, %v5264
    %v5348 = vadd.f32 %v5248, %v5264
    %v5349 = vadd.f32 %v5249, %v5264
    %v5350 = vadd.f32 %v5250, %v5264
    %v5351 = vadd.f32 %v5251, %v5264
    %v5352 = vadd.f32 %v5252, %v5264
    %v5353 = vadd.f32 %v5253, %v5264
    %v5354 = vadd.f32 %v5254, %v5264
    %v5355 = vadd.f32 %v5255, %v5264
    %v5356 = vadd.f32 %v5256, %v5264
    %v5357 = vadd.f32 %v5257, %v5264
    %v5358 = vadd.f32 %v5258, %v5264
    %v5359 = vadd.f32 %v5259, %v5264
    %v5360 = vadd.f32 %v5260, %v5264
    %v5361 = vmax.f32 %v5265, 0.0
    %v5362 = vmax.f32 %v5266, 0.0
    %v5363 = vmax.f32 %v5267, 0.0
    %v5364 = vmax.f32 %v5268, 0.0
    %v5365 = vmax.f32 %v5269, 0.0
    %v5366 = vmax.f32 %v5270, 0.0
    %v5367 = vmax.f32 %v5271, 0.0
    %v5368 = vmax.f32 %v5272, 0.0
    %v5369 = vmax.f32 %v5273, 0.0
    %v5370 = vmax.f32 %v5274, 0.0
    %v5371 = vmax.f32 %v5275, 0.0
    %v5372 = vmax.f32 %v5276, 0.0
    %v5373 = vmax.f32 %v5277, 0.0
    %v5374 = vmax.f32 %v5278, 0.0
    %v5375 = vmax.f32 %v5279, 0.0
    %v5376 = vmax.f32 %v5280, 0.0
    %v5377 = vmax.f32 %v5281, 0.0
    %v5378 = vmax.f32 %v5282, 0.0
    %v5379 = vmax.f32 %v5283, 0.0
    %v5380 = vmax.f32 %v5284, 0.0
    %v5381 = vmax.f32 %v5285, 0.0
    %v5382 = vmax.f32 %v5286, 0.0
    %v5383 = vmax.f32 %v5287, 0.0
    %v5384 = vmax.f32 %v5288, 0.0
    %v5385 = vmax.f32 %v5289, 0.0
    %v5386 = vmax.f32 %v5290, 0.0
    %v5387 = vmax.f32 %v5291, 0.0
    %v5388 = vmax.f32 %v5292, 0.0
    %v5389 = vmax.f32 %v5293, 0.0
    %v5390 = vmax.f32 %v5294, 0.0
    %v5391 = vmax.f32 %v5295, 0.0
    %v5392 = vmax.f32 %v5296, 0.0
    %v5393 = vmax.f32 %v5297, 0.0
    %v5394 = vmax.f32 %v5298, 0.0
    %v5395 = vmax.f32 %v5299, 0.0
    %v5396 = vmax.f32 %v5300, 0.0
    %v5397 = vmax.f32 %v5301, 0.0
    %v5398 = vmax.f32 %v5302, 0.0
    %v5399 = vmax.f32 %v5303, 0.0
    %v5400 = vmax.f32 %v5304, 0.0
    %v5401 = vmax.f32 %v5305, 0.0
    %v5402 = vmax.f32 %v5306, 0.0
    %v5403 = vmax.f32 %v5307, 0.0
    %v5404 = vmax.f32 %v5308, 0.0
    %v5405 = vmax.f32 %v5309, 0.0
    %v5406 = vmax.f32 %v5310, 0.0
    %v5407 = vmax.f32 %v5311, 0.0
    %v5408 = vmax.f32 %v5312, 0.0
    %v5409 = vmax.f32 %v5313, 0.0
    %v5410 = vmax.f32 %v5314, 0.0
    %v5411 = vmax.f32 %v5315, 0.0
    %v5412 = vmax.f32 %v5316, 0.0
    %v5413 = vmax.f32 %v5317, 0.0
    %v5414 = vmax.f32 %v5318, 0.0
    %v5415 = vmax.f32 %v5319, 0.0
    %v5416 = vmax.f32 %v5320, 0.0
    %v5417 = vmax.f32 %v5321, 0.0
    %v5418 = vmax.f32 %v5322, 0.0
    %v5419 = vmax.f32 %v5323, 0.0
    %v5420 = vmax.f32 %v5324, 0.0
    %v5421 = vmax.f32 %v5325, 0.0
    %v5422 = vmax.f32 %v5326, 0.0
    %v5423 = vmax.f32 %v5327, 0.0
    %v5424 = vmax.f32 %v5328, 0.0
    %v5425 = vmax.f32 %v5329, 0.0
    %v5426 = vmax.f32 %v5330, 0.0
    %v5427 = vmax.f32 %v5331, 0.0
    %v5428 = vmax.f32 %v5332, 0.0
    %v5429 = vmax.f32 %v5333, 0.0
    %v5430 = vmax.f32 %v5334, 0.0
    %v5431 = vmax.f32 %v5335, 0.0
    %v5432 = vmax.f32 %v5336, 0.0
    %v5433 = vmax.f32 %v5337, 0.0
    %v5434 = vmax.f32 %v5338, 0.0
    %v5435 = vmax.f32 %v5339, 0.0
    %v5436 = vmax.f32 %v5340, 0.0
    %v5437 = vmax.f32 %v5341, 0.0
    %v5438 = vmax.f32 %v5342, 0.0
    %v5439 = vmax.f32 %v5343, 0.0
    %v5440 = vmax.f32 %v5344, 0.0
    %v5441 = vmax.f32 %v5345, 0.0
    %v5442 = vmax.f32 %v5346, 0.0
    %v5443 = vmax.f32 %v5347, 0.0
    %v5444 = vmax.f32 %v5348, 0.0
    %v5445 = vmax.f32 %v5349, 0.0
    %v5446 = vmax.f32 %v5350, 0.0
    %v5447 = vmax.f32 %v5351, 0.0
    %v5448 = vmax.f32 %v5352, 0.0
    %v5449 = vmax.f32 %v5353, 0.0
    %v5450 = vmax.f32 %v5354, 0.0
    %v5451 = vmax.f32 %v5355, 0.0
    %v5452 = vmax.f32 %v5356, 0.0
    %v5453 = vmax.f32 %v5357, 0.0
    %v5454 = vmax.f32 %v5358, 0.0
    %v5455 = vmax.f32 %v5359, 0.0
    %v5456 = vmax.f32 %v5360, 0.0
    %v5457 = vlaneseq
    %v5458 = vshrl.u32 %v5457, 7
    %v5459 = vadd.s32 %v5458, 8
    %v5460 = vadd.s32 %v5458, 16
    %vm5461 = vcmp.ge.s32.totalorder %v5458, 1
    %vm5462 = vcmp.ge.s32.totalorder %v5459, 1
    %vm5463 = vcmp.ge.s32.totalorder %v5460, 1
    %vm5464 = vcmp.le.s32.totalorder %v5458, 16
    %vm5465 = vcmp.le.s32.totalorder %v5459, 16
    %vm5466 = vcmp.le.s32.totalorder %v5460, 16
    %vm5467 = vmand %vm5461, %vm5464
    %vm5468 = vmand %vm5462, %vm5465
    %vm5469 = vmand %vm5463, %vm5466
    %v5470 = vsel %vm5467, 1, 0
    %v5471 = vsel %vm5468, 1, 0
    %v5472 = vsel %vm5469, 1, 0
    %v5473 = vcvt.s32.f32 %v5470
    %v5474 = vcvt.s32.f32 %v5471
    %v5475 = vcvt.s32.f32 %v5472
    %v5476 = vmul.f32 %v5361, %v5473
    %v5477 = vmul.f32 %v5362, %v5474
    %v5478 = vmul.f32 %v5363, %v5475
    %v5479 = vmul.f32 %v5364, %v5473
    %v5480 = vmul.f32 %v5365, %v5474
    %v5481 = vmul.f32 %v5366, %v5475
    %v5482 = vmul.f32 %v5367, %v5473
    %v5483 = vmul.f32 %v5368, %v5474
    %v5484 = vmul.f32 %v5369, %v5475
    %v5485 = vmul.f32 %v5370, %v5473
    %v5486 = vmul.f32 %v5371, %v5474
    %v5487 = vmul.f32 %v5372, %v5475
    %v5488 = vmul.f32 %v5373, %v5473
    %v5489 = vmul.f32 %v5374, %v5474
    %v5490 = vmul.f32 %v5375, %v5475
    %v5491 = vmul.f32 %v5376, %v5473
    %v5492 = vmul.f32 %v5377, %v5474
    %v5493 = vmul.f32 %v5378, %v5475
    %v5494 = vmul.f32 %v5379, %v5473
    %v5495 = vmul.f32 %v5380, %v5474
    %v5496 = vmul.f32 %v5381, %v5475
    %v5497 = vmul.f32 %v5382, %v5473
    %v5498 = vmul.f32 %v5383, %v5474
    %v5499 = vmul.f32 %v5384, %v5475
    %v5500 = vmul.f32 %v5385, %v5473
    %v5501 = vmul.f32 %v5386, %v5474
    %v5502 = vmul.f32 %v5387, %v5475
    %v5503 = vmul.f32 %v5388, %v5473
    %v5504 = vmul.f32 %v5389, %v5474
    %v5505 = vmul.f32 %v5390, %v5475
    %v5506 = vmul.f32 %v5391, %v5473
    %v5507 = vmul.f32 %v5392, %v5474
    %v5508 = vmul.f32 %v5393, %v5475
    %v5509 = vmul.f32 %v5394, %v5473
    %v5510 = vmul.f32 %v5395, %v5474
    %v5511 = vmul.f32 %v5396, %v5475
    %v5512 = vmul.f32 %v5397, %v5473
    %v5513 = vmul.f32 %v5398, %v5474
    %v5514 = vmul.f32 %v5399, %v5475
    %v5515 = vmul.f32 %v5400, %v5473
    %v5516 = vmul.f32 %v5401, %v5474
    %v5517 = vmul.f32 %v5402, %v5475
    %v5518 = vmul.f32 %v5403, %v5473
    %v5519 = vmul.f32 %v5404, %v5474
    %v5520 = vmul.f32 %v5405, %v5475
    %v5521 = vmul.f32 %v5406, %v5473
    %v5522 = vmul.f32 %v5407, %v5474
    %v5523 = vmul.f32 %v5408, %v5475
    %v5524 = vmul.f32 %v5409, %v5473
    %v5525 = vmul.f32 %v5410, %v5474
    %v5526 = vmul.f32 %v5411, %v5475
    %v5527 = vmul.f32 %v5412, %v5473
    %v5528 = vmul.f32 %v5413, %v5474
    %v5529 = vmul.f32 %v5414, %v5475
    %v5530 = vmul.f32 %v5415, %v5473
    %v5531 = vmul.f32 %v5416, %v5474
    %v5532 = vmul.f32 %v5417, %v5475
    %v5533 = vmul.f32 %v5418, %v5473
    %v5534 = vmul.f32 %v5419, %v5474
    %v5535 = vmul.f32 %v5420, %v5475
    %v5536 = vmul.f32 %v5421, %v5473
    %v5537 = vmul.f32 %v5422, %v5474
    %v5538 = vmul.f32 %v5423, %v5475
    %v5539 = vmul.f32 %v5424, %v5473
    %v5540 = vmul.f32 %v5425, %v5474
    %v5541 = vmul.f32 %v5426, %v5475
    %v5542 = vmul.f32 %v5427, %v5473
    %v5543 = vmul.f32 %v5428, %v5474
    %v5544 = vmul.f32 %v5429, %v5475
    %v5545 = vmul.f32 %v5430, %v5473
    %v5546 = vmul.f32 %v5431, %v5474
    %v5547 = vmul.f32 %v5432, %v5475
    %v5548 = vmul.f32 %v5433, %v5473
    %v5549 = vmul.f32 %v5434, %v5474
    %v5550 = vmul.f32 %v5435, %v5475
    %v5551 = vmul.f32 %v5436, %v5473
    %v5552 = vmul.f32 %v5437, %v5474
    %v5553 = vmul.f32 %v5438, %v5475
    %v5554 = vmul.f32 %v5439, %v5473
    %v5555 = vmul.f32 %v5440, %v5474
    %v5556 = vmul.f32 %v5441, %v5475
    %v5557 = vmul.f32 %v5442, %v5473
    %v5558 = vmul.f32 %v5443, %v5474
    %v5559 = vmul.f32 %v5444, %v5475
    %v5560 = vmul.f32 %v5445, %v5473
    %v5561 = vmul.f32 %v5446, %v5474
    %v5562 = vmul.f32 %v5447, %v5475
    %v5563 = vmul.f32 %v5448, %v5473
    %v5564 = vmul.f32 %v5449, %v5474
    %v5565 = vmul.f32 %v5450, %v5475
    %v5566 = vmul.f32 %v5451, %v5473
    %v5567 = vmul.f32 %v5452, %v5474
    %v5568 = vmul.f32 %v5453, %v5475
    %v5569 = vmul.f32 %v5454, %v5473
    %v5570 = vmul.f32 %v5455, %v5474
    %v5571 = vmul.f32 %v5456, %v5475
    %v5572 = vpack.c.bf16 %v5477, %v5476
    %v5573 = vpack.c.bf16 %v5478, %v5478
    %v5574 = vpack.c.bf16 %v5480, %v5479
    %v5575 = vpack.c.bf16 %v5481, %v5481
    %v5576 = vpack.c.bf16 %v5483, %v5482
    %v5577 = vpack.c.bf16 %v5484, %v5484
    %v5578 = vpack.c.bf16 %v5486, %v5485
    %v5579 = vpack.c.bf16 %v5487, %v5487
    %v5580 = vpack.c.bf16 %v5489, %v5488
    %v5581 = vpack.c.bf16 %v5490, %v5490
    %v5582 = vpack.c.bf16 %v5492, %v5491
    %v5583 = vpack.c.bf16 %v5493, %v5493
    %v5584 = vpack.c.bf16 %v5495, %v5494
    %v5585 = vpack.c.bf16 %v5496, %v5496
    %v5586 = vpack.c.bf16 %v5498, %v5497
    %v5587 = vpack.c.bf16 %v5499, %v5499
    %v5588 = vpack.c.bf16 %v5501, %v5500
    %v5589 = vpack.c.bf16 %v5502, %v5502
    %v5590 = vpack.c.bf16 %v5504, %v5503
    %v5591 = vpack.c.bf16 %v5505, %v5505
    %v5592 = vpack.c.bf16 %v5507, %v5506
    %v5593 = vpack.c.bf16 %v5508, %v5508
    %v5594 = vpack.c.bf16 %v5510, %v5509
    %v5595 = vpack.c.bf16 %v5511, %v5511
    %v5596 = vpack.c.bf16 %v5513, %v5512
    %v5597 = vpack.c.bf16 %v5514, %v5514
    %v5598 = vpack.c.bf16 %v5516, %v5515
    %v5599 = vpack.c.bf16 %v5517, %v5517
    %v5600 = vpack.c.bf16 %v5519, %v5518
    %v5601 = vpack.c.bf16 %v5520, %v5520
    %v5602 = vpack.c.bf16 %v5522, %v5521
    %v5603 = vpack.c.bf16 %v5523, %v5523
    %v5604 = vpack.c.bf16 %v5525, %v5524
    %v5605 = vpack.c.bf16 %v5526, %v5526
    %v5606 = vpack.c.bf16 %v5528, %v5527
    %v5607 = vpack.c.bf16 %v5529, %v5529
    %v5608 = vpack.c.bf16 %v5531, %v5530
    %v5609 = vpack.c.bf16 %v5532, %v5532
    %v5610 = vpack.c.bf16 %v5534, %v5533
    %v5611 = vpack.c.bf16 %v5535, %v5535
    %v5612 = vpack.c.bf16 %v5537, %v5536
    %v5613 = vpack.c.bf16 %v5538, %v5538
    %v5614 = vpack.c.bf16 %v5540, %v5539
    %v5615 = vpack.c.bf16 %v5541, %v5541
    %v5616 = vpack.c.bf16 %v5543, %v5542
    %v5617 = vpack.c.bf16 %v5544, %v5544
    %v5618 = vpack.c.bf16 %v5546, %v5545
    %v5619 = vpack.c.bf16 %v5547, %v5547
    %v5620 = vpack.c.bf16 %v5549, %v5548
    %v5621 = vpack.c.bf16 %v5550, %v5550
    %v5622 = vpack.c.bf16 %v5552, %v5551
    %v5623 = vpack.c.bf16 %v5553, %v5553
    %v5624 = vpack.c.bf16 %v5555, %v5554
    %v5625 = vpack.c.bf16 %v5556, %v5556
    %v5626 = vpack.c.bf16 %v5558, %v5557
    %v5627 = vpack.c.bf16 %v5559, %v5559
    %v5628 = vpack.c.bf16 %v5561, %v5560
    %v5629 = vpack.c.bf16 %v5562, %v5562
    %v5630 = vpack.c.bf16 %v5564, %v5563
    %v5631 = vpack.c.bf16 %v5565, %v5565
    %v5632 = vpack.c.bf16 %v5567, %v5566
    %v5633 = vpack.c.bf16 %v5568, %v5568
    %v5634 = vpack.c.bf16 %v5570, %v5569
    %v5635 = vpack.c.bf16 %v5571, %v5571
    %5636 = vst [vmem:[#allocation2] sm:$0xf] 0
    %5637 = vst [vmem:[#allocation2 + $0x4] sm:$0xf] 0
    %5638 = vst [vmem:[#allocation2 + $0x8] sm:$0xf] 0
    %5639 = vst [vmem:[#allocation2 + $0xd8] sm:$0xf] 0
    %5640 = vst [vmem:[#allocation2 + $0xdc] sm:$0xf] 0
    %5641 = vst [vmem:[#allocation2 + $0xe0] sm:$0xf] 0
    %s5642 = scalar_lea.vmem [#allocation2], 204
    %5643 = vst [vmem:[%s5642] sm:$0xf] 0
    %5644 = vst [vmem:[%s5642 + $0x4] sm:$0xf] 0
    %5645 = vst [vmem:[%s5642 + $0x8] sm:$0xf] 0
    %5646 = vst [vmem:[%s5642 + $0xd8] sm:$0xf] 0
    %5647 = vst [vmem:[%s5642 + $0xdc] sm:$0xf] 0
    %5648 = vst [vmem:[%s5642 + $0xe0] sm:$0xf] 0
    %v5713 = vunpack.c.l.b16 %v5572
    %v5714 = vunpack.c.h.b16 %v5572
    %v5715 = vunpack.c.l.b16 %v5573
    %v5716 = vunpack.c.l.b16 %v5574
    %v5717 = vunpack.c.h.b16 %v5574
    %v5718 = vunpack.c.l.b16 %v5575
    %v5719 = vunpack.c.l.b16 %v5576
    %v5720 = vunpack.c.h.b16 %v5576
    %v5721 = vunpack.c.l.b16 %v5577
    %v5722 = vunpack.c.l.b16 %v5578
    %v5723 = vunpack.c.h.b16 %v5578
    %v5724 = vunpack.c.l.b16 %v5579
    %v5725 = vunpack.c.l.b16 %v5580
    %v5726 = vunpack.c.h.b16 %v5580
    %v5727 = vunpack.c.l.b16 %v5581
    %v5728 = vunpack.c.l.b16 %v5582
    %v5729 = vunpack.c.h.b16 %v5582
    %v5730 = vunpack.c.l.b16 %v5583
    %v5731 = vunpack.c.l.b16 %v5584
    %v5732 = vunpack.c.h.b16 %v5584
    %v5733 = vunpack.c.l.b16 %v5585
    %v5734 = vunpack.c.l.b16 %v5586
    %v5735 = vunpack.c.h.b16 %v5586
    %v5736 = vunpack.c.l.b16 %v5587
    %v5737 = vunpack.c.l.b16 %v5588
    %v5738 = vunpack.c.h.b16 %v5588
    %v5739 = vunpack.c.l.b16 %v5589
    %v5740 = vunpack.c.l.b16 %v5590
    %v5741 = vunpack.c.h.b16 %v5590
    %v5742 = vunpack.c.l.b16 %v5591
    %v5743 = vunpack.c.l.b16 %v5592
    %v5744 = vunpack.c.h.b16 %v5592
    %v5745 = vunpack.c.l.b16 %v5593
    %v5746 = vunpack.c.l.b16 %v5594
    %v5747 = vunpack.c.h.b16 %v5594
    %v5748 = vunpack.c.l.b16 %v5595
    %v5749 = vunpack.c.l.b16 %v5596
    %v5750 = vunpack.c.h.b16 %v5596
    %v5751 = vunpack.c.l.b16 %v5597
    %v5752 = vunpack.c.l.b16 %v5598
    %v5753 = vunpack.c.h.b16 %v5598
    %v5754 = vunpack.c.l.b16 %v5599
    %v5755 = vunpack.c.l.b16 %v5600
    %v5756 = vunpack.c.h.b16 %v5600
    %v5757 = vunpack.c.l.b16 %v5601
    %v5758 = vunpack.c.l.b16 %v5602
    %v5759 = vunpack.c.h.b16 %v5602
    %v5760 = vunpack.c.l.b16 %v5603
    %v5761 = vunpack.c.l.b16 %v5604
    %v5762 = vunpack.c.h.b16 %v5604
    %v5763 = vunpack.c.l.b16 %v5605
    %v5764 = vunpack.c.l.b16 %v5606
    %v5765 = vunpack.c.h.b16 %v5606
    %v5766 = vunpack.c.l.b16 %v5607
    %v5767 = vunpack.c.l.b16 %v5608
    %v5768 = vunpack.c.h.b16 %v5608
    %v5769 = vunpack.c.l.b16 %v5609
    %v5770 = vunpack.c.l.b16 %v5610
    %v5771 = vunpack.c.h.b16 %v5610
    %v5772 = vunpack.c.l.b16 %v5611
    %v5773 = vunpack.c.l.b16 %v5612
    %v5774 = vunpack.c.h.b16 %v5612
    %v5775 = vunpack.c.l.b16 %v5613
    %v5776 = vunpack.c.l.b16 %v5614
    %v5777 = vunpack.c.h.b16 %v5614
    %v5778 = vunpack.c.l.b16 %v5615
    %v5779 = vunpack.c.l.b16 %v5616
    %v5780 = vunpack.c.h.b16 %v5616
    %v5781 = vunpack.c.l.b16 %v5617
    %v5782 = vunpack.c.l.b16 %v5618
    %v5783 = vunpack.c.h.b16 %v5618
    %v5784 = vunpack.c.l.b16 %v5619
    %v5785 = vunpack.c.l.b16 %v5620
    %v5786 = vunpack.c.h.b16 %v5620
    %v5787 = vunpack.c.l.b16 %v5621
    %v5788 = vunpack.c.l.b16 %v5622
    %v5789 = vunpack.c.h.b16 %v5622
    %v5790 = vunpack.c.l.b16 %v5623
    %v5791 = vunpack.c.l.b16 %v5624
    %v5792 = vunpack.c.h.b16 %v5624
    %v5793 = vunpack.c.l.b16 %v5625
    %v5794 = vunpack.c.l.b16 %v5626
    %v5795 = vunpack.c.h.b16 %v5626
    %v5796 = vunpack.c.l.b16 %v5627
    %v5797 = vunpack.c.l.b16 %v5628
    %v5798 = vunpack.c.h.b16 %v5628
    %v5799 = vunpack.c.l.b16 %v5629
    %v5800 = vunpack.c.l.b16 %v5630
    %v5801 = vunpack.c.h.b16 %v5630
    %v5802 = vunpack.c.l.b16 %v5631
    %v5803 = vunpack.c.l.b16 %v5632
    %v5804 = vunpack.c.h.b16 %v5632
    %v5805 = vunpack.c.l.b16 %v5633
    %v5806 = vunpack.c.l.b16 %v5634
    %v5807 = vunpack.c.h.b16 %v5634
    %v5808 = vunpack.c.l.b16 %v5635
    %v5809 = vpack.c.b16 %v5713, %v5713
    %v5810 = vpack.c.b16 %v5714, %v5714
    %v5811 = vpack.c.b16 %v5715, %v5715
    %v5812 = vpack.c.b16 %v5716, %v5716
    %v5813 = vpack.c.b16 %v5717, %v5717
    %v5814 = vpack.c.b16 %v5718, %v5718
    %v5815 = vpack.c.b16 %v5719, %v5719
    %v5816 = vpack.c.b16 %v5720, %v5720
    %v5817 = vpack.c.b16 %v5721, %v5721
    %v5818 = vpack.c.b16 %v5722, %v5722
    %v5819 = vpack.c.b16 %v5723, %v5723
    %v5820 = vpack.c.b16 %v5724, %v5724
    %v5821 = vpack.c.b16 %v5725, %v5725
    %v5822 = vpack.c.b16 %v5726, %v5726
    %v5823 = vpack.c.b16 %v5727, %v5727
    %v5824 = vpack.c.b16 %v5728, %v5728
    %v5825 = vpack.c.b16 %v5729, %v5729
    %v5826 = vpack.c.b16 %v5730, %v5730
    %v5827 = vpack.c.b16 %v5731, %v5731
    %v5828 = vpack.c.b16 %v5732, %v5732
    %v5829 = vpack.c.b16 %v5733, %v5733
    %v5830 = vpack.c.b16 %v5734, %v5734
    %v5831 = vpack.c.b16 %v5735, %v5735
    %v5832 = vpack.c.b16 %v5736, %v5736
    %v5833 = vpack.c.b16 %v5737, %v5737
    %v5834 = vpack.c.b16 %v5738, %v5738
    %v5835 = vpack.c.b16 %v5739, %v5739
    %v5836 = vpack.c.b16 %v5740, %v5740
    %v5837 = vpack.c.b16 %v5741, %v5741
    %v5838 = vpack.c.b16 %v5742, %v5742
    %v5839 = vpack.c.b16 %v5743, %v5743
    %v5840 = vpack.c.b16 %v5744, %v5744
    %v5841 = vpack.c.b16 %v5745, %v5745
    %v5842 = vpack.c.b16 %v5746, %v5746
    %v5843 = vpack.c.b16 %v5747, %v5747
    %v5844 = vpack.c.b16 %v5748, %v5748
    %v5845 = vpack.c.b16 %v5749, %v5749
    %v5846 = vpack.c.b16 %v5750, %v5750
    %v5847 = vpack.c.b16 %v5751, %v5751
    %v5848 = vpack.c.b16 %v5752, %v5752
    %v5849 = vpack.c.b16 %v5753, %v5753
    %v5850 = vpack.c.b16 %v5754, %v5754
    %v5851 = vpack.c.b16 %v5755, %v5755
    %v5852 = vpack.c.b16 %v5756, %v5756
    %v5853 = vpack.c.b16 %v5757, %v5757
    %v5854 = vpack.c.b16 %v5758, %v5758
    %v5855 = vpack.c.b16 %v5759, %v5759
    %v5856 = vpack.c.b16 %v5760, %v5760
    %v5857 = vpack.c.b16 %v5761, %v5761
    %v5858 = vpack.c.b16 %v5762, %v5762
    %v5859 = vpack.c.b16 %v5763, %v5763
    %v5860 = vpack.c.b16 %v5764, %v5764
    %v5861 = vpack.c.b16 %v5765, %v5765
    %v5862 = vpack.c.b16 %v5766, %v5766
    %v5863 = vpack.c.b16 %v5767, %v5767
    %v5864 = vpack.c.b16 %v5768, %v5768
    %v5865 = vpack.c.b16 %v5769, %v5769
    %v5866 = vpack.c.b16 %v5770, %v5770
    %v5867 = vpack.c.b16 %v5771, %v5771
    %v5868 = vpack.c.b16 %v5772, %v5772
    %v5869 = vpack.c.b16 %v5773, %v5773
    %v5870 = vpack.c.b16 %v5774, %v5774
    %v5871 = vpack.c.b16 %v5775, %v5775
    %v5872 = vpack.c.b16 %v5776, %v5776
    %v5873 = vpack.c.b16 %v5777, %v5777
    %v5874 = vpack.c.b16 %v5778, %v5778
    %v5875 = vpack.c.b16 %v5779, %v5779
    %v5876 = vpack.c.b16 %v5780, %v5780
    %v5877 = vpack.c.b16 %v5781, %v5781
    %v5878 = vpack.c.b16 %v5782, %v5782
    %v5879 = vpack.c.b16 %v5783, %v5783
    %v5880 = vpack.c.b16 %v5784, %v5784
    %v5881 = vpack.c.b16 %v5785, %v5785
    %v5882 = vpack.c.b16 %v5786, %v5786
    %v5883 = vpack.c.b16 %v5787, %v5787
    %v5884 = vpack.c.b16 %v5788, %v5788
    %v5885 = vpack.c.b16 %v5789, %v5789
    %v5886 = vpack.c.b16 %v5790, %v5790
    %v5887 = vpack.c.b16 %v5791, %v5791
    %v5888 = vpack.c.b16 %v5792, %v5792
    %v5889 = vpack.c.b16 %v5793, %v5793
    %v5890 = vpack.c.b16 %v5794, %v5794
    %v5891 = vpack.c.b16 %v5795, %v5795
    %v5892 = vpack.c.b16 %v5796, %v5796
    %v5893 = vpack.c.b16 %v5797, %v5797
    %v5894 = vpack.c.b16 %v5798, %v5798
    %v5895 = vpack.c.b16 %v5799, %v5799
    %v5896 = vpack.c.b16 %v5800, %v5800
    %v5897 = vpack.c.b16 %v5801, %v5801
    %v5898 = vpack.c.b16 %v5802, %v5802
    %v5899 = vpack.c.b16 %v5803, %v5803
    %v5900 = vpack.c.b16 %v5804, %v5804
    %v5901 = vpack.c.b16 %v5805, %v5805
    %v5902 = vpack.c.b16 %v5806, %v5806
    %v5903 = vpack.c.b16 %v5807, %v5807
    %v5904 = vpack.c.b16 %v5808, %v5808
    %s6001 = scalar_lea.vmem [#allocation2], 12
    %6002 = vst [vmem:[%s6001] sm:$0xf] %v5809
    %6003 = vst [vmem:[%s6001 + $0x4] sm:$0xf] %v5810
    %6004 = vst [vmem:[%s6001 + $0x8] sm:$0xf] %v5811
    %6005 = vst [vmem:[%s6001 + $0xc] sm:$0xf] %v5812
    %6006 = vst [vmem:[%s6001 + $0x10] sm:$0xf] %v5813
    %6007 = vst [vmem:[%s6001 + $0x14] sm:$0xf] %v5814
    %6008 = vst [vmem:[%s6001 + $0x18] sm:$0xf] %v5815
    %6009 = vst [vmem:[%s6001 + $0x1c] sm:$0xf] %v5816
    %6010 = vst [vmem:[%s6001 + $0x20] sm:$0xf] %v5817
    %6011 = vst [vmem:[%s6001 + $0x24] sm:$0xf] %v5818
    %6012 = vst [vmem:[%s6001 + $0x28] sm:$0xf] %v5819
    %6013 = vst [vmem:[%s6001 + $0x2c] sm:$0xf] %v5820
    %6014 = vst [vmem:[%s6001 + $0x30] sm:$0xf] %v5821
    %6015 = vst [vmem:[%s6001 + $0x34] sm:$0xf] %v5822
    %6016 = vst [vmem:[%s6001 + $0x38] sm:$0xf] %v5823
    %6017 = vst [vmem:[%s6001 + $0x3c] sm:$0xf] %v5824
    %6018 = vst [vmem:[%s6001 + $0x40] sm:$0xf] %v5825
    %6019 = vst [vmem:[%s6001 + $0x44] sm:$0xf] %v5826
    %6020 = vst [vmem:[%s6001 + $0x48] sm:$0xf] %v5827
    %6021 = vst [vmem:[%s6001 + $0x4c] sm:$0xf] %v5828
    %6022 = vst [vmem:[%s6001 + $0x50] sm:$0xf] %v5829
    %6023 = vst [vmem:[%s6001 + $0x54] sm:$0xf] %v5830
    %6024 = vst [vmem:[%s6001 + $0x58] sm:$0xf] %v5831
    %6025 = vst [vmem:[%s6001 + $0x5c] sm:$0xf] %v5832
    %6026 = vst [vmem:[%s6001 + $0x60] sm:$0xf] %v5833
    %6027 = vst [vmem:[%s6001 + $0x64] sm:$0xf] %v5834
    %6028 = vst [vmem:[%s6001 + $0x68] sm:$0xf] %v5835
    %6029 = vst [vmem:[%s6001 + $0x6c] sm:$0xf] %v5836
    %6030 = vst [vmem:[%s6001 + $0x70] sm:$0xf] %v5837
    %6031 = vst [vmem:[%s6001 + $0x74] sm:$0xf] %v5838
    %6032 = vst [vmem:[%s6001 + $0x78] sm:$0xf] %v5839
    %6033 = vst [vmem:[%s6001 + $0x7c] sm:$0xf] %v5840
    %6034 = vst [vmem:[%s6001 + $0x80] sm:$0xf] %v5841
    %6035 = vst [vmem:[%s6001 + $0x84] sm:$0xf] %v5842
    %6036 = vst [vmem:[%s6001 + $0x88] sm:$0xf] %v5843
    %6037 = vst [vmem:[%s6001 + $0x8c] sm:$0xf] %v5844
    %6038 = vst [vmem:[%s6001 + $0x90] sm:$0xf] %v5845
    %6039 = vst [vmem:[%s6001 + $0x94] sm:$0xf] %v5846
    %6040 = vst [vmem:[%s6001 + $0x98] sm:$0xf] %v5847
    %6041 = vst [vmem:[%s6001 + $0x9c] sm:$0xf] %v5848
    %6042 = vst [vmem:[%s6001 + $0xa0] sm:$0xf] %v5849
    %6043 = vst [vmem:[%s6001 + $0xa4] sm:$0xf] %v5850
    %6044 = vst [vmem:[%s6001 + $0xa8] sm:$0xf] %v5851
    %6045 = vst [vmem:[%s6001 + $0xac] sm:$0xf] %v5852
    %6046 = vst [vmem:[%s6001 + $0xb0] sm:$0xf] %v5853
    %6047 = vst [vmem:[%s6001 + $0xb4] sm:$0xf] %v5854
    %6048 = vst [vmem:[%s6001 + $0xb8] sm:$0xf] %v5855
    %6049 = vst [vmem:[%s6001 + $0xbc] sm:$0xf] %v5856
    %6050 = vst [vmem:[%s6001 + $0xd8] sm:$0xf] %v5857
    %6051 = vst [vmem:[%s6001 + $0xdc] sm:$0xf] %v5858
    %6052 = vst [vmem:[%s6001 + $0xe0] sm:$0xf] %v5859
    %6053 = vst [vmem:[%s6001 + $0xe4] sm:$0xf] %v5860
    %6054 = vst [vmem:[%s6001 + $0xe8] sm:$0xf] %v5861
    %6055 = vst [vmem:[%s6001 + $0xec] sm:$0xf] %v5862
    %6056 = vst [vmem:[%s6001 + $0xf0] sm:$0xf] %v5863
    %6057 = vst [vmem:[%s6001 + $0xf4] sm:$0xf] %v5864
    %6058 = vst [vmem:[%s6001 + $0xf8] sm:$0xf] %v5865
    %6059 = vst [vmem:[%s6001 + $0xfc] sm:$0xf] %v5866
    %6060 = vst [vmem:[%s6001 + $0x100] sm:$0xf] %v5867
    %6061 = vst [vmem:[%s6001 + $0x104] sm:$0xf] %v5868
    %6062 = vst [vmem:[%s6001 + $0x108] sm:$0xf] %v5869
    %6063 = vst [vmem:[%s6001 + $0x10c] sm:$0xf] %v5870
    %6064 = vst [vmem:[%s6001 + $0x110] sm:$0xf] %v5871
    %6065 = vst [vmem:[%s6001 + $0x114] sm:$0xf] %v5872
    %6066 = vst [vmem:[%s6001 + $0x118] sm:$0xf] %v5873
    %6067 = vst [vmem:[%s6001 + $0x11c] sm:$0xf] %v5874
    %6068 = vst [vmem:[%s6001 + $0x120] sm:$0xf] %v5875
    %6069 = vst [vmem:[%s6001 + $0x124] sm:$0xf] %v5876
    %6070 = vst [vmem:[%s6001 + $0x128] sm:$0xf] %v5877
    %6071 = vst [vmem:[%s6001 + $0x12c] sm:$0xf] %v5878
    %6072 = vst [vmem:[%s6001 + $0x130] sm:$0xf] %v5879
    %6073 = vst [vmem:[%s6001 + $0x134] sm:$0xf] %v5880
    %6074 = vst [vmem:[%s6001 + $0x138] sm:$0xf] %v5881
    %6075 = vst [vmem:[%s6001 + $0x13c] sm:$0xf] %v5882
    %6076 = vst [vmem:[%s6001 + $0x140] sm:$0xf] %v5883
    %6077 = vst [vmem:[%s6001 + $0x144] sm:$0xf] %v5884
    %6078 = vst [vmem:[%s6001 + $0x148] sm:$0xf] %v5885
    %6079 = vst [vmem:[%s6001 + $0x14c] sm:$0xf] %v5886
    %6080 = vst [vmem:[%s6001 + $0x150] sm:$0xf] %v5887
    %6081 = vst [vmem:[%s6001 + $0x154] sm:$0xf] %v5888
    %6082 = vst [vmem:[%s6001 + $0x158] sm:$0xf] %v5889
    %6083 = vst [vmem:[%s6001 + $0x15c] sm:$0xf] %v5890
    %6084 = vst [vmem:[%s6001 + $0x160] sm:$0xf] %v5891
    %6085 = vst [vmem:[%s6001 + $0x164] sm:$0xf] %v5892
    %6086 = vst [vmem:[%s6001 + $0x168] sm:$0xf] %v5893
    %6087 = vst [vmem:[%s6001 + $0x16c] sm:$0xf] %v5894
    %6088 = vst [vmem:[%s6001 + $0x170] sm:$0xf] %v5895
    %6089 = vst [vmem:[%s6001 + $0x174] sm:$0xf] %v5896
    %6090 = vst [vmem:[%s6001 + $0x178] sm:$0xf] %v5897
    %6091 = vst [vmem:[%s6001 + $0x17c] sm:$0xf] %v5898
    %6092 = vst [vmem:[%s6001 + $0x180] sm:$0xf] %v5899
    %6093 = vst [vmem:[%s6001 + $0x184] sm:$0xf] %v5900
    %6094 = vst [vmem:[%s6001 + $0x188] sm:$0xf] %v5901
    %6095 = vst [vmem:[%s6001 + $0x18c] sm:$0xf] %v5902
    %6096 = vst [vmem:[%s6001 + $0x190] sm:$0xf] %v5903
    %6097 = vst [vmem:[%s6001 + $0x194] sm:$0xf] %v5904
    %v6098 = vld [vmem:[#allocation2] sm:$0xf]
    %v6099 = vld [vmem:[#allocation2 + $0x4] sm:$0xf]
    %v6100 = vld [vmem:[#allocation2 + $0x8] sm:$0xf]
    %v6101 = vld [vmem:[#allocation2 + $0xc] sm:$0xf]
    %v6102 = vld [vmem:[#allocation2 + $0x10] sm:$0xf]
    %v6103 = vld [vmem:[#allocation2 + $0x14] sm:$0xf]
    %v6104 = vld [vmem:[#allocation2 + $0x18] sm:$0xf]
    %v6105 = vld [vmem:[#allocation2 + $0x1c] sm:$0xf]
    %v6106 = vld [vmem:[#allocation2 + $0x20] sm:$0xf]
    %v6107 = vld [vmem:[#allocation2 + $0x24] sm:$0xf]
    %v6108 = vld [vmem:[#allocation2 + $0x28] sm:$0xf]
    %v6109 = vld [vmem:[#allocation2 + $0x2c] sm:$0xf]
    %v6110 = vld [vmem:[#allocation2 + $0x30] sm:$0xf]
    %v6111 = vld [vmem:[#allocation2 + $0x34] sm:$0xf]
    %v6112 = vld [vmem:[#allocation2 + $0x38] sm:$0xf]
    %v6113 = vld [vmem:[#allocation2 + $0x3c] sm:$0xf]
    %v6114 = vld [vmem:[#allocation2 + $0x40] sm:$0xf]
    %v6115 = vld [vmem:[#allocation2 + $0x44] sm:$0xf]
    %v6116 = vld [vmem:[#allocation2 + $0x48] sm:$0xf]
    %v6117 = vld [vmem:[#allocation2 + $0x4c] sm:$0xf]
    %v6118 = vld [vmem:[#allocation2 + $0x50] sm:$0xf]
    %v6119 = vld [vmem:[#allocation2 + $0x54] sm:$0xf]
    %v6120 = vld [vmem:[#allocation2 + $0x58] sm:$0xf]
    %v6121 = vld [vmem:[#allocation2 + $0x5c] sm:$0xf]
    %v6122 = vld [vmem:[#allocation2 + $0x60] sm:$0xf]
    %v6123 = vld [vmem:[#allocation2 + $0x64] sm:$0xf]
    %v6124 = vld [vmem:[#allocation2 + $0x68] sm:$0xf]
    %v6125 = vld [vmem:[#allocation2 + $0x6c] sm:$0xf]
    %v6126 = vld [vmem:[#allocation2 + $0x70] sm:$0xf]
    %v6127 = vld [vmem:[#allocation2 + $0x74] sm:$0xf]
    %v6128 = vld [vmem:[#allocation2 + $0x78] sm:$0xf]
    %v6129 = vld [vmem:[#allocation2 + $0x7c] sm:$0xf]
    %v6130 = vld [vmem:[#allocation2 + $0x80] sm:$0xf]
    %v6131 = vld [vmem:[#allocation2 + $0x84] sm:$0xf]
    %v6132 = vld [vmem:[#allocation2 + $0x88] sm:$0xf]
    %v6133 = vld [vmem:[#allocation2 + $0x8c] sm:$0xf]
    %v6134 = vld [vmem:[#allocation2 + $0x90] sm:$0xf]
    %v6135 = vld [vmem:[#allocation2 + $0x94] sm:$0xf]
    %v6136 = vld [vmem:[#allocation2 + $0x98] sm:$0xf]
    %v6137 = vld [vmem:[#allocation2 + $0x9c] sm:$0xf]
    %v6138 = vld [vmem:[#allocation2 + $0xa0] sm:$0xf]
    %v6139 = vld [vmem:[#allocation2 + $0xa4] sm:$0xf]
    %v6140 = vld [vmem:[#allocation2 + $0xa8] sm:$0xf]
    %v6141 = vld [vmem:[#allocation2 + $0xac] sm:$0xf]
    %v6142 = vld [vmem:[#allocation2 + $0xb0] sm:$0xf]
    %v6143 = vld [vmem:[#allocation2 + $0xb4] sm:$0xf]
    %v6144 = vld [vmem:[#allocation2 + $0xb8] sm:$0xf]
    %v6145 = vld [vmem:[#allocation2 + $0xbc] sm:$0xf]
    %v6146 = vld [vmem:[#allocation2 + $0xc0] sm:$0xf]
    %v6147 = vld [vmem:[#allocation2 + $0xc4] sm:$0xf]
    %v6148 = vld [vmem:[#allocation2 + $0xc8] sm:$0xf]
    %v6149 = vld [vmem:[#allocation2 + $0xcc] sm:$0xf]
    %v6150 = vld [vmem:[#allocation2 + $0xd0] sm:$0xf]
    %v6151 = vld [vmem:[#allocation2 + $0xd4] sm:$0xf]
    %v6152 = vld [vmem:[#allocation2 + $0xd8] sm:$0xf]
    %v6153 = vld [vmem:[#allocation2 + $0xdc] sm:$0xf]
    %v6154 = vld [vmem:[#allocation2 + $0xe0] sm:$0xf]
    %v6155 = vld [vmem:[#allocation2 + $0xe4] sm:$0xf]
    %v6156 = vld [vmem:[#allocation2 + $0xe8] sm:$0xf]
    %v6157 = vld [vmem:[#allocation2 + $0xec] sm:$0xf]
    %v6158 = vld [vmem:[#allocation2 + $0xf0] sm:$0xf]
    %v6159 = vld [vmem:[#allocation2 + $0xf4] sm:$0xf]
    %v6160 = vld [vmem:[#allocation2 + $0xf8] sm:$0xf]
    %v6161 = vld [vmem:[#allocation2 + $0xfc] sm:$0xf]
    %v6162 = vld [vmem:[#allocation2 + $0x100] sm:$0xf]
    %v6163 = vld [vmem:[#allocation2 + $0x104] sm:$0xf]
    %v6164 = vld [vmem:[#allocation2 + $0x108] sm:$0xf]
    %v6165 = vld [vmem:[#allocation2 + $0x10c] sm:$0xf]
    %v6166 = vld [vmem:[#allocation2 + $0x110] sm:$0xf]
    %v6167 = vld [vmem:[#allocation2 + $0x114] sm:$0xf]
    %v6168 = vld [vmem:[#allocation2 + $0x118] sm:$0xf]
    %v6169 = vld [vmem:[#allocation2 + $0x11c] sm:$0xf]
    %v6170 = vld [vmem:[#allocation2 + $0x120] sm:$0xf]
    %v6171 = vld [vmem:[#allocation2 + $0x124] sm:$0xf]
    %v6172 = vld [vmem:[#allocation2 + $0x128] sm:$0xf]
    %v6173 = vld [vmem:[#allocation2 + $0x12c] sm:$0xf]
    %v6174 = vld [vmem:[#allocation2 + $0x130] sm:$0xf]
    %v6175 = vld [vmem:[#allocation2 + $0x134] sm:$0xf]
    %v6176 = vld [vmem:[#allocation2 + $0x138] sm:$0xf]
    %v6177 = vld [vmem:[#allocation2 + $0x13c] sm:$0xf]
    %v6178 = vld [vmem:[#allocation2 + $0x140] sm:$0xf]
    %v6179 = vld [vmem:[#allocation2 + $0x144] sm:$0xf]
    %v6180 = vld [vmem:[#allocation2 + $0x148] sm:$0xf]
    %v6181 = vld [vmem:[#allocation2 + $0x14c] sm:$0xf]
    %v6182 = vld [vmem:[#allocation2 + $0x150] sm:$0xf]
    %v6183 = vld [vmem:[#allocation2 + $0x154] sm:$0xf]
    %v6184 = vld [vmem:[#allocation2 + $0x158] sm:$0xf]
    %v6185 = vld [vmem:[#allocation2 + $0x15c] sm:$0xf]
    %v6186 = vld [vmem:[#allocation2 + $0x160] sm:$0xf]
    %v6187 = vld [vmem:[#allocation2 + $0x164] sm:$0xf]
    %v6188 = vld [vmem:[#allocation2 + $0x168] sm:$0xf]
    %v6189 = vld [vmem:[#allocation2 + $0x16c] sm:$0xf]
    %v6190 = vld [vmem:[#allocation2 + $0x170] sm:$0xf]
    %v6191 = vld [vmem:[#allocation2 + $0x174] sm:$0xf]
    %v6192 = vld [vmem:[#allocation2 + $0x178] sm:$0xf]
    %v6193 = vld [vmem:[#allocation2 + $0x17c] sm:$0xf]
    %v6194 = vld [vmem:[#allocation2 + $0x180] sm:$0xf]
    %v6195 = vld [vmem:[#allocation2 + $0x184] sm:$0xf]
    %v6196 = vld [vmem:[#allocation2 + $0x188] sm:$0xf]
    %v6197 = vld [vmem:[#allocation2 + $0x18c] sm:$0xf]
    %v6198 = vld [vmem:[#allocation2 + $0x190] sm:$0xf]
    %v6199 = vld [vmem:[#allocation2 + $0x194] sm:$0xf]
    %v6200 = vld [vmem:[#allocation2 + $0x198] sm:$0xf]
    %v6201 = vld [vmem:[#allocation2 + $0x19c] sm:$0xf]
    %v6202 = vld [vmem:[#allocation2 + $0x1a0] sm:$0xf]
    %v6203 = vld [vmem:[#allocation2 + $0x1a4] sm:$0xf]
    %v6204 = vld [vmem:[#allocation2 + $0x1a8] sm:$0xf]
    %v6205 = vld [vmem:[#allocation2 + $0x1ac] sm:$0xf]
    %v6270 = vunpack.c.l.b16 %v6098
    %v6271 = vunpack.c.l.b16 %v6099
    %v6272 = vunpack.c.l.b16 %v6101
    %v6273 = vunpack.c.l.b16 %v6102
    %v6274 = vunpack.c.l.b16 %v6104
    %v6275 = vunpack.c.l.b16 %v6105
    %v6276 = vunpack.c.l.b16 %v6107
    %v6277 = vunpack.c.l.b16 %v6108
    %v6278 = vunpack.c.l.b16 %v6110
    %v6279 = vunpack.c.l.b16 %v6111
    %v6280 = vunpack.c.l.b16 %v6113
    %v6281 = vunpack.c.l.b16 %v6114
    %v6282 = vunpack.c.l.b16 %v6116
    %v6283 = vunpack.c.l.b16 %v6117
    %v6284 = vunpack.c.l.b16 %v6119
    %v6285 = vunpack.c.l.b16 %v6120
    %v6286 = vunpack.c.l.b16 %v6122
    %v6287 = vunpack.c.l.b16 %v6123
    %v6288 = vunpack.c.l.b16 %v6125
    %v6289 = vunpack.c.l.b16 %v6126
    %v6290 = vunpack.c.l.b16 %v6128
    %v6291 = vunpack.c.l.b16 %v6129
    %v6292 = vunpack.c.l.b16 %v6131
    %v6293 = vunpack.c.l.b16 %v6132
    %v6294 = vunpack.c.l.b16 %v6134
    %v6295 = vunpack.c.l.b16 %v6135
    %v6296 = vunpack.c.l.b16 %v6137
    %v6297 = vunpack.c.l.b16 %v6138
    %v6298 = vunpack.c.l.b16 %v6140
    %v6299 = vunpack.c.l.b16 %v6141
    %v6300 = vunpack.c.l.b16 %v6143
    %v6301 = vunpack.c.l.b16 %v6144
    %v6302 = vunpack.c.l.b16 %v6152
    %v6303 = vunpack.c.l.b16 %v6153
    %v6304 = vunpack.c.l.b16 %v6155
    %v6305 = vunpack.c.l.b16 %v6156
    %v6306 = vunpack.c.l.b16 %v6158
    %v6307 = vunpack.c.l.b16 %v6159
    %v6308 = vunpack.c.l.b16 %v6161
    %v6309 = vunpack.c.l.b16 %v6162
    %v6310 = vunpack.c.l.b16 %v6164
    %v6311 = vunpack.c.l.b16 %v6165
    %v6312 = vunpack.c.l.b16 %v6167
    %v6313 = vunpack.c.l.b16 %v6168
    %v6314 = vunpack.c.l.b16 %v6170
    %v6315 = vunpack.c.l.b16 %v6171
    %v6316 = vunpack.c.l.b16 %v6173
    %v6317 = vunpack.c.l.b16 %v6174
    %v6318 = vunpack.c.l.b16 %v6176
    %v6319 = vunpack.c.l.b16 %v6177
    %v6320 = vunpack.c.l.b16 %v6179
    %v6321 = vunpack.c.l.b16 %v6180
    %v6322 = vunpack.c.l.b16 %v6182
    %v6323 = vunpack.c.l.b16 %v6183
    %v6324 = vunpack.c.l.b16 %v6185
    %v6325 = vunpack.c.l.b16 %v6186
    %v6326 = vunpack.c.l.b16 %v6188
    %v6327 = vunpack.c.l.b16 %v6189
    %v6328 = vunpack.c.l.b16 %v6191
    %v6329 = vunpack.c.l.b16 %v6192
    %v6330 = vunpack.c.l.b16 %v6194
    %v6331 = vunpack.c.l.b16 %v6195
    %v6332 = vunpack.c.l.b16 %v6197
    %v6333 = vunpack.c.l.b16 %v6198
    %v6334 = vpack.c.b16 %v6271, %v6270
    %v6335 = vpack.c.b16 %v6273, %v6272
    %v6336 = vpack.c.b16 %v6275, %v6274
    %v6337 = vpack.c.b16 %v6277, %v6276
    %v6338 = vpack.c.b16 %v6279, %v6278
    %v6339 = vpack.c.b16 %v6281, %v6280
    %v6340 = vpack.c.b16 %v6283, %v6282
    %v6341 = vpack.c.b16 %v6285, %v6284
    %v6342 = vpack.c.b16 %v6287, %v6286
    %v6343 = vpack.c.b16 %v6289, %v6288
    %v6344 = vpack.c.b16 %v6291, %v6290
    %v6345 = vpack.c.b16 %v6293, %v6292
    %v6346 = vpack.c.b16 %v6295, %v6294
    %v6347 = vpack.c.b16 %v6297, %v6296
    %v6348 = vpack.c.b16 %v6299, %v6298
    %v6349 = vpack.c.b16 %v6301, %v6300
    %v6350 = vpack.c.b16 %v6303, %v6302
    %v6351 = vpack.c.b16 %v6305, %v6304
    %v6352 = vpack.c.b16 %v6307, %v6306
    %v6353 = vpack.c.b16 %v6309, %v6308
    %v6354 = vpack.c.b16 %v6311, %v6310
    %v6355 = vpack.c.b16 %v6313, %v6312
    %v6356 = vpack.c.b16 %v6315, %v6314
    %v6357 = vpack.c.b16 %v6317, %v6316
    %v6358 = vpack.c.b16 %v6319, %v6318
    %v6359 = vpack.c.b16 %v6321, %v6320
    %v6360 = vpack.c.b16 %v6323, %v6322
    %v6361 = vpack.c.b16 %v6325, %v6324
    %v6362 = vpack.c.b16 %v6327, %v6326
    %v6363 = vpack.c.b16 %v6329, %v6328
    %v6364 = vpack.c.b16 %v6331, %v6330
    %v6365 = vpack.c.b16 %v6333, %v6332
    %v6430 = vunpack.c.l.b16 %v6100
    %v6431 = vunpack.c.l.b16 %v6103
    %v6432 = vunpack.c.l.b16 %v6106
    %v6433 = vunpack.c.l.b16 %v6109
    %v6434 = vunpack.c.l.b16 %v6112
    %v6435 = vunpack.c.l.b16 %v6115
    %v6436 = vunpack.c.l.b16 %v6118
    %v6437 = vunpack.c.l.b16 %v6121
    %v6438 = vunpack.c.l.b16 %v6124
    %v6439 = vunpack.c.l.b16 %v6127
    %v6440 = vunpack.c.l.b16 %v6130
    %v6441 = vunpack.c.l.b16 %v6133
    %v6442 = vunpack.c.l.b16 %v6136
    %v6443 = vunpack.c.l.b16 %v6139
    %v6444 = vunpack.c.l.b16 %v6142
    %v6445 = vunpack.c.l.b16 %v6145
    %v6446 = vunpack.c.l.b16 %v6154
    %v6447 = vunpack.c.l.b16 %v6157
    %v6448 = vunpack.c.l.b16 %v6160
    %v6449 = vunpack.c.l.b16 %v6163
    %v6450 = vunpack.c.l.b16 %v6166
    %v6451 = vunpack.c.l.b16 %v6169
    %v6452 = vunpack.c.l.b16 %v6172
    %v6453 = vunpack.c.l.b16 %v6175
    %v6454 = vunpack.c.l.b16 %v6178
    %v6455 = vunpack.c.l.b16 %v6181
    %v6456 = vunpack.c.l.b16 %v6184
    %v6457 = vunpack.c.l.b16 %v6187
    %v6458 = vunpack.c.l.b16 %v6190
    %v6459 = vunpack.c.l.b16 %v6193
    %v6460 = vunpack.c.l.b16 %v6196
    %v6461 = vunpack.c.l.b16 %v6199
    %v6462 = vpack.c.b16 %v6430, %v6430
    %v6463 = vpack.c.b16 %v6431, %v6431
    %v6464 = vpack.c.b16 %v6432, %v6432
    %v6465 = vpack.c.b16 %v6433, %v6433
    %v6466 = vpack.c.b16 %v6434, %v6434
    %v6467 = vpack.c.b16 %v6435, %v6435
    %v6468 = vpack.c.b16 %v6436, %v6436
    %v6469 = vpack.c.b16 %v6437, %v6437
    %v6470 = vpack.c.b16 %v6438, %v6438
    %v6471 = vpack.c.b16 %v6439, %v6439
    %v6472 = vpack.c.b16 %v6440, %v6440
    %v6473 = vpack.c.b16 %v6441, %v6441
    %v6474 = vpack.c.b16 %v6442, %v6442
    %v6475 = vpack.c.b16 %v6443, %v6443
    %v6476 = vpack.c.b16 %v6444, %v6444
    %v6477 = vpack.c.b16 %v6445, %v6445
    %v6478 = vpack.c.b16 %v6446, %v6446
    %v6479 = vpack.c.b16 %v6447, %v6447
    %v6480 = vpack.c.b16 %v6448, %v6448
    %v6481 = vpack.c.b16 %v6449, %v6449
    %v6482 = vpack.c.b16 %v6450, %v6450
    %v6483 = vpack.c.b16 %v6451, %v6451
    %v6484 = vpack.c.b16 %v6452, %v6452
    %v6485 = vpack.c.b16 %v6453, %v6453
    %v6486 = vpack.c.b16 %v6454, %v6454
    %v6487 = vpack.c.b16 %v6455, %v6455
    %v6488 = vpack.c.b16 %v6456, %v6456
    %v6489 = vpack.c.b16 %v6457, %v6457
    %v6490 = vpack.c.b16 %v6458, %v6458
    %v6491 = vpack.c.b16 %v6459, %v6459
    %v6492 = vpack.c.b16 %v6460, %v6460
    %v6493 = vpack.c.b16 %v6461, %v6461
    %v6495 = vshrl.u32 %v6334, 16
    %v6497 = vshll.u32 %v6334, 16
    %v6499 = vrot.slane %v6497, 1
    %v6500 = vor.u32 %v6495, %v6499
    %v6502 = vshll.u32 %v6462, 16
    %v6504 = vrot.slane %v6502, 1
    %v6505 = vsel %vm501, %v6500, %v6504
    %v6507 = vshrl.u32 %v6335, 16
    %v6509 = vshll.u32 %v6335, 16
    %v6511 = vrot.slane %v6509, 1
    %v6512 = vor.u32 %v6507, %v6511
    %v6514 = vshll.u32 %v6463, 16
    %v6516 = vrot.slane %v6514, 1
    %v6517 = vsel %vm501, %v6512, %v6516
    %v6519 = vshrl.u32 %v6336, 16
    %v6521 = vshll.u32 %v6336, 16
    %v6523 = vrot.slane %v6521, 1
    %v6524 = vor.u32 %v6519, %v6523
    %v6526 = vshll.u32 %v6464, 16
    %v6528 = vrot.slane %v6526, 1
    %v6529 = vsel %vm501, %v6524, %v6528
    %v6531 = vshrl.u32 %v6337, 16
    %v6533 = vshll.u32 %v6337, 16
    %v6535 = vrot.slane %v6533, 1
    %v6536 = vor.u32 %v6531, %v6535
    %v6538 = vshll.u32 %v6465, 16
    %v6540 = vrot.slane %v6538, 1
    %v6541 = vsel %vm501, %v6536, %v6540
    %v6543 = vshrl.u32 %v6338, 16
    %v6545 = vshll.u32 %v6338, 16
    %v6547 = vrot.slane %v6545, 1
    %v6548 = vor.u32 %v6543, %v6547
    %v6550 = vshll.u32 %v6466, 16
    %v6552 = vrot.slane %v6550, 1
    %v6553 = vsel %vm501, %v6548, %v6552
    %v6555 = vshrl.u32 %v6339, 16
    %v6557 = vshll.u32 %v6339, 16
    %v6559 = vrot.slane %v6557, 1
    %v6560 = vor.u32 %v6555, %v6559
    %v6562 = vshll.u32 %v6467, 16
    %v6564 = vrot.slane %v6562, 1
    %v6565 = vsel %vm501, %v6560, %v6564
    %v6567 = vshrl.u32 %v6340, 16
    %v6569 = vshll.u32 %v6340, 16
    %v6571 = vrot.slane %v6569, 1
    %v6572 = vor.u32 %v6567, %v6571
    %v6574 = vshll.u32 %v6468, 16
    %v6576 = vrot.slane %v6574, 1
    %v6577 = vsel %vm501, %v6572, %v6576
    %v6579 = vshrl.u32 %v6341, 16
    %v6581 = vshll.u32 %v6341, 16
    %v6583 = vrot.slane %v6581, 1
    %v6584 = vor.u32 %v6579, %v6583
    %v6586 = vshll.u32 %v6469, 16
    %v6588 = vrot.slane %v6586, 1
    %v6589 = vsel %vm501, %v6584, %v6588
    %v6591 = vshrl.u32 %v6342, 16
    %v6593 = vshll.u32 %v6342, 16
    %v6595 = vrot.slane %v6593, 1
    %v6596 = vor.u32 %v6591, %v6595
    %v6598 = vshll.u32 %v6470, 16
    %v6600 = vrot.slane %v6598, 1
    %v6601 = vsel %vm501, %v6596, %v6600
    %v6603 = vshrl.u32 %v6343, 16
    %v6605 = vshll.u32 %v6343, 16
    %v6607 = vrot.slane %v6605, 1
    %v6608 = vor.u32 %v6603, %v6607
    %v6610 = vshll.u32 %v6471, 16
    %v6612 = vrot.slane %v6610, 1
    %v6613 = vsel %vm501, %v6608, %v6612
    %v6615 = vshrl.u32 %v6344, 16
    %v6617 = vshll.u32 %v6344, 16
    %v6619 = vrot.slane %v6617, 1
    %v6620 = vor.u32 %v6615, %v6619
    %v6622 = vshll.u32 %v6472, 16
    %v6624 = vrot.slane %v6622, 1
    %v6625 = vsel %vm501, %v6620, %v6624
    %v6627 = vshrl.u32 %v6345, 16
    %v6629 = vshll.u32 %v6345, 16
    %v6631 = vrot.slane %v6629, 1
    %v6632 = vor.u32 %v6627, %v6631
    %v6634 = vshll.u32 %v6473, 16
    %v6636 = vrot.slane %v6634, 1
    %v6637 = vsel %vm501, %v6632, %v6636
    %v6639 = vshrl.u32 %v6346, 16
    %v6641 = vshll.u32 %v6346, 16
    %v6643 = vrot.slane %v6641, 1
    %v6644 = vor.u32 %v6639, %v6643
    %v6646 = vshll.u32 %v6474, 16
    %v6648 = vrot.slane %v6646, 1
    %v6649 = vsel %vm501, %v6644, %v6648
    %v6651 = vshrl.u32 %v6347, 16
    %v6653 = vshll.u32 %v6347, 16
    %v6655 = vrot.slane %v6653, 1
    %v6656 = vor.u32 %v6651, %v6655
    %v6658 = vshll.u32 %v6475, 16
    %v6660 = vrot.slane %v6658, 1
    %v6661 = vsel %vm501, %v6656, %v6660
    %v6663 = vshrl.u32 %v6348, 16
    %v6665 = vshll.u32 %v6348, 16
    %v6667 = vrot.slane %v6665, 1
    %v6668 = vor.u32 %v6663, %v6667
    %v6670 = vshll.u32 %v6476, 16
    %v6672 = vrot.slane %v6670, 1
    %v6673 = vsel %vm501, %v6668, %v6672
    %v6675 = vshrl.u32 %v6349, 16
    %v6677 = vshll.u32 %v6349, 16
    %v6679 = vrot.slane %v6677, 1
    %v6680 = vor.u32 %v6675, %v6679
    %v6682 = vshll.u32 %v6477, 16
    %v6684 = vrot.slane %v6682, 1
    %v6685 = vsel %vm501, %v6680, %v6684
    %v6687 = vshrl.u32 %v6350, 16
    %v6689 = vshll.u32 %v6350, 16
    %v6691 = vrot.slane %v6689, 1
    %v6692 = vor.u32 %v6687, %v6691
    %v6694 = vshll.u32 %v6478, 16
    %v6696 = vrot.slane %v6694, 1
    %v6697 = vsel %vm501, %v6692, %v6696
    %v6699 = vshrl.u32 %v6351, 16
    %v6701 = vshll.u32 %v6351, 16
    %v6703 = vrot.slane %v6701, 1
    %v6704 = vor.u32 %v6699, %v6703
    %v6706 = vshll.u32 %v6479, 16
    %v6708 = vrot.slane %v6706, 1
    %v6709 = vsel %vm501, %v6704, %v6708
    %v6711 = vshrl.u32 %v6352, 16
    %v6713 = vshll.u32 %v6352, 16
    %v6715 = vrot.slane %v6713, 1
    %v6716 = vor.u32 %v6711, %v6715
    %v6718 = vshll.u32 %v6480, 16
    %v6720 = vrot.slane %v6718, 1
    %v6721 = vsel %vm501, %v6716, %v6720
    %v6723 = vshrl.u32 %v6353, 16
    %v6725 = vshll.u32 %v6353, 16
    %v6727 = vrot.slane %v6725, 1
    %v6728 = vor.u32 %v6723, %v6727
    %v6730 = vshll.u32 %v6481, 16
    %v6732 = vrot.slane %v6730, 1
    %v6733 = vsel %vm501, %v6728, %v6732
    %v6735 = vshrl.u32 %v6354, 16
    %v6737 = vshll.u32 %v6354, 16
    %v6739 = vrot.slane %v6737, 1
    %v6740 = vor.u32 %v6735, %v6739
    %v6742 = vshll.u32 %v6482, 16
    %v6744 = vrot.slane %v6742, 1
    %v6745 = vsel %vm501, %v6740, %v6744
    %v6747 = vshrl.u32 %v6355, 16
    %v6749 = vshll.u32 %v6355, 16
    %v6751 = vrot.slane %v6749, 1
    %v6752 = vor.u32 %v6747, %v6751
    %v6754 = vshll.u32 %v6483, 16
    %v6756 = vrot.slane %v6754, 1
    %v6757 = vsel %vm501, %v6752, %v6756
    %v6759 = vshrl.u32 %v6356, 16
    %v6761 = vshll.u32 %v6356, 16
    %v6763 = vrot.slane %v6761, 1
    %v6764 = vor.u32 %v6759, %v6763
    %v6766 = vshll.u32 %v6484, 16
    %v6768 = vrot.slane %v6766, 1
    %v6769 = vsel %vm501, %v6764, %v6768
    %v6771 = vshrl.u32 %v6357, 16
    %v6773 = vshll.u32 %v6357, 16
    %v6775 = vrot.slane %v6773, 1
    %v6776 = vor.u32 %v6771, %v6775
    %v6778 = vshll.u32 %v6485, 16
    %v6780 = vrot.slane %v6778, 1
    %v6781 = vsel %vm501, %v6776, %v6780
    %v6783 = vshrl.u32 %v6358, 16
    %v6785 = vshll.u32 %v6358, 16
    %v6787 = vrot.slane %v6785, 1
    %v6788 = vor.u32 %v6783, %v6787
    %v6790 = vshll.u32 %v6486, 16
    %v6792 = vrot.slane %v6790, 1
    %v6793 = vsel %vm501, %v6788, %v6792
    %v6795 = vshrl.u32 %v6359, 16
    %v6797 = vshll.u32 %v6359, 16
    %v6799 = vrot.slane %v6797, 1
    %v6800 = vor.u32 %v6795, %v6799
    %v6802 = vshll.u32 %v6487, 16
    %v6804 = vrot.slane %v6802, 1
    %v6805 = vsel %vm501, %v6800, %v6804
    %v6807 = vshrl.u32 %v6360, 16
    %v6809 = vshll.u32 %v6360, 16
    %v6811 = vrot.slane %v6809, 1
    %v6812 = vor.u32 %v6807, %v6811
    %v6814 = vshll.u32 %v6488, 16
    %v6816 = vrot.slane %v6814, 1
    %v6817 = vsel %vm501, %v6812, %v6816
    %v6819 = vshrl.u32 %v6361, 16
    %v6821 = vshll.u32 %v6361, 16
    %v6823 = vrot.slane %v6821, 1
    %v6824 = vor.u32 %v6819, %v6823
    %v6826 = vshll.u32 %v6489, 16
    %v6828 = vrot.slane %v6826, 1
    %v6829 = vsel %vm501, %v6824, %v6828
    %v6831 = vshrl.u32 %v6362, 16
    %v6833 = vshll.u32 %v6362, 16
    %v6835 = vrot.slane %v6833, 1
    %v6836 = vor.u32 %v6831, %v6835
    %v6838 = vshll.u32 %v6490, 16
    %v6840 = vrot.slane %v6838, 1
    %v6841 = vsel %vm501, %v6836, %v6840
    %v6843 = vshrl.u32 %v6363, 16
    %v6845 = vshll.u32 %v6363, 16
    %v6847 = vrot.slane %v6845, 1
    %v6848 = vor.u32 %v6843, %v6847
    %v6850 = vshll.u32 %v6491, 16
    %v6852 = vrot.slane %v6850, 1
    %v6853 = vsel %vm501, %v6848, %v6852
    %v6855 = vshrl.u32 %v6364, 16
    %v6857 = vshll.u32 %v6364, 16
    %v6859 = vrot.slane %v6857, 1
    %v6860 = vor.u32 %v6855, %v6859
    %v6862 = vshll.u32 %v6492, 16
    %v6864 = vrot.slane %v6862, 1
    %v6865 = vsel %vm501, %v6860, %v6864
    %v6867 = vshrl.u32 %v6365, 16
    %v6869 = vshll.u32 %v6365, 16
    %v6871 = vrot.slane %v6869, 1
    %v6872 = vor.u32 %v6867, %v6871
    %v6874 = vshll.u32 %v6493, 16
    %v6876 = vrot.slane %v6874, 1
    %v6877 = vsel %vm501, %v6872, %v6876
    %v6910 = vrot.slane %v6334, 1
    %v6911 = vrot.slane %v6462, 1
    %v6912 = vsel %vm982, %v6910, %v6911
    %v6913 = vrot.slane %v6335, 1
    %v6914 = vrot.slane %v6463, 1
    %v6915 = vsel %vm982, %v6913, %v6914
    %v6916 = vrot.slane %v6336, 1
    %v6917 = vrot.slane %v6464, 1
    %v6918 = vsel %vm982, %v6916, %v6917
    %v6919 = vrot.slane %v6337, 1
    %v6920 = vrot.slane %v6465, 1
    %v6921 = vsel %vm982, %v6919, %v6920
    %v6922 = vrot.slane %v6338, 1
    %v6923 = vrot.slane %v6466, 1
    %v6924 = vsel %vm982, %v6922, %v6923
    %v6925 = vrot.slane %v6339, 1
    %v6926 = vrot.slane %v6467, 1
    %v6927 = vsel %vm982, %v6925, %v6926
    %v6928 = vrot.slane %v6340, 1
    %v6929 = vrot.slane %v6468, 1
    %v6930 = vsel %vm982, %v6928, %v6929
    %v6931 = vrot.slane %v6341, 1
    %v6932 = vrot.slane %v6469, 1
    %v6933 = vsel %vm982, %v6931, %v6932
    %v6934 = vrot.slane %v6342, 1
    %v6935 = vrot.slane %v6470, 1
    %v6936 = vsel %vm982, %v6934, %v6935
    %v6937 = vrot.slane %v6343, 1
    %v6938 = vrot.slane %v6471, 1
    %v6939 = vsel %vm982, %v6937, %v6938
    %v6940 = vrot.slane %v6344, 1
    %v6941 = vrot.slane %v6472, 1
    %v6942 = vsel %vm982, %v6940, %v6941
    %v6943 = vrot.slane %v6345, 1
    %v6944 = vrot.slane %v6473, 1
    %v6945 = vsel %vm982, %v6943, %v6944
    %v6946 = vrot.slane %v6346, 1
    %v6947 = vrot.slane %v6474, 1
    %v6948 = vsel %vm982, %v6946, %v6947
    %v6949 = vrot.slane %v6347, 1
    %v6950 = vrot.slane %v6475, 1
    %v6951 = vsel %vm982, %v6949, %v6950
    %v6952 = vrot.slane %v6348, 1
    %v6953 = vrot.slane %v6476, 1
    %v6954 = vsel %vm982, %v6952, %v6953
    %v6955 = vrot.slane %v6349, 1
    %v6956 = vrot.slane %v6477, 1
    %v6957 = vsel %vm982, %v6955, %v6956
    %v6958 = vrot.slane %v6350, 1
    %v6959 = vrot.slane %v6478, 1
    %v6960 = vsel %vm982, %v6958, %v6959
    %v6961 = vrot.slane %v6351, 1
    %v6962 = vrot.slane %v6479, 1
    %v6963 = vsel %vm982, %v6961, %v6962
    %v6964 = vrot.slane %v6352, 1
    %v6965 = vrot.slane %v6480, 1
    %v6966 = vsel %vm982, %v6964, %v6965
    %v6967 = vrot.slane %v6353, 1
    %v6968 = vrot.slane %v6481, 1
    %v6969 = vsel %vm982, %v6967, %v6968
    %v6970 = vrot.slane %v6354, 1
    %v6971 = vrot.slane %v6482, 1
    %v6972 = vsel %vm982, %v6970, %v6971
    %v6973 = vrot.slane %v6355, 1
    %v6974 = vrot.slane %v6483, 1
    %v6975 = vsel %vm982, %v6973, %v6974
    %v6976 = vrot.slane %v6356, 1
    %v6977 = vrot.slane %v6484, 1
    %v6978 = vsel %vm982, %v6976, %v6977
    %v6979 = vrot.slane %v6357, 1
    %v6980 = vrot.slane %v6485, 1
    %v6981 = vsel %vm982, %v6979, %v6980
    %v6982 = vrot.slane %v6358, 1
    %v6983 = vrot.slane %v6486, 1
    %v6984 = vsel %vm982, %v6982, %v6983
    %v6985 = vrot.slane %v6359, 1
    %v6986 = vrot.slane %v6487, 1
    %v6987 = vsel %vm982, %v6985, %v6986
    %v6988 = vrot.slane %v6360, 1
    %v6989 = vrot.slane %v6488, 1
    %v6990 = vsel %vm982, %v6988, %v6989
    %v6991 = vrot.slane %v6361, 1
    %v6992 = vrot.slane %v6489, 1
    %v6993 = vsel %vm982, %v6991, %v6992
    %v6994 = vrot.slane %v6362, 1
    %v6995 = vrot.slane %v6490, 1
    %v6996 = vsel %vm982, %v6994, %v6995
    %v6997 = vrot.slane %v6363, 1
    %v6998 = vrot.slane %v6491, 1
    %v6999 = vsel %vm982, %v6997, %v6998
    %v7000 = vrot.slane %v6364, 1
    %v7001 = vrot.slane %v6492, 1
    %v7002 = vsel %vm982, %v7000, %v7001
    %v7003 = vrot.slane %v6365, 1
    %v7004 = vrot.slane %v6493, 1
    %v7005 = vsel %vm982, %v7003, %v7004
    %v7038 = vld [vmem:[#allocation3] sm:$0xf]
    %v7039 = vld [vmem:[#allocation3 + $0x4] sm:$0xf]
    %v7040 = vld [vmem:[#allocation3 + $0x8] sm:$0xf]
    %v7041 = vld [vmem:[#allocation3 + $0xc] sm:$0xf]
    %v7042 = vld [vmem:[#allocation3 + $0x10] sm:$0xf]
    %v7043 = vld [vmem:[#allocation3 + $0x14] sm:$0xf]
    %v7044 = vld [vmem:[#allocation3 + $0x18] sm:$0xf]
    %v7045 = vld [vmem:[#allocation3 + $0x1c] sm:$0xf]
    %v7046 = vld [vmem:[#allocation3 + $0x20] sm:$0xf]
    %v7047 = vld [vmem:[#allocation3 + $0x24] sm:$0xf]
    %v7048 = vld [vmem:[#allocation3 + $0x28] sm:$0xf]
    %v7049 = vld [vmem:[#allocation3 + $0x2c] sm:$0xf]
    %v7050 = vld [vmem:[#allocation3 + $0x30] sm:$0xf]
    %v7051 = vld [vmem:[#allocation3 + $0x34] sm:$0xf]
    %v7052 = vld [vmem:[#allocation3 + $0x38] sm:$0xf]
    %v7053 = vld [vmem:[#allocation3 + $0x3c] sm:$0xf]
    %v7054 = vld [vmem:[#allocation3 + $0x40] sm:$0xf]
    %v7055 = vld [vmem:[#allocation3 + $0x44] sm:$0xf]
    %v7056 = vld [vmem:[#allocation3 + $0x48] sm:$0xf]
    %v7057 = vld [vmem:[#allocation3 + $0x4c] sm:$0xf]
    %v7058 = vld [vmem:[#allocation3 + $0x50] sm:$0xf]
    %v7059 = vld [vmem:[#allocation3 + $0x54] sm:$0xf]
    %v7060 = vld [vmem:[#allocation3 + $0x58] sm:$0xf]
    %v7061 = vld [vmem:[#allocation3 + $0x5c] sm:$0xf]
    %v7062 = vld [vmem:[#allocation3 + $0x60] sm:$0xf]
    %v7063 = vld [vmem:[#allocation3 + $0x64] sm:$0xf]
    %v7064 = vld [vmem:[#allocation3 + $0x68] sm:$0xf]
    %v7065 = vld [vmem:[#allocation3 + $0x6c] sm:$0xf]
    %v7066 = vld [vmem:[#allocation3 + $0x70] sm:$0xf]
    %v7067 = vld [vmem:[#allocation3 + $0x74] sm:$0xf]
    %v7068 = vld [vmem:[#allocation3 + $0x78] sm:$0xf]
    %v7069 = vld [vmem:[#allocation3 + $0x7c] sm:$0xf]
    %v7070 = vld [vmem:[#allocation3 + $0x80] sm:$0xf]
    %v7071 = vld [vmem:[#allocation3 + $0x84] sm:$0xf]
    %v7072 = vld [vmem:[#allocation3 + $0x88] sm:$0xf]
    %v7073 = vld [vmem:[#allocation3 + $0x8c] sm:$0xf]
    %v7074 = vld [vmem:[#allocation3 + $0x90] sm:$0xf]
    %v7075 = vld [vmem:[#allocation3 + $0x94] sm:$0xf]
    %v7076 = vld [vmem:[#allocation3 + $0x98] sm:$0xf]
    %v7077 = vld [vmem:[#allocation3 + $0x9c] sm:$0xf]
    %v7078 = vld [vmem:[#allocation3 + $0xa0] sm:$0xf]
    %v7079 = vld [vmem:[#allocation3 + $0xa4] sm:$0xf]
    %v7080 = vld [vmem:[#allocation3 + $0xa8] sm:$0xf]
    %v7081 = vld [vmem:[#allocation3 + $0xac] sm:$0xf]
    %v7082 = vld [vmem:[#allocation3 + $0xb0] sm:$0xf]
    %v7083 = vld [vmem:[#allocation3 + $0xb4] sm:$0xf]
    %v7084 = vld [vmem:[#allocation3 + $0xb8] sm:$0xf]
    %v7085 = vld [vmem:[#allocation3 + $0xbc] sm:$0xf]
    %v7090 = vunpack.c.l.b16 %v6146
    %v7091 = vunpack.c.l.b16 %v6147
    %v7092 = vunpack.c.l.b16 %v6200
    %v7093 = vunpack.c.l.b16 %v6201
    %v7094 = vpack.c.b16 %v7091, %v7090
    %v7095 = vpack.c.b16 %v7093, %v7092
    %v7100 = vunpack.c.l.b16 %v6148
    %v7101 = vunpack.c.l.b16 %v6202
    %v7102 = vpack.c.b16 %v7100, %v7100
    %v7103 = vpack.c.b16 %v7101, %v7101
    %v7105 = vshrl.u32 %v7094, 16
    %v7107 = vshll.u32 %v7094, 16
    %v7109 = vrot.slane %v7107, 1
    %v7110 = vor.u32 %v7105, %v7109
    %v7112 = vshll.u32 %v7102, 16
    %v7114 = vrot.slane %v7112, 1
    %v7115 = vsel %vm501, %v7110, %v7114
    %v7117 = vshrl.u32 %v7095, 16
    %v7119 = vshll.u32 %v7095, 16
    %v7121 = vrot.slane %v7119, 1
    %v7122 = vor.u32 %v7117, %v7121
    %v7124 = vshll.u32 %v7103, 16
    %v7126 = vrot.slane %v7124, 1
    %v7127 = vsel %vm501, %v7122, %v7126
    %v7130 = vrot.slane %v7094, 1
    %v7131 = vrot.slane %v7102, 1
    %v7132 = vsel %vm982, %v7130, %v7131
    %v7133 = vrot.slane %v7095, 1
    %v7134 = vrot.slane %v7103, 1
    %v7135 = vsel %vm982, %v7133, %v7134
    %s7138 = scalar_lea.vmem [#allocation3], 192
    %v7139 = vld [vmem:[%s7138] sm:$0xf]
    %v7140 = vld [vmem:[%s7138 + $0x4] sm:$0xf]
    %v7141 = vld [vmem:[%s7138 + $0x8] sm:$0xf]
    %v7142 = vld [vmem:[%s7138 + $0xc] sm:$0xf]
    %v7143 = vld [vmem:[%s7138 + $0x10] sm:$0xf]
    %v7144 = vld [vmem:[%s7138 + $0x14] sm:$0xf]
    %v7145 = vld [vmem:[%s7138 + $0x18] sm:$0xf]
    %v7146 = vld [vmem:[%s7138 + $0x1c] sm:$0xf]
    %v7147 = vld [vmem:[%s7138 + $0x20] sm:$0xf]
    %v7148 = vld [vmem:[%s7138 + $0x24] sm:$0xf]
    %v7149 = vld [vmem:[%s7138 + $0x28] sm:$0xf]
    %v7150 = vld [vmem:[%s7138 + $0x2c] sm:$0xf]
    %v7151 = vld [vmem:[%s7138 + $0x30] sm:$0xf]
    %v7152 = vld [vmem:[%s7138 + $0x34] sm:$0xf]
    %v7153 = vld [vmem:[%s7138 + $0x38] sm:$0xf]
    %v7154 = vld [vmem:[%s7138 + $0x3c] sm:$0xf]
    %v7155 = vld [vmem:[%s7138 + $0x40] sm:$0xf]
    %v7156 = vld [vmem:[%s7138 + $0x44] sm:$0xf]
    %v7157 = vld [vmem:[%s7138 + $0x48] sm:$0xf]
    %v7158 = vld [vmem:[%s7138 + $0x4c] sm:$0xf]
    %v7159 = vld [vmem:[%s7138 + $0x50] sm:$0xf]
    %v7160 = vld [vmem:[%s7138 + $0x54] sm:$0xf]
    %v7161 = vld [vmem:[%s7138 + $0x58] sm:$0xf]
    %v7162 = vld [vmem:[%s7138 + $0x5c] sm:$0xf]
    %v7163 = vld [vmem:[%s7138 + $0x60] sm:$0xf]
    %v7164 = vld [vmem:[%s7138 + $0x64] sm:$0xf]
    %v7165 = vld [vmem:[%s7138 + $0x68] sm:$0xf]
    %v7166 = vld [vmem:[%s7138 + $0x6c] sm:$0xf]
    %v7167 = vld [vmem:[%s7138 + $0x70] sm:$0xf]
    %v7168 = vld [vmem:[%s7138 + $0x74] sm:$0xf]
    %v7169 = vld [vmem:[%s7138 + $0x78] sm:$0xf]
    %v7170 = vld [vmem:[%s7138 + $0x7c] sm:$0xf]
    %v7171 = vld [vmem:[%s7138 + $0x80] sm:$0xf]
    %v7172 = vld [vmem:[%s7138 + $0x84] sm:$0xf]
    %v7173 = vld [vmem:[%s7138 + $0x88] sm:$0xf]
    %v7174 = vld [vmem:[%s7138 + $0x8c] sm:$0xf]
    %v7175 = vld [vmem:[%s7138 + $0x90] sm:$0xf]
    %v7176 = vld [vmem:[%s7138 + $0x94] sm:$0xf]
    %v7177 = vld [vmem:[%s7138 + $0x98] sm:$0xf]
    %v7178 = vld [vmem:[%s7138 + $0x9c] sm:$0xf]
    %v7179 = vld [vmem:[%s7138 + $0xa0] sm:$0xf]
    %v7180 = vld [vmem:[%s7138 + $0xa4] sm:$0xf]
    %v7181 = vld [vmem:[%s7138 + $0xa8] sm:$0xf]
    %v7182 = vld [vmem:[%s7138 + $0xac] sm:$0xf]
    %v7183 = vld [vmem:[%s7138 + $0xb0] sm:$0xf]
    %v7184 = vld [vmem:[%s7138 + $0xb4] sm:$0xf]
    %v7185 = vld [vmem:[%s7138 + $0xb8] sm:$0xf]
    %v7186 = vld [vmem:[%s7138 + $0xbc] sm:$0xf]
    %v7235 = vunpack.c.l.b16 %v7139
    %v7236 = vunpack.c.l.b16 %v7140
    %v7237 = vunpack.c.l.b16 %v7141
    %v7238 = vunpack.c.l.b16 %v7142
    %v7239 = vunpack.c.l.b16 %v7143
    %v7240 = vunpack.c.l.b16 %v7144
    %v7241 = vunpack.c.l.b16 %v7145
    %v7242 = vunpack.c.l.b16 %v7146
    %v7243 = vunpack.c.l.b16 %v7147
    %v7244 = vunpack.c.l.b16 %v7148
    %v7245 = vunpack.c.l.b16 %v7149
    %v7246 = vunpack.c.l.b16 %v7150
    %v7247 = vunpack.c.l.b16 %v7151
    %v7248 = vunpack.c.l.b16 %v7152
    %v7249 = vunpack.c.l.b16 %v7153
    %v7250 = vunpack.c.l.b16 %v7154
    %v7251 = vunpack.c.l.b16 %v7155
    %v7252 = vunpack.c.l.b16 %v7156
    %v7253 = vunpack.c.l.b16 %v7157
    %v7254 = vunpack.c.l.b16 %v7158
    %v7255 = vunpack.c.l.b16 %v7159
    %v7256 = vunpack.c.l.b16 %v7160
    %v7257 = vunpack.c.l.b16 %v7161
    %v7258 = vunpack.c.l.b16 %v7162
    %v7259 = vunpack.c.l.b16 %v7163
    %v7260 = vunpack.c.l.b16 %v7164
    %v7261 = vunpack.c.l.b16 %v7165
    %v7262 = vunpack.c.l.b16 %v7166
    %v7263 = vunpack.c.l.b16 %v7167
    %v7264 = vunpack.c.l.b16 %v7168
    %v7265 = vunpack.c.l.b16 %v7169
    %v7266 = vunpack.c.l.b16 %v7170
    %v7267 = vunpack.c.l.b16 %v7171
    %v7268 = vunpack.c.l.b16 %v7172
    %v7269 = vunpack.c.l.b16 %v7173
    %v7270 = vunpack.c.l.b16 %v7174
    %v7271 = vunpack.c.l.b16 %v7175
    %v7272 = vunpack.c.l.b16 %v7176
    %v7273 = vunpack.c.l.b16 %v7177
    %v7274 = vunpack.c.l.b16 %v7178
    %v7275 = vunpack.c.l.b16 %v7179
    %v7276 = vunpack.c.l.b16 %v7180
    %v7277 = vunpack.c.l.b16 %v7181
    %v7278 = vunpack.c.l.b16 %v7182
    %v7279 = vunpack.c.l.b16 %v7183
    %v7280 = vunpack.c.l.b16 %v7184
    %v7281 = vunpack.c.l.b16 %v7185
    %v7282 = vunpack.c.l.b16 %v7186
    %v7283 = vpack.c.b16 %v7236, %v7235
    %v7284 = vpack.c.b16 %v7238, %v7237
    %v7285 = vpack.c.b16 %v7240, %v7239
    %v7286 = vpack.c.b16 %v7242, %v7241
    %v7287 = vpack.c.b16 %v7244, %v7243
    %v7288 = vpack.c.b16 %v7246, %v7245
    %v7289 = vpack.c.b16 %v7248, %v7247
    %v7290 = vpack.c.b16 %v7250, %v7249
    %v7291 = vpack.c.b16 %v7252, %v7251
    %v7292 = vpack.c.b16 %v7254, %v7253
    %v7293 = vpack.c.b16 %v7256, %v7255
    %v7294 = vpack.c.b16 %v7258, %v7257
    %v7295 = vpack.c.b16 %v7260, %v7259
    %v7296 = vpack.c.b16 %v7262, %v7261
    %v7297 = vpack.c.b16 %v7264, %v7263
    %v7298 = vpack.c.b16 %v7266, %v7265
    %v7299 = vpack.c.b16 %v7268, %v7267
    %v7300 = vpack.c.b16 %v7270, %v7269
    %v7301 = vpack.c.b16 %v7272, %v7271
    %v7302 = vpack.c.b16 %v7274, %v7273
    %v7303 = vpack.c.b16 %v7276, %v7275
    %v7304 = vpack.c.b16 %v7278, %v7277
    %v7305 = vpack.c.b16 %v7280, %v7279
    %v7306 = vpack.c.b16 %v7282, %v7281
    %7331 = vmatprep.subr.bf16.mxu0 0
    %7332 = vmatpush1.bf16.msra.mxu0 %v7283
    %7333 = vmatprep.subr.bf16.mxu0 0
    %7334 = vmatpush1.bf16.msra.mxu0 %v7284
    %7335 = vmatprep.subr.bf16.mxu0 0
    %7336 = vmatpush1.bf16.msra.mxu0 %v7285
    %7337 = vmatprep.subr.bf16.mxu0 0
    %7338 = vmatpush1.bf16.msra.mxu0 %v7286
    %7339 = vmatprep.subr.bf16.mxu0 0
    %7340 = vmatpush1.bf16.msra.mxu0 %v7287
    %7341 = vmatprep.subr.bf16.mxu0 0
    %7342 = vmatpush1.bf16.msra.mxu0 %v7288
    %7343 = vmatprep.subr.bf16.mxu0 0
    %7344 = vmatpush1.bf16.msra.mxu0 %v7289
    %7345 = vmatprep.subr.bf16.mxu0 0
    %7346 = vmatpush1.bf16.msra.mxu0 %v7290
    %7347 = vmatprep.subr.bf16.mxu0 0
    %7348 = vmatpush1.bf16.msra.mxu0 %v7291
    %7349 = vmatprep.subr.bf16.mxu0 0
    %7350 = vmatpush1.bf16.msra.mxu0 %v7292
    %7351 = vmatprep.subr.bf16.mxu0 0
    %7352 = vmatpush1.bf16.msra.mxu0 %v7293
    %7353 = vmatprep.subr.bf16.mxu0 0
    %7354 = vmatpush1.bf16.msra.mxu0 %v7294
    %7355 = vmatprep.subr.bf16.mxu0 0
    %7356 = vmatpush1.bf16.msra.mxu0 %v7295
    %7357 = vmatprep.subr.bf16.mxu0 0
    %7358 = vmatpush1.bf16.msra.mxu0 %v7296
    %7359 = vmatprep.subr.bf16.mxu0 0
    %7360 = vmatpush1.bf16.msra.mxu0 %v7297
    %7361 = vmatprep.subr.bf16.mxu0 0
    %7362 = vmatpush1.bf16.msra.mxu0 %v7298
    %7363 = vmatprep.mubr.bf16.mxu0 %v6517
    %7364 = vmatmul.mubr.bf16.gmra.mrb[0].mxu0 %v6335
    %v7365 = vpop.f32.mrb[0].mxu0
    %v7366 = vadd.f32 0.0, %v7365
    %v7367 = vpop.f32.mrb[0].mxu0
    %v7368 = vpop.f32.mrb[0].mxu0
    %v7369 = vadd.f32 0.0, %v7368
    %v7370 = vpop.f32.mrb[0].mxu0
    %7371 = vmatprep.mubr.bf16.mxu0 %v6529
    %7372 = vmatmul.mubr.bf16.gmra.mrb[0].mxu0 %v6336
    %v7373 = vpop.f32.mrb[0].mxu0
    %v7374 = vadd.f32 0.0, %v7373
    %v7375 = vpop.f32.mrb[0].mxu0
    %v7376 = vpop.f32.mrb[0].mxu0
    %v7377 = vadd.f32 0.0, %v7376
    %v7378 = vpop.f32.mrb[0].mxu0
    %7379 = vmatprep.mubr.bf16.mxu0 %v6541
    %7380 = vmatmul.mubr.bf16.gmra.mrb[0].mxu0 %v6337
    %v7381 = vpop.f32.mrb[0].mxu0
    %v7382 = vadd.f32 0.0, %v7381
    %v7383 = vpop.f32.mrb[0].mxu0
    %v7384 = vpop.f32.mrb[0].mxu0
    %v7385 = vadd.f32 0.0, %v7384
    %v7386 = vpop.f32.mrb[0].mxu0
    %7387 = vmatprep.mubr.bf16.mxu0 %v6553
    %7388 = vmatmul.mubr.bf16.gmra.mrb[0].mxu0 %v6338
    %v7389 = vpop.f32.mrb[0].mxu0
    %v7390 = vadd.f32 0.0, %v7389
    %v7391 = vpop.f32.mrb[0].mxu0
    %v7392 = vpop.f32.mrb[0].mxu0
    %v7393 = vadd.f32 0.0, %v7392
    %v7394 = vpop.f32.mrb[0].mxu0
    %7395 = vmatprep.mubr.bf16.mxu0 %v6565
    %7396 = vmatmul.mubr.bf16.gmra.mrb[0].mxu0 %v6339
    %v7397 = vpop.f32.mrb[0].mxu0
    %v7398 = vadd.f32 0.0, %v7397
    %v7399 = vpop.f32.mrb[0].mxu0
    %v7400 = vpop.f32.mrb[0].mxu0
    %v7401 = vadd.f32 0.0, %v7400
    %v7402 = vpop.f32.mrb[0].mxu0
    %7403 = vmatprep.mubr.bf16.mxu0 %v6577
    %7404 = vmatmul.mubr.bf16.gmra.mrb[0].mxu0 %v6340
    %v7405 = vpop.f32.mrb[0].mxu0
    %v7406 = vadd.f32 0.0, %v7405
    %v7407 = vpop.f32.mrb[0].mxu0
    %v7408 = vpop.f32.mrb[0].mxu0
    %v7409 = vadd.f32 0.0, %v7408
    %v7410 = vpop.f32.mrb[0].mxu0
    %7411 = vmatprep.mubr.bf16.mxu0 %v6589
    %7412 = vmatmul.mubr.bf16.gmra.mrb[0].mxu0 %v6341
    %v7413 = vpop.f32.mrb[0].mxu0
    %v7414 = vadd.f32 0.0, %v7413
    %v7415 = vpop.f32.mrb[0].mxu0
    %v7416 = vpop.f32.mrb[0].mxu0
    %v7417 = vadd.f32 0.0, %v7416
    %v7418 = vpop.f32.mrb[0].mxu0
    %7419 = vmatprep.mubr.bf16.mxu0 %v6601
    %7420 = vmatmul.mubr.bf16.gmra.mrb[0].mxu0 %v6342
    %v7421 = vpop.f32.mrb[0].mxu0
    %v7422 = vadd.f32 0.0, %v7421
    %v7423 = vpop.f32.mrb[0].mxu0
    %v7424 = vpop.f32.mrb[0].mxu0
    %v7425 = vadd.f32 0.0, %v7424
    %v7426 = vpop.f32.mrb[0].mxu0
    %7427 = vmatprep.mubr.bf16.mxu0 %v6613
    %7428 = vmatmul.mubr.bf16.gmra.mrb[0].mxu0 %v6343
    %v7429 = vpop.f32.mrb[0].mxu0
    %v7430 = vadd.f32 0.0, %v7429
    %v7431 = vpop.f32.mrb[0].mxu0
    %v7432 = vpop.f32.mrb[0].mxu0
    %v7433 = vadd.f32 0.0, %v7432
    %v7434 = vpop.f32.mrb[0].mxu0
    %7435 = vmatprep.mubr.bf16.mxu0 %v6625
    %7436 = vmatmul.mubr.bf16.gmra.mrb[0].mxu0 %v6344
    %v7437 = vpop.f32.mrb[0].mxu0
    %v7438 = vadd.f32 0.0, %v7437
    %v7439 = vpop.f32.mrb[0].mxu0
    %v7440 = vpop.f32.mrb[0].mxu0
    %v7441 = vadd.f32 0.0, %v7440
    %v7442 = vpop.f32.mrb[0].mxu0
    %7443 = vmatprep.mubr.bf16.mxu0 %v6637
    %7444 = vmatmul.mubr.bf16.gmra.mrb[0].mxu0 %v6345
    %v7445 = vpop.f32.mrb[0].mxu0
    %v7446 = vadd.f32 0.0, %v7445
    %v7447 = vpop.f32.mrb[0].mxu0
    %v7448 = vpop.f32.mrb[0].mxu0
    %v7449 = vadd.f32 0.0, %v7448
    %v7450 = vpop.f32.mrb[0].mxu0
    %7451 = vmatprep.mubr.bf16.mxu0 %v6649
    %7452 = vmatmul.mubr.bf16.gmra.mrb[0].mxu0 %v6346
    %v7453 = vpop.f32.mrb[0].mxu0
    %v7454 = vadd.f32 0.0, %v7453
    %v7455 = vpop.f32.mrb[0].mxu0
    %v7456 = vpop.f32.mrb[0].mxu0
    %v7457 = vadd.f32 0.0, %v7456
    %v7458 = vpop.f32.mrb[0].mxu0
    %7459 = vmatprep.mubr.bf16.mxu0 %v6661
    %7460 = vmatmul.mubr.bf16.gmra.mrb[0].mxu0 %v6347
    %v7461 = vpop.f32.mrb[0].mxu0
    %v7462 = vadd.f32 0.0, %v7461
    %v7463 = vpop.f32.mrb[0].mxu0
    %v7464 = vpop.f32.mrb[0].mxu0
    %v7465 = vadd.f32 0.0, %v7464
    %v7466 = vpop.f32.mrb[0].mxu0
    %7467 = vmatprep.mubr.bf16.mxu0 %v6673
    %7468 = vmatmul.mubr.bf16.gmra.mrb[0].mxu0 %v6348
    %v7469 = vpop.f32.mrb[0].mxu0
    %v7470 = vadd.f32 0.0, %v7469
    %v7471 = vpop.f32.mrb[0].mxu0
    %v7472 = vpop.f32.mrb[0].mxu0
    %v7473 = vadd.f32 0.0, %v7472
    %v7474 = vpop.f32.mrb[0].mxu0
    %7475 = vmatprep.mubr.bf16.mxu0 %v6685
    %7476 = vmatmul.mubr.bf16.gmra.mrb[0].mxu0 %v6349
    %v7477 = vpop.f32.mrb[0].mxu0
    %v7478 = vadd.f32 0.0, %v7477
    %v7479 = vpop.f32.mrb[0].mxu0
    %v7480 = vpop.f32.mrb[0].mxu0
    %v7481 = vadd.f32 0.0, %v7480
    %v7482 = vpop.f32.mrb[0].mxu0
    %7483 = vmatprep.mubr.bf16.mxu0 %v7115
    %7484 = vmatmul.mubr.bf16.gmra.mrb[0].mxu0 %v7094
    %v7485 = vpop.f32.mrb[0].mxu0
    %v7486 = vadd.f32 0.0, %v7485
    %v7487 = vpop.f32.mrb[0].mxu0
    %v7488 = vpop.f32.mrb[0].mxu0
    %v7489 = vadd.f32 0.0, %v7488
    %v7490 = vpop.f32.mrb[0].mxu0
    %7491 = vmatprep.mubr.bf16.mxu0 %v6709
    %7492 = vmatmul.mubr.bf16.gmra.mrb[0].mxu0 %v6351
    %v7493 = vpop.f32.mrb[0].mxu0
    %v7494 = vadd.f32 0.0, %v7493
    %v7495 = vpop.f32.mrb[0].mxu0
    %v7496 = vpop.f32.mrb[0].mxu0
    %v7497 = vadd.f32 0.0, %v7496
    %v7498 = vpop.f32.mrb[0].mxu0
    %7499 = vmatprep.mubr.bf16.mxu0 %v6721
    %7500 = vmatmul.mubr.bf16.gmra.mrb[0].mxu0 %v6352
    %v7501 = vpop.f32.mrb[0].mxu0
    %v7502 = vadd.f32 0.0, %v7501
    %v7503 = vpop.f32.mrb[0].mxu0
    %v7504 = vpop.f32.mrb[0].mxu0
    %v7505 = vadd.f32 0.0, %v7504
    %v7506 = vpop.f32.mrb[0].mxu0
    %7507 = vmatprep.mubr.bf16.mxu0 %v6733
    %7508 = vmatmul.mubr.bf16.gmra.mrb[0].mxu0 %v6353
    %v7509 = vpop.f32.mrb[0].mxu0
    %v7510 = vadd.f32 0.0, %v7509
    %v7511 = vpop.f32.mrb[0].mxu0
    %v7512 = vpop.f32.mrb[0].mxu0
    %v7513 = vadd.f32 0.0, %v7512
    %v7514 = vpop.f32.mrb[0].mxu0
    %7515 = vmatprep.mubr.bf16.mxu0 %v6745
    %7516 = vmatmul.mubr.bf16.gmra.mrb[0].mxu0 %v6354
    %v7517 = vpop.f32.mrb[0].mxu0
    %v7518 = vadd.f32 0.0, %v7517
    %v7519 = vpop.f32.mrb[0].mxu0
    %v7520 = vpop.f32.mrb[0].mxu0
    %v7521 = vadd.f32 0.0, %v7520
    %v7522 = vpop.f32.mrb[0].mxu0
    %7523 = vmatprep.mubr.bf16.mxu0 %v6757
    %7524 = vmatmul.mubr.bf16.gmra.mrb[0].mxu0 %v6355
    %v7525 = vpop.f32.mrb[0].mxu0
    %v7526 = vadd.f32 0.0, %v7525
    %v7527 = vpop.f32.mrb[0].mxu0
    %v7528 = vpop.f32.mrb[0].mxu0
    %v7529 = vadd.f32 0.0, %v7528
    %v7530 = vpop.f32.mrb[0].mxu0
    %7531 = vmatprep.mubr.bf16.mxu0 %v6769
    %7532 = vmatmul.mubr.bf16.gmra.mrb[0].mxu0 %v6356
    %v7533 = vpop.f32.mrb[0].mxu0
    %v7534 = vadd.f32 0.0, %v7533
    %v7535 = vpop.f32.mrb[0].mxu0
    %v7536 = vpop.f32.mrb[0].mxu0
    %v7537 = vadd.f32 0.0, %v7536
    %v7538 = vpop.f32.mrb[0].mxu0
    %7539 = vmatprep.mubr.bf16.mxu0 %v6781
    %7540 = vmatmul.mubr.bf16.gmra.mrb[0].mxu0 %v6357
    %v7541 = vpop.f32.mrb[0].mxu0
    %v7542 = vadd.f32 0.0, %v7541
    %v7543 = vpop.f32.mrb[0].mxu0
    %v7544 = vpop.f32.mrb[0].mxu0
    %v7545 = vadd.f32 0.0, %v7544
    %v7546 = vpop.f32.mrb[0].mxu0
    %7547 = vmatprep.mubr.bf16.mxu0 %v6793
    %7548 = vmatmul.mubr.bf16.gmra.mrb[0].mxu0 %v6358
    %v7549 = vpop.f32.mrb[0].mxu0
    %v7550 = vadd.f32 0.0, %v7549
    %v7551 = vpop.f32.mrb[0].mxu0
    %v7552 = vpop.f32.mrb[0].mxu0
    %v7553 = vadd.f32 0.0, %v7552
    %v7554 = vpop.f32.mrb[0].mxu0
    %7555 = vmatprep.mubr.bf16.mxu0 %v6805
    %7556 = vmatmul.mubr.bf16.gmra.mrb[0].mxu0 %v6359
    %v7557 = vpop.f32.mrb[0].mxu0
    %v7558 = vadd.f32 0.0, %v7557
    %v7559 = vpop.f32.mrb[0].mxu0
    %v7560 = vpop.f32.mrb[0].mxu0
    %v7561 = vadd.f32 0.0, %v7560
    %v7562 = vpop.f32.mrb[0].mxu0
    %7563 = vmatprep.mubr.bf16.mxu0 %v6817
    %7564 = vmatmul.mubr.bf16.gmra.mrb[0].mxu0 %v6360
    %v7565 = vpop.f32.mrb[0].mxu0
    %v7566 = vadd.f32 0.0, %v7565
    %v7567 = vpop.f32.mrb[0].mxu0
    %v7568 = vpop.f32.mrb[0].mxu0
    %v7569 = vadd.f32 0.0, %v7568
    %v7570 = vpop.f32.mrb[0].mxu0
    %7571 = vmatprep.mubr.bf16.mxu0 %v6829
    %7572 = vmatmul.mubr.bf16.gmra.mrb[0].mxu0 %v6361
    %v7573 = vpop.f32.mrb[0].mxu0
    %v7574 = vadd.f32 0.0, %v7573
    %v7575 = vpop.f32.mrb[0].mxu0
    %v7576 = vpop.f32.mrb[0].mxu0
    %v7577 = vadd.f32 0.0, %v7576
    %v7578 = vpop.f32.mrb[0].mxu0
    %7579 = vmatprep.mubr.bf16.mxu0 %v6841
    %7580 = vmatmul.mubr.bf16.gmra.mrb[0].mxu0 %v6362
    %v7581 = vpop.f32.mrb[0].mxu0
    %v7582 = vadd.f32 0.0, %v7581
    %v7583 = vpop.f32.mrb[0].mxu0
    %v7584 = vpop.f32.mrb[0].mxu0
    %v7585 = vadd.f32 0.0, %v7584
    %v7586 = vpop.f32.mrb[0].mxu0
    %7587 = vmatprep.mubr.bf16.mxu0 %v6853
    %7588 = vmatmul.mubr.bf16.gmra.mrb[0].mxu0 %v6363
    %v7589 = vpop.f32.mrb[0].mxu0
    %v7590 = vadd.f32 0.0, %v7589
    %v7591 = vpop.f32.mrb[0].mxu0
    %v7592 = vpop.f32.mrb[0].mxu0
    %v7593 = vadd.f32 0.0, %v7592
    %v7594 = vpop.f32.mrb[0].mxu0
    %7595 = vmatprep.mubr.bf16.mxu0 %v6865
    %7596 = vmatmul.mubr.bf16.gmra.mrb[0].mxu0 %v6364
    %v7597 = vpop.f32.mrb[0].mxu0
    %v7598 = vadd.f32 0.0, %v7597
    %v7599 = vpop.f32.mrb[0].mxu0
    %v7600 = vpop.f32.mrb[0].mxu0
    %v7601 = vadd.f32 0.0, %v7600
    %v7602 = vpop.f32.mrb[0].mxu0
    %7603 = vmatprep.mubr.bf16.mxu0 %v6877
    %7604 = vmatmul.mubr.bf16.gmra.mrb[0].mxu0 %v6365
    %v7605 = vpop.f32.mrb[0].mxu0
    %v7606 = vadd.f32 0.0, %v7605
    %v7607 = vpop.f32.mrb[0].mxu0
    %v7608 = vpop.f32.mrb[0].mxu0
    %v7609 = vadd.f32 0.0, %v7608
    %v7610 = vpop.f32.mrb[0].mxu0
    %7611 = vmatprep.mubr.bf16.mxu0 %v7127
    %7612 = vmatmul.mubr.bf16.gmra.mrb[0].mxu0 %v7095
    %v7613 = vpop.f32.mrb[0].mxu0
    %v7614 = vadd.f32 0.0, %v7613
    %v7615 = vpop.f32.mrb[0].mxu0
    %v7616 = vpop.f32.mrb[0].mxu0
    %v7617 = vadd.f32 0.0, %v7616
    %v7618 = vpop.f32.mrb[0].mxu0
    %7619 = vdwg.mxu0
    %7620 = vmatprep.subr.bf16.mxu0 0
    %7621 = vmatpush1.bf16.msra.mxu0 %v7299
    %7622 = vmatprep.subr.bf16.mxu0 0
    %7623 = vmatpush1.bf16.msra.mxu0 %v7300
    %7624 = vmatprep.subr.bf16.mxu0 0
    %7625 = vmatpush1.bf16.msra.mxu0 %v7301
    %7626 = vmatprep.subr.bf16.mxu0 0
    %7627 = vmatpush1.bf16.msra.mxu0 %v7302
    %7628 = vmatprep.subr.bf16.mxu0 0
    %7629 = vmatpush1.bf16.msra.mxu0 %v7303
    %7630 = vmatprep.subr.bf16.mxu0 0
    %7631 = vmatpush1.bf16.msra.mxu0 %v7304
    %7632 = vmatprep.subr.bf16.mxu0 0
    %7633 = vmatpush1.bf16.msra.mxu0 %v7305
    %7634 = vmatprep.subr.bf16.mxu0 0
    %7635 = vmatpush1.bf16.msra.mxu0 %v7306
    %7636 = vmatprep.subr.bf16.mxu0 0
    %7637 = vmatpush1.bf16.msra.mxu0 0
    %7638 = vmatprep.subr.bf16.mxu0 0
    %7639 = vmatpush1.bf16.msra.mxu0 0
    %7640 = vmatprep.subr.bf16.mxu0 0
    %7641 = vmatpush1.bf16.msra.mxu0 0
    %7642 = vmatprep.subr.bf16.mxu0 0
    %7643 = vmatpush1.bf16.msra.mxu0 0
    %7644 = vmatprep.subr.bf16.mxu0 0
    %7645 = vmatpush1.bf16.msra.mxu0 0
    %7646 = vmatprep.subr.bf16.mxu0 0
    %7647 = vmatpush1.bf16.msra.mxu0 0
    %7648 = vmatprep.subr.bf16.mxu0 0
    %7649 = vmatpush1.bf16.msra.mxu0 0
    %7650 = vmatprep.subr.bf16.mxu0 0
    %7651 = vmatpush1.bf16.msra.mxu0 0
    %7652 = vmatprep.mubr.bf16.mxu0 0
    %7653 = vmatmul.mubr.bf16.gmra.mrb[0].mxu0 %v6915
    %v7654 = vpop.f32.mrb[0].mxu0
    %v7655 = vadd.f32 %v7366, %v7654
    %v7656 = vpop.f32.mrb[0].mxu0
    %v7657 = vpop.f32.mrb[0].mxu0
    %v7658 = vadd.f32 %v7369, %v7657
    %v7659 = vpop.f32.mrb[0].mxu0
    %7660 = vmatprep.mubr.bf16.mxu0 0
    %7661 = vmatmul.mubr.bf16.gmra.mrb[0].mxu0 %v6918
    %v7662 = vpop.f32.mrb[0].mxu0
    %v7663 = vadd.f32 %v7374, %v7662
    %v7664 = vpop.f32.mrb[0].mxu0
    %v7665 = vpop.f32.mrb[0].mxu0
    %v7666 = vadd.f32 %v7377, %v7665
    %v7667 = vpop.f32.mrb[0].mxu0
    %7668 = vmatprep.mubr.bf16.mxu0 0
    %7669 = vmatmul.mubr.bf16.gmra.mrb[0].mxu0 %v6921
    %v7670 = vpop.f32.mrb[0].mxu0
    %v7671 = vadd.f32 %v7382, %v7670
    %v7672 = vpop.f32.mrb[0].mxu0
    %v7673 = vpop.f32.mrb[0].mxu0
    %v7674 = vadd.f32 %v7385, %v7673
    %v7675 = vpop.f32.mrb[0].mxu0
    %7676 = vmatprep.mubr.bf16.mxu0 0
    %7677 = vmatmul.mubr.bf16.gmra.mrb[0].mxu0 %v6924
    %v7678 = vpop.f32.mrb[0].mxu0
    %v7679 = vadd.f32 %v7390, %v7678
    %v7680 = vpop.f32.mrb[0].mxu0
    %v7681 = vpop.f32.mrb[0].mxu0
    %v7682 = vadd.f32 %v7393, %v7681
    %v7683 = vpop.f32.mrb[0].mxu0
    %7684 = vmatprep.mubr.bf16.mxu0 0
    %7685 = vmatmul.mubr.bf16.gmra.mrb[0].mxu0 %v6927
    %v7686 = vpop.f32.mrb[0].mxu0
    %v7687 = vadd.f32 %v7398, %v7686
    %v7688 = vpop.f32.mrb[0].mxu0
    %v7689 = vpop.f32.mrb[0].mxu0
    %v7690 = vadd.f32 %v7401, %v7689
    %v7691 = vpop.f32.mrb[0].mxu0
    %7692 = vmatprep.mubr.bf16.mxu0 0
    %7693 = vmatmul.mubr.bf16.gmra.mrb[0].mxu0 %v6930
    %v7694 = vpop.f32.mrb[0].mxu0
    %v7695 = vadd.f32 %v7406, %v7694
    %v7696 = vpop.f32.mrb[0].mxu0
    %v7697 = vpop.f32.mrb[0].mxu0
    %v7698 = vadd.f32 %v7409, %v7697
    %v7699 = vpop.f32.mrb[0].mxu0
    %7700 = vmatprep.mubr.bf16.mxu0 0
    %7701 = vmatmul.mubr.bf16.gmra.mrb[0].mxu0 %v6933
    %v7702 = vpop.f32.mrb[0].mxu0
    %v7703 = vadd.f32 %v7414, %v7702
    %v7704 = vpop.f32.mrb[0].mxu0
    %v7705 = vpop.f32.mrb[0].mxu0
    %v7706 = vadd.f32 %v7417, %v7705
    %v7707 = vpop.f32.mrb[0].mxu0
    %7708 = vmatprep.mubr.bf16.mxu0 0
    %7709 = vmatmul.mubr.bf16.gmra.mrb[0].mxu0 %v6936
    %v7710 = vpop.f32.mrb[0].mxu0
    %v7711 = vadd.f32 %v7422, %v7710
    %v7712 = vpop.f32.mrb[0].mxu0
    %v7713 = vpop.f32.mrb[0].mxu0
    %v7714 = vadd.f32 %v7425, %v7713
    %v7715 = vpop.f32.mrb[0].mxu0
    %7716 = vmatprep.mubr.bf16.mxu0 0
    %7717 = vmatmul.mubr.bf16.gmra.mrb[0].mxu0 %v6939
    %v7718 = vpop.f32.mrb[0].mxu0
    %v7719 = vadd.f32 %v7430, %v7718
    %v7720 = vpop.f32.mrb[0].mxu0
    %v7721 = vpop.f32.mrb[0].mxu0
    %v7722 = vadd.f32 %v7433, %v7721
    %v7723 = vpop.f32.mrb[0].mxu0
    %7724 = vmatprep.mubr.bf16.mxu0 0
    %7725 = vmatmul.mubr.bf16.gmra.mrb[0].mxu0 %v6942
    %v7726 = vpop.f32.mrb[0].mxu0
    %v7727 = vadd.f32 %v7438, %v7726
    %v7728 = vpop.f32.mrb[0].mxu0
    %v7729 = vpop.f32.mrb[0].mxu0
    %v7730 = vadd.f32 %v7441, %v7729
    %v7731 = vpop.f32.mrb[0].mxu0
    %7732 = vmatprep.mubr.bf16.mxu0 0
    %7733 = vmatmul.mubr.bf16.gmra.mrb[0].mxu0 %v6945
    %v7734 = vpop.f32.mrb[0].mxu0
    %v7735 = vadd.f32 %v7446, %v7734
    %v7736 = vpop.f32.mrb[0].mxu0
    %v7737 = vpop.f32.mrb[0].mxu0
    %v7738 = vadd.f32 %v7449, %v7737
    %v7739 = vpop.f32.mrb[0].mxu0
    %7740 = vmatprep.mubr.bf16.mxu0 0
    %7741 = vmatmul.mubr.bf16.gmra.mrb[0].mxu0 %v6948
    %v7742 = vpop.f32.mrb[0].mxu0
    %v7743 = vadd.f32 %v7454, %v7742
    %v7744 = vpop.f32.mrb[0].mxu0
    %v7745 = vpop.f32.mrb[0].mxu0
    %v7746 = vadd.f32 %v7457, %v7745
    %v7747 = vpop.f32.mrb[0].mxu0
    %7748 = vmatprep.mubr.bf16.mxu0 0
    %7749 = vmatmul.mubr.bf16.gmra.mrb[0].mxu0 %v6951
    %v7750 = vpop.f32.mrb[0].mxu0
    %v7751 = vadd.f32 %v7462, %v7750
    %v7752 = vpop.f32.mrb[0].mxu0
    %v7753 = vpop.f32.mrb[0].mxu0
    %v7754 = vadd.f32 %v7465, %v7753
    %v7755 = vpop.f32.mrb[0].mxu0
    %7756 = vmatprep.mubr.bf16.mxu0 0
    %7757 = vmatmul.mubr.bf16.gmra.mrb[0].mxu0 %v6954
    %v7758 = vpop.f32.mrb[0].mxu0
    %v7759 = vadd.f32 %v7470, %v7758
    %v7760 = vpop.f32.mrb[0].mxu0
    %v7761 = vpop.f32.mrb[0].mxu0
    %v7762 = vadd.f32 %v7473, %v7761
    %v7763 = vpop.f32.mrb[0].mxu0
    %7764 = vmatprep.mubr.bf16.mxu0 0
    %7765 = vmatmul.mubr.bf16.gmra.mrb[0].mxu0 %v6957
    %v7766 = vpop.f32.mrb[0].mxu0
    %v7767 = vadd.f32 %v7478, %v7766
    %v7768 = vpop.f32.mrb[0].mxu0
    %v7769 = vpop.f32.mrb[0].mxu0
    %v7770 = vadd.f32 %v7481, %v7769
    %v7771 = vpop.f32.mrb[0].mxu0
    %7772 = vmatprep.mubr.bf16.mxu0 0
    %7773 = vmatmul.mubr.bf16.gmra.mrb[0].mxu0 %v7132
    %v7774 = vpop.f32.mrb[0].mxu0
    %v7775 = vadd.f32 %v7486, %v7774
    %v7776 = vpop.f32.mrb[0].mxu0
    %v7777 = vpop.f32.mrb[0].mxu0
    %v7778 = vadd.f32 %v7489, %v7777
    %v7779 = vpop.f32.mrb[0].mxu0
    %7780 = vmatprep.mubr.bf16.mxu0 0
    %7781 = vmatmul.mubr.bf16.gmra.mrb[0].mxu0 %v6963
    %v7782 = vpop.f32.mrb[0].mxu0
    %v7783 = vadd.f32 %v7494, %v7782
    %v7784 = vpop.f32.mrb[0].mxu0
    %v7785 = vpop.f32.mrb[0].mxu0
    %v7786 = vadd.f32 %v7497, %v7785
    %v7787 = vpop.f32.mrb[0].mxu0
    %7788 = vmatprep.mubr.bf16.mxu0 0
    %7789 = vmatmul.mubr.bf16.gmra.mrb[0].mxu0 %v6966
    %v7790 = vpop.f32.mrb[0].mxu0
    %v7791 = vadd.f32 %v7502, %v7790
    %v7792 = vpop.f32.mrb[0].mxu0
    %v7793 = vpop.f32.mrb[0].mxu0
    %v7794 = vadd.f32 %v7505, %v7793
    %v7795 = vpop.f32.mrb[0].mxu0
    %7796 = vmatprep.mubr.bf16.mxu0 0
    %7797 = vmatmul.mubr.bf16.gmra.mrb[0].mxu0 %v6969
    %v7798 = vpop.f32.mrb[0].mxu0
    %v7799 = vadd.f32 %v7510, %v7798
    %v7800 = vpop.f32.mrb[0].mxu0
    %v7801 = vpop.f32.mrb[0].mxu0
    %v7802 = vadd.f32 %v7513, %v7801
    %v7803 = vpop.f32.mrb[0].mxu0
    %7804 = vmatprep.mubr.bf16.mxu0 0
    %7805 = vmatmul.mubr.bf16.gmra.mrb[0].mxu0 %v6972
    %v7806 = vpop.f32.mrb[0].mxu0
    %v7807 = vadd.f32 %v7518, %v7806
    %v7808 = vpop.f32.mrb[0].mxu0
    %v7809 = vpop.f32.mrb[0].mxu0
    %v7810 = vadd.f32 %v7521, %v7809
    %v7811 = vpop.f32.mrb[0].mxu0
    %7812 = vmatprep.mubr.bf16.mxu0 0
    %7813 = vmatmul.mubr.bf16.gmra.mrb[0].mxu0 %v6975
    %v7814 = vpop.f32.mrb[0].mxu0
    %v7815 = vadd.f32 %v7526, %v7814
    %v7816 = vpop.f32.mrb[0].mxu0
    %v7817 = vpop.f32.mrb[0].mxu0
    %v7818 = vadd.f32 %v7529, %v7817
    %v7819 = vpop.f32.mrb[0].mxu0
    %7820 = vmatprep.mubr.bf16.mxu0 0
    %7821 = vmatmul.mubr.bf16.gmra.mrb[0].mxu0 %v6978
    %v7822 = vpop.f32.mrb[0].mxu0
    %v7823 = vadd.f32 %v7534, %v7822
    %v7824 = vpop.f32.mrb[0].mxu0
    %v7825 = vpop.f32.mrb[0].mxu0
    %v7826 = vadd.f32 %v7537, %v7825
    %v7827 = vpop.f32.mrb[0].mxu0
    %7828 = vmatprep.mubr.bf16.mxu0 0
    %7829 = vmatmul.mubr.bf16.gmra.mrb[0].mxu0 %v6981
    %v7830 = vpop.f32.mrb[0].mxu0
    %v7831 = vadd.f32 %v7542, %v7830
    %v7832 = vpop.f32.mrb[0].mxu0
    %v7833 = vpop.f32.mrb[0].mxu0
    %v7834 = vadd.f32 %v7545, %v7833
    %v7835 = vpop.f32.mrb[0].mxu0
    %7836 = vmatprep.mubr.bf16.mxu0 0
    %7837 = vmatmul.mubr.bf16.gmra.mrb[0].mxu0 %v6984
    %v7838 = vpop.f32.mrb[0].mxu0
    %v7839 = vadd.f32 %v7550, %v7838
    %v7840 = vpop.f32.mrb[0].mxu0
    %v7841 = vpop.f32.mrb[0].mxu0
    %v7842 = vadd.f32 %v7553, %v7841
    %v7843 = vpop.f32.mrb[0].mxu0
    %7844 = vmatprep.mubr.bf16.mxu0 0
    %7845 = vmatmul.mubr.bf16.gmra.mrb[0].mxu0 %v6987
    %v7846 = vpop.f32.mrb[0].mxu0
    %v7847 = vadd.f32 %v7558, %v7846
    %v7848 = vpop.f32.mrb[0].mxu0
    %v7849 = vpop.f32.mrb[0].mxu0
    %v7850 = vadd.f32 %v7561, %v7849
    %v7851 = vpop.f32.mrb[0].mxu0
    %7852 = vmatprep.mubr.bf16.mxu0 0
    %7853 = vmatmul.mubr.bf16.gmra.mrb[0].mxu0 %v6990
    %v7854 = vpop.f32.mrb[0].mxu0
    %v7855 = vadd.f32 %v7566, %v7854
    %v7856 = vpop.f32.mrb[0].mxu0
    %v7857 = vpop.f32.mrb[0].mxu0
    %v7858 = vadd.f32 %v7569, %v7857
    %v7859 = vpop.f32.mrb[0].mxu0
    %7860 = vmatprep.mubr.bf16.mxu0 0
    %7861 = vmatmul.mubr.bf16.gmra.mrb[0].mxu0 %v6993
    %v7862 = vpop.f32.mrb[0].mxu0
    %v7863 = vadd.f32 %v7574, %v7862
    %v7864 = vpop.f32.mrb[0].mxu0
    %v7865 = vpop.f32.mrb[0].mxu0
    %v7866 = vadd.f32 %v7577, %v7865
    %v7867 = vpop.f32.mrb[0].mxu0
    %7868 = vmatprep.mubr.bf16.mxu0 0
    %7869 = vmatmul.mubr.bf16.gmra.mrb[0].mxu0 %v6996
    %v7870 = vpop.f32.mrb[0].mxu0
    %v7871 = vadd.f32 %v7582, %v7870
    %v7872 = vpop.f32.mrb[0].mxu0
    %v7873 = vpop.f32.mrb[0].mxu0
    %v7874 = vadd.f32 %v7585, %v7873
    %v7875 = vpop.f32.mrb[0].mxu0
    %7876 = vmatprep.mubr.bf16.mxu0 0
    %7877 = vmatmul.mubr.bf16.gmra.mrb[0].mxu0 %v6999
    %v7878 = vpop.f32.mrb[0].mxu0
    %v7879 = vadd.f32 %v7590, %v7878
    %v7880 = vpop.f32.mrb[0].mxu0
    %v7881 = vpop.f32.mrb[0].mxu0
    %v7882 = vadd.f32 %v7593, %v7881
    %v7883 = vpop.f32.mrb[0].mxu0
    %7884 = vmatprep.mubr.bf16.mxu0 0
    %7885 = vmatmul.mubr.bf16.gmra.mrb[0].mxu0 %v7002
    %v7886 = vpop.f32.mrb[0].mxu0
    %v7887 = vadd.f32 %v7598, %v7886
    %v7888 = vpop.f32.mrb[0].mxu0
    %v7889 = vpop.f32.mrb[0].mxu0
    %v7890 = vadd.f32 %v7601, %v7889
    %v7891 = vpop.f32.mrb[0].mxu0
    %7892 = vmatprep.mubr.bf16.mxu0 0
    %7893 = vmatmul.mubr.bf16.gmra.mrb[0].mxu0 %v7005
    %v7894 = vpop.f32.mrb[0].mxu0
    %v7895 = vadd.f32 %v7606, %v7894
    %v7896 = vpop.f32.mrb[0].mxu0
    %v7897 = vpop.f32.mrb[0].mxu0
    %v7898 = vadd.f32 %v7609, %v7897
    %v7899 = vpop.f32.mrb[0].mxu0
    %7900 = vmatprep.mubr.bf16.mxu0 0
    %7901 = vmatmul.mubr.bf16.gmra.mrb[0].mxu0 %v7135
    %v7902 = vpop.f32.mrb[0].mxu0
    %v7903 = vadd.f32 %v7614, %v7902
    %v7904 = vpop.f32.mrb[0].mxu0
    %v7905 = vpop.f32.mrb[0].mxu0
    %v7906 = vadd.f32 %v7617, %v7905
    %v7907 = vpop.f32.mrb[0].mxu0
    %7908 = vdwg.mxu0
    %v7957 = vunpack.c.l.b16 %v7038
    %v7958 = vunpack.c.l.b16 %v7039
    %v7959 = vunpack.c.l.b16 %v7040
    %v7960 = vunpack.c.l.b16 %v7041
    %v7961 = vunpack.c.l.b16 %v7042
    %v7962 = vunpack.c.l.b16 %v7043
    %v7963 = vunpack.c.l.b16 %v7044
    %v7964 = vunpack.c.l.b16 %v7045
    %v7965 = vunpack.c.l.b16 %v7046
    %v7966 = vunpack.c.l.b16 %v7047
    %v7967 = vunpack.c.l.b16 %v7048
    %v7968 = vunpack.c.l.b16 %v7049
    %v7969 = vunpack.c.l.b16 %v7050
    %v7970 = vunpack.c.l.b16 %v7051
    %v7971 = vunpack.c.l.b16 %v7052
    %v7972 = vunpack.c.l.b16 %v7053
    %v7973 = vunpack.c.l.b16 %v7054
    %v7974 = vunpack.c.l.b16 %v7055
    %v7975 = vunpack.c.l.b16 %v7056
    %v7976 = vunpack.c.l.b16 %v7057
    %v7977 = vunpack.c.l.b16 %v7058
    %v7978 = vunpack.c.l.b16 %v7059
    %v7979 = vunpack.c.l.b16 %v7060
    %v7980 = vunpack.c.l.b16 %v7061
    %v7981 = vunpack.c.l.b16 %v7062
    %v7982 = vunpack.c.l.b16 %v7063
    %v7983 = vunpack.c.l.b16 %v7064
    %v7984 = vunpack.c.l.b16 %v7065
    %v7985 = vunpack.c.l.b16 %v7066
    %v7986 = vunpack.c.l.b16 %v7067
    %v7987 = vunpack.c.l.b16 %v7068
    %v7988 = vunpack.c.l.b16 %v7069
    %v7989 = vunpack.c.l.b16 %v7070
    %v7990 = vunpack.c.l.b16 %v7071
    %v7991 = vunpack.c.l.b16 %v7072
    %v7992 = vunpack.c.l.b16 %v7073
    %v7993 = vunpack.c.l.b16 %v7074
    %v7994 = vunpack.c.l.b16 %v7075
    %v7995 = vunpack.c.l.b16 %v7076
    %v7996 = vunpack.c.l.b16 %v7077
    %v7997 = vunpack.c.l.b16 %v7078
    %v7998 = vunpack.c.l.b16 %v7079
    %v7999 = vunpack.c.l.b16 %v7080
    %v8000 = vunpack.c.l.b16 %v7081
    %v8001 = vunpack.c.l.b16 %v7082
    %v8002 = vunpack.c.l.b16 %v7083
    %v8003 = vunpack.c.l.b16 %v7084
    %v8004 = vunpack.c.l.b16 %v7085
    %v8005 = vpack.c.b16 %v7958, %v7957
    %v8006 = vpack.c.b16 %v7960, %v7959
    %v8007 = vpack.c.b16 %v7962, %v7961
    %v8008 = vpack.c.b16 %v7964, %v7963
    %v8009 = vpack.c.b16 %v7966, %v7965
    %v8010 = vpack.c.b16 %v7968, %v7967
    %v8011 = vpack.c.b16 %v7970, %v7969
    %v8012 = vpack.c.b16 %v7972, %v7971
    %v8013 = vpack.c.b16 %v7974, %v7973
    %v8014 = vpack.c.b16 %v7976, %v7975
    %v8015 = vpack.c.b16 %v7978, %v7977
    %v8016 = vpack.c.b16 %v7980, %v7979
    %v8017 = vpack.c.b16 %v7982, %v7981
    %v8018 = vpack.c.b16 %v7984, %v7983
    %v8019 = vpack.c.b16 %v7986, %v7985
    %v8020 = vpack.c.b16 %v7988, %v7987
    %v8021 = vpack.c.b16 %v7990, %v7989
    %v8022 = vpack.c.b16 %v7992, %v7991
    %v8023 = vpack.c.b16 %v7994, %v7993
    %v8024 = vpack.c.b16 %v7996, %v7995
    %v8025 = vpack.c.b16 %v7998, %v7997
    %v8026 = vpack.c.b16 %v8000, %v7999
    %v8027 = vpack.c.b16 %v8002, %v8001
    %v8028 = vpack.c.b16 %v8004, %v8003
    %8053 = vmatprep.subr.bf16.mxu0 0
    %8054 = vmatpush1.bf16.msra.mxu0 %v8005
    %8055 = vmatprep.subr.bf16.mxu0 0
    %8056 = vmatpush1.bf16.msra.mxu0 %v8006
    %8057 = vmatprep.subr.bf16.mxu0 0
    %8058 = vmatpush1.bf16.msra.mxu0 %v8007
    %8059 = vmatprep.subr.bf16.mxu0 0
    %8060 = vmatpush1.bf16.msra.mxu0 %v8008
    %8061 = vmatprep.subr.bf16.mxu0 0
    %8062 = vmatpush1.bf16.msra.mxu0 %v8009
    %8063 = vmatprep.subr.bf16.mxu0 0
    %8064 = vmatpush1.bf16.msra.mxu0 %v8010
    %8065 = vmatprep.subr.bf16.mxu0 0
    %8066 = vmatpush1.bf16.msra.mxu0 %v8011
    %8067 = vmatprep.subr.bf16.mxu0 0
    %8068 = vmatpush1.bf16.msra.mxu0 %v8012
    %8069 = vmatprep.subr.bf16.mxu0 0
    %8070 = vmatpush1.bf16.msra.mxu0 %v8013
    %8071 = vmatprep.subr.bf16.mxu0 0
    %8072 = vmatpush1.bf16.msra.mxu0 %v8014
    %8073 = vmatprep.subr.bf16.mxu0 0
    %8074 = vmatpush1.bf16.msra.mxu0 %v8015
    %8075 = vmatprep.subr.bf16.mxu0 0
    %8076 = vmatpush1.bf16.msra.mxu0 %v8016
    %8077 = vmatprep.subr.bf16.mxu0 0
    %8078 = vmatpush1.bf16.msra.mxu0 %v8017
    %8079 = vmatprep.subr.bf16.mxu0 0
    %8080 = vmatpush1.bf16.msra.mxu0 %v8018
    %8081 = vmatprep.subr.bf16.mxu0 0
    %8082 = vmatpush1.bf16.msra.mxu0 %v8019
    %8083 = vmatprep.subr.bf16.mxu0 0
    %8084 = vmatpush1.bf16.msra.mxu0 %v8020
    %8085 = vmatprep.mubr.bf16.mxu0 %v6505
    %8086 = vmatmul.mubr.bf16.gmra.mrb[0].mxu0 %v6334
    %v8087 = vpop.f32.mrb[0].mxu0
    %v8088 = vadd.f32 %v7655, %v8087
    %v8089 = vpop.f32.mrb[0].mxu0
    %v8090 = vpop.f32.mrb[0].mxu0
    %v8091 = vadd.f32 %v7658, %v8090
    %v8092 = vpop.f32.mrb[0].mxu0
    %8093 = vmatprep.mubr.bf16.mxu0 %v6517
    %8094 = vmatmul.mubr.bf16.gmra.mrb[0].mxu0 %v6335
    %v8095 = vpop.f32.mrb[0].mxu0
    %v8096 = vadd.f32 %v7663, %v8095
    %v8097 = vpop.f32.mrb[0].mxu0
    %v8098 = vpop.f32.mrb[0].mxu0
    %v8099 = vadd.f32 %v7666, %v8098
    %v8100 = vpop.f32.mrb[0].mxu0
    %8101 = vmatprep.mubr.bf16.mxu0 %v6529
    %8102 = vmatmul.mubr.bf16.gmra.mrb[0].mxu0 %v6336
    %v8103 = vpop.f32.mrb[0].mxu0
    %v8104 = vadd.f32 %v7671, %v8103
    %v8105 = vpop.f32.mrb[0].mxu0
    %v8106 = vpop.f32.mrb[0].mxu0
    %v8107 = vadd.f32 %v7674, %v8106
    %v8108 = vpop.f32.mrb[0].mxu0
    %8109 = vmatprep.mubr.bf16.mxu0 %v6541
    %8110 = vmatmul.mubr.bf16.gmra.mrb[0].mxu0 %v6337
    %v8111 = vpop.f32.mrb[0].mxu0
    %v8112 = vadd.f32 %v7679, %v8111
    %v8113 = vpop.f32.mrb[0].mxu0
    %v8114 = vpop.f32.mrb[0].mxu0
    %v8115 = vadd.f32 %v7682, %v8114
    %v8116 = vpop.f32.mrb[0].mxu0
    %8117 = vmatprep.mubr.bf16.mxu0 %v6553
    %8118 = vmatmul.mubr.bf16.gmra.mrb[0].mxu0 %v6338
    %v8119 = vpop.f32.mrb[0].mxu0
    %v8120 = vadd.f32 %v7687, %v8119
    %v8121 = vpop.f32.mrb[0].mxu0
    %v8122 = vpop.f32.mrb[0].mxu0
    %v8123 = vadd.f32 %v7690, %v8122
    %v8124 = vpop.f32.mrb[0].mxu0
    %8125 = vmatprep.mubr.bf16.mxu0 %v6565
    %8126 = vmatmul.mubr.bf16.gmra.mrb[0].mxu0 %v6339
    %v8127 = vpop.f32.mrb[0].mxu0
    %v8128 = vadd.f32 %v7695, %v8127
    %v8129 = vpop.f32.mrb[0].mxu0
    %v8130 = vpop.f32.mrb[0].mxu0
    %v8131 = vadd.f32 %v7698, %v8130
    %v8132 = vpop.f32.mrb[0].mxu0
    %8133 = vmatprep.mubr.bf16.mxu0 %v6577
    %8134 = vmatmul.mubr.bf16.gmra.mrb[0].mxu0 %v6340
    %v8135 = vpop.f32.mrb[0].mxu0
    %v8136 = vadd.f32 %v7703, %v8135
    %v8137 = vpop.f32.mrb[0].mxu0
    %v8138 = vpop.f32.mrb[0].mxu0
    %v8139 = vadd.f32 %v7706, %v8138
    %v8140 = vpop.f32.mrb[0].mxu0
    %8141 = vmatprep.mubr.bf16.mxu0 %v6589
    %8142 = vmatmul.mubr.bf16.gmra.mrb[0].mxu0 %v6341
    %v8143 = vpop.f32.mrb[0].mxu0
    %v8144 = vadd.f32 %v7711, %v8143
    %v8145 = vpop.f32.mrb[0].mxu0
    %v8146 = vpop.f32.mrb[0].mxu0
    %v8147 = vadd.f32 %v7714, %v8146
    %v8148 = vpop.f32.mrb[0].mxu0
    %8149 = vmatprep.mubr.bf16.mxu0 %v6601
    %8150 = vmatmul.mubr.bf16.gmra.mrb[0].mxu0 %v6342
    %v8151 = vpop.f32.mrb[0].mxu0
    %v8152 = vadd.f32 %v7719, %v8151
    %v8153 = vpop.f32.mrb[0].mxu0
    %v8154 = vpop.f32.mrb[0].mxu0
    %v8155 = vadd.f32 %v7722, %v8154
    %v8156 = vpop.f32.mrb[0].mxu0
    %8157 = vmatprep.mubr.bf16.mxu0 %v6613
    %8158 = vmatmul.mubr.bf16.gmra.mrb[0].mxu0 %v6343
    %v8159 = vpop.f32.mrb[0].mxu0
    %v8160 = vadd.f32 %v7727, %v8159
    %v8161 = vpop.f32.mrb[0].mxu0
    %v8162 = vpop.f32.mrb[0].mxu0
    %v8163 = vadd.f32 %v7730, %v8162
    %v8164 = vpop.f32.mrb[0].mxu0
    %8165 = vmatprep.mubr.bf16.mxu0 %v6625
    %8166 = vmatmul.mubr.bf16.gmra.mrb[0].mxu0 %v6344
    %v8167 = vpop.f32.mrb[0].mxu0
    %v8168 = vadd.f32 %v7735, %v8167
    %v8169 = vpop.f32.mrb[0].mxu0
    %v8170 = vpop.f32.mrb[0].mxu0
    %v8171 = vadd.f32 %v7738, %v8170
    %v8172 = vpop.f32.mrb[0].mxu0
    %8173 = vmatprep.mubr.bf16.mxu0 %v6637
    %8174 = vmatmul.mubr.bf16.gmra.mrb[0].mxu0 %v6345
    %v8175 = vpop.f32.mrb[0].mxu0
    %v8176 = vadd.f32 %v7743, %v8175
    %v8177 = vpop.f32.mrb[0].mxu0
    %v8178 = vpop.f32.mrb[0].mxu0
    %v8179 = vadd.f32 %v7746, %v8178
    %v8180 = vpop.f32.mrb[0].mxu0
    %8181 = vmatprep.mubr.bf16.mxu0 %v6649
    %8182 = vmatmul.mubr.bf16.gmra.mrb[0].mxu0 %v6346
    %v8183 = vpop.f32.mrb[0].mxu0
    %v8184 = vadd.f32 %v7751, %v8183
    %v8185 = vpop.f32.mrb[0].mxu0
    %v8186 = vpop.f32.mrb[0].mxu0
    %v8187 = vadd.f32 %v7754, %v8186
    %v8188 = vpop.f32.mrb[0].mxu0
    %8189 = vmatprep.mubr.bf16.mxu0 %v6661
    %8190 = vmatmul.mubr.bf16.gmra.mrb[0].mxu0 %v6347
    %v8191 = vpop.f32.mrb[0].mxu0
    %v8192 = vadd.f32 %v7759, %v8191
    %v8193 = vpop.f32.mrb[0].mxu0
    %v8194 = vpop.f32.mrb[0].mxu0
    %v8195 = vadd.f32 %v7762, %v8194
    %v8196 = vpop.f32.mrb[0].mxu0
    %8197 = vmatprep.mubr.bf16.mxu0 %v6673
    %8198 = vmatmul.mubr.bf16.gmra.mrb[0].mxu0 %v6348
    %v8199 = vpop.f32.mrb[0].mxu0
    %v8200 = vadd.f32 %v7767, %v8199
    %v8201 = vpop.f32.mrb[0].mxu0
    %v8202 = vpop.f32.mrb[0].mxu0
    %v8203 = vadd.f32 %v7770, %v8202
    %v8204 = vpop.f32.mrb[0].mxu0
    %8205 = vmatprep.mubr.bf16.mxu0 %v6685
    %8206 = vmatmul.mubr.bf16.gmra.mrb[0].mxu0 %v6349
    %v8207 = vpop.f32.mrb[0].mxu0
    %v8208 = vadd.f32 %v7775, %v8207
    %v8209 = vpop.f32.mrb[0].mxu0
    %v8210 = vpop.f32.mrb[0].mxu0
    %v8211 = vadd.f32 %v7778, %v8210
    %v8212 = vpop.f32.mrb[0].mxu0
    %8213 = vmatprep.mubr.bf16.mxu0 %v6697
    %8214 = vmatmul.mubr.bf16.gmra.mrb[0].mxu0 %v6350
    %v8215 = vpop.f32.mrb[0].mxu0
    %v8216 = vadd.f32 %v7783, %v8215
    %v8217 = vpop.f32.mrb[0].mxu0
    %v8218 = vpop.f32.mrb[0].mxu0
    %v8219 = vadd.f32 %v7786, %v8218
    %v8220 = vpop.f32.mrb[0].mxu0
    %8221 = vmatprep.mubr.bf16.mxu0 %v6709
    %8222 = vmatmul.mubr.bf16.gmra.mrb[0].mxu0 %v6351
    %v8223 = vpop.f32.mrb[0].mxu0
    %v8224 = vadd.f32 %v7791, %v8223
    %v8225 = vpop.f32.mrb[0].mxu0
    %v8226 = vpop.f32.mrb[0].mxu0
    %v8227 = vadd.f32 %v7794, %v8226
    %v8228 = vpop.f32.mrb[0].mxu0
    %8229 = vmatprep.mubr.bf16.mxu0 %v6721
    %8230 = vmatmul.mubr.bf16.gmra.mrb[0].mxu0 %v6352
    %v8231 = vpop.f32.mrb[0].mxu0
    %v8232 = vadd.f32 %v7799, %v8231
    %v8233 = vpop.f32.mrb[0].mxu0
    %v8234 = vpop.f32.mrb[0].mxu0
    %v8235 = vadd.f32 %v7802, %v8234
    %v8236 = vpop.f32.mrb[0].mxu0
    %8237 = vmatprep.mubr.bf16.mxu0 %v6733
    %8238 = vmatmul.mubr.bf16.gmra.mrb[0].mxu0 %v6353
    %v8239 = vpop.f32.mrb[0].mxu0
    %v8240 = vadd.f32 %v7807, %v8239
    %v8241 = vpop.f32.mrb[0].mxu0
    %v8242 = vpop.f32.mrb[0].mxu0
    %v8243 = vadd.f32 %v7810, %v8242
    %v8244 = vpop.f32.mrb[0].mxu0
    %8245 = vmatprep.mubr.bf16.mxu0 %v6745
    %8246 = vmatmul.mubr.bf16.gmra.mrb[0].mxu0 %v6354
    %v8247 = vpop.f32.mrb[0].mxu0
    %v8248 = vadd.f32 %v7815, %v8247
    %v8249 = vpop.f32.mrb[0].mxu0
    %v8250 = vpop.f32.mrb[0].mxu0
    %v8251 = vadd.f32 %v7818, %v8250
    %v8252 = vpop.f32.mrb[0].mxu0
    %8253 = vmatprep.mubr.bf16.mxu0 %v6757
    %8254 = vmatmul.mubr.bf16.gmra.mrb[0].mxu0 %v6355
    %v8255 = vpop.f32.mrb[0].mxu0
    %v8256 = vadd.f32 %v7823, %v8255
    %v8257 = vpop.f32.mrb[0].mxu0
    %v8258 = vpop.f32.mrb[0].mxu0
    %v8259 = vadd.f32 %v7826, %v8258
    %v8260 = vpop.f32.mrb[0].mxu0
    %8261 = vmatprep.mubr.bf16.mxu0 %v6769
    %8262 = vmatmul.mubr.bf16.gmra.mrb[0].mxu0 %v6356
    %v8263 = vpop.f32.mrb[0].mxu0
    %v8264 = vadd.f32 %v7831, %v8263
    %v8265 = vpop.f32.mrb[0].mxu0
    %v8266 = vpop.f32.mrb[0].mxu0
    %v8267 = vadd.f32 %v7834, %v8266
    %v8268 = vpop.f32.mrb[0].mxu0
    %8269 = vmatprep.mubr.bf16.mxu0 %v6781
    %8270 = vmatmul.mubr.bf16.gmra.mrb[0].mxu0 %v6357
    %v8271 = vpop.f32.mrb[0].mxu0
    %v8272 = vadd.f32 %v7839, %v8271
    %v8273 = vpop.f32.mrb[0].mxu0
    %v8274 = vpop.f32.mrb[0].mxu0
    %v8275 = vadd.f32 %v7842, %v8274
    %v8276 = vpop.f32.mrb[0].mxu0
    %8277 = vmatprep.mubr.bf16.mxu0 %v6793
    %8278 = vmatmul.mubr.bf16.gmra.mrb[0].mxu0 %v6358
    %v8279 = vpop.f32.mrb[0].mxu0
    %v8280 = vadd.f32 %v7847, %v8279
    %v8281 = vpop.f32.mrb[0].mxu0
    %v8282 = vpop.f32.mrb[0].mxu0
    %v8283 = vadd.f32 %v7850, %v8282
    %v8284 = vpop.f32.mrb[0].mxu0
    %8285 = vmatprep.mubr.bf16.mxu0 %v6805
    %8286 = vmatmul.mubr.bf16.gmra.mrb[0].mxu0 %v6359
    %v8287 = vpop.f32.mrb[0].mxu0
    %v8288 = vadd.f32 %v7855, %v8287
    %v8289 = vpop.f32.mrb[0].mxu0
    %v8290 = vpop.f32.mrb[0].mxu0
    %v8291 = vadd.f32 %v7858, %v8290
    %v8292 = vpop.f32.mrb[0].mxu0
    %8293 = vmatprep.mubr.bf16.mxu0 %v6817
    %8294 = vmatmul.mubr.bf16.gmra.mrb[0].mxu0 %v6360
    %v8295 = vpop.f32.mrb[0].mxu0
    %v8296 = vadd.f32 %v7863, %v8295
    %v8297 = vpop.f32.mrb[0].mxu0
    %v8298 = vpop.f32.mrb[0].mxu0
    %v8299 = vadd.f32 %v7866, %v8298
    %v8300 = vpop.f32.mrb[0].mxu0
    %8301 = vmatprep.mubr.bf16.mxu0 %v6829
    %8302 = vmatmul.mubr.bf16.gmra.mrb[0].mxu0 %v6361
    %v8303 = vpop.f32.mrb[0].mxu0
    %v8304 = vadd.f32 %v7871, %v8303
    %v8305 = vpop.f32.mrb[0].mxu0
    %v8306 = vpop.f32.mrb[0].mxu0
    %v8307 = vadd.f32 %v7874, %v8306
    %v8308 = vpop.f32.mrb[0].mxu0
    %8309 = vmatprep.mubr.bf16.mxu0 %v6841
    %8310 = vmatmul.mubr.bf16.gmra.mrb[0].mxu0 %v6362
    %v8311 = vpop.f32.mrb[0].mxu0
    %v8312 = vadd.f32 %v7879, %v8311
    %v8313 = vpop.f32.mrb[0].mxu0
    %v8314 = vpop.f32.mrb[0].mxu0
    %v8315 = vadd.f32 %v7882, %v8314
    %v8316 = vpop.f32.mrb[0].mxu0
    %8317 = vmatprep.mubr.bf16.mxu0 %v6853
    %8318 = vmatmul.mubr.bf16.gmra.mrb[0].mxu0 %v6363
    %v8319 = vpop.f32.mrb[0].mxu0
    %v8320 = vadd.f32 %v7887, %v8319
    %v8321 = vpop.f32.mrb[0].mxu0
    %v8322 = vpop.f32.mrb[0].mxu0
    %v8323 = vadd.f32 %v7890, %v8322
    %v8324 = vpop.f32.mrb[0].mxu0
    %8325 = vmatprep.mubr.bf16.mxu0 %v6865
    %8326 = vmatmul.mubr.bf16.gmra.mrb[0].mxu0 %v6364
    %v8327 = vpop.f32.mrb[0].mxu0
    %v8328 = vadd.f32 %v7895, %v8327
    %v8329 = vpop.f32.mrb[0].mxu0
    %v8330 = vpop.f32.mrb[0].mxu0
    %v8331 = vadd.f32 %v7898, %v8330
    %v8332 = vpop.f32.mrb[0].mxu0
    %8333 = vmatprep.mubr.bf16.mxu0 %v6877
    %8334 = vmatmul.mubr.bf16.gmra.mrb[0].mxu0 %v6365
    %v8335 = vpop.f32.mrb[0].mxu0
    %v8336 = vadd.f32 %v7903, %v8335
    %v8337 = vpop.f32.mrb[0].mxu0
    %v8338 = vpop.f32.mrb[0].mxu0
    %v8339 = vadd.f32 %v7906, %v8338
    %v8340 = vpop.f32.mrb[0].mxu0
    %8341 = vdwg.mxu0
    %8342 = vmatprep.subr.bf16.mxu0 0
    %8343 = vmatpush1.bf16.msra.mxu0 %v8021
    %8344 = vmatprep.subr.bf16.mxu0 0
    %8345 = vmatpush1.bf16.msra.mxu0 %v8022
    %8346 = vmatprep.subr.bf16.mxu0 0
    %8347 = vmatpush1.bf16.msra.mxu0 %v8023
    %8348 = vmatprep.subr.bf16.mxu0 0
    %8349 = vmatpush1.bf16.msra.mxu0 %v8024
    %8350 = vmatprep.subr.bf16.mxu0 0
    %8351 = vmatpush1.bf16.msra.mxu0 %v8025
    %8352 = vmatprep.subr.bf16.mxu0 0
    %8353 = vmatpush1.bf16.msra.mxu0 %v8026
    %8354 = vmatprep.subr.bf16.mxu0 0
    %8355 = vmatpush1.bf16.msra.mxu0 %v8027
    %8356 = vmatprep.subr.bf16.mxu0 0
    %8357 = vmatpush1.bf16.msra.mxu0 %v8028
    %8358 = vmatprep.subr.bf16.mxu0 0
    %8359 = vmatpush1.bf16.msra.mxu0 0
    %8360 = vmatprep.subr.bf16.mxu0 0
    %8361 = vmatpush1.bf16.msra.mxu0 0
    %8362 = vmatprep.subr.bf16.mxu0 0
    %8363 = vmatpush1.bf16.msra.mxu0 0
    %8364 = vmatprep.subr.bf16.mxu0 0
    %8365 = vmatpush1.bf16.msra.mxu0 0
    %8366 = vmatprep.subr.bf16.mxu0 0
    %8367 = vmatpush1.bf16.msra.mxu0 0
    %8368 = vmatprep.subr.bf16.mxu0 0
    %8369 = vmatpush1.bf16.msra.mxu0 0
    %8370 = vmatprep.subr.bf16.mxu0 0
    %8371 = vmatpush1.bf16.msra.mxu0 0
    %8372 = vmatprep.subr.bf16.mxu0 0
    %8373 = vmatpush1.bf16.msra.mxu0 0
    %8374 = vmatprep.mubr.bf16.mxu0 0
    %8375 = vmatmul.mubr.bf16.gmra.mrb[0].mxu0 %v6912
    %v8376 = vpop.f32.mrb[0].mxu0
    %v8377 = vadd.f32 %v8088, %v8376
    %v8378 = vpop.f32.mrb[0].mxu0
    %v8379 = vpop.f32.mrb[0].mxu0
    %v8380 = vadd.f32 %v8091, %v8379
    %v8381 = vpop.f32.mrb[0].mxu0
    %8382 = vmatprep.mubr.bf16.mxu0 0
    %8383 = vmatmul.mubr.bf16.gmra.mrb[0].mxu0 %v6915
    %v8384 = vpop.f32.mrb[0].mxu0
    %v8385 = vadd.f32 %v8096, %v8384
    %v8386 = vpop.f32.mrb[0].mxu0
    %v8387 = vpop.f32.mrb[0].mxu0
    %v8388 = vadd.f32 %v8099, %v8387
    %v8389 = vpop.f32.mrb[0].mxu0
    %8390 = vmatprep.mubr.bf16.mxu0 0
    %8391 = vmatmul.mubr.bf16.gmra.mrb[0].mxu0 %v6918
    %v8392 = vpop.f32.mrb[0].mxu0
    %v8393 = vadd.f32 %v8104, %v8392
    %v8394 = vpop.f32.mrb[0].mxu0
    %v8395 = vpop.f32.mrb[0].mxu0
    %v8396 = vadd.f32 %v8107, %v8395
    %v8397 = vpop.f32.mrb[0].mxu0
    %8398 = vmatprep.mubr.bf16.mxu0 0
    %8399 = vmatmul.mubr.bf16.gmra.mrb[0].mxu0 %v6921
    %v8400 = vpop.f32.mrb[0].mxu0
    %v8401 = vadd.f32 %v8112, %v8400
    %v8402 = vpop.f32.mrb[0].mxu0
    %v8403 = vpop.f32.mrb[0].mxu0
    %v8404 = vadd.f32 %v8115, %v8403
    %v8405 = vpop.f32.mrb[0].mxu0
    %8406 = vmatprep.mubr.bf16.mxu0 0
    %8407 = vmatmul.mubr.bf16.gmra.mrb[0].mxu0 %v6924
    %v8408 = vpop.f32.mrb[0].mxu0
    %v8409 = vadd.f32 %v8120, %v8408
    %v8410 = vpop.f32.mrb[0].mxu0
    %v8411 = vpop.f32.mrb[0].mxu0
    %v8412 = vadd.f32 %v8123, %v8411
    %v8413 = vpop.f32.mrb[0].mxu0
    %8414 = vmatprep.mubr.bf16.mxu0 0
    %8415 = vmatmul.mubr.bf16.gmra.mrb[0].mxu0 %v6927
    %v8416 = vpop.f32.mrb[0].mxu0
    %v8417 = vadd.f32 %v8128, %v8416
    %v8418 = vpop.f32.mrb[0].mxu0
    %v8419 = vpop.f32.mrb[0].mxu0
    %v8420 = vadd.f32 %v8131, %v8419
    %v8421 = vpop.f32.mrb[0].mxu0
    %8422 = vmatprep.mubr.bf16.mxu0 0
    %8423 = vmatmul.mubr.bf16.gmra.mrb[0].mxu0 %v6930
    %v8424 = vpop.f32.mrb[0].mxu0
    %v8425 = vadd.f32 %v8136, %v8424
    %v8426 = vpop.f32.mrb[0].mxu0
    %v8427 = vpop.f32.mrb[0].mxu0
    %v8428 = vadd.f32 %v8139, %v8427
    %v8429 = vpop.f32.mrb[0].mxu0
    %8430 = vmatprep.mubr.bf16.mxu0 0
    %8431 = vmatmul.mubr.bf16.gmra.mrb[0].mxu0 %v6933
    %v8432 = vpop.f32.mrb[0].mxu0
    %v8433 = vadd.f32 %v8144, %v8432
    %v8434 = vpop.f32.mrb[0].mxu0
    %v8435 = vpop.f32.mrb[0].mxu0
    %v8436 = vadd.f32 %v8147, %v8435
    %v8437 = vpop.f32.mrb[0].mxu0
    %8438 = vmatprep.mubr.bf16.mxu0 0
    %8439 = vmatmul.mubr.bf16.gmra.mrb[0].mxu0 %v6936
    %v8440 = vpop.f32.mrb[0].mxu0
    %v8441 = vadd.f32 %v8152, %v8440
    %v8442 = vpop.f32.mrb[0].mxu0
    %v8443 = vpop.f32.mrb[0].mxu0
    %v8444 = vadd.f32 %v8155, %v8443
    %v8445 = vpop.f32.mrb[0].mxu0
    %8446 = vmatprep.mubr.bf16.mxu0 0
    %8447 = vmatmul.mubr.bf16.gmra.mrb[0].mxu0 %v6939
    %v8448 = vpop.f32.mrb[0].mxu0
    %v8449 = vadd.f32 %v8160, %v8448
    %v8450 = vpop.f32.mrb[0].mxu0
    %v8451 = vpop.f32.mrb[0].mxu0
    %v8452 = vadd.f32 %v8163, %v8451
    %v8453 = vpop.f32.mrb[0].mxu0
    %8454 = vmatprep.mubr.bf16.mxu0 0
    %8455 = vmatmul.mubr.bf16.gmra.mrb[0].mxu0 %v6942
    %v8456 = vpop.f32.mrb[0].mxu0
    %v8457 = vadd.f32 %v8168, %v8456
    %v8458 = vpop.f32.mrb[0].mxu0
    %v8459 = vpop.f32.mrb[0].mxu0
    %v8460 = vadd.f32 %v8171, %v8459
    %v8461 = vpop.f32.mrb[0].mxu0
    %8462 = vmatprep.mubr.bf16.mxu0 0
    %8463 = vmatmul.mubr.bf16.gmra.mrb[0].mxu0 %v6945
    %v8464 = vpop.f32.mrb[0].mxu0
    %v8465 = vadd.f32 %v8176, %v8464
    %v8466 = vpop.f32.mrb[0].mxu0
    %v8467 = vpop.f32.mrb[0].mxu0
    %v8468 = vadd.f32 %v8179, %v8467
    %v8469 = vpop.f32.mrb[0].mxu0
    %8470 = vmatprep.mubr.bf16.mxu0 0
    %8471 = vmatmul.mubr.bf16.gmra.mrb[0].mxu0 %v6948
    %v8472 = vpop.f32.mrb[0].mxu0
    %v8473 = vadd.f32 %v8184, %v8472
    %v8474 = vpop.f32.mrb[0].mxu0
    %v8475 = vpop.f32.mrb[0].mxu0
    %v8476 = vadd.f32 %v8187, %v8475
    %v8477 = vpop.f32.mrb[0].mxu0
    %8478 = vmatprep.mubr.bf16.mxu0 0
    %8479 = vmatmul.mubr.bf16.gmra.mrb[0].mxu0 %v6951
    %v8480 = vpop.f32.mrb[0].mxu0
    %v8481 = vadd.f32 %v8192, %v8480
    %v8482 = vpop.f32.mrb[0].mxu0
    %v8483 = vpop.f32.mrb[0].mxu0
    %v8484 = vadd.f32 %v8195, %v8483
    %v8485 = vpop.f32.mrb[0].mxu0
    %8486 = vmatprep.mubr.bf16.mxu0 0
    %8487 = vmatmul.mubr.bf16.gmra.mrb[0].mxu0 %v6954
    %v8488 = vpop.f32.mrb[0].mxu0
    %v8489 = vadd.f32 %v8200, %v8488
    %v8490 = vpop.f32.mrb[0].mxu0
    %v8491 = vpop.f32.mrb[0].mxu0
    %v8492 = vadd.f32 %v8203, %v8491
    %v8493 = vpop.f32.mrb[0].mxu0
    %8494 = vmatprep.mubr.bf16.mxu0 0
    %8495 = vmatmul.mubr.bf16.gmra.mrb[0].mxu0 %v6957
    %v8496 = vpop.f32.mrb[0].mxu0
    %v8497 = vadd.f32 %v8208, %v8496
    %v8498 = vpop.f32.mrb[0].mxu0
    %v8499 = vpop.f32.mrb[0].mxu0
    %v8500 = vadd.f32 %v8211, %v8499
    %v8501 = vpop.f32.mrb[0].mxu0
    %8502 = vmatprep.mubr.bf16.mxu0 0
    %8503 = vmatmul.mubr.bf16.gmra.mrb[0].mxu0 %v6960
    %v8504 = vpop.f32.mrb[0].mxu0
    %v8505 = vadd.f32 %v8216, %v8504
    %v8506 = vpop.f32.mrb[0].mxu0
    %v8507 = vpop.f32.mrb[0].mxu0
    %v8508 = vadd.f32 %v8219, %v8507
    %v8509 = vpop.f32.mrb[0].mxu0
    %8510 = vmatprep.mubr.bf16.mxu0 0
    %8511 = vmatmul.mubr.bf16.gmra.mrb[0].mxu0 %v6963
    %v8512 = vpop.f32.mrb[0].mxu0
    %v8513 = vadd.f32 %v8224, %v8512
    %v8514 = vpop.f32.mrb[0].mxu0
    %v8515 = vpop.f32.mrb[0].mxu0
    %v8516 = vadd.f32 %v8227, %v8515
    %v8517 = vpop.f32.mrb[0].mxu0
    %8518 = vmatprep.mubr.bf16.mxu0 0
    %8519 = vmatmul.mubr.bf16.gmra.mrb[0].mxu0 %v6966
    %v8520 = vpop.f32.mrb[0].mxu0
    %v8521 = vadd.f32 %v8232, %v8520
    %v8522 = vpop.f32.mrb[0].mxu0
    %v8523 = vpop.f32.mrb[0].mxu0
    %v8524 = vadd.f32 %v8235, %v8523
    %v8525 = vpop.f32.mrb[0].mxu0
    %8526 = vmatprep.mubr.bf16.mxu0 0
    %8527 = vmatmul.mubr.bf16.gmra.mrb[0].mxu0 %v6969
    %v8528 = vpop.f32.mrb[0].mxu0
    %v8529 = vadd.f32 %v8240, %v8528
    %v8530 = vpop.f32.mrb[0].mxu0
    %v8531 = vpop.f32.mrb[0].mxu0
    %v8532 = vadd.f32 %v8243, %v8531
    %v8533 = vpop.f32.mrb[0].mxu0
    %8534 = vmatprep.mubr.bf16.mxu0 0
    %8535 = vmatmul.mubr.bf16.gmra.mrb[0].mxu0 %v6972
    %v8536 = vpop.f32.mrb[0].mxu0
    %v8537 = vadd.f32 %v8248, %v8536
    %v8538 = vpop.f32.mrb[0].mxu0
    %v8539 = vpop.f32.mrb[0].mxu0
    %v8540 = vadd.f32 %v8251, %v8539
    %v8541 = vpop.f32.mrb[0].mxu0
    %8542 = vmatprep.mubr.bf16.mxu0 0
    %8543 = vmatmul.mubr.bf16.gmra.mrb[0].mxu0 %v6975
    %v8544 = vpop.f32.mrb[0].mxu0
    %v8545 = vadd.f32 %v8256, %v8544
    %v8546 = vpop.f32.mrb[0].mxu0
    %v8547 = vpop.f32.mrb[0].mxu0
    %v8548 = vadd.f32 %v8259, %v8547
    %v8549 = vpop.f32.mrb[0].mxu0
    %8550 = vmatprep.mubr.bf16.mxu0 0
    %8551 = vmatmul.mubr.bf16.gmra.mrb[0].mxu0 %v6978
    %v8552 = vpop.f32.mrb[0].mxu0
    %v8553 = vadd.f32 %v8264, %v8552
    %v8554 = vpop.f32.mrb[0].mxu0
    %v8555 = vpop.f32.mrb[0].mxu0
    %v8556 = vadd.f32 %v8267, %v8555
    %v8557 = vpop.f32.mrb[0].mxu0
    %8558 = vmatprep.mubr.bf16.mxu0 0
    %8559 = vmatmul.mubr.bf16.gmra.mrb[0].mxu0 %v6981
    %v8560 = vpop.f32.mrb[0].mxu0
    %v8561 = vadd.f32 %v8272, %v8560
    %v8562 = vpop.f32.mrb[0].mxu0
    %v8563 = vpop.f32.mrb[0].mxu0
    %v8564 = vadd.f32 %v8275, %v8563
    %v8565 = vpop.f32.mrb[0].mxu0
    %8566 = vmatprep.mubr.bf16.mxu0 0
    %8567 = vmatmul.mubr.bf16.gmra.mrb[0].mxu0 %v6984
    %v8568 = vpop.f32.mrb[0].mxu0
    %v8569 = vadd.f32 %v8280, %v8568
    %v8570 = vpop.f32.mrb[0].mxu0
    %v8571 = vpop.f32.mrb[0].mxu0
    %v8572 = vadd.f32 %v8283, %v8571
    %v8573 = vpop.f32.mrb[0].mxu0
    %8574 = vmatprep.mubr.bf16.mxu0 0
    %8575 = vmatmul.mubr.bf16.gmra.mrb[0].mxu0 %v6987
    %v8576 = vpop.f32.mrb[0].mxu0
    %v8577 = vadd.f32 %v8288, %v8576
    %v8578 = vpop.f32.mrb[0].mxu0
    %v8579 = vpop.f32.mrb[0].mxu0
    %v8580 = vadd.f32 %v8291, %v8579
    %v8581 = vpop.f32.mrb[0].mxu0
    %8582 = vmatprep.mubr.bf16.mxu0 0
    %8583 = vmatmul.mubr.bf16.gmra.mrb[0].mxu0 %v6990
    %v8584 = vpop.f32.mrb[0].mxu0
    %v8585 = vadd.f32 %v8296, %v8584
    %v8586 = vpop.f32.mrb[0].mxu0
    %v8587 = vpop.f32.mrb[0].mxu0
    %v8588 = vadd.f32 %v8299, %v8587
    %v8589 = vpop.f32.mrb[0].mxu0
    %8590 = vmatprep.mubr.bf16.mxu0 0
    %8591 = vmatmul.mubr.bf16.gmra.mrb[0].mxu0 %v6993
    %v8592 = vpop.f32.mrb[0].mxu0
    %v8593 = vadd.f32 %v8304, %v8592
    %v8594 = vpop.f32.mrb[0].mxu0
    %v8595 = vpop.f32.mrb[0].mxu0
    %v8596 = vadd.f32 %v8307, %v8595
    %v8597 = vpop.f32.mrb[0].mxu0
    %8598 = vmatprep.mubr.bf16.mxu0 0
    %8599 = vmatmul.mubr.bf16.gmra.mrb[0].mxu0 %v6996
    %v8600 = vpop.f32.mrb[0].mxu0
    %v8601 = vadd.f32 %v8312, %v8600
    %v8602 = vpop.f32.mrb[0].mxu0
    %v8603 = vpop.f32.mrb[0].mxu0
    %v8604 = vadd.f32 %v8315, %v8603
    %v8605 = vpop.f32.mrb[0].mxu0
    %8606 = vmatprep.mubr.bf16.mxu0 0
    %8607 = vmatmul.mubr.bf16.gmra.mrb[0].mxu0 %v6999
    %v8608 = vpop.f32.mrb[0].mxu0
    %v8609 = vadd.f32 %v8320, %v8608
    %v8610 = vpop.f32.mrb[0].mxu0
    %v8611 = vpop.f32.mrb[0].mxu0
    %v8612 = vadd.f32 %v8323, %v8611
    %v8613 = vpop.f32.mrb[0].mxu0
    %8614 = vmatprep.mubr.bf16.mxu0 0
    %8615 = vmatmul.mubr.bf16.gmra.mrb[0].mxu0 %v7002
    %v8616 = vpop.f32.mrb[0].mxu0
    %v8617 = vadd.f32 %v8328, %v8616
    %v8618 = vpop.f32.mrb[0].mxu0
    %v8619 = vpop.f32.mrb[0].mxu0
    %v8620 = vadd.f32 %v8331, %v8619
    %v8621 = vpop.f32.mrb[0].mxu0
    %8622 = vmatprep.mubr.bf16.mxu0 0
    %8623 = vmatmul.mubr.bf16.gmra.mrb[0].mxu0 %v7005
    %v8624 = vpop.f32.mrb[0].mxu0
    %v8625 = vadd.f32 %v8336, %v8624
    %v8626 = vpop.f32.mrb[0].mxu0
    %v8627 = vpop.f32.mrb[0].mxu0
    %v8628 = vadd.f32 %v8339, %v8627
    %v8629 = vpop.f32.mrb[0].mxu0
    %8630 = vdwg.mxu0
    %v8635 = vunpack.c.l.b16 %v6149
    %v8636 = vunpack.c.l.b16 %v6150
    %v8637 = vunpack.c.l.b16 %v6203
    %v8638 = vunpack.c.l.b16 %v6204
    %v8639 = vpack.c.b16 %v8636, %v8635
    %v8640 = vpack.c.b16 %v8638, %v8637
    %v8645 = vunpack.c.l.b16 %v6151
    %v8646 = vunpack.c.l.b16 %v6205
    %v8647 = vpack.c.b16 %v8645, %v8645
    %v8648 = vpack.c.b16 %v8646, %v8646
    %v8650 = vshrl.u32 %v8639, 16
    %v8652 = vshll.u32 %v8639, 16
    %v8654 = vrot.slane %v8652, 1
    %v8655 = vor.u32 %v8650, %v8654
    %v8657 = vshll.u32 %v8647, 16
    %v8659 = vrot.slane %v8657, 1
    %v8660 = vsel %vm501, %v8655, %v8659
    %v8662 = vshrl.u32 %v8640, 16
    %v8664 = vshll.u32 %v8640, 16
    %v8666 = vrot.slane %v8664, 1
    %v8667 = vor.u32 %v8662, %v8666
    %v8669 = vshll.u32 %v8648, 16
    %v8671 = vrot.slane %v8669, 1
    %v8672 = vsel %vm501, %v8667, %v8671
    %v8675 = vrot.slane %v8639, 1
    %v8676 = vrot.slane %v8647, 1
    %v8677 = vsel %vm982, %v8675, %v8676
    %v8678 = vrot.slane %v8640, 1
    %v8679 = vrot.slane %v8648, 1
    %v8680 = vsel %vm982, %v8678, %v8679
    %s8683 = scalar_lea.vmem [#allocation3], 384
    %v8684 = vld [vmem:[%s8683] sm:$0xf]
    %v8685 = vld [vmem:[%s8683 + $0x4] sm:$0xf]
    %v8686 = vld [vmem:[%s8683 + $0x8] sm:$0xf]
    %v8687 = vld [vmem:[%s8683 + $0xc] sm:$0xf]
    %v8688 = vld [vmem:[%s8683 + $0x10] sm:$0xf]
    %v8689 = vld [vmem:[%s8683 + $0x14] sm:$0xf]
    %v8690 = vld [vmem:[%s8683 + $0x18] sm:$0xf]
    %v8691 = vld [vmem:[%s8683 + $0x1c] sm:$0xf]
    %v8692 = vld [vmem:[%s8683 + $0x20] sm:$0xf]
    %v8693 = vld [vmem:[%s8683 + $0x24] sm:$0xf]
    %v8694 = vld [vmem:[%s8683 + $0x28] sm:$0xf]
    %v8695 = vld [vmem:[%s8683 + $0x2c] sm:$0xf]
    %v8696 = vld [vmem:[%s8683 + $0x30] sm:$0xf]
    %v8697 = vld [vmem:[%s8683 + $0x34] sm:$0xf]
    %v8698 = vld [vmem:[%s8683 + $0x38] sm:$0xf]
    %v8699 = vld [vmem:[%s8683 + $0x3c] sm:$0xf]
    %v8700 = vld [vmem:[%s8683 + $0x40] sm:$0xf]
    %v8701 = vld [vmem:[%s8683 + $0x44] sm:$0xf]
    %v8702 = vld [vmem:[%s8683 + $0x48] sm:$0xf]
    %v8703 = vld [vmem:[%s8683 + $0x4c] sm:$0xf]
    %v8704 = vld [vmem:[%s8683 + $0x50] sm:$0xf]
    %v8705 = vld [vmem:[%s8683 + $0x54] sm:$0xf]
    %v8706 = vld [vmem:[%s8683 + $0x58] sm:$0xf]
    %v8707 = vld [vmem:[%s8683 + $0x5c] sm:$0xf]
    %v8708 = vld [vmem:[%s8683 + $0x60] sm:$0xf]
    %v8709 = vld [vmem:[%s8683 + $0x64] sm:$0xf]
    %v8710 = vld [vmem:[%s8683 + $0x68] sm:$0xf]
    %v8711 = vld [vmem:[%s8683 + $0x6c] sm:$0xf]
    %v8712 = vld [vmem:[%s8683 + $0x70] sm:$0xf]
    %v8713 = vld [vmem:[%s8683 + $0x74] sm:$0xf]
    %v8714 = vld [vmem:[%s8683 + $0x78] sm:$0xf]
    %v8715 = vld [vmem:[%s8683 + $0x7c] sm:$0xf]
    %v8716 = vld [vmem:[%s8683 + $0x80] sm:$0xf]
    %v8717 = vld [vmem:[%s8683 + $0x84] sm:$0xf]
    %v8718 = vld [vmem:[%s8683 + $0x88] sm:$0xf]
    %v8719 = vld [vmem:[%s8683 + $0x8c] sm:$0xf]
    %v8720 = vld [vmem:[%s8683 + $0x90] sm:$0xf]
    %v8721 = vld [vmem:[%s8683 + $0x94] sm:$0xf]
    %v8722 = vld [vmem:[%s8683 + $0x98] sm:$0xf]
    %v8723 = vld [vmem:[%s8683 + $0x9c] sm:$0xf]
    %v8724 = vld [vmem:[%s8683 + $0xa0] sm:$0xf]
    %v8725 = vld [vmem:[%s8683 + $0xa4] sm:$0xf]
    %v8726 = vld [vmem:[%s8683 + $0xa8] sm:$0xf]
    %v8727 = vld [vmem:[%s8683 + $0xac] sm:$0xf]
    %v8728 = vld [vmem:[%s8683 + $0xb0] sm:$0xf]
    %v8729 = vld [vmem:[%s8683 + $0xb4] sm:$0xf]
    %v8730 = vld [vmem:[%s8683 + $0xb8] sm:$0xf]
    %v8731 = vld [vmem:[%s8683 + $0xbc] sm:$0xf]
    %v8780 = vunpack.c.l.b16 %v8684
    %v8781 = vunpack.c.l.b16 %v8685
    %v8782 = vunpack.c.l.b16 %v8686
    %v8783 = vunpack.c.l.b16 %v8687
    %v8784 = vunpack.c.l.b16 %v8688
    %v8785 = vunpack.c.l.b16 %v8689
    %v8786 = vunpack.c.l.b16 %v8690
    %v8787 = vunpack.c.l.b16 %v8691
    %v8788 = vunpack.c.l.b16 %v8692
    %v8789 = vunpack.c.l.b16 %v8693
    %v8790 = vunpack.c.l.b16 %v8694
    %v8791 = vunpack.c.l.b16 %v8695
    %v8792 = vunpack.c.l.b16 %v8696
    %v8793 = vunpack.c.l.b16 %v8697
    %v8794 = vunpack.c.l.b16 %v8698
    %v8795 = vunpack.c.l.b16 %v8699
    %v8796 = vunpack.c.l.b16 %v8700
    %v8797 = vunpack.c.l.b16 %v8701
    %v8798 = vunpack.c.l.b16 %v8702
    %v8799 = vunpack.c.l.b16 %v8703
    %v8800 = vunpack.c.l.b16 %v8704
    %v8801 = vunpack.c.l.b16 %v8705
    %v8802 = vunpack.c.l.b16 %v8706
    %v8803 = vunpack.c.l.b16 %v8707
    %v8804 = vunpack.c.l.b16 %v8708
    %v8805 = vunpack.c.l.b16 %v8709
    %v8806 = vunpack.c.l.b16 %v8710
    %v8807 = vunpack.c.l.b16 %v8711
    %v8808 = vunpack.c.l.b16 %v8712
    %v8809 = vunpack.c.l.b16 %v8713
    %v8810 = vunpack.c.l.b16 %v8714
    %v8811 = vunpack.c.l.b16 %v8715
    %v8812 = vunpack.c.l.b16 %v8716
    %v8813 = vunpack.c.l.b16 %v8717
    %v8814 = vunpack.c.l.b16 %v8718
    %v8815 = vunpack.c.l.b16 %v8719
    %v8816 = vunpack.c.l.b16 %v8720
    %v8817 = vunpack.c.l.b16 %v8721
    %v8818 = vunpack.c.l.b16 %v8722
    %v8819 = vunpack.c.l.b16 %v8723
    %v8820 = vunpack.c.l.b16 %v8724
    %v8821 = vunpack.c.l.b16 %v8725
    %v8822 = vunpack.c.l.b16 %v8726
    %v8823 = vunpack.c.l.b16 %v8727
    %v8824 = vunpack.c.l.b16 %v8728
    %v8825 = vunpack.c.l.b16 %v8729
    %v8826 = vunpack.c.l.b16 %v8730
    %v8827 = vunpack.c.l.b16 %v8731
    %v8828 = vpack.c.b16 %v8781, %v8780
    %v8829 = vpack.c.b16 %v8783, %v8782
    %v8830 = vpack.c.b16 %v8785, %v8784
    %v8831 = vpack.c.b16 %v8787, %v8786
    %v8832 = vpack.c.b16 %v8789, %v8788
    %v8833 = vpack.c.b16 %v8791, %v8790
    %v8834 = vpack.c.b16 %v8793, %v8792
    %v8835 = vpack.c.b16 %v8795, %v8794
    %v8836 = vpack.c.b16 %v8797, %v8796
    %v8837 = vpack.c.b16 %v8799, %v8798
    %v8838 = vpack.c.b16 %v8801, %v8800
    %v8839 = vpack.c.b16 %v8803, %v8802
    %v8840 = vpack.c.b16 %v8805, %v8804
    %v8841 = vpack.c.b16 %v8807, %v8806
    %v8842 = vpack.c.b16 %v8809, %v8808
    %v8843 = vpack.c.b16 %v8811, %v8810
    %v8844 = vpack.c.b16 %v8813, %v8812
    %v8845 = vpack.c.b16 %v8815, %v8814
    %v8846 = vpack.c.b16 %v8817, %v8816
    %v8847 = vpack.c.b16 %v8819, %v8818
    %v8848 = vpack.c.b16 %v8821, %v8820
    %v8849 = vpack.c.b16 %v8823, %v8822
    %v8850 = vpack.c.b16 %v8825, %v8824
    %v8851 = vpack.c.b16 %v8827, %v8826
    %8876 = vmatprep.subr.bf16.mxu0 0
    %8877 = vmatpush1.bf16.msra.mxu0 %v8828
    %8878 = vmatprep.subr.bf16.mxu0 0
    %8879 = vmatpush1.bf16.msra.mxu0 %v8829
    %8880 = vmatprep.subr.bf16.mxu0 0
    %8881 = vmatpush1.bf16.msra.mxu0 %v8830
    %8882 = vmatprep.subr.bf16.mxu0 0
    %8883 = vmatpush1.bf16.msra.mxu0 %v8831
    %8884 = vmatprep.subr.bf16.mxu0 0
    %8885 = vmatpush1.bf16.msra.mxu0 %v8832
    %8886 = vmatprep.subr.bf16.mxu0 0
    %8887 = vmatpush1.bf16.msra.mxu0 %v8833
    %8888 = vmatprep.subr.bf16.mxu0 0
    %8889 = vmatpush1.bf16.msra.mxu0 %v8834
    %8890 = vmatprep.subr.bf16.mxu0 0
    %8891 = vmatpush1.bf16.msra.mxu0 %v8835
    %8892 = vmatprep.subr.bf16.mxu0 0
    %8893 = vmatpush1.bf16.msra.mxu0 %v8836
    %8894 = vmatprep.subr.bf16.mxu0 0
    %8895 = vmatpush1.bf16.msra.mxu0 %v8837
    %8896 = vmatprep.subr.bf16.mxu0 0
    %8897 = vmatpush1.bf16.msra.mxu0 %v8838
    %8898 = vmatprep.subr.bf16.mxu0 0
    %8899 = vmatpush1.bf16.msra.mxu0 %v8839
    %8900 = vmatprep.subr.bf16.mxu0 0
    %8901 = vmatpush1.bf16.msra.mxu0 %v8840
    %8902 = vmatprep.subr.bf16.mxu0 0
    %8903 = vmatpush1.bf16.msra.mxu0 %v8841
    %8904 = vmatprep.subr.bf16.mxu0 0
    %8905 = vmatpush1.bf16.msra.mxu0 %v8842
    %8906 = vmatprep.subr.bf16.mxu0 0
    %8907 = vmatpush1.bf16.msra.mxu0 %v8843
    %8908 = vmatprep.mubr.bf16.mxu0 %v6529
    %8909 = vmatmul.mubr.bf16.gmra.mrb[0].mxu0 %v6336
    %v8910 = vpop.f32.mrb[0].mxu0
    %v8911 = vadd.f32 0.0, %v8910
    %v8912 = vpop.f32.mrb[0].mxu0
    %v8913 = vpop.f32.mrb[0].mxu0
    %v8914 = vadd.f32 0.0, %v8913
    %v8915 = vpop.f32.mrb[0].mxu0
    %8916 = vmatprep.mubr.bf16.mxu0 %v6541
    %8917 = vmatmul.mubr.bf16.gmra.mrb[0].mxu0 %v6337
    %v8918 = vpop.f32.mrb[0].mxu0
    %v8919 = vadd.f32 0.0, %v8918
    %v8920 = vpop.f32.mrb[0].mxu0
    %v8921 = vpop.f32.mrb[0].mxu0
    %v8922 = vadd.f32 0.0, %v8921
    %v8923 = vpop.f32.mrb[0].mxu0
    %8924 = vmatprep.mubr.bf16.mxu0 %v6553
    %8925 = vmatmul.mubr.bf16.gmra.mrb[0].mxu0 %v6338
    %v8926 = vpop.f32.mrb[0].mxu0
    %v8927 = vadd.f32 0.0, %v8926
    %v8928 = vpop.f32.mrb[0].mxu0
    %v8929 = vpop.f32.mrb[0].mxu0
    %v8930 = vadd.f32 0.0, %v8929
    %v8931 = vpop.f32.mrb[0].mxu0
    %8932 = vmatprep.mubr.bf16.mxu0 %v6565
    %8933 = vmatmul.mubr.bf16.gmra.mrb[0].mxu0 %v6339
    %v8934 = vpop.f32.mrb[0].mxu0
    %v8935 = vadd.f32 0.0, %v8934
    %v8936 = vpop.f32.mrb[0].mxu0
    %v8937 = vpop.f32.mrb[0].mxu0
    %v8938 = vadd.f32 0.0, %v8937
    %v8939 = vpop.f32.mrb[0].mxu0
    %8940 = vmatprep.mubr.bf16.mxu0 %v6577
    %8941 = vmatmul.mubr.bf16.gmra.mrb[0].mxu0 %v6340
    %v8942 = vpop.f32.mrb[0].mxu0
    %v8943 = vadd.f32 0.0, %v8942
    %v8944 = vpop.f32.mrb[0].mxu0
    %v8945 = vpop.f32.mrb[0].mxu0
    %v8946 = vadd.f32 0.0, %v8945
    %v8947 = vpop.f32.mrb[0].mxu0
    %8948 = vmatprep.mubr.bf16.mxu0 %v6589
    %8949 = vmatmul.mubr.bf16.gmra.mrb[0].mxu0 %v6341
    %v8950 = vpop.f32.mrb[0].mxu0
    %v8951 = vadd.f32 0.0, %v8950
    %v8952 = vpop.f32.mrb[0].mxu0
    %v8953 = vpop.f32.mrb[0].mxu0
    %v8954 = vadd.f32 0.0, %v8953
    %v8955 = vpop.f32.mrb[0].mxu0
    %8956 = vmatprep.mubr.bf16.mxu0 %v6601
    %8957 = vmatmul.mubr.bf16.gmra.mrb[0].mxu0 %v6342
    %v8958 = vpop.f32.mrb[0].mxu0
    %v8959 = vadd.f32 0.0, %v8958
    %v8960 = vpop.f32.mrb[0].mxu0
    %v8961 = vpop.f32.mrb[0].mxu0
    %v8962 = vadd.f32 0.0, %v8961
    %v8963 = vpop.f32.mrb[0].mxu0
    %8964 = vmatprep.mubr.bf16.mxu0 %v6613
    %8965 = vmatmul.mubr.bf16.gmra.mrb[0].mxu0 %v6343
    %v8966 = vpop.f32.mrb[0].mxu0
    %v8967 = vadd.f32 0.0, %v8966
    %v8968 = vpop.f32.mrb[0].mxu0
    %v8969 = vpop.f32.mrb[0].mxu0
    %v8970 = vadd.f32 0.0, %v8969
    %v8971 = vpop.f32.mrb[0].mxu0
    %8972 = vmatprep.mubr.bf16.mxu0 %v6625
    %8973 = vmatmul.mubr.bf16.gmra.mrb[0].mxu0 %v6344
    %v8974 = vpop.f32.mrb[0].mxu0
    %v8975 = vadd.f32 0.0, %v8974
    %v8976 = vpop.f32.mrb[0].mxu0
    %v8977 = vpop.f32.mrb[0].mxu0
    %v8978 = vadd.f32 0.0, %v8977
    %v8979 = vpop.f32.mrb[0].mxu0
    %8980 = vmatprep.mubr.bf16.mxu0 %v6637
    %8981 = vmatmul.mubr.bf16.gmra.mrb[0].mxu0 %v6345
    %v8982 = vpop.f32.mrb[0].mxu0
    %v8983 = vadd.f32 0.0, %v8982
    %v8984 = vpop.f32.mrb[0].mxu0
    %v8985 = vpop.f32.mrb[0].mxu0
    %v8986 = vadd.f32 0.0, %v8985
    %v8987 = vpop.f32.mrb[0].mxu0
    %8988 = vmatprep.mubr.bf16.mxu0 %v6649
    %8989 = vmatmul.mubr.bf16.gmra.mrb[0].mxu0 %v6346
    %v8990 = vpop.f32.mrb[0].mxu0
    %v8991 = vadd.f32 0.0, %v8990
    %v8992 = vpop.f32.mrb[0].mxu0
    %v8993 = vpop.f32.mrb[0].mxu0
    %v8994 = vadd.f32 0.0, %v8993
    %v8995 = vpop.f32.mrb[0].mxu0
    %8996 = vmatprep.mubr.bf16.mxu0 %v6661
    %8997 = vmatmul.mubr.bf16.gmra.mrb[0].mxu0 %v6347
    %v8998 = vpop.f32.mrb[0].mxu0
    %v8999 = vadd.f32 0.0, %v8998
    %v9000 = vpop.f32.mrb[0].mxu0
    %v9001 = vpop.f32.mrb[0].mxu0
    %v9002 = vadd.f32 0.0, %v9001
    %v9003 = vpop.f32.mrb[0].mxu0
    %9004 = vmatprep.mubr.bf16.mxu0 %v6673
    %9005 = vmatmul.mubr.bf16.gmra.mrb[0].mxu0 %v6348
    %v9006 = vpop.f32.mrb[0].mxu0
    %v9007 = vadd.f32 0.0, %v9006
    %v9008 = vpop.f32.mrb[0].mxu0
    %v9009 = vpop.f32.mrb[0].mxu0
    %v9010 = vadd.f32 0.0, %v9009
    %v9011 = vpop.f32.mrb[0].mxu0
    %9012 = vmatprep.mubr.bf16.mxu0 %v6685
    %9013 = vmatmul.mubr.bf16.gmra.mrb[0].mxu0 %v6349
    %v9014 = vpop.f32.mrb[0].mxu0
    %v9015 = vadd.f32 0.0, %v9014
    %v9016 = vpop.f32.mrb[0].mxu0
    %v9017 = vpop.f32.mrb[0].mxu0
    %v9018 = vadd.f32 0.0, %v9017
    %v9019 = vpop.f32.mrb[0].mxu0
    %9020 = vmatprep.mubr.bf16.mxu0 %v7115
    %9021 = vmatmul.mubr.bf16.gmra.mrb[0].mxu0 %v7094
    %v9022 = vpop.f32.mrb[0].mxu0
    %v9023 = vadd.f32 0.0, %v9022
    %v9024 = vpop.f32.mrb[0].mxu0
    %v9025 = vpop.f32.mrb[0].mxu0
    %v9026 = vadd.f32 0.0, %v9025
    %v9027 = vpop.f32.mrb[0].mxu0
    %9028 = vmatprep.mubr.bf16.mxu0 %v8660
    %9029 = vmatmul.mubr.bf16.gmra.mrb[0].mxu0 %v8639
    %v9030 = vpop.f32.mrb[0].mxu0
    %v9031 = vadd.f32 0.0, %v9030
    %v9032 = vpop.f32.mrb[0].mxu0
    %v9033 = vpop.f32.mrb[0].mxu0
    %v9034 = vadd.f32 0.0, %v9033
    %v9035 = vpop.f32.mrb[0].mxu0
    %9036 = vmatprep.mubr.bf16.mxu0 %v6721
    %9037 = vmatmul.mubr.bf16.gmra.mrb[0].mxu0 %v6352
    %v9038 = vpop.f32.mrb[0].mxu0
    %v9039 = vadd.f32 0.0, %v9038
    %v9040 = vpop.f32.mrb[0].mxu0
    %v9041 = vpop.f32.mrb[0].mxu0
    %v9042 = vadd.f32 0.0, %v9041
    %v9043 = vpop.f32.mrb[0].mxu0
    %9044 = vmatprep.mubr.bf16.mxu0 %v6733
    %9045 = vmatmul.mubr.bf16.gmra.mrb[0].mxu0 %v6353
    %v9046 = vpop.f32.mrb[0].mxu0
    %v9047 = vadd.f32 0.0, %v9046
    %v9048 = vpop.f32.mrb[0].mxu0
    %v9049 = vpop.f32.mrb[0].mxu0
    %v9050 = vadd.f32 0.0, %v9049
    %v9051 = vpop.f32.mrb[0].mxu0
    %9052 = vmatprep.mubr.bf16.mxu0 %v6745
    %9053 = vmatmul.mubr.bf16.gmra.mrb[0].mxu0 %v6354
    %v9054 = vpop.f32.mrb[0].mxu0
    %v9055 = vadd.f32 0.0, %v9054
    %v9056 = vpop.f32.mrb[0].mxu0
    %v9057 = vpop.f32.mrb[0].mxu0
    %v9058 = vadd.f32 0.0, %v9057
    %v9059 = vpop.f32.mrb[0].mxu0
    %9060 = vmatprep.mubr.bf16.mxu0 %v6757
    %9061 = vmatmul.mubr.bf16.gmra.mrb[0].mxu0 %v6355
    %v9062 = vpop.f32.mrb[0].mxu0
    %v9063 = vadd.f32 0.0, %v9062
    %v9064 = vpop.f32.mrb[0].mxu0
    %v9065 = vpop.f32.mrb[0].mxu0
    %v9066 = vadd.f32 0.0, %v9065
    %v9067 = vpop.f32.mrb[0].mxu0
    %9068 = vmatprep.mubr.bf16.mxu0 %v6769
    %9069 = vmatmul.mubr.bf16.gmra.mrb[0].mxu0 %v6356
    %v9070 = vpop.f32.mrb[0].mxu0
    %v9071 = vadd.f32 0.0, %v9070
    %v9072 = vpop.f32.mrb[0].mxu0
    %v9073 = vpop.f32.mrb[0].mxu0
    %v9074 = vadd.f32 0.0, %v9073
    %v9075 = vpop.f32.mrb[0].mxu0
    %9076 = vmatprep.mubr.bf16.mxu0 %v6781
    %9077 = vmatmul.mubr.bf16.gmra.mrb[0].mxu0 %v6357
    %v9078 = vpop.f32.mrb[0].mxu0
    %v9079 = vadd.f32 0.0, %v9078
    %v9080 = vpop.f32.mrb[0].mxu0
    %v9081 = vpop.f32.mrb[0].mxu0
    %v9082 = vadd.f32 0.0, %v9081
    %v9083 = vpop.f32.mrb[0].mxu0
    %9084 = vmatprep.mubr.bf16.mxu0 %v6793
    %9085 = vmatmul.mubr.bf16.gmra.mrb[0].mxu0 %v6358
    %v9086 = vpop.f32.mrb[0].mxu0
    %v9087 = vadd.f32 0.0, %v9086
    %v9088 = vpop.f32.mrb[0].mxu0
    %v9089 = vpop.f32.mrb[0].mxu0
    %v9090 = vadd.f32 0.0, %v9089
    %v9091 = vpop.f32.mrb[0].mxu0
    %9092 = vmatprep.mubr.bf16.mxu0 %v6805
    %9093 = vmatmul.mubr.bf16.gmra.mrb[0].mxu0 %v6359
    %v9094 = vpop.f32.mrb[0].mxu0
    %v9095 = vadd.f32 0.0, %v9094
    %v9096 = vpop.f32.mrb[0].mxu0
    %v9097 = vpop.f32.mrb[0].mxu0
    %v9098 = vadd.f32 0.0, %v9097
    %v9099 = vpop.f32.mrb[0].mxu0
    %9100 = vmatprep.mubr.bf16.mxu0 %v6817
    %9101 = vmatmul.mubr.bf16.gmra.mrb[0].mxu0 %v6360
    %v9102 = vpop.f32.mrb[0].mxu0
    %v9103 = vadd.f32 0.0, %v9102
    %v9104 = vpop.f32.mrb[0].mxu0
    %v9105 = vpop.f32.mrb[0].mxu0
    %v9106 = vadd.f32 0.0, %v9105
    %v9107 = vpop.f32.mrb[0].mxu0
    %9108 = vmatprep.mubr.bf16.mxu0 %v6829
    %9109 = vmatmul.mubr.bf16.gmra.mrb[0].mxu0 %v6361
    %v9110 = vpop.f32.mrb[0].mxu0
    %v9111 = vadd.f32 0.0, %v9110
    %v9112 = vpop.f32.mrb[0].mxu0
    %v9113 = vpop.f32.mrb[0].mxu0
    %v9114 = vadd.f32 0.0, %v9113
    %v9115 = vpop.f32.mrb[0].mxu0
    %9116 = vmatprep.mubr.bf16.mxu0 %v6841
    %9117 = vmatmul.mubr.bf16.gmra.mrb[0].mxu0 %v6362
    %v9118 = vpop.f32.mrb[0].mxu0
    %v9119 = vadd.f32 0.0, %v9118
    %v9120 = vpop.f32.mrb[0].mxu0
    %v9121 = vpop.f32.mrb[0].mxu0
    %v9122 = vadd.f32 0.0, %v9121
    %v9123 = vpop.f32.mrb[0].mxu0
    %9124 = vmatprep.mubr.bf16.mxu0 %v6853
    %9125 = vmatmul.mubr.bf16.gmra.mrb[0].mxu0 %v6363
    %v9126 = vpop.f32.mrb[0].mxu0
    %v9127 = vadd.f32 0.0, %v9126
    %v9128 = vpop.f32.mrb[0].mxu0
    %v9129 = vpop.f32.mrb[0].mxu0
    %v9130 = vadd.f32 0.0, %v9129
    %v9131 = vpop.f32.mrb[0].mxu0
    %9132 = vmatprep.mubr.bf16.mxu0 %v6865
    %9133 = vmatmul.mubr.bf16.gmra.mrb[0].mxu0 %v6364
    %v9134 = vpop.f32.mrb[0].mxu0
    %v9135 = vadd.f32 0.0, %v9134
    %v9136 = vpop.f32.mrb[0].mxu0
    %v9137 = vpop.f32.mrb[0].mxu0
    %v9138 = vadd.f32 0.0, %v9137
    %v9139 = vpop.f32.mrb[0].mxu0
    %9140 = vmatprep.mubr.bf16.mxu0 %v6877
    %9141 = vmatmul.mubr.bf16.gmra.mrb[0].mxu0 %v6365
    %v9142 = vpop.f32.mrb[0].mxu0
    %v9143 = vadd.f32 0.0, %v9142
    %v9144 = vpop.f32.mrb[0].mxu0
    %v9145 = vpop.f32.mrb[0].mxu0
    %v9146 = vadd.f32 0.0, %v9145
    %v9147 = vpop.f32.mrb[0].mxu0
    %9148 = vmatprep.mubr.bf16.mxu0 %v7127
    %9149 = vmatmul.mubr.bf16.gmra.mrb[0].mxu0 %v7095
    %v9150 = vpop.f32.mrb[0].mxu0
    %v9151 = vadd.f32 0.0, %v9150
    %v9152 = vpop.f32.mrb[0].mxu0
    %v9153 = vpop.f32.mrb[0].mxu0
    %v9154 = vadd.f32 0.0, %v9153
    %v9155 = vpop.f32.mrb[0].mxu0
    %9156 = vmatprep.mubr.bf16.mxu0 %v8672
    %9157 = vmatmul.mubr.bf16.gmra.mrb[0].mxu0 %v8640
    %v9158 = vpop.f32.mrb[0].mxu0
    %v9159 = vadd.f32 0.0, %v9158
    %v9160 = vpop.f32.mrb[0].mxu0
    %v9161 = vpop.f32.mrb[0].mxu0
    %v9162 = vadd.f32 0.0, %v9161
    %v9163 = vpop.f32.mrb[0].mxu0
    %9164 = vdwg.mxu0
    %9165 = vmatprep.subr.bf16.mxu0 0
    %9166 = vmatpush1.bf16.msra.mxu0 %v8844
    %9167 = vmatprep.subr.bf16.mxu0 0
    %9168 = vmatpush1.bf16.msra.mxu0 %v8845
    %9169 = vmatprep.subr.bf16.mxu0 0
    %9170 = vmatpush1.bf16.msra.mxu0 %v8846
    %9171 = vmatprep.subr.bf16.mxu0 0
    %9172 = vmatpush1.bf16.msra.mxu0 %v8847
    %9173 = vmatprep.subr.bf16.mxu0 0
    %9174 = vmatpush1.bf16.msra.mxu0 %v8848
    %9175 = vmatprep.subr.bf16.mxu0 0
    %9176 = vmatpush1.bf16.msra.mxu0 %v8849
    %9177 = vmatprep.subr.bf16.mxu0 0
    %9178 = vmatpush1.bf16.msra.mxu0 %v8850
    %9179 = vmatprep.subr.bf16.mxu0 0
    %9180 = vmatpush1.bf16.msra.mxu0 %v8851
    %9181 = vmatprep.subr.bf16.mxu0 0
    %9182 = vmatpush1.bf16.msra.mxu0 0
    %9183 = vmatprep.subr.bf16.mxu0 0
    %9184 = vmatpush1.bf16.msra.mxu0 0
    %9185 = vmatprep.subr.bf16.mxu0 0
    %9186 = vmatpush1.bf16.msra.mxu0 0
    %9187 = vmatprep.subr.bf16.mxu0 0
    %9188 = vmatpush1.bf16.msra.mxu0 0
    %9189 = vmatprep.subr.bf16.mxu0 0
    %9190 = vmatpush1.bf16.msra.mxu0 0
    %9191 = vmatprep.subr.bf16.mxu0 0
    %9192 = vmatpush1.bf16.msra.mxu0 0
    %9193 = vmatprep.subr.bf16.mxu0 0
    %9194 = vmatpush1.bf16.msra.mxu0 0
    %9195 = vmatprep.subr.bf16.mxu0 0
    %9196 = vmatpush1.bf16.msra.mxu0 0
    %9197 = vmatprep.mubr.bf16.mxu0 0
    %9198 = vmatmul.mubr.bf16.gmra.mrb[0].mxu0 %v6918
    %v9199 = vpop.f32.mrb[0].mxu0
    %v9200 = vadd.f32 %v8911, %v9199
    %v9201 = vpop.f32.mrb[0].mxu0
    %v9202 = vpop.f32.mrb[0].mxu0
    %v9203 = vadd.f32 %v8914, %v9202
    %v9204 = vpop.f32.mrb[0].mxu0
    %9205 = vmatprep.mubr.bf16.mxu0 0
    %9206 = vmatmul.mubr.bf16.gmra.mrb[0].mxu0 %v6921
    %v9207 = vpop.f32.mrb[0].mxu0
    %v9208 = vadd.f32 %v8919, %v9207
    %v9209 = vpop.f32.mrb[0].mxu0
    %v9210 = vpop.f32.mrb[0].mxu0
    %v9211 = vadd.f32 %v8922, %v9210
    %v9212 = vpop.f32.mrb[0].mxu0
    %9213 = vmatprep.mubr.bf16.mxu0 0
    %9214 = vmatmul.mubr.bf16.gmra.mrb[0].mxu0 %v6924
    %v9215 = vpop.f32.mrb[0].mxu0
    %v9216 = vadd.f32 %v8927, %v9215
    %v9217 = vpop.f32.mrb[0].mxu0
    %v9218 = vpop.f32.mrb[0].mxu0
    %v9219 = vadd.f32 %v8930, %v9218
    %v9220 = vpop.f32.mrb[0].mxu0
    %9221 = vmatprep.mubr.bf16.mxu0 0
    %9222 = vmatmul.mubr.bf16.gmra.mrb[0].mxu0 %v6927
    %v9223 = vpop.f32.mrb[0].mxu0
    %v9224 = vadd.f32 %v8935, %v9223
    %v9225 = vpop.f32.mrb[0].mxu0
    %v9226 = vpop.f32.mrb[0].mxu0
    %v9227 = vadd.f32 %v8938, %v9226
    %v9228 = vpop.f32.mrb[0].mxu0
    %9229 = vmatprep.mubr.bf16.mxu0 0
    %9230 = vmatmul.mubr.bf16.gmra.mrb[0].mxu0 %v6930
    %v9231 = vpop.f32.mrb[0].mxu0
    %v9232 = vadd.f32 %v8943, %v9231
    %v9233 = vpop.f32.mrb[0].mxu0
    %v9234 = vpop.f32.mrb[0].mxu0
    %v9235 = vadd.f32 %v8946, %v9234
    %v9236 = vpop.f32.mrb[0].mxu0
    %9237 = vmatprep.mubr.bf16.mxu0 0
    %9238 = vmatmul.mubr.bf16.gmra.mrb[0].mxu0 %v6933
    %v9239 = vpop.f32.mrb[0].mxu0
    %v9240 = vadd.f32 %v8951, %v9239
    %v9241 = vpop.f32.mrb[0].mxu0
    %v9242 = vpop.f32.mrb[0].mxu0
    %v9243 = vadd.f32 %v8954, %v9242
    %v9244 = vpop.f32.mrb[0].mxu0
    %9245 = vmatprep.mubr.bf16.mxu0 0
    %9246 = vmatmul.mubr.bf16.gmra.mrb[0].mxu0 %v6936
    %v9247 = vpop.f32.mrb[0].mxu0
    %v9248 = vadd.f32 %v8959, %v9247
    %v9249 = vpop.f32.mrb[0].mxu0
    %v9250 = vpop.f32.mrb[0].mxu0
    %v9251 = vadd.f32 %v8962, %v9250
    %v9252 = vpop.f32.mrb[0].mxu0
    %9253 = vmatprep.mubr.bf16.mxu0 0
    %9254 = vmatmul.mubr.bf16.gmra.mrb[0].mxu0 %v6939
    %v9255 = vpop.f32.mrb[0].mxu0
    %v9256 = vadd.f32 %v8967, %v9255
    %v9257 = vpop.f32.mrb[0].mxu0
    %v9258 = vpop.f32.mrb[0].mxu0
    %v9259 = vadd.f32 %v8970, %v9258
    %v9260 = vpop.f32.mrb[0].mxu0
    %9261 = vmatprep.mubr.bf16.mxu0 0
    %9262 = vmatmul.mubr.bf16.gmra.mrb[0].mxu0 %v6942
    %v9263 = vpop.f32.mrb[0].mxu0
    %v9264 = vadd.f32 %v8975, %v9263
    %v9265 = vpop.f32.mrb[0].mxu0
    %v9266 = vpop.f32.mrb[0].mxu0
    %v9267 = vadd.f32 %v8978, %v9266
    %v9268 = vpop.f32.mrb[0].mxu0
    %9269 = vmatprep.mubr.bf16.mxu0 0
    %9270 = vmatmul.mubr.bf16.gmra.mrb[0].mxu0 %v6945
    %v9271 = vpop.f32.mrb[0].mxu0
    %v9272 = vadd.f32 %v8983, %v9271
    %v9273 = vpop.f32.mrb[0].mxu0
    %v9274 = vpop.f32.mrb[0].mxu0
    %v9275 = vadd.f32 %v8986, %v9274
    %v9276 = vpop.f32.mrb[0].mxu0
    %9277 = vmatprep.mubr.bf16.mxu0 0
    %9278 = vmatmul.mubr.bf16.gmra.mrb[0].mxu0 %v6948
    %v9279 = vpop.f32.mrb[0].mxu0
    %v9280 = vadd.f32 %v8991, %v9279
    %v9281 = vpop.f32.mrb[0].mxu0
    %v9282 = vpop.f32.mrb[0].mxu0
    %v9283 = vadd.f32 %v8994, %v9282
    %v9284 = vpop.f32.mrb[0].mxu0
    %9285 = vmatprep.mubr.bf16.mxu0 0
    %9286 = vmatmul.mubr.bf16.gmra.mrb[0].mxu0 %v6951
    %v9287 = vpop.f32.mrb[0].mxu0
    %v9288 = vadd.f32 %v8999, %v9287
    %v9289 = vpop.f32.mrb[0].mxu0
    %v9290 = vpop.f32.mrb[0].mxu0
    %v9291 = vadd.f32 %v9002, %v9290
    %v9292 = vpop.f32.mrb[0].mxu0
    %9293 = vmatprep.mubr.bf16.mxu0 0
    %9294 = vmatmul.mubr.bf16.gmra.mrb[0].mxu0 %v6954
    %v9295 = vpop.f32.mrb[0].mxu0
    %v9296 = vadd.f32 %v9007, %v9295
    %v9297 = vpop.f32.mrb[0].mxu0
    %v9298 = vpop.f32.mrb[0].mxu0
    %v9299 = vadd.f32 %v9010, %v9298
    %v9300 = vpop.f32.mrb[0].mxu0
    %9301 = vmatprep.mubr.bf16.mxu0 0
    %9302 = vmatmul.mubr.bf16.gmra.mrb[0].mxu0 %v6957
    %v9303 = vpop.f32.mrb[0].mxu0
    %v9304 = vadd.f32 %v9015, %v9303
    %v9305 = vpop.f32.mrb[0].mxu0
    %v9306 = vpop.f32.mrb[0].mxu0
    %v9307 = vadd.f32 %v9018, %v9306
    %v9308 = vpop.f32.mrb[0].mxu0
    %9309 = vmatprep.mubr.bf16.mxu0 0
    %9310 = vmatmul.mubr.bf16.gmra.mrb[0].mxu0 %v7132
    %v9311 = vpop.f32.mrb[0].mxu0
    %v9312 = vadd.f32 %v9023, %v9311
    %v9313 = vpop.f32.mrb[0].mxu0
    %v9314 = vpop.f32.mrb[0].mxu0
    %v9315 = vadd.f32 %v9026, %v9314
    %v9316 = vpop.f32.mrb[0].mxu0
    %9317 = vmatprep.mubr.bf16.mxu0 0
    %9318 = vmatmul.mubr.bf16.gmra.mrb[0].mxu0 %v8677
    %v9319 = vpop.f32.mrb[0].mxu0
    %v9320 = vadd.f32 %v9031, %v9319
    %v9321 = vpop.f32.mrb[0].mxu0
    %v9322 = vpop.f32.mrb[0].mxu0
    %v9323 = vadd.f32 %v9034, %v9322
    %v9324 = vpop.f32.mrb[0].mxu0
    %9325 = vmatprep.mubr.bf16.mxu0 0
    %9326 = vmatmul.mubr.bf16.gmra.mrb[0].mxu0 %v6966
    %v9327 = vpop.f32.mrb[0].mxu0
    %v9328 = vadd.f32 %v9039, %v9327
    %v9329 = vpop.f32.mrb[0].mxu0
    %v9330 = vpop.f32.mrb[0].mxu0
    %v9331 = vadd.f32 %v9042, %v9330
    %v9332 = vpop.f32.mrb[0].mxu0
    %9333 = vmatprep.mubr.bf16.mxu0 0
    %9334 = vmatmul.mubr.bf16.gmra.mrb[0].mxu0 %v6969
    %v9335 = vpop.f32.mrb[0].mxu0
    %v9336 = vadd.f32 %v9047, %v9335
    %v9337 = vpop.f32.mrb[0].mxu0
    %v9338 = vpop.f32.mrb[0].mxu0
    %v9339 = vadd.f32 %v9050, %v9338
    %v9340 = vpop.f32.mrb[0].mxu0
    %9341 = vmatprep.mubr.bf16.mxu0 0
    %9342 = vmatmul.mubr.bf16.gmra.mrb[0].mxu0 %v6972
    %v9343 = vpop.f32.mrb[0].mxu0
    %v9344 = vadd.f32 %v9055, %v9343
    %v9345 = vpop.f32.mrb[0].mxu0
    %v9346 = vpop.f32.mrb[0].mxu0
    %v9347 = vadd.f32 %v9058, %v9346
    %v9348 = vpop.f32.mrb[0].mxu0
    %9349 = vmatprep.mubr.bf16.mxu0 0
    %9350 = vmatmul.mubr.bf16.gmra.mrb[0].mxu0 %v6975
    %v9351 = vpop.f32.mrb[0].mxu0
    %v9352 = vadd.f32 %v9063, %v9351
    %v9353 = vpop.f32.mrb[0].mxu0
    %v9354 = vpop.f32.mrb[0].mxu0
    %v9355 = vadd.f32 %v9066, %v9354
    %v9356 = vpop.f32.mrb[0].mxu0
    %9357 = vmatprep.mubr.bf16.mxu0 0
    %9358 = vmatmul.mubr.bf16.gmra.mrb[0].mxu0 %v6978
    %v9359 = vpop.f32.mrb[0].mxu0
    %v9360 = vadd.f32 %v9071, %v9359
    %v9361 = vpop.f32.mrb[0].mxu0
    %v9362 = vpop.f32.mrb[0].mxu0
    %v9363 = vadd.f32 %v9074, %v9362
    %v9364 = vpop.f32.mrb[0].mxu0
    %9365 = vmatprep.mubr.bf16.mxu0 0
    %9366 = vmatmul.mubr.bf16.gmra.mrb[0].mxu0 %v6981
    %v9367 = vpop.f32.mrb[0].mxu0
    %v9368 = vadd.f32 %v9079, %v9367
    %v9369 = vpop.f32.mrb[0].mxu0
    %v9370 = vpop.f32.mrb[0].mxu0
    %v9371 = vadd.f32 %v9082, %v9370
    %v9372 = vpop.f32.mrb[0].mxu0
    %9373 = vmatprep.mubr.bf16.mxu0 0
    %9374 = vmatmul.mubr.bf16.gmra.mrb[0].mxu0 %v6984
    %v9375 = vpop.f32.mrb[0].mxu0
    %v9376 = vadd.f32 %v9087, %v9375
    %v9377 = vpop.f32.mrb[0].mxu0
    %v9378 = vpop.f32.mrb[0].mxu0
    %v9379 = vadd.f32 %v9090, %v9378
    %v9380 = vpop.f32.mrb[0].mxu0
    %9381 = vmatprep.mubr.bf16.mxu0 0
    %9382 = vmatmul.mubr.bf16.gmra.mrb[0].mxu0 %v6987
    %v9383 = vpop.f32.mrb[0].mxu0
    %v9384 = vadd.f32 %v9095, %v9383
    %v9385 = vpop.f32.mrb[0].mxu0
    %v9386 = vpop.f32.mrb[0].mxu0
    %v9387 = vadd.f32 %v9098, %v9386
    %v9388 = vpop.f32.mrb[0].mxu0
    %9389 = vmatprep.mubr.bf16.mxu0 0
    %9390 = vmatmul.mubr.bf16.gmra.mrb[0].mxu0 %v6990
    %v9391 = vpop.f32.mrb[0].mxu0
    %v9392 = vadd.f32 %v9103, %v9391
    %v9393 = vpop.f32.mrb[0].mxu0
    %v9394 = vpop.f32.mrb[0].mxu0
    %v9395 = vadd.f32 %v9106, %v9394
    %v9396 = vpop.f32.mrb[0].mxu0
    %9397 = vmatprep.mubr.bf16.mxu0 0
    %9398 = vmatmul.mubr.bf16.gmra.mrb[0].mxu0 %v6993
    %v9399 = vpop.f32.mrb[0].mxu0
    %v9400 = vadd.f32 %v9111, %v9399
    %v9401 = vpop.f32.mrb[0].mxu0
    %v9402 = vpop.f32.mrb[0].mxu0
    %v9403 = vadd.f32 %v9114, %v9402
    %v9404 = vpop.f32.mrb[0].mxu0
    %9405 = vmatprep.mubr.bf16.mxu0 0
    %9406 = vmatmul.mubr.bf16.gmra.mrb[0].mxu0 %v6996
    %v9407 = vpop.f32.mrb[0].mxu0
    %v9408 = vadd.f32 %v9119, %v9407
    %v9409 = vpop.f32.mrb[0].mxu0
    %v9410 = vpop.f32.mrb[0].mxu0
    %v9411 = vadd.f32 %v9122, %v9410
    %v9412 = vpop.f32.mrb[0].mxu0
    %9413 = vmatprep.mubr.bf16.mxu0 0
    %9414 = vmatmul.mubr.bf16.gmra.mrb[0].mxu0 %v6999
    %v9415 = vpop.f32.mrb[0].mxu0
    %v9416 = vadd.f32 %v9127, %v9415
    %v9417 = vpop.f32.mrb[0].mxu0
    %v9418 = vpop.f32.mrb[0].mxu0
    %v9419 = vadd.f32 %v9130, %v9418
    %v9420 = vpop.f32.mrb[0].mxu0
    %9421 = vmatprep.mubr.bf16.mxu0 0
    %9422 = vmatmul.mubr.bf16.gmra.mrb[0].mxu0 %v7002
    %v9423 = vpop.f32.mrb[0].mxu0
    %v9424 = vadd.f32 %v9135, %v9423
    %v9425 = vpop.f32.mrb[0].mxu0
    %v9426 = vpop.f32.mrb[0].mxu0
    %v9427 = vadd.f32 %v9138, %v9426
    %v9428 = vpop.f32.mrb[0].mxu0
    %9429 = vmatprep.mubr.bf16.mxu0 0
    %9430 = vmatmul.mubr.bf16.gmra.mrb[0].mxu0 %v7005
    %v9431 = vpop.f32.mrb[0].mxu0
    %v9432 = vadd.f32 %v9143, %v9431
    %v9433 = vpop.f32.mrb[0].mxu0
    %v9434 = vpop.f32.mrb[0].mxu0
    %v9435 = vadd.f32 %v9146, %v9434
    %v9436 = vpop.f32.mrb[0].mxu0
    %9437 = vmatprep.mubr.bf16.mxu0 0
    %9438 = vmatmul.mubr.bf16.gmra.mrb[0].mxu0 %v7135
    %v9439 = vpop.f32.mrb[0].mxu0
    %v9440 = vadd.f32 %v9151, %v9439
    %v9441 = vpop.f32.mrb[0].mxu0
    %v9442 = vpop.f32.mrb[0].mxu0
    %v9443 = vadd.f32 %v9154, %v9442
    %v9444 = vpop.f32.mrb[0].mxu0
    %9445 = vmatprep.mubr.bf16.mxu0 0
    %9446 = vmatmul.mubr.bf16.gmra.mrb[0].mxu0 %v8680
    %v9447 = vpop.f32.mrb[0].mxu0
    %v9448 = vadd.f32 %v9159, %v9447
    %v9449 = vpop.f32.mrb[0].mxu0
    %v9450 = vpop.f32.mrb[0].mxu0
    %v9451 = vadd.f32 %v9162, %v9450
    %v9452 = vpop.f32.mrb[0].mxu0
    %9453 = vdwg.mxu0
    %v9454 = vadd.f32 %v8377, %v9200
    %v9455 = vadd.f32 %v8380, %v9203
    %v9456 = vadd.f32 %v8385, %v9208
    %v9457 = vadd.f32 %v8388, %v9211
    %v9458 = vadd.f32 %v8393, %v9216
    %v9459 = vadd.f32 %v8396, %v9219
    %v9460 = vadd.f32 %v8401, %v9224
    %v9461 = vadd.f32 %v8404, %v9227
    %v9462 = vadd.f32 %v8409, %v9232
    %v9463 = vadd.f32 %v8412, %v9235
    %v9464 = vadd.f32 %v8417, %v9240
    %v9465 = vadd.f32 %v8420, %v9243
    %v9466 = vadd.f32 %v8425, %v9248
    %v9467 = vadd.f32 %v8428, %v9251
    %v9468 = vadd.f32 %v8433, %v9256
    %v9469 = vadd.f32 %v8436, %v9259
    %v9470 = vadd.f32 %v8441, %v9264
    %v9471 = vadd.f32 %v8444, %v9267
    %v9472 = vadd.f32 %v8449, %v9272
    %v9473 = vadd.f32 %v8452, %v9275
    %v9474 = vadd.f32 %v8457, %v9280
    %v9475 = vadd.f32 %v8460, %v9283
    %v9476 = vadd.f32 %v8465, %v9288
    %v9477 = vadd.f32 %v8468, %v9291
    %v9478 = vadd.f32 %v8473, %v9296
    %v9479 = vadd.f32 %v8476, %v9299
    %v9480 = vadd.f32 %v8481, %v9304
    %v9481 = vadd.f32 %v8484, %v9307
    %v9482 = vadd.f32 %v8489, %v9312
    %v9483 = vadd.f32 %v8492, %v9315
    %v9484 = vadd.f32 %v8497, %v9320
    %v9485 = vadd.f32 %v8500, %v9323
    %v9486 = vadd.f32 %v8505, %v9328
    %v9487 = vadd.f32 %v8508, %v9331
    %v9488 = vadd.f32 %v8513, %v9336
    %v9489 = vadd.f32 %v8516, %v9339
    %v9490 = vadd.f32 %v8521, %v9344
    %v9491 = vadd.f32 %v8524, %v9347
    %v9492 = vadd.f32 %v8529, %v9352
    %v9493 = vadd.f32 %v8532, %v9355
    %v9494 = vadd.f32 %v8537, %v9360
    %v9495 = vadd.f32 %v8540, %v9363
    %v9496 = vadd.f32 %v8545, %v9368
    %v9497 = vadd.f32 %v8548, %v9371
    %v9498 = vadd.f32 %v8553, %v9376
    %v9499 = vadd.f32 %v8556, %v9379
    %v9500 = vadd.f32 %v8561, %v9384
    %v9501 = vadd.f32 %v8564, %v9387
    %v9502 = vadd.f32 %v8569, %v9392
    %v9503 = vadd.f32 %v8572, %v9395
    %v9504 = vadd.f32 %v8577, %v9400
    %v9505 = vadd.f32 %v8580, %v9403
    %v9506 = vadd.f32 %v8585, %v9408
    %v9507 = vadd.f32 %v8588, %v9411
    %v9508 = vadd.f32 %v8593, %v9416
    %v9509 = vadd.f32 %v8596, %v9419
    %v9510 = vadd.f32 %v8601, %v9424
    %v9511 = vadd.f32 %v8604, %v9427
    %v9512 = vadd.f32 %v8609, %v9432
    %v9513 = vadd.f32 %v8612, %v9435
    %v9514 = vadd.f32 %v8617, %v9440
    %v9515 = vadd.f32 %v8620, %v9443
    %v9516 = vadd.f32 %v8625, %v9448
    %v9517 = vadd.f32 %v8628, %v9451
    %v9518 = vlaneseq
    %v9519 = vshrl.u32 %v9518, 7
    %v9520 = vsub.s32 2, %v9519
    %v9521 = vrot.slane %v36, %v9520
    %v9522 = vmul.f32 %v9454, %v9521
    %v9523 = vmul.f32 %v9455, %v9521
    %v9524 = vmul.f32 %v9456, %v9521
    %v9525 = vmul.f32 %v9457, %v9521
    %v9526 = vmul.f32 %v9458, %v9521
    %v9527 = vmul.f32 %v9459, %v9521
    %v9528 = vmul.f32 %v9460, %v9521
    %v9529 = vmul.f32 %v9461, %v9521
    %v9530 = vmul.f32 %v9462, %v9521
    %v9531 = vmul.f32 %v9463, %v9521
    %v9532 = vmul.f32 %v9464, %v9521
    %v9533 = vmul.f32 %v9465, %v9521
    %v9534 = vmul.f32 %v9466, %v9521
    %v9535 = vmul.f32 %v9467, %v9521
    %v9536 = vmul.f32 %v9468, %v9521
    %v9537 = vmul.f32 %v9469, %v9521
    %v9538 = vmul.f32 %v9470, %v9521
    %v9539 = vmul.f32 %v9471, %v9521
    %v9540 = vmul.f32 %v9472, %v9521
    %v9541 = vmul.f32 %v9473, %v9521
    %v9542 = vmul.f32 %v9474, %v9521
    %v9543 = vmul.f32 %v9475, %v9521
    %v9544 = vmul.f32 %v9476, %v9521
    %v9545 = vmul.f32 %v9477, %v9521
    %v9546 = vmul.f32 %v9478, %v9521
    %v9547 = vmul.f32 %v9479, %v9521
    %v9548 = vmul.f32 %v9480, %v9521
    %v9549 = vmul.f32 %v9481, %v9521
    %v9550 = vmul.f32 %v9482, %v9521
    %v9551 = vmul.f32 %v9483, %v9521
    %v9552 = vmul.f32 %v9484, %v9521
    %v9553 = vmul.f32 %v9485, %v9521
    %v9554 = vmul.f32 %v9486, %v9521
    %v9555 = vmul.f32 %v9487, %v9521
    %v9556 = vmul.f32 %v9488, %v9521
    %v9557 = vmul.f32 %v9489, %v9521
    %v9558 = vmul.f32 %v9490, %v9521
    %v9559 = vmul.f32 %v9491, %v9521
    %v9560 = vmul.f32 %v9492, %v9521
    %v9561 = vmul.f32 %v9493, %v9521
    %v9562 = vmul.f32 %v9494, %v9521
    %v9563 = vmul.f32 %v9495, %v9521
    %v9564 = vmul.f32 %v9496, %v9521
    %v9565 = vmul.f32 %v9497, %v9521
    %v9566 = vmul.f32 %v9498, %v9521
    %v9567 = vmul.f32 %v9499, %v9521
    %v9568 = vmul.f32 %v9500, %v9521
    %v9569 = vmul.f32 %v9501, %v9521
    %v9570 = vmul.f32 %v9502, %v9521
    %v9571 = vmul.f32 %v9503, %v9521
    %v9572 = vmul.f32 %v9504, %v9521
    %v9573 = vmul.f32 %v9505, %v9521
    %v9574 = vmul.f32 %v9506, %v9521
    %v9575 = vmul.f32 %v9507, %v9521
    %v9576 = vmul.f32 %v9508, %v9521
    %v9577 = vmul.f32 %v9509, %v9521
    %v9578 = vmul.f32 %v9510, %v9521
    %v9579 = vmul.f32 %v9511, %v9521
    %v9580 = vmul.f32 %v9512, %v9521
    %v9581 = vmul.f32 %v9513, %v9521
    %v9582 = vmul.f32 %v9514, %v9521
    %v9583 = vmul.f32 %v9515, %v9521
    %v9584 = vmul.f32 %v9516, %v9521
    %v9585 = vmul.f32 %v9517, %v9521
    %v9586 = vlaneseq
    %v9587 = vshrl.u32 %v9586, 7
    %v9588 = vsub.s32 3, %v9587
    %v9589 = vrot.slane %v36, %v9588
    %v9590 = vadd.f32 %v9522, %v9589
    %v9591 = vadd.f32 %v9523, %v9589
    %v9592 = vadd.f32 %v9524, %v9589
    %v9593 = vadd.f32 %v9525, %v9589
    %v9594 = vadd.f32 %v9526, %v9589
    %v9595 = vadd.f32 %v9527, %v9589
    %v9596 = vadd.f32 %v9528, %v9589
    %v9597 = vadd.f32 %v9529, %v9589
    %v9598 = vadd.f32 %v9530, %v9589
    %v9599 = vadd.f32 %v9531, %v9589
    %v9600 = vadd.f32 %v9532, %v9589
    %v9601 = vadd.f32 %v9533, %v9589
    %v9602 = vadd.f32 %v9534, %v9589
    %v9603 = vadd.f32 %v9535, %v9589
    %v9604 = vadd.f32 %v9536, %v9589
    %v9605 = vadd.f32 %v9537, %v9589
    %v9606 = vadd.f32 %v9538, %v9589
    %v9607 = vadd.f32 %v9539, %v9589
    %v9608 = vadd.f32 %v9540, %v9589
    %v9609 = vadd.f32 %v9541, %v9589
    %v9610 = vadd.f32 %v9542, %v9589
    %v9611 = vadd.f32 %v9543, %v9589
    %v9612 = vadd.f32 %v9544, %v9589
    %v9613 = vadd.f32 %v9545, %v9589
    %v9614 = vadd.f32 %v9546, %v9589
    %v9615 = vadd.f32 %v9547, %v9589
    %v9616 = vadd.f32 %v9548, %v9589
    %v9617 = vadd.f32 %v9549, %v9589
    %v9618 = vadd.f32 %v9550, %v9589
    %v9619 = vadd.f32 %v9551, %v9589
    %v9620 = vadd.f32 %v9552, %v9589
    %v9621 = vadd.f32 %v9553, %v9589
    %v9622 = vadd.f32 %v9554, %v9589
    %v9623 = vadd.f32 %v9555, %v9589
    %v9624 = vadd.f32 %v9556, %v9589
    %v9625 = vadd.f32 %v9557, %v9589
    %v9626 = vadd.f32 %v9558, %v9589
    %v9627 = vadd.f32 %v9559, %v9589
    %v9628 = vadd.f32 %v9560, %v9589
    %v9629 = vadd.f32 %v9561, %v9589
    %v9630 = vadd.f32 %v9562, %v9589
    %v9631 = vadd.f32 %v9563, %v9589
    %v9632 = vadd.f32 %v9564, %v9589
    %v9633 = vadd.f32 %v9565, %v9589
    %v9634 = vadd.f32 %v9566, %v9589
    %v9635 = vadd.f32 %v9567, %v9589
    %v9636 = vadd.f32 %v9568, %v9589
    %v9637 = vadd.f32 %v9569, %v9589
    %v9638 = vadd.f32 %v9570, %v9589
    %v9639 = vadd.f32 %v9571, %v9589
    %v9640 = vadd.f32 %v9572, %v9589
    %v9641 = vadd.f32 %v9573, %v9589
    %v9642 = vadd.f32 %v9574, %v9589
    %v9643 = vadd.f32 %v9575, %v9589
    %v9644 = vadd.f32 %v9576, %v9589
    %v9645 = vadd.f32 %v9577, %v9589
    %v9646 = vadd.f32 %v9578, %v9589
    %v9647 = vadd.f32 %v9579, %v9589
    %v9648 = vadd.f32 %v9580, %v9589
    %v9649 = vadd.f32 %v9581, %v9589
    %v9650 = vadd.f32 %v9582, %v9589
    %v9651 = vadd.f32 %v9583, %v9589
    %v9652 = vadd.f32 %v9584, %v9589
    %v9653 = vadd.f32 %v9585, %v9589
    %v9654 = vmax.f32 %v9590, 0.0
    %v9655 = vmax.f32 %v9591, 0.0
    %v9656 = vmax.f32 %v9592, 0.0
    %v9657 = vmax.f32 %v9593, 0.0
    %v9658 = vmax.f32 %v9594, 0.0
    %v9659 = vmax.f32 %v9595, 0.0
    %v9660 = vmax.f32 %v9596, 0.0
    %v9661 = vmax.f32 %v9597, 0.0
    %v9662 = vmax.f32 %v9598, 0.0
    %v9663 = vmax.f32 %v9599, 0.0
    %v9664 = vmax.f32 %v9600, 0.0
    %v9665 = vmax.f32 %v9601, 0.0
    %v9666 = vmax.f32 %v9602, 0.0
    %v9667 = vmax.f32 %v9603, 0.0
    %v9668 = vmax.f32 %v9604, 0.0
    %v9669 = vmax.f32 %v9605, 0.0
    %v9670 = vmax.f32 %v9606, 0.0
    %v9671 = vmax.f32 %v9607, 0.0
    %v9672 = vmax.f32 %v9608, 0.0
    %v9673 = vmax.f32 %v9609, 0.0
    %v9674 = vmax.f32 %v9610, 0.0
    %v9675 = vmax.f32 %v9611, 0.0
    %v9676 = vmax.f32 %v9612, 0.0
    %v9677 = vmax.f32 %v9613, 0.0
    %v9678 = vmax.f32 %v9614, 0.0
    %v9679 = vmax.f32 %v9615, 0.0
    %v9680 = vmax.f32 %v9616, 0.0
    %v9681 = vmax.f32 %v9617, 0.0
    %v9682 = vmax.f32 %v9618, 0.0
    %v9683 = vmax.f32 %v9619, 0.0
    %v9684 = vmax.f32 %v9620, 0.0
    %v9685 = vmax.f32 %v9621, 0.0
    %v9686 = vmax.f32 %v9622, 0.0
    %v9687 = vmax.f32 %v9623, 0.0
    %v9688 = vmax.f32 %v9624, 0.0
    %v9689 = vmax.f32 %v9625, 0.0
    %v9690 = vmax.f32 %v9626, 0.0
    %v9691 = vmax.f32 %v9627, 0.0
    %v9692 = vmax.f32 %v9628, 0.0
    %v9693 = vmax.f32 %v9629, 0.0
    %v9694 = vmax.f32 %v9630, 0.0
    %v9695 = vmax.f32 %v9631, 0.0
    %v9696 = vmax.f32 %v9632, 0.0
    %v9697 = vmax.f32 %v9633, 0.0
    %v9698 = vmax.f32 %v9634, 0.0
    %v9699 = vmax.f32 %v9635, 0.0
    %v9700 = vmax.f32 %v9636, 0.0
    %v9701 = vmax.f32 %v9637, 0.0
    %v9702 = vmax.f32 %v9638, 0.0
    %v9703 = vmax.f32 %v9639, 0.0
    %v9704 = vmax.f32 %v9640, 0.0
    %v9705 = vmax.f32 %v9641, 0.0
    %v9706 = vmax.f32 %v9642, 0.0
    %v9707 = vmax.f32 %v9643, 0.0
    %v9708 = vmax.f32 %v9644, 0.0
    %v9709 = vmax.f32 %v9645, 0.0
    %v9710 = vmax.f32 %v9646, 0.0
    %v9711 = vmax.f32 %v9647, 0.0
    %v9712 = vmax.f32 %v9648, 0.0
    %v9713 = vmax.f32 %v9649, 0.0
    %v9714 = vmax.f32 %v9650, 0.0
    %v9715 = vmax.f32 %v9651, 0.0
    %v9716 = vmax.f32 %v9652, 0.0
    %v9717 = vmax.f32 %v9653, 0.0
    %vm9718 = vcmask 1042432
    %vm9719 = vcmask 1046532
    %vm9720 = vmor %vm9718, %vm9719
    %v9721 = vrot.slane %v41, 5
    %v9722 = vrot.slane %v9721, 4
    %v9723 = vrot.slane %v42, 5
    %v9724 = vsel %vm9720, %v9722, %v9723
    %v9725 = vrot.slane %v9723, 4
    %v9726 = vrot.slane %v43, 5
    %v9727 = vsel %vm9720, %v9725, %v9726
    %v9728 = vrot.slane %v45, 5
    %v9729 = vrot.slane %v9728, 4
    %v9730 = vrot.slane %v46, 5
    %v9731 = vsel %vm9720, %v9729, %v9730
    %v9732 = vrot.slane %v9730, 4
    %v9733 = vrot.slane %v47, 5
    %v9734 = vsel %vm9720, %v9732, %v9733
    %v9735 = vrot.slane %v49, 5
    %v9736 = vrot.slane %v9735, 4
    %v9737 = vrot.slane %v50, 5
    %v9738 = vsel %vm9720, %v9736, %v9737
    %v9739 = vrot.slane %v9737, 4
    %v9740 = vrot.slane %v51, 5
    %v9741 = vsel %vm9720, %v9739, %v9740
    %v9742 = vrot.slane %v53, 5
    %v9743 = vrot.slane %v9742, 4
    %v9744 = vrot.slane %v54, 5
    %v9745 = vsel %vm9720, %v9743, %v9744
    %v9746 = vrot.slane %v9744, 4
    %v9747 = vrot.slane %v55, 5
    %v9748 = vsel %vm9720, %v9746, %v9747
    %v9749 = vrot.slane %v57, 5
    %v9750 = vrot.slane %v9749, 4
    %v9751 = vrot.slane %v58, 5
    %v9752 = vsel %vm9720, %v9750, %v9751
    %v9753 = vrot.slane %v9751, 4
    %v9754 = vrot.slane %v59, 5
    %v9755 = vsel %vm9720, %v9753, %v9754
    %v9756 = vrot.slane %v61, 5
    %v9757 = vrot.slane %v9756, 4
    %v9758 = vrot.slane %v62, 5
    %v9759 = vsel %vm9720, %v9757, %v9758
    %v9760 = vrot.slane %v9758, 4
    %v9761 = vrot.slane %v63, 5
    %v9762 = vsel %vm9720, %v9760, %v9761
    %v9763 = vrot.slane %v65, 5
    %v9764 = vrot.slane %v9763, 4
    %v9765 = vrot.slane %v66, 5
    %v9766 = vsel %vm9720, %v9764, %v9765
    %v9767 = vrot.slane %v9765, 4
    %v9768 = vrot.slane %v67, 5
    %v9769 = vsel %vm9720, %v9767, %v9768
    %v9770 = vrot.slane %v69, 5
    %v9771 = vrot.slane %v9770, 4
    %v9772 = vrot.slane %v70, 5
    %v9773 = vsel %vm9720, %v9771, %v9772
    %v9774 = vrot.slane %v9772, 4
    %v9775 = vrot.slane %v71, 5
    %v9776 = vsel %vm9720, %v9774, %v9775
    %v9777 = vrot.slane %v73, 5
    %v9778 = vrot.slane %v9777, 4
    %v9779 = vrot.slane %v74, 5
    %v9780 = vsel %vm9720, %v9778, %v9779
    %v9781 = vrot.slane %v9779, 4
    %v9782 = vrot.slane %v75, 5
    %v9783 = vsel %vm9720, %v9781, %v9782
    %v9784 = vrot.slane %v77, 5
    %v9785 = vrot.slane %v9784, 4
    %v9786 = vrot.slane %v78, 5
    %v9787 = vsel %vm9720, %v9785, %v9786
    %v9788 = vrot.slane %v9786, 4
    %v9789 = vrot.slane %v79, 5
    %v9790 = vsel %vm9720, %v9788, %v9789
    %v9791 = vrot.slane %v81, 5
    %v9792 = vrot.slane %v9791, 4
    %v9793 = vrot.slane %v82, 5
    %v9794 = vsel %vm9720, %v9792, %v9793
    %v9795 = vrot.slane %v9793, 4
    %v9796 = vrot.slane %v83, 5
    %v9797 = vsel %vm9720, %v9795, %v9796
    %v9798 = vrot.slane %v85, 5
    %v9799 = vrot.slane %v9798, 4
    %v9800 = vrot.slane %v86, 5
    %v9801 = vsel %vm9720, %v9799, %v9800
    %v9802 = vrot.slane %v9800, 4
    %v9803 = vrot.slane %v87, 5
    %v9804 = vsel %vm9720, %v9802, %v9803
    %v9805 = vrot.slane %v89, 5
    %v9806 = vrot.slane %v9805, 4
    %v9807 = vrot.slane %v90, 5
    %v9808 = vsel %vm9720, %v9806, %v9807
    %v9809 = vrot.slane %v9807, 4
    %v9810 = vrot.slane %v91, 5
    %v9811 = vsel %vm9720, %v9809, %v9810
    %v9812 = vrot.slane %v93, 5
    %v9813 = vrot.slane %v9812, 4
    %v9814 = vrot.slane %v94, 5
    %v9815 = vsel %vm9720, %v9813, %v9814
    %v9816 = vrot.slane %v9814, 4
    %v9817 = vrot.slane %v95, 5
    %v9818 = vsel %vm9720, %v9816, %v9817
    %v9819 = vrot.slane %v97, 5
    %v9820 = vrot.slane %v9819, 4
    %v9821 = vrot.slane %v98, 5
    %v9822 = vsel %vm9720, %v9820, %v9821
    %v9823 = vrot.slane %v9821, 4
    %v9824 = vrot.slane %v99, 5
    %v9825 = vsel %vm9720, %v9823, %v9824
    %v9826 = vrot.slane %v101, 5
    %v9827 = vrot.slane %v9826, 4
    %v9828 = vrot.slane %v102, 5
    %v9829 = vsel %vm9720, %v9827, %v9828
    %v9830 = vrot.slane %v9828, 4
    %v9831 = vrot.slane %v103, 5
    %v9832 = vsel %vm9720, %v9830, %v9831
    %v9833 = vrot.slane %v113, 5
    %v9834 = vrot.slane %v9833, 4
    %v9835 = vrot.slane %v114, 5
    %v9836 = vsel %vm9720, %v9834, %v9835
    %v9837 = vrot.slane %v9835, 4
    %v9838 = vrot.slane %v115, 5
    %v9839 = vsel %vm9720, %v9837, %v9838
    %v9840 = vrot.slane %v117, 5
    %v9841 = vrot.slane %v9840, 4
    %v9842 = vrot.slane %v118, 5
    %v9843 = vsel %vm9720, %v9841, %v9842
    %v9844 = vrot.slane %v9842, 4
    %v9845 = vrot.slane %v119, 5
    %v9846 = vsel %vm9720, %v9844, %v9845
    %v9847 = vrot.slane %v121, 5
    %v9848 = vrot.slane %v9847, 4
    %v9849 = vrot.slane %v122, 5
    %v9850 = vsel %vm9720, %v9848, %v9849
    %v9851 = vrot.slane %v9849, 4
    %v9852 = vrot.slane %v123, 5
    %v9853 = vsel %vm9720, %v9851, %v9852
    %v9854 = vrot.slane %v125, 5
    %v9855 = vrot.slane %v9854, 4
    %v9856 = vrot.slane %v126, 5
    %v9857 = vsel %vm9720, %v9855, %v9856
    %v9858 = vrot.slane %v9856, 4
    %v9859 = vrot.slane %v127, 5
    %v9860 = vsel %vm9720, %v9858, %v9859
    %v9861 = vrot.slane %v129, 5
    %v9862 = vrot.slane %v9861, 4
    %v9863 = vrot.slane %v130, 5
    %v9864 = vsel %vm9720, %v9862, %v9863
    %v9865 = vrot.slane %v9863, 4
    %v9866 = vrot.slane %v131, 5
    %v9867 = vsel %vm9720, %v9865, %v9866
    %v9868 = vrot.slane %v133, 5
    %v9869 = vrot.slane %v9868, 4
    %v9870 = vrot.slane %v134, 5
    %v9871 = vsel %vm9720, %v9869, %v9870
    %v9872 = vrot.slane %v9870, 4
    %v9873 = vrot.slane %v135, 5
    %v9874 = vsel %vm9720, %v9872, %v9873
    %v9875 = vrot.slane %v137, 5
    %v9876 = vrot.slane %v9875, 4
    %v9877 = vrot.slane %v138, 5
    %v9878 = vsel %vm9720, %v9876, %v9877
    %v9879 = vrot.slane %v9877, 4
    %v9880 = vrot.slane %v139, 5
    %v9881 = vsel %vm9720, %v9879, %v9880
    %v9882 = vrot.slane %v141, 5
    %v9883 = vrot.slane %v9882, 4
    %v9884 = vrot.slane %v142, 5
    %v9885 = vsel %vm9720, %v9883, %v9884
    %v9886 = vrot.slane %v9884, 4
    %v9887 = vrot.slane %v143, 5
    %v9888 = vsel %vm9720, %v9886, %v9887
    %v9889 = vrot.slane %v145, 5
    %v9890 = vrot.slane %v9889, 4
    %v9891 = vrot.slane %v146, 5
    %v9892 = vsel %vm9720, %v9890, %v9891
    %v9893 = vrot.slane %v9891, 4
    %v9894 = vrot.slane %v147, 5
    %v9895 = vsel %vm9720, %v9893, %v9894
    %v9896 = vrot.slane %v149, 5
    %v9897 = vrot.slane %v9896, 4
    %v9898 = vrot.slane %v150, 5
    %v9899 = vsel %vm9720, %v9897, %v9898
    %v9900 = vrot.slane %v9898, 4
    %v9901 = vrot.slane %v151, 5
    %v9902 = vsel %vm9720, %v9900, %v9901
    %v9903 = vrot.slane %v153, 5
    %v9904 = vrot.slane %v9903, 4
    %v9905 = vrot.slane %v154, 5
    %v9906 = vsel %vm9720, %v9904, %v9905
    %v9907 = vrot.slane %v9905, 4
    %v9908 = vrot.slane %v155, 5
    %v9909 = vsel %vm9720, %v9907, %v9908
    %v9910 = vrot.slane %v157, 5
    %v9911 = vrot.slane %v9910, 4
    %v9912 = vrot.slane %v158, 5
    %v9913 = vsel %vm9720, %v9911, %v9912
    %v9914 = vrot.slane %v9912, 4
    %v9915 = vrot.slane %v159, 5
    %v9916 = vsel %vm9720, %v9914, %v9915
    %v9917 = vrot.slane %v161, 5
    %v9918 = vrot.slane %v9917, 4
    %v9919 = vrot.slane %v162, 5
    %v9920 = vsel %vm9720, %v9918, %v9919
    %v9921 = vrot.slane %v9919, 4
    %v9922 = vrot.slane %v163, 5
    %v9923 = vsel %vm9720, %v9921, %v9922
    %v9924 = vrot.slane %v165, 5
    %v9925 = vrot.slane %v9924, 4
    %v9926 = vrot.slane %v166, 5
    %v9927 = vsel %vm9720, %v9925, %v9926
    %v9928 = vrot.slane %v9926, 4
    %v9929 = vrot.slane %v167, 5
    %v9930 = vsel %vm9720, %v9928, %v9929
    %v9931 = vrot.slane %v169, 5
    %v9932 = vrot.slane %v9931, 4
    %v9933 = vrot.slane %v170, 5
    %v9934 = vsel %vm9720, %v9932, %v9933
    %v9935 = vrot.slane %v9933, 4
    %v9936 = vrot.slane %v171, 5
    %v9937 = vsel %vm9720, %v9935, %v9936
    %v9938 = vrot.slane %v173, 5
    %v9939 = vrot.slane %v9938, 4
    %v9940 = vrot.slane %v174, 5
    %v9941 = vsel %vm9720, %v9939, %v9940
    %v9942 = vrot.slane %v9940, 4
    %v9943 = vrot.slane %v175, 5
    %v9944 = vsel %vm9720, %v9942, %v9943
    %v9945 = vld [vmem:[%s3] sm:$0xf]
    %v9946 = vld [vmem:[%s3 + $0x4] sm:$0xf]
    %v9947 = vld [vmem:[%s3 + $0x8] sm:$0xf]
    %v9948 = vld [vmem:[%s3 + $0xc] sm:$0xf]
    %v9949 = vld [vmem:[%s3 + $0x10] sm:$0xf]
    %v9950 = vld [vmem:[%s3 + $0x14] sm:$0xf]
    %v9951 = vld [vmem:[%s3 + $0x18] sm:$0xf]
    %v9952 = vld [vmem:[%s3 + $0x1c] sm:$0xf]
    %v9953 = vld [vmem:[%s3 + $0x20] sm:$0xf]
    %v9954 = vld [vmem:[%s3 + $0x24] sm:$0xf]
    %v9955 = vld [vmem:[%s3 + $0x28] sm:$0xf]
    %v9956 = vld [vmem:[%s3 + $0x2c] sm:$0xf]
    %v9957 = vld [vmem:[%s3 + $0x30] sm:$0xf]
    %v9958 = vld [vmem:[%s3 + $0x34] sm:$0xf]
    %v9959 = vld [vmem:[%s3 + $0x38] sm:$0xf]
    %v9960 = vld [vmem:[%s3 + $0x3c] sm:$0xf]
    %v9961 = vunpack.c.l.b16 %v9724
    %v9962 = vunpack.c.l.b16 %v9727
    %v9963 = vunpack.c.l.b16 %v9731
    %v9964 = vunpack.c.l.b16 %v9734
    %v9965 = vunpack.c.l.b16 %v9738
    %v9966 = vunpack.c.l.b16 %v9741
    %v9967 = vunpack.c.l.b16 %v9745
    %v9968 = vunpack.c.l.b16 %v9748
    %v9969 = vunpack.c.l.b16 %v9752
    %v9970 = vunpack.c.l.b16 %v9755
    %v9971 = vunpack.c.l.b16 %v9759
    %v9972 = vunpack.c.l.b16 %v9762
    %v9973 = vunpack.c.l.b16 %v9766
    %v9974 = vunpack.c.l.b16 %v9769
    %v9975 = vunpack.c.l.b16 %v9773
    %v9976 = vunpack.c.l.b16 %v9776
    %v9977 = vunpack.c.l.b16 %v9780
    %v9978 = vunpack.c.l.b16 %v9783
    %v9979 = vunpack.c.l.b16 %v9787
    %v9980 = vunpack.c.l.b16 %v9790
    %v9981 = vunpack.c.l.b16 %v9794
    %v9982 = vunpack.c.l.b16 %v9797
    %v9983 = vunpack.c.l.b16 %v9801
    %v9984 = vunpack.c.l.b16 %v9804
    %v9985 = vunpack.c.l.b16 %v9808
    %v9986 = vunpack.c.l.b16 %v9811
    %v9987 = vunpack.c.l.b16 %v9815
    %v9988 = vunpack.c.l.b16 %v9818
    %v9989 = vunpack.c.l.b16 %v9822
    %v9990 = vunpack.c.l.b16 %v9825
    %v9991 = vunpack.c.l.b16 %v9829
    %v9992 = vunpack.c.l.b16 %v9832
    %v9993 = vunpack.c.l.b16 %v9836
    %v9994 = vunpack.c.l.b16 %v9839
    %v9995 = vunpack.c.l.b16 %v9843
    %v9996 = vunpack.c.l.b16 %v9846
    %v9997 = vunpack.c.l.b16 %v9850
    %v9998 = vunpack.c.l.b16 %v9853
    %v9999 = vunpack.c.l.b16 %v9857
    %v10000 = vunpack.c.l.b16 %v9860
    %v10001 = vunpack.c.l.b16 %v9864
    %v10002 = vunpack.c.l.b16 %v9867
    %v10003 = vunpack.c.l.b16 %v9871
    %v10004 = vunpack.c.l.b16 %v9874
    %v10005 = vunpack.c.l.b16 %v9878
    %v10006 = vunpack.c.l.b16 %v9881
    %v10007 = vunpack.c.l.b16 %v9885
    %v10008 = vunpack.c.l.b16 %v9888
    %v10009 = vunpack.c.l.b16 %v9892
    %v10010 = vunpack.c.l.b16 %v9895
    %v10011 = vunpack.c.l.b16 %v9899
    %v10012 = vunpack.c.l.b16 %v9902
    %v10013 = vunpack.c.l.b16 %v9906
    %v10014 = vunpack.c.l.b16 %v9909
    %v10015 = vunpack.c.l.b16 %v9913
    %v10016 = vunpack.c.l.b16 %v9916
    %v10017 = vunpack.c.l.b16 %v9920
    %v10018 = vunpack.c.l.b16 %v9923
    %v10019 = vunpack.c.l.b16 %v9927
    %v10020 = vunpack.c.l.b16 %v9930
    %v10021 = vunpack.c.l.b16 %v9934
    %v10022 = vunpack.c.l.b16 %v9937
    %v10023 = vunpack.c.l.b16 %v9941
    %v10024 = vunpack.c.l.b16 %v9944
    %v10025 = vpack.c.b16 %v9962, %v9961
    %v10026 = vpack.c.b16 %v9964, %v9963
    %v10027 = vpack.c.b16 %v9966, %v9965
    %v10028 = vpack.c.b16 %v9968, %v9967
    %v10029 = vpack.c.b16 %v9970, %v9969
    %v10030 = vpack.c.b16 %v9972, %v9971
    %v10031 = vpack.c.b16 %v9974, %v9973
    %v10032 = vpack.c.b16 %v9976, %v9975
    %v10033 = vpack.c.b16 %v9978, %v9977
    %v10034 = vpack.c.b16 %v9980, %v9979
    %v10035 = vpack.c.b16 %v9982, %v9981
    %v10036 = vpack.c.b16 %v9984, %v9983
    %v10037 = vpack.c.b16 %v9986, %v9985
    %v10038 = vpack.c.b16 %v9988, %v9987
    %v10039 = vpack.c.b16 %v9990, %v9989
    %v10040 = vpack.c.b16 %v9992, %v9991
    %v10041 = vpack.c.b16 %v9994, %v9993
    %v10042 = vpack.c.b16 %v9996, %v9995
    %v10043 = vpack.c.b16 %v9998, %v9997
    %v10044 = vpack.c.b16 %v10000, %v9999
    %v10045 = vpack.c.b16 %v10002, %v10001
    %v10046 = vpack.c.b16 %v10004, %v10003
    %v10047 = vpack.c.b16 %v10006, %v10005
    %v10048 = vpack.c.b16 %v10008, %v10007
    %v10049 = vpack.c.b16 %v10010, %v10009
    %v10050 = vpack.c.b16 %v10012, %v10011
    %v10051 = vpack.c.b16 %v10014, %v10013
    %v10052 = vpack.c.b16 %v10016, %v10015
    %v10053 = vpack.c.b16 %v10018, %v10017
    %v10054 = vpack.c.b16 %v10020, %v10019
    %v10055 = vpack.c.b16 %v10022, %v10021
    %v10056 = vpack.c.b16 %v10024, %v10023
    %v10105 = vunpack.c.l.b16 %v9945
    %v10106 = vunpack.c.l.b16 %v9946
    %v10107 = vunpack.c.l.b16 %v9947
    %v10108 = vunpack.c.l.b16 %v9948
    %v10109 = vunpack.c.l.b16 %v9949
    %v10110 = vunpack.c.l.b16 %v9950
    %v10111 = vunpack.c.l.b16 %v9951
    %v10112 = vunpack.c.l.b16 %v9952
    %v10113 = vunpack.c.l.b16 %v9953
    %v10114 = vunpack.c.l.b16 %v9954
    %v10115 = vunpack.c.l.b16 %v9955
    %v10116 = vunpack.c.l.b16 %v9956
    %v10117 = vunpack.c.l.b16 %v9957
    %v10118 = vunpack.c.l.b16 %v9958
    %v10119 = vunpack.c.l.b16 %v9959
    %v10120 = vunpack.c.l.b16 %v9960
    %v10121 = vpack.c.b16 %v10106, %v10105
    %v10122 = vpack.c.b16 %v10108, %v10107
    %v10123 = vpack.c.b16 %v10110, %v10109
    %v10124 = vpack.c.b16 %v10112, %v10111
    %v10125 = vpack.c.b16 %v10114, %v10113
    %v10126 = vpack.c.b16 %v10116, %v10115
    %v10127 = vpack.c.b16 %v10118, %v10117
    %v10128 = vpack.c.b16 %v10120, %v10119
    %10137 = vmatprep.subr.bf16.mxu0 0
    %10138 = vmatpush1.bf16.msra.mxu0 %v10121
    %10139 = vmatprep.subr.bf16.mxu0 0
    %10140 = vmatpush1.bf16.msra.mxu0 %v10122
    %10141 = vmatprep.subr.bf16.mxu0 0
    %10142 = vmatpush1.bf16.msra.mxu0 %v10123
    %10143 = vmatprep.subr.bf16.mxu0 0
    %10144 = vmatpush1.bf16.msra.mxu0 %v10124
    %10145 = vmatprep.subr.bf16.mxu0 0
    %10146 = vmatpush1.bf16.msra.mxu0 %v10125
    %10147 = vmatprep.subr.bf16.mxu0 0
    %10148 = vmatpush1.bf16.msra.mxu0 %v10126
    %10149 = vmatprep.subr.bf16.mxu0 0
    %10150 = vmatpush1.bf16.msra.mxu0 %v10127
    %10151 = vmatprep.subr.bf16.mxu0 0
    %10152 = vmatpush1.bf16.msra.mxu0 %v10128
    %10153 = vmatprep.subr.bf16.mxu0 0
    %10154 = vmatpush1.bf16.msra.mxu0 0
    %10155 = vmatprep.subr.bf16.mxu0 0
    %10156 = vmatpush1.bf16.msra.mxu0 0
    %10157 = vmatprep.subr.bf16.mxu0 0
    %10158 = vmatpush1.bf16.msra.mxu0 0
    %10159 = vmatprep.subr.bf16.mxu0 0
    %10160 = vmatpush1.bf16.msra.mxu0 0
    %10161 = vmatprep.subr.bf16.mxu0 0
    %10162 = vmatpush1.bf16.msra.mxu0 0
    %10163 = vmatprep.subr.bf16.mxu0 0
    %10164 = vmatpush1.bf16.msra.mxu0 0
    %10165 = vmatprep.subr.bf16.mxu0 0
    %10166 = vmatpush1.bf16.msra.mxu0 0
    %10167 = vmatprep.subr.bf16.mxu0 0
    %10168 = vmatpush1.bf16.msra.mxu0 0
    %10169 = vmatprep.mubr.bf16.mxu0 0
    %10170 = vmatmul.mubr.bf16.gmra.mrb[0].mxu0 %v10025
    %v10171 = vpop.f32.mrb[0].mxu0
    %v10172 = vadd.f32 0.0, %v10171
    %v10173 = vpop.f32.mrb[0].mxu0
    %v10174 = vpop.f32.mrb[0].mxu0
    %v10175 = vadd.f32 0.0, %v10174
    %v10176 = vpop.f32.mrb[0].mxu0
    %10177 = vmatprep.mubr.bf16.mxu0 0
    %10178 = vmatmul.mubr.bf16.gmra.mrb[0].mxu0 %v10026
    %v10179 = vpop.f32.mrb[0].mxu0
    %v10180 = vadd.f32 0.0, %v10179
    %v10181 = vpop.f32.mrb[0].mxu0
    %v10182 = vpop.f32.mrb[0].mxu0
    %v10183 = vadd.f32 0.0, %v10182
    %v10184 = vpop.f32.mrb[0].mxu0
    %10185 = vmatprep.mubr.bf16.mxu0 0
    %10186 = vmatmul.mubr.bf16.gmra.mrb[0].mxu0 %v10027
    %v10187 = vpop.f32.mrb[0].mxu0
    %v10188 = vadd.f32 0.0, %v10187
    %v10189 = vpop.f32.mrb[0].mxu0
    %v10190 = vpop.f32.mrb[0].mxu0
    %v10191 = vadd.f32 0.0, %v10190
    %v10192 = vpop.f32.mrb[0].mxu0
    %10193 = vmatprep.mubr.bf16.mxu0 0
    %10194 = vmatmul.mubr.bf16.gmra.mrb[0].mxu0 %v10028
    %v10195 = vpop.f32.mrb[0].mxu0
    %v10196 = vadd.f32 0.0, %v10195
    %v10197 = vpop.f32.mrb[0].mxu0
    %v10198 = vpop.f32.mrb[0].mxu0
    %v10199 = vadd.f32 0.0, %v10198
    %v10200 = vpop.f32.mrb[0].mxu0
    %10201 = vmatprep.mubr.bf16.mxu0 0
    %10202 = vmatmul.mubr.bf16.gmra.mrb[0].mxu0 %v10029
    %v10203 = vpop.f32.mrb[0].mxu0
    %v10204 = vadd.f32 0.0, %v10203
    %v10205 = vpop.f32.mrb[0].mxu0
    %v10206 = vpop.f32.mrb[0].mxu0
    %v10207 = vadd.f32 0.0, %v10206
    %v10208 = vpop.f32.mrb[0].mxu0
    %10209 = vmatprep.mubr.bf16.mxu0 0
    %10210 = vmatmul.mubr.bf16.gmra.mrb[0].mxu0 %v10030
    %v10211 = vpop.f32.mrb[0].mxu0
    %v10212 = vadd.f32 0.0, %v10211
    %v10213 = vpop.f32.mrb[0].mxu0
    %v10214 = vpop.f32.mrb[0].mxu0
    %v10215 = vadd.f32 0.0, %v10214
    %v10216 = vpop.f32.mrb[0].mxu0
    %10217 = vmatprep.mubr.bf16.mxu0 0
    %10218 = vmatmul.mubr.bf16.gmra.mrb[0].mxu0 %v10031
    %v10219 = vpop.f32.mrb[0].mxu0
    %v10220 = vadd.f32 0.0, %v10219
    %v10221 = vpop.f32.mrb[0].mxu0
    %v10222 = vpop.f32.mrb[0].mxu0
    %v10223 = vadd.f32 0.0, %v10222
    %v10224 = vpop.f32.mrb[0].mxu0
    %10225 = vmatprep.mubr.bf16.mxu0 0
    %10226 = vmatmul.mubr.bf16.gmra.mrb[0].mxu0 %v10032
    %v10227 = vpop.f32.mrb[0].mxu0
    %v10228 = vadd.f32 0.0, %v10227
    %v10229 = vpop.f32.mrb[0].mxu0
    %v10230 = vpop.f32.mrb[0].mxu0
    %v10231 = vadd.f32 0.0, %v10230
    %v10232 = vpop.f32.mrb[0].mxu0
    %10233 = vmatprep.mubr.bf16.mxu0 0
    %10234 = vmatmul.mubr.bf16.gmra.mrb[0].mxu0 %v10033
    %v10235 = vpop.f32.mrb[0].mxu0
    %v10236 = vadd.f32 0.0, %v10235
    %v10237 = vpop.f32.mrb[0].mxu0
    %v10238 = vpop.f32.mrb[0].mxu0
    %v10239 = vadd.f32 0.0, %v10238
    %v10240 = vpop.f32.mrb[0].mxu0
    %10241 = vmatprep.mubr.bf16.mxu0 0
    %10242 = vmatmul.mubr.bf16.gmra.mrb[0].mxu0 %v10034
    %v10243 = vpop.f32.mrb[0].mxu0
    %v10244 = vadd.f32 0.0, %v10243
    %v10245 = vpop.f32.mrb[0].mxu0
    %v10246 = vpop.f32.mrb[0].mxu0
    %v10247 = vadd.f32 0.0, %v10246
    %v10248 = vpop.f32.mrb[0].mxu0
    %10249 = vmatprep.mubr.bf16.mxu0 0
    %10250 = vmatmul.mubr.bf16.gmra.mrb[0].mxu0 %v10035
    %v10251 = vpop.f32.mrb[0].mxu0
    %v10252 = vadd.f32 0.0, %v10251
    %v10253 = vpop.f32.mrb[0].mxu0
    %v10254 = vpop.f32.mrb[0].mxu0
    %v10255 = vadd.f32 0.0, %v10254
    %v10256 = vpop.f32.mrb[0].mxu0
    %10257 = vmatprep.mubr.bf16.mxu0 0
    %10258 = vmatmul.mubr.bf16.gmra.mrb[0].mxu0 %v10036
    %v10259 = vpop.f32.mrb[0].mxu0
    %v10260 = vadd.f32 0.0, %v10259
    %v10261 = vpop.f32.mrb[0].mxu0
    %v10262 = vpop.f32.mrb[0].mxu0
    %v10263 = vadd.f32 0.0, %v10262
    %v10264 = vpop.f32.mrb[0].mxu0
    %10265 = vmatprep.mubr.bf16.mxu0 0
    %10266 = vmatmul.mubr.bf16.gmra.mrb[0].mxu0 %v10037
    %v10267 = vpop.f32.mrb[0].mxu0
    %v10268 = vadd.f32 0.0, %v10267
    %v10269 = vpop.f32.mrb[0].mxu0
    %v10270 = vpop.f32.mrb[0].mxu0
    %v10271 = vadd.f32 0.0, %v10270
    %v10272 = vpop.f32.mrb[0].mxu0
    %10273 = vmatprep.mubr.bf16.mxu0 0
    %10274 = vmatmul.mubr.bf16.gmra.mrb[0].mxu0 %v10038
    %v10275 = vpop.f32.mrb[0].mxu0
    %v10276 = vadd.f32 0.0, %v10275
    %v10277 = vpop.f32.mrb[0].mxu0
    %v10278 = vpop.f32.mrb[0].mxu0
    %v10279 = vadd.f32 0.0, %v10278
    %v10280 = vpop.f32.mrb[0].mxu0
    %10281 = vmatprep.mubr.bf16.mxu0 0
    %10282 = vmatmul.mubr.bf16.gmra.mrb[0].mxu0 %v10039
    %v10283 = vpop.f32.mrb[0].mxu0
    %v10284 = vadd.f32 0.0, %v10283
    %v10285 = vpop.f32.mrb[0].mxu0
    %v10286 = vpop.f32.mrb[0].mxu0
    %v10287 = vadd.f32 0.0, %v10286
    %v10288 = vpop.f32.mrb[0].mxu0
    %10289 = vmatprep.mubr.bf16.mxu0 0
    %10290 = vmatmul.mubr.bf16.gmra.mrb[0].mxu0 %v10040
    %v10291 = vpop.f32.mrb[0].mxu0
    %v10292 = vadd.f32 0.0, %v10291
    %v10293 = vpop.f32.mrb[0].mxu0
    %v10294 = vpop.f32.mrb[0].mxu0
    %v10295 = vadd.f32 0.0, %v10294
    %v10296 = vpop.f32.mrb[0].mxu0
    %10297 = vmatprep.mubr.bf16.mxu0 0
    %10298 = vmatmul.mubr.bf16.gmra.mrb[0].mxu0 %v10041
    %v10299 = vpop.f32.mrb[0].mxu0
    %v10300 = vadd.f32 0.0, %v10299
    %v10301 = vpop.f32.mrb[0].mxu0
    %v10302 = vpop.f32.mrb[0].mxu0
    %v10303 = vadd.f32 0.0, %v10302
    %v10304 = vpop.f32.mrb[0].mxu0
    %10305 = vmatprep.mubr.bf16.mxu0 0
    %10306 = vmatmul.mubr.bf16.gmra.mrb[0].mxu0 %v10042
    %v10307 = vpop.f32.mrb[0].mxu0
    %v10308 = vadd.f32 0.0, %v10307
    %v10309 = vpop.f32.mrb[0].mxu0
    %v10310 = vpop.f32.mrb[0].mxu0
    %v10311 = vadd.f32 0.0, %v10310
    %v10312 = vpop.f32.mrb[0].mxu0
    %10313 = vmatprep.mubr.bf16.mxu0 0
    %10314 = vmatmul.mubr.bf16.gmra.mrb[0].mxu0 %v10043
    %v10315 = vpop.f32.mrb[0].mxu0
    %v10316 = vadd.f32 0.0, %v10315
    %v10317 = vpop.f32.mrb[0].mxu0
    %v10318 = vpop.f32.mrb[0].mxu0
    %v10319 = vadd.f32 0.0, %v10318
    %v10320 = vpop.f32.mrb[0].mxu0
    %10321 = vmatprep.mubr.bf16.mxu0 0
    %10322 = vmatmul.mubr.bf16.gmra.mrb[0].mxu0 %v10044
    %v10323 = vpop.f32.mrb[0].mxu0
    %v10324 = vadd.f32 0.0, %v10323
    %v10325 = vpop.f32.mrb[0].mxu0
    %v10326 = vpop.f32.mrb[0].mxu0
    %v10327 = vadd.f32 0.0, %v10326
    %v10328 = vpop.f32.mrb[0].mxu0
    %10329 = vmatprep.mubr.bf16.mxu0 0
    %10330 = vmatmul.mubr.bf16.gmra.mrb[0].mxu0 %v10045
    %v10331 = vpop.f32.mrb[0].mxu0
    %v10332 = vadd.f32 0.0, %v10331
    %v10333 = vpop.f32.mrb[0].mxu0
    %v10334 = vpop.f32.mrb[0].mxu0
    %v10335 = vadd.f32 0.0, %v10334
    %v10336 = vpop.f32.mrb[0].mxu0
    %10337 = vmatprep.mubr.bf16.mxu0 0
    %10338 = vmatmul.mubr.bf16.gmra.mrb[0].mxu0 %v10046
    %v10339 = vpop.f32.mrb[0].mxu0
    %v10340 = vadd.f32 0.0, %v10339
    %v10341 = vpop.f32.mrb[0].mxu0
    %v10342 = vpop.f32.mrb[0].mxu0
    %v10343 = vadd.f32 0.0, %v10342
    %v10344 = vpop.f32.mrb[0].mxu0
    %10345 = vmatprep.mubr.bf16.mxu0 0
    %10346 = vmatmul.mubr.bf16.gmra.mrb[0].mxu0 %v10047
    %v10347 = vpop.f32.mrb[0].mxu0
    %v10348 = vadd.f32 0.0, %v10347
    %v10349 = vpop.f32.mrb[0].mxu0
    %v10350 = vpop.f32.mrb[0].mxu0
    %v10351 = vadd.f32 0.0, %v10350
    %v10352 = vpop.f32.mrb[0].mxu0
    %10353 = vmatprep.mubr.bf16.mxu0 0
    %10354 = vmatmul.mubr.bf16.gmra.mrb[0].mxu0 %v10048
    %v10355 = vpop.f32.mrb[0].mxu0
    %v10356 = vadd.f32 0.0, %v10355
    %v10357 = vpop.f32.mrb[0].mxu0
    %v10358 = vpop.f32.mrb[0].mxu0
    %v10359 = vadd.f32 0.0, %v10358
    %v10360 = vpop.f32.mrb[0].mxu0
    %10361 = vmatprep.mubr.bf16.mxu0 0
    %10362 = vmatmul.mubr.bf16.gmra.mrb[0].mxu0 %v10049
    %v10363 = vpop.f32.mrb[0].mxu0
    %v10364 = vadd.f32 0.0, %v10363
    %v10365 = vpop.f32.mrb[0].mxu0
    %v10366 = vpop.f32.mrb[0].mxu0
    %v10367 = vadd.f32 0.0, %v10366
    %v10368 = vpop.f32.mrb[0].mxu0
    %10369 = vmatprep.mubr.bf16.mxu0 0
    %10370 = vmatmul.mubr.bf16.gmra.mrb[0].mxu0 %v10050
    %v10371 = vpop.f32.mrb[0].mxu0
    %v10372 = vadd.f32 0.0, %v10371
    %v10373 = vpop.f32.mrb[0].mxu0
    %v10374 = vpop.f32.mrb[0].mxu0
    %v10375 = vadd.f32 0.0, %v10374
    %v10376 = vpop.f32.mrb[0].mxu0
    %10377 = vmatprep.mubr.bf16.mxu0 0
    %10378 = vmatmul.mubr.bf16.gmra.mrb[0].mxu0 %v10051
    %v10379 = vpop.f32.mrb[0].mxu0
    %v10380 = vadd.f32 0.0, %v10379
    %v10381 = vpop.f32.mrb[0].mxu0
    %v10382 = vpop.f32.mrb[0].mxu0
    %v10383 = vadd.f32 0.0, %v10382
    %v10384 = vpop.f32.mrb[0].mxu0
    %10385 = vmatprep.mubr.bf16.mxu0 0
    %10386 = vmatmul.mubr.bf16.gmra.mrb[0].mxu0 %v10052
    %v10387 = vpop.f32.mrb[0].mxu0
    %v10388 = vadd.f32 0.0, %v10387
    %v10389 = vpop.f32.mrb[0].mxu0
    %v10390 = vpop.f32.mrb[0].mxu0
    %v10391 = vadd.f32 0.0, %v10390
    %v10392 = vpop.f32.mrb[0].mxu0
    %10393 = vmatprep.mubr.bf16.mxu0 0
    %10394 = vmatmul.mubr.bf16.gmra.mrb[0].mxu0 %v10053
    %v10395 = vpop.f32.mrb[0].mxu0
    %v10396 = vadd.f32 0.0, %v10395
    %v10397 = vpop.f32.mrb[0].mxu0
    %v10398 = vpop.f32.mrb[0].mxu0
    %v10399 = vadd.f32 0.0, %v10398
    %v10400 = vpop.f32.mrb[0].mxu0
    %10401 = vmatprep.mubr.bf16.mxu0 0
    %10402 = vmatmul.mubr.bf16.gmra.mrb[0].mxu0 %v10054
    %v10403 = vpop.f32.mrb[0].mxu0
    %v10404 = vadd.f32 0.0, %v10403
    %v10405 = vpop.f32.mrb[0].mxu0
    %v10406 = vpop.f32.mrb[0].mxu0
    %v10407 = vadd.f32 0.0, %v10406
    %v10408 = vpop.f32.mrb[0].mxu0
    %10409 = vmatprep.mubr.bf16.mxu0 0
    %10410 = vmatmul.mubr.bf16.gmra.mrb[0].mxu0 %v10055
    %v10411 = vpop.f32.mrb[0].mxu0
    %v10412 = vadd.f32 0.0, %v10411
    %v10413 = vpop.f32.mrb[0].mxu0
    %v10414 = vpop.f32.mrb[0].mxu0
    %v10415 = vadd.f32 0.0, %v10414
    %v10416 = vpop.f32.mrb[0].mxu0
    %10417 = vmatprep.mubr.bf16.mxu0 0
    %10418 = vmatmul.mubr.bf16.gmra.mrb[0].mxu0 %v10056
    %v10419 = vpop.f32.mrb[0].mxu0
    %v10420 = vadd.f32 0.0, %v10419
    %v10421 = vpop.f32.mrb[0].mxu0
    %v10422 = vpop.f32.mrb[0].mxu0
    %v10423 = vadd.f32 0.0, %v10422
    %v10424 = vpop.f32.mrb[0].mxu0
    %10425 = vdwg.mxu0
    %v10426 = vlaneseq
    %v10427 = vshrl.u32 %v10426, 7
    %v10428 = vsub.s32 4, %v10427
    %v10429 = vrot.slane %v36, %v10428
    %v10430 = vmul.f32 %v10172, %v10429
    %v10431 = vmul.f32 %v10175, %v10429
    %v10432 = vmul.f32 %v10180, %v10429
    %v10433 = vmul.f32 %v10183, %v10429
    %v10434 = vmul.f32 %v10188, %v10429
    %v10435 = vmul.f32 %v10191, %v10429
    %v10436 = vmul.f32 %v10196, %v10429
    %v10437 = vmul.f32 %v10199, %v10429
    %v10438 = vmul.f32 %v10204, %v10429
    %v10439 = vmul.f32 %v10207, %v10429
    %v10440 = vmul.f32 %v10212, %v10429
    %v10441 = vmul.f32 %v10215, %v10429
    %v10442 = vmul.f32 %v10220, %v10429
    %v10443 = vmul.f32 %v10223, %v10429
    %v10444 = vmul.f32 %v10228, %v10429
    %v10445 = vmul.f32 %v10231, %v10429
    %v10446 = vmul.f32 %v10236, %v10429
    %v10447 = vmul.f32 %v10239, %v10429
    %v10448 = vmul.f32 %v10244, %v10429
    %v10449 = vmul.f32 %v10247, %v10429
    %v10450 = vmul.f32 %v10252, %v10429
    %v10451 = vmul.f32 %v10255, %v10429
    %v10452 = vmul.f32 %v10260, %v10429
    %v10453 = vmul.f32 %v10263, %v10429
    %v10454 = vmul.f32 %v10268, %v10429
    %v10455 = vmul.f32 %v10271, %v10429
    %v10456 = vmul.f32 %v10276, %v10429
    %v10457 = vmul.f32 %v10279, %v10429
    %v10458 = vmul.f32 %v10284, %v10429
    %v10459 = vmul.f32 %v10287, %v10429
    %v10460 = vmul.f32 %v10292, %v10429
    %v10461 = vmul.f32 %v10295, %v10429
    %v10462 = vmul.f32 %v10300, %v10429
    %v10463 = vmul.f32 %v10303, %v10429
    %v10464 = vmul.f32 %v10308, %v10429
    %v10465 = vmul.f32 %v10311, %v10429
    %v10466 = vmul.f32 %v10316, %v10429
    %v10467 = vmul.f32 %v10319, %v10429
    %v10468 = vmul.f32 %v10324, %v10429
    %v10469 = vmul.f32 %v10327, %v10429
    %v10470 = vmul.f32 %v10332, %v10429
    %v10471 = vmul.f32 %v10335, %v10429
    %v10472 = vmul.f32 %v10340, %v10429
    %v10473 = vmul.f32 %v10343, %v10429
    %v10474 = vmul.f32 %v10348, %v10429
    %v10475 = vmul.f32 %v10351, %v10429
    %v10476 = vmul.f32 %v10356, %v10429
    %v10477 = vmul.f32 %v10359, %v10429
    %v10478 = vmul.f32 %v10364, %v10429
    %v10479 = vmul.f32 %v10367, %v10429
    %v10480 = vmul.f32 %v10372, %v10429
    %v10481 = vmul.f32 %v10375, %v10429
    %v10482 = vmul.f32 %v10380, %v10429
    %v10483 = vmul.f32 %v10383, %v10429
    %v10484 = vmul.f32 %v10388, %v10429
    %v10485 = vmul.f32 %v10391, %v10429
    %v10486 = vmul.f32 %v10396, %v10429
    %v10487 = vmul.f32 %v10399, %v10429
    %v10488 = vmul.f32 %v10404, %v10429
    %v10489 = vmul.f32 %v10407, %v10429
    %v10490 = vmul.f32 %v10412, %v10429
    %v10491 = vmul.f32 %v10415, %v10429
    %v10492 = vmul.f32 %v10420, %v10429
    %v10493 = vmul.f32 %v10423, %v10429
    %v10494 = vlaneseq
    %v10495 = vshrl.u32 %v10494, 7
    %v10496 = vsub.s32 5, %v10495
    %v10497 = vrot.slane %v36, %v10496
    %v10498 = vadd.f32 %v10430, %v10497
    %v10499 = vadd.f32 %v10431, %v10497
    %v10500 = vadd.f32 %v10432, %v10497
    %v10501 = vadd.f32 %v10433, %v10497
    %v10502 = vadd.f32 %v10434, %v10497
    %v10503 = vadd.f32 %v10435, %v10497
    %v10504 = vadd.f32 %v10436, %v10497
    %v10505 = vadd.f32 %v10437, %v10497
    %v10506 = vadd.f32 %v10438, %v10497
    %v10507 = vadd.f32 %v10439, %v10497
    %v10508 = vadd.f32 %v10440, %v10497
    %v10509 = vadd.f32 %v10441, %v10497
    %v10510 = vadd.f32 %v10442, %v10497
    %v10511 = vadd.f32 %v10443, %v10497
    %v10512 = vadd.f32 %v10444, %v10497
    %v10513 = vadd.f32 %v10445, %v10497
    %v10514 = vadd.f32 %v10446, %v10497
    %v10515 = vadd.f32 %v10447, %v10497
    %v10516 = vadd.f32 %v10448, %v10497
    %v10517 = vadd.f32 %v10449, %v10497
    %v10518 = vadd.f32 %v10450, %v10497
    %v10519 = vadd.f32 %v10451, %v10497
    %v10520 = vadd.f32 %v10452, %v10497
    %v10521 = vadd.f32 %v10453, %v10497
    %v10522 = vadd.f32 %v10454, %v10497
    %v10523 = vadd.f32 %v10455, %v10497
    %v10524 = vadd.f32 %v10456, %v10497
    %v10525 = vadd.f32 %v10457, %v10497
    %v10526 = vadd.f32 %v10458, %v10497
    %v10527 = vadd.f32 %v10459, %v10497
    %v10528 = vadd.f32 %v10460, %v10497
    %v10529 = vadd.f32 %v10461, %v10497
    %v10530 = vadd.f32 %v10462, %v10497
    %v10531 = vadd.f32 %v10463, %v10497
    %v10532 = vadd.f32 %v10464, %v10497
    %v10533 = vadd.f32 %v10465, %v10497
    %v10534 = vadd.f32 %v10466, %v10497
    %v10535 = vadd.f32 %v10467, %v10497
    %v10536 = vadd.f32 %v10468, %v10497
    %v10537 = vadd.f32 %v10469, %v10497
    %v10538 = vadd.f32 %v10470, %v10497
    %v10539 = vadd.f32 %v10471, %v10497
    %v10540 = vadd.f32 %v10472, %v10497
    %v10541 = vadd.f32 %v10473, %v10497
    %v10542 = vadd.f32 %v10474, %v10497
    %v10543 = vadd.f32 %v10475, %v10497
    %v10544 = vadd.f32 %v10476, %v10497
    %v10545 = vadd.f32 %v10477, %v10497
    %v10546 = vadd.f32 %v10478, %v10497
    %v10547 = vadd.f32 %v10479, %v10497
    %v10548 = vadd.f32 %v10480, %v10497
    %v10549 = vadd.f32 %v10481, %v10497
    %v10550 = vadd.f32 %v10482, %v10497
    %v10551 = vadd.f32 %v10483, %v10497
    %v10552 = vadd.f32 %v10484, %v10497
    %v10553 = vadd.f32 %v10485, %v10497
    %v10554 = vadd.f32 %v10486, %v10497
    %v10555 = vadd.f32 %v10487, %v10497
    %v10556 = vadd.f32 %v10488, %v10497
    %v10557 = vadd.f32 %v10489, %v10497
    %v10558 = vadd.f32 %v10490, %v10497
    %v10559 = vadd.f32 %v10491, %v10497
    %v10560 = vadd.f32 %v10492, %v10497
    %v10561 = vadd.f32 %v10493, %v10497
    %v10562 = vadd.f32 %v9654, %v10498
    %v10563 = vadd.f32 %v9655, %v10499
    %v10564 = vadd.f32 %v9656, %v10500
    %v10565 = vadd.f32 %v9657, %v10501
    %v10566 = vadd.f32 %v9658, %v10502
    %v10567 = vadd.f32 %v9659, %v10503
    %v10568 = vadd.f32 %v9660, %v10504
    %v10569 = vadd.f32 %v9661, %v10505
    %v10570 = vadd.f32 %v9662, %v10506
    %v10571 = vadd.f32 %v9663, %v10507
    %v10572 = vadd.f32 %v9664, %v10508
    %v10573 = vadd.f32 %v9665, %v10509
    %v10574 = vadd.f32 %v9666, %v10510
    %v10575 = vadd.f32 %v9667, %v10511
    %v10576 = vadd.f32 %v9668, %v10512
    %v10577 = vadd.f32 %v9669, %v10513
    %v10578 = vadd.f32 %v9670, %v10514
    %v10579 = vadd.f32 %v9671, %v10515
    %v10580 = vadd.f32 %v9672, %v10516
    %v10581 = vadd.f32 %v9673, %v10517
    %v10582 = vadd.f32 %v9674, %v10518
    %v10583 = vadd.f32 %v9675, %v10519
    %v10584 = vadd.f32 %v9676, %v10520
    %v10585 = vadd.f32 %v9677, %v10521
    %v10586 = vadd.f32 %v9678, %v10522
    %v10587 = vadd.f32 %v9679, %v10523
    %v10588 = vadd.f32 %v9680, %v10524
    %v10589 = vadd.f32 %v9681, %v10525
    %v10590 = vadd.f32 %v9682, %v10526
    %v10591 = vadd.f32 %v9683, %v10527
    %v10592 = vadd.f32 %v9684, %v10528
    %v10593 = vadd.f32 %v9685, %v10529
    %v10594 = vadd.f32 %v9686, %v10530
    %v10595 = vadd.f32 %v9687, %v10531
    %v10596 = vadd.f32 %v9688, %v10532
    %v10597 = vadd.f32 %v9689, %v10533
    %v10598 = vadd.f32 %v9690, %v10534
    %v10599 = vadd.f32 %v9691, %v10535
    %v10600 = vadd.f32 %v9692, %v10536
    %v10601 = vadd.f32 %v9693, %v10537
    %v10602 = vadd.f32 %v9694, %v10538
    %v10603 = vadd.f32 %v9695, %v10539
    %v10604 = vadd.f32 %v9696, %v10540
    %v10605 = vadd.f32 %v9697, %v10541
    %v10606 = vadd.f32 %v9698, %v10542
    %v10607 = vadd.f32 %v9699, %v10543
    %v10608 = vadd.f32 %v9700, %v10544
    %v10609 = vadd.f32 %v9701, %v10545
    %v10610 = vadd.f32 %v9702, %v10546
    %v10611 = vadd.f32 %v9703, %v10547
    %v10612 = vadd.f32 %v9704, %v10548
    %v10613 = vadd.f32 %v9705, %v10549
    %v10614 = vadd.f32 %v9706, %v10550
    %v10615 = vadd.f32 %v9707, %v10551
    %v10616 = vadd.f32 %v9708, %v10552
    %v10617 = vadd.f32 %v9709, %v10553
    %v10618 = vadd.f32 %v9710, %v10554
    %v10619 = vadd.f32 %v9711, %v10555
    %v10620 = vadd.f32 %v9712, %v10556
    %v10621 = vadd.f32 %v9713, %v10557
    %v10622 = vadd.f32 %v9714, %v10558
    %v10623 = vadd.f32 %v9715, %v10559
    %v10624 = vadd.f32 %v9716, %v10560
    %v10625 = vadd.f32 %v9717, %v10561
    %v10626 = vpack.c.bf16 %v10563, %v10562
    %v10627 = vpack.c.bf16 %v10565, %v10564
    %v10628 = vpack.c.bf16 %v10567, %v10566
    %v10629 = vpack.c.bf16 %v10569, %v10568
    %v10630 = vpack.c.bf16 %v10571, %v10570
    %v10631 = vpack.c.bf16 %v10573, %v10572
    %v10632 = vpack.c.bf16 %v10575, %v10574
    %v10633 = vpack.c.bf16 %v10577, %v10576
    %v10634 = vpack.c.bf16 %v10579, %v10578
    %v10635 = vpack.c.bf16 %v10581, %v10580
    %v10636 = vpack.c.bf16 %v10583, %v10582
    %v10637 = vpack.c.bf16 %v10585, %v10584
    %v10638 = vpack.c.bf16 %v10587, %v10586
    %v10639 = vpack.c.bf16 %v10589, %v10588
    %v10640 = vpack.c.bf16 %v10591, %v10590
    %v10641 = vpack.c.bf16 %v10593, %v10592
    %v10642 = vpack.c.bf16 %v10595, %v10594
    %v10643 = vpack.c.bf16 %v10597, %v10596
    %v10644 = vpack.c.bf16 %v10599, %v10598
    %v10645 = vpack.c.bf16 %v10601, %v10600
    %v10646 = vpack.c.bf16 %v10603, %v10602
    %v10647 = vpack.c.bf16 %v10605, %v10604
    %v10648 = vpack.c.bf16 %v10607, %v10606
    %v10649 = vpack.c.bf16 %v10609, %v10608
    %v10650 = vpack.c.bf16 %v10611, %v10610
    %v10651 = vpack.c.bf16 %v10613, %v10612
    %v10652 = vpack.c.bf16 %v10615, %v10614
    %v10653 = vpack.c.bf16 %v10617, %v10616
    %v10654 = vpack.c.bf16 %v10619, %v10618
    %v10655 = vpack.c.bf16 %v10621, %v10620
    %v10656 = vpack.c.bf16 %v10623, %v10622
    %v10657 = vpack.c.bf16 %v10625, %v10624
    %v10690 = vunpack.c.l.b16 %v10626
    %v10691 = vunpack.c.h.b16 %v10626
    %v10692 = vunpack.c.l.b16 %v10627
    %v10693 = vunpack.c.h.b16 %v10627
    %v10694 = vunpack.c.l.b16 %v10628
    %v10695 = vunpack.c.h.b16 %v10628
    %v10696 = vunpack.c.l.b16 %v10629
    %v10697 = vunpack.c.h.b16 %v10629
    %v10698 = vunpack.c.l.b16 %v10630
    %v10699 = vunpack.c.h.b16 %v10630
    %v10700 = vunpack.c.l.b16 %v10631
    %v10701 = vunpack.c.h.b16 %v10631
    %v10702 = vunpack.c.l.b16 %v10632
    %v10703 = vunpack.c.h.b16 %v10632
    %v10704 = vunpack.c.l.b16 %v10633
    %v10705 = vunpack.c.h.b16 %v10633
    %v10706 = vunpack.c.l.b16 %v10634
    %v10707 = vunpack.c.h.b16 %v10634
    %v10708 = vunpack.c.l.b16 %v10635
    %v10709 = vunpack.c.h.b16 %v10635
    %v10710 = vunpack.c.l.b16 %v10636
    %v10711 = vunpack.c.h.b16 %v10636
    %v10712 = vunpack.c.l.b16 %v10637
    %v10713 = vunpack.c.h.b16 %v10637
    %v10714 = vunpack.c.l.b16 %v10638
    %v10715 = vunpack.c.h.b16 %v10638
    %v10716 = vunpack.c.l.b16 %v10639
    %v10717 = vunpack.c.h.b16 %v10639
    %v10718 = vunpack.c.l.b16 %v10640
    %v10719 = vunpack.c.h.b16 %v10640
    %v10720 = vunpack.c.l.b16 %v10641
    %v10721 = vunpack.c.h.b16 %v10641
    %v10722 = vunpack.c.l.b16 %v10642
    %v10723 = vunpack.c.h.b16 %v10642
    %v10724 = vunpack.c.l.b16 %v10643
    %v10725 = vunpack.c.h.b16 %v10643
    %v10726 = vunpack.c.l.b16 %v10644
    %v10727 = vunpack.c.h.b16 %v10644
    %v10728 = vunpack.c.l.b16 %v10645
    %v10729 = vunpack.c.h.b16 %v10645
    %v10730 = vunpack.c.l.b16 %v10646
    %v10731 = vunpack.c.h.b16 %v10646
    %v10732 = vunpack.c.l.b16 %v10647
    %v10733 = vunpack.c.h.b16 %v10647
    %v10734 = vunpack.c.l.b16 %v10648
    %v10735 = vunpack.c.h.b16 %v10648
    %v10736 = vunpack.c.l.b16 %v10649
    %v10737 = vunpack.c.h.b16 %v10649
    %v10738 = vunpack.c.l.b16 %v10650
    %v10739 = vunpack.c.h.b16 %v10650
    %v10740 = vunpack.c.l.b16 %v10651
    %v10741 = vunpack.c.h.b16 %v10651
    %v10742 = vunpack.c.l.b16 %v10652
    %v10743 = vunpack.c.h.b16 %v10652
    %v10744 = vunpack.c.l.b16 %v10653
    %v10745 = vunpack.c.h.b16 %v10653
    %v10746 = vunpack.c.l.b16 %v10654
    %v10747 = vunpack.c.h.b16 %v10654
    %v10748 = vunpack.c.l.b16 %v10655
    %v10749 = vunpack.c.h.b16 %v10655
    %v10750 = vunpack.c.l.b16 %v10656
    %v10751 = vunpack.c.h.b16 %v10656
    %v10752 = vunpack.c.l.b16 %v10657
    %v10753 = vunpack.c.h.b16 %v10657
    %v10754 = vpack.c.b16 %v10690, %v10690
    %v10755 = vpack.c.b16 %v10691, %v10691
    %v10756 = vpack.c.b16 %v10692, %v10692
    %v10757 = vpack.c.b16 %v10693, %v10693
    %v10758 = vpack.c.b16 %v10694, %v10694
    %v10759 = vpack.c.b16 %v10695, %v10695
    %v10760 = vpack.c.b16 %v10696, %v10696
    %v10761 = vpack.c.b16 %v10697, %v10697
    %v10762 = vpack.c.b16 %v10698, %v10698
    %v10763 = vpack.c.b16 %v10699, %v10699
    %v10764 = vpack.c.b16 %v10700, %v10700
    %v10765 = vpack.c.b16 %v10701, %v10701
    %v10766 = vpack.c.b16 %v10702, %v10702
    %v10767 = vpack.c.b16 %v10703, %v10703
    %v10768 = vpack.c.b16 %v10704, %v10704
    %v10769 = vpack.c.b16 %v10705, %v10705
    %v10770 = vpack.c.b16 %v10706, %v10706
    %v10771 = vpack.c.b16 %v10707, %v10707
    %v10772 = vpack.c.b16 %v10708, %v10708
    %v10773 = vpack.c.b16 %v10709, %v10709
    %v10774 = vpack.c.b16 %v10710, %v10710
    %v10775 = vpack.c.b16 %v10711, %v10711
    %v10776 = vpack.c.b16 %v10712, %v10712
    %v10777 = vpack.c.b16 %v10713, %v10713
    %v10778 = vpack.c.b16 %v10714, %v10714
    %v10779 = vpack.c.b16 %v10715, %v10715
    %v10780 = vpack.c.b16 %v10716, %v10716
    %v10781 = vpack.c.b16 %v10717, %v10717
    %v10782 = vpack.c.b16 %v10718, %v10718
    %v10783 = vpack.c.b16 %v10719, %v10719
    %v10784 = vpack.c.b16 %v10720, %v10720
    %v10785 = vpack.c.b16 %v10721, %v10721
    %v10786 = vpack.c.b16 %v10722, %v10722
    %v10787 = vpack.c.b16 %v10723, %v10723
    %v10788 = vpack.c.b16 %v10724, %v10724
    %v10789 = vpack.c.b16 %v10725, %v10725
    %v10790 = vpack.c.b16 %v10726, %v10726
    %v10791 = vpack.c.b16 %v10727, %v10727
    %v10792 = vpack.c.b16 %v10728, %v10728
    %v10793 = vpack.c.b16 %v10729, %v10729
    %v10794 = vpack.c.b16 %v10730, %v10730
    %v10795 = vpack.c.b16 %v10731, %v10731
    %v10796 = vpack.c.b16 %v10732, %v10732
    %v10797 = vpack.c.b16 %v10733, %v10733
    %v10798 = vpack.c.b16 %v10734, %v10734
    %v10799 = vpack.c.b16 %v10735, %v10735
    %v10800 = vpack.c.b16 %v10736, %v10736
    %v10801 = vpack.c.b16 %v10737, %v10737
    %v10802 = vpack.c.b16 %v10738, %v10738
    %v10803 = vpack.c.b16 %v10739, %v10739
    %v10804 = vpack.c.b16 %v10740, %v10740
    %v10805 = vpack.c.b16 %v10741, %v10741
    %v10806 = vpack.c.b16 %v10742, %v10742
    %v10807 = vpack.c.b16 %v10743, %v10743
    %v10808 = vpack.c.b16 %v10744, %v10744
    %v10809 = vpack.c.b16 %v10745, %v10745
    %v10810 = vpack.c.b16 %v10746, %v10746
    %v10811 = vpack.c.b16 %v10747, %v10747
    %v10812 = vpack.c.b16 %v10748, %v10748
    %v10813 = vpack.c.b16 %v10749, %v10749
    %v10814 = vpack.c.b16 %v10750, %v10750
    %v10815 = vpack.c.b16 %v10751, %v10751
    %v10816 = vpack.c.b16 %v10752, %v10752
    %v10817 = vpack.c.b16 %v10753, %v10753
    %10882 = vst [vmem:[#allocation6] sm:$0xf] %v10754
    %10883 = vst [vmem:[#allocation6 + $0x4] sm:$0xf] %v10755
    %10884 = vst [vmem:[#allocation6 + $0x8] sm:$0xf] %v10756
    %10885 = vst [vmem:[#allocation6 + $0xc] sm:$0xf] %v10757
    %10886 = vst [vmem:[#allocation6 + $0x10] sm:$0xf] %v10758
    %10887 = vst [vmem:[#allocation6 + $0x14] sm:$0xf] %v10759
    %10888 = vst [vmem:[#allocation6 + $0x18] sm:$0xf] %v10760
    %10889 = vst [vmem:[#allocation6 + $0x1c] sm:$0xf] %v10761
    %10890 = vst [vmem:[#allocation6 + $0x20] sm:$0xf] %v10762
    %10891 = vst [vmem:[#allocation6 + $0x24] sm:$0xf] %v10763
    %10892 = vst [vmem:[#allocation6 + $0x28] sm:$0xf] %v10764
    %10893 = vst [vmem:[#allocation6 + $0x2c] sm:$0xf] %v10765
    %10894 = vst [vmem:[#allocation6 + $0x30] sm:$0xf] %v10766
    %10895 = vst [vmem:[#allocation6 + $0x34] sm:$0xf] %v10767
    %10896 = vst [vmem:[#allocation6 + $0x38] sm:$0xf] %v10768
    %10897 = vst [vmem:[#allocation6 + $0x3c] sm:$0xf] %v10769
    %10898 = vst [vmem:[#allocation6 + $0x40] sm:$0xf] %v10770
    %10899 = vst [vmem:[#allocation6 + $0x44] sm:$0xf] %v10771
    %10900 = vst [vmem:[#allocation6 + $0x48] sm:$0xf] %v10772
    %10901 = vst [vmem:[#allocation6 + $0x4c] sm:$0xf] %v10773
    %10902 = vst [vmem:[#allocation6 + $0x50] sm:$0xf] %v10774
    %10903 = vst [vmem:[#allocation6 + $0x54] sm:$0xf] %v10775
    %10904 = vst [vmem:[#allocation6 + $0x58] sm:$0xf] %v10776
    %10905 = vst [vmem:[#allocation6 + $0x5c] sm:$0xf] %v10777
    %10906 = vst [vmem:[#allocation6 + $0x60] sm:$0xf] %v10778
    %10907 = vst [vmem:[#allocation6 + $0x64] sm:$0xf] %v10779
    %10908 = vst [vmem:[#allocation6 + $0x68] sm:$0xf] %v10780
    %10909 = vst [vmem:[#allocation6 + $0x6c] sm:$0xf] %v10781
    %10910 = vst [vmem:[#allocation6 + $0x70] sm:$0xf] %v10782
    %10911 = vst [vmem:[#allocation6 + $0x74] sm:$0xf] %v10783
    %10912 = vst [vmem:[#allocation6 + $0x78] sm:$0xf] %v10784
    %10913 = vst [vmem:[#allocation6 + $0x7c] sm:$0xf] %v10785
    %10914 = vst [vmem:[#allocation6 + $0x80] sm:$0xf] %v10786
    %10915 = vst [vmem:[#allocation6 + $0x84] sm:$0xf] %v10787
    %10916 = vst [vmem:[#allocation6 + $0x88] sm:$0xf] %v10788
    %10917 = vst [vmem:[#allocation6 + $0x8c] sm:$0xf] %v10789
    %10918 = vst [vmem:[#allocation6 + $0x90] sm:$0xf] %v10790
    %10919 = vst [vmem:[#allocation6 + $0x94] sm:$0xf] %v10791
    %10920 = vst [vmem:[#allocation6 + $0x98] sm:$0xf] %v10792
    %10921 = vst [vmem:[#allocation6 + $0x9c] sm:$0xf] %v10793
    %10922 = vst [vmem:[#allocation6 + $0xa0] sm:$0xf] %v10794
    %10923 = vst [vmem:[#allocation6 + $0xa4] sm:$0xf] %v10795
    %10924 = vst [vmem:[#allocation6 + $0xa8] sm:$0xf] %v10796
    %10925 = vst [vmem:[#allocation6 + $0xac] sm:$0xf] %v10797
    %10926 = vst [vmem:[#allocation6 + $0xb0] sm:$0xf] %v10798
    %10927 = vst [vmem:[#allocation6 + $0xb4] sm:$0xf] %v10799
    %10928 = vst [vmem:[#allocation6 + $0xb8] sm:$0xf] %v10800
    %10929 = vst [vmem:[#allocation6 + $0xbc] sm:$0xf] %v10801
    %10930 = vst [vmem:[#allocation6 + $0xc0] sm:$0xf] %v10802
    %10931 = vst [vmem:[#allocation6 + $0xc4] sm:$0xf] %v10803
    %10932 = vst [vmem:[#allocation6 + $0xc8] sm:$0xf] %v10804
    %10933 = vst [vmem:[#allocation6 + $0xcc] sm:$0xf] %v10805
    %10934 = vst [vmem:[#allocation6 + $0xd0] sm:$0xf] %v10806
    %10935 = vst [vmem:[#allocation6 + $0xd4] sm:$0xf] %v10807
    %10936 = vst [vmem:[#allocation6 + $0xd8] sm:$0xf] %v10808
    %10937 = vst [vmem:[#allocation6 + $0xdc] sm:$0xf] %v10809
    %10938 = vst [vmem:[#allocation6 + $0xe0] sm:$0xf] %v10810
    %10939 = vst [vmem:[#allocation6 + $0xe4] sm:$0xf] %v10811
    %10940 = vst [vmem:[#allocation6 + $0xe8] sm:$0xf] %v10812
    %10941 = vst [vmem:[#allocation6 + $0xec] sm:$0xf] %v10813
    %10942 = vst [vmem:[#allocation6 + $0xf0] sm:$0xf] %v10814
    %10943 = vst [vmem:[#allocation6 + $0xf4] sm:$0xf] %v10815
    %10944 = vst [vmem:[#allocation6 + $0xf8] sm:$0xf] %v10816
    %10945 = vst [vmem:[#allocation6 + $0xfc] sm:$0xf] %v10817
    // Predicated region
    $region26: #{tpu_custom_call.1} parent=1 // pred_check
      _
    $region27: #{tpu_custom_call.1} parent=1 // pred_check_branch
      %10947 = sbr.rel (0) target = $region29
    $region28: #{tpu_custom_call.1} parent=1 // pred_region
      %s10949 = ssub.s32 4096, 4096
      %10950 = vsyncadd [#allocation5], %s10949
      %s10951 = sshll.u32 [#allocation6], 4
      %s10952 = int_to_ptr.vmem [resolvable:$true] %s10951
      %10957 = dma.vmem_to_hbm [thread:$0]  %s10952, 4096, %s5, [#allocation5], 64, 64, 4
    $region29: #{tpu_custom_call.1} parent=1 // pred_fallthru
      _
    // Predicated region
    $region30: #{tpu_custom_call.1} parent=1 // pred_check
      _
    $region31: #{tpu_custom_call.1} parent=1 // pred_check_branch
      %10959 = sbr.rel (0) target = $region33
    $region32: #{tpu_custom_call.1} parent=1 // pred_region
      %10960 = dma.done [#allocation5], 4096
    $region33: #{tpu_custom_call.1} parent=1 // pred_fallthru
      _
    %10961 = vsyncpa [#allocation4], 1
    %10962 = vsyncpa [#allocation5], 1

</llo_original>
